<compile_context>
chip_gen: v5e
topology: v5e:2x2
jax: 0.10.0
libtpu: 0.0.40
codegen_flags: <defaults>
</compile_context>

<pallas_src>
import functools

import jax
import jax.numpy as jnp
from jax import lax
from jax.experimental import pallas as pl
from jax.experimental.pallas import tpu as pltpu

Categories = ['alopodmo', 'ankush', 'ardhachandra', 'bhramar', 'chatur',
              'ghronik', 'hongshashyo', 'kangul', 'khotkamukh', 'kodombo',
              'kopitho', 'kortorimukho', 'krishnaxarmukh', 'mrigoshirsho',
              'mukul']

INPUT_DIM = 150 * 150 * 3          # 67500
NUM_CLASSES = len(Categories)      # 15


def _linear_partial_kernel(x_ref, w_ref, o_ref, *, n_k, n_k_total, tk, rem):
    """Accumulate one K tile of x @ W.T into this split's partial sum."""
    c = pl.program_id(0)           # K-split index ("parallel" -> megacore)
    k = pl.program_id(1)           # K-tile index within the split ("arbitrary")

    @pl.when(k == 0)
    def _():
        o_ref[...] = jnp.zeros(o_ref.shape, o_ref.dtype)

    def accum(xv, wv):
        # (B, tk) . (N, tk) contracting the lane axis of both -> (B, N).
        o_ref[...] += lax.dot_general(
            xv, wv, dimension_numbers=(((1,), (1,)), ((), ())),
            preferred_element_type=jnp.float32)

    if rem == 0:
        # K divides evenly into tiles: no masking anywhere.
        accum(x_ref[...], w_ref[...])
    else:
        tile_idx = c * n_k + k
        last = n_k_total - 1

        # Full tiles: plain MXU accumulate, no VPU mask work.
        @pl.when(tile_idx < last)
        def _():
            accum(x_ref[...], w_ref[...])

        # Globally-last (ragged) tile: mask the tail lanes of BOTH operands so
        # uninitialized VMEM padding (possible NaN bits) never enters the sum.
        @pl.when(tile_idx == last)
        def _():
            lane = lax.broadcasted_iota(jnp.int32, (1, tk), 1)
            valid = lane < rem
            accum(jnp.where(valid, x_ref[...], 0.0),
                  jnp.where(valid, w_ref[...], 0.0))


def svm_forward(x, weight, bias, *, tk=16896, k_splits=2):
    """x: (B, C, H, W); weight: (N, K); bias: (N,) -> (B, N) like nn.Linear."""
    B = x.shape[0]
    x2 = x.reshape(B, -1)                    # == torch x.view(B, -1); no copy
    K = x2.shape[1]
    N, Kw = weight.shape
    assert Kw == K, (Kw, K)

    n_k_total = pl.cdiv(K, tk)               # K tiles over the real array
    if n_k_total % k_splits != 0:            # keep every tile index in range
        k_splits = 1
    n_k = n_k_total // k_splits              # K tiles handled per split
    rem = K % tk                             # ragged tail width (0 == none)

    kernel = functools.partial(_linear_partial_kernel,
                               n_k=n_k, n_k_total=n_k_total, tk=tk, rem=rem)

    partials = pl.pallas_call(
        kernel,
        out_shape=jax.ShapeDtypeStruct((k_splits, B, N), jnp.float32),
        grid_spec=pltpu.PrefetchScalarGridSpec(
            num_scalar_prefetch=0,
            grid=(k_splits, n_k),
            in_specs=[
                # x tile: (B, tk) with K on the lane axis.
                pl.BlockSpec((B, tk), lambda c, k: (0, c * n_k + k)),
                # weight tile in its natural (N, K) layout: (N, tk), K on lanes.
                pl.BlockSpec((N, tk), lambda c, k: (0, c * n_k + k)),
            ],
            # One partial-sum block per K split; resident across the k axis.
            out_specs=pl.BlockSpec((None, B, N), lambda c, k: (c, 0, 0)),
        ),
        compiler_params=pltpu.CompilerParams(
            dimension_semantics=("parallel", "arbitrary")),
    )(x2, weight)

    # Tiny (k_splits, B, N) combine + bias; fuses into one trivial XLA op.
    return jnp.sum(partials, axis=0) + bias


if __name__ == "__main__":
    key = jax.random.PRNGKey(0)
    kx, kw, kb = jax.random.split(key, 3)

    # Deterministic parameters mimicking nn.Linear's U(-1/sqrt(K), 1/sqrt(K)).
    bound = 1.0 / jnp.sqrt(jnp.float32(INPUT_DIM))
    weight = jax.random.uniform(kw, (NUM_CLASSES, INPUT_DIM),
                                dtype=jnp.float32, minval=-bound, maxval=bound)
    bias = jax.random.uniform(kb, (NUM_CLASSES,),
                              dtype=jnp.float32, minval=-bound, maxval=bound)

    # Small batch of NCHW images consistent with input_dim = 3*150*150.
    x = jax.random.normal(kx, (2, 3, 150, 150), dtype=jnp.float32)

    fwd = jax.jit(svm_forward)
    out = jax.block_until_ready(fwd(x, weight, bias))

    # Reference check in plain JAX (same math as torch nn.Linear).
    ref = x.reshape(x.shape[0], -1) @ weight.T + bias
    assert out.shape == (2, NUM_CLASSES)
    assert jnp.allclose(out, ref, atol=1e-3, rtol=1e-3)

    print("KERNEL_OK")
</pallas_src>

<mosaic_0001>
module attributes {stable_mosaic.version = 11 : i64} {
  func.func @_linear_partial_kernel(%arg0: i32, %arg1: i32, %arg2: memref<2x16896xf32, #tpu.memory_space<vmem>>, %arg3: memref<15x16896xf32, #tpu.memory_space<vmem>>, %arg4: memref<1x2x15xf32, #tpu.memory_space<vmem>>) attributes {dimension_semantics = [#tpu.dimension_semantics<parallel>, #tpu.dimension_semantics<arbitrary>], iteration_bounds = array<i64: 2, 2>, scalar_prefetch = 0 : i64, scratch_operands = 0 : i64, tpu.core_type = #tpu.core_type<tc>, window_params = [{transform_indices = @transform_0, window_bounds = array<i64: 2, 16896>}, {transform_indices = @transform_1, window_bounds = array<i64: 15, 16896>}, {transform_indices = @transform_2, window_bounds = array<i64: 1, 2, 15>}]} {
    %c0_i32 = arith.constant 0 : i32
    %0 = arith.cmpi eq, %arg1, %c0_i32 : i32
    %1 = arith.extui %0 : i1 to i32
    %c0_i32_0 = arith.constant 0 : i32
    %2 = arith.cmpi ne, %1, %c0_i32_0 : i32
    scf.if %2 {
      %cst = arith.constant 0.000000e+00 : f32
      %11 = vector.broadcast %cst : f32 to vector<2x15xf32>
      %c0 = arith.constant 0 : index
      %c0_4 = arith.constant 0 : index
      %c0_5 = arith.constant 0 : index
      %12 = vector.load %arg4[%c0, %c0_4, %c0_5] : memref<1x2x15xf32, #tpu.memory_space<vmem>>, vector<1x2x15xf32>
      %13 = vector.shape_cast %12 : vector<1x2x15xf32> to vector<2x15xf32>
      %14 = vector.shape_cast %11 : vector<2x15xf32> to vector<1x2x15xf32>
      tpu.vector_store %arg4[%c0, %c0_4, %c0_5], %14 {strides = array<i32>} : memref<1x2x15xf32, #tpu.memory_space<vmem>>, vector<1x2x15xf32>,
    } else {
    }
    %c2_i32 = arith.constant 2 : i32
    %3 = arith.muli %arg0, %c2_i32 : i32
    %4 = arith.addi %3, %arg1 : i32
    %c3_i32 = arith.constant 3 : i32
    %5 = arith.cmpi slt, %4, %c3_i32 : i32
    %6 = arith.extui %5 : i1 to i32
    %c0_i32_1 = arith.constant 0 : i32
    %7 = arith.cmpi ne, %6, %c0_i32_1 : i32
    scf.if %7 {
      %c0 = arith.constant 0 : index
      %c0_4 = arith.constant 0 : index
      %11 = vector.load %arg2[%c0, %c0_4] : memref<2x16896xf32, #tpu.memory_space<vmem>>, vector<2x16896xf32>
      %c0_5 = arith.constant 0 : index
      %c0_6 = arith.constant 0 : index
      %12 = vector.load %arg3[%c0_5, %c0_6] : memref<15x16896xf32, #tpu.memory_space<vmem>>, vector<15x16896xf32>
      %c0_7 = arith.constant 0 : index
      %c0_8 = arith.constant 0 : index
      %c0_9 = arith.constant 0 : index
      %13 = vector.load %arg4[%c0_7, %c0_8, %c0_9] : memref<1x2x15xf32, #tpu.memory_space<vmem>>, vector<1x2x15xf32>
      %14 = vector.shape_cast %13 : vector<1x2x15xf32> to vector<2x15xf32>
      %cst = arith.constant dense<0.000000e+00> : vector<2x15xf32>
      %15 = tpu.matmul %11, %12, %cst {dimension_numbers = #tpu.dot_dimension_numbers<[1], [1], [0], [0], [0, 0, 1, 0], [], []>} : vector<2x16896xf32>, vector<15x16896xf32>, vector<2x15xf32> -> vector<2x15xf32>
      %16 = arith.addf %14, %15 : vector<2x15xf32>
      %c0_10 = arith.constant 0 : index
      %c0_11 = arith.constant 0 : index
      %c0_12 = arith.constant 0 : index
      %17 = vector.load %arg4[%c0_10, %c0_11, %c0_12] : memref<1x2x15xf32, #tpu.memory_space<vmem>>, vector<1x2x15xf32>
      %18 = vector.shape_cast %17 : vector<1x2x15xf32> to vector<2x15xf32>
      %19 = vector.shape_cast %16 : vector<2x15xf32> to vector<1x2x15xf32>
      tpu.vector_store %arg4[%c0_10, %c0_11, %c0_12], %19 {strides = array<i32>} : memref<1x2x15xf32, #tpu.memory_space<vmem>>, vector<1x2x15xf32>,
    } else {
    }
    %c3_i32_2 = arith.constant 3 : i32
    %8 = arith.cmpi eq, %4, %c3_i32_2 : i32
    %9 = arith.extui %8 : i1 to i32
    %c0_i32_3 = arith.constant 0 : i32
    %10 = arith.cmpi ne, %9, %c0_i32_3 : i32
    scf.if %10 {
      %11 = tpu.iota {dimensions = array<i32: 1>} : vector<1x16896xi32>
      %c16812_i32 = arith.constant 16812 : i32
      %12 = vector.broadcast %c16812_i32 : i32 to vector<1x16896xi32>
      %13 = arith.cmpi slt, %11, %12 : vector<1x16896xi32>
      %c0 = arith.constant 0 : index
      %c0_4 = arith.constant 0 : index
      %14 = vector.load %arg2[%c0, %c0_4] : memref<2x16896xf32, #tpu.memory_space<vmem>>, vector<2x16896xf32>
      %cst = arith.constant 0.000000e+00 : f32
      %15 = vector.shape_cast %13 : vector<1x16896xi1> to vector<1x16896xi1>
      %16 = vector.broadcast %15 : vector<1x16896xi1> to vector<2x16896xi1>
      %17 = vector.broadcast %cst : f32 to vector<2x16896xf32>
      %18 = arith.select %16, %14, %17 : vector<2x16896xi1>, vector<2x16896xf32>
      %c0_5 = arith.constant 0 : index
      %c0_6 = arith.constant 0 : index
      %19 = vector.load %arg3[%c0_5, %c0_6] : memref<15x16896xf32, #tpu.memory_space<vmem>>, vector<15x16896xf32>
      %cst_7 = arith.constant 0.000000e+00 : f32
      %20 = vector.shape_cast %13 : vector<1x16896xi1> to vector<1x16896xi1>
      %21 = vector.broadcast %20 : vector<1x16896xi1> to vector<15x16896xi1>
      %22 = vector.broadcast %cst_7 : f32 to vector<15x16896xf32>
      %23 = arith.select %21, %19, %22 : vector<15x16896xi1>, vector<15x16896xf32>
      %c0_8 = arith.constant 0 : index
      %c0_9 = arith.constant 0 : index
      %c0_10 = arith.constant 0 : index
      %24 = vector.load %arg4[%c0_8, %c0_9, %c0_10] : memref<1x2x15xf32, #tpu.memory_space<vmem>>, vector<1x2x15xf32>
      %25 = vector.shape_cast %24 : vector<1x2x15xf32> to vector<2x15xf32>
      %cst_11 = arith.constant dense<0.000000e+00> : vector<2x15xf32>
      %26 = tpu.matmul %18, %23, %cst_11 {dimension_numbers = #tpu.dot_dimension_numbers<[1], [1], [0], [0], [0, 0, 1, 0], [], []>} : vector<2x16896xf32>, vector<15x16896xf32>, vector<2x15xf32> -> vector<2x15xf32>
      %27 = arith.addf %25, %26 : vector<2x15xf32>
      %c0_12 = arith.constant 0 : index
      %c0_13 = arith.constant 0 : index
      %c0_14 = arith.constant 0 : index
      %28 = vector.load %arg4[%c0_12, %c0_13, %c0_14] : memref<1x2x15xf32, #tpu.memory_space<vmem>>, vector<1x2x15xf32>
      %29 = vector.shape_cast %28 : vector<1x2x15xf32> to vector<2x15xf32>
      %30 = vector.shape_cast %27 : vector<2x15xf32> to vector<1x2x15xf32>
      tpu.vector_store %arg4[%c0_12, %c0_13, %c0_14], %30 {strides = array<i32>} : memref<1x2x15xf32, #tpu.memory_space<vmem>>, vector<1x2x15xf32>,
    } else {
    }
    return
  }
  func.func @transform_0(%arg0: i32, %arg1: i32) -> (i32, i32) {
    %c2_i32 = arith.constant 2 : i32
    %0 = arith.muli %arg0, %c2_i32 : i32
    %1 = arith.addi %0, %arg1 : i32
    %c0_i32 = arith.constant 0 : i32
    %c0_i32_0 = arith.constant 0 : i32
    return %c0_i32, %1 : i32, i32
  }
  func.func @transform_1(%arg0: i32, %arg1: i32) -> (i32, i32) {
    %c2_i32 = arith.constant 2 : i32
    %0 = arith.muli %arg0, %c2_i32 : i32
    %1 = arith.addi %0, %arg1 : i32
    %c0_i32 = arith.constant 0 : i32
    %c0_i32_0 = arith.constant 0 : i32
    return %c0_i32, %1 : i32, i32
  }
  func.func @transform_2(%arg0: i32, %arg1: i32) -> (i32, i32, i32) {
    %c0_i32 = arith.constant 0 : i32
    %c0_i32_0 = arith.constant 0 : i32
    %c0_i32_1 = arith.constant 0 : i32
    return %arg0, %c0_i32, %c0_i32_0 : i32, i32, i32
  }
}

</mosaic_0001>

<llo_original>
// kernel: svm_forward.1
$region0: #{svm_forward.1}
  #allocation0 [shape = 'u32[]', space=smem, size = 0x4, offset = 0x4, fixed_abs, tag = 'smem constant byte address 0x4 - core index']
  #allocation1 [shape = 'u32[72,128]{1,0:T(1,128)}', space=vmem, size = 0x9000, scoped, tag = 'internal scratch']
  %s0 = inlined_call_operand.vmem [shape: f32[2,67500], index: 0, kind: input, shape index: {}]
  %s1 = inlined_call_operand.hbm [shape: f32[15,67500], index: 1, kind: input, shape index: {}]
  %s2 = inlined_call_operand.vmem [shape: f32[2,2,15], index: 2, kind: output, shape index: {}]
  %s3 = sld [smem:[#allocation0]]
  $region57: #{svm_forward.1} parent=0
    _
  %s5 = ssub.s32 1, %s3
  %s6 = scalar_select 0, %s5, %s3
  $region1: #{svm_forward.1} parent=0
    #allocation2 [shape = 'u8[2162688]{0}', space=vmem, size = 0x210000, scoped, tag = 'input window, operand 1']
    #allocation3 [shape = 's32[2]{0}', space=sflag, size = 0x8, scoped, tag = 'scoped memory for svm_forward.1']
    %7 = vsyncpa [#allocation3], 0
    %s8 = scalar_lea.sflag [#allocation3], 1
    %9 = vsyncpa %s8, 0
    loop: start=0, step=1, limit=6
    $region2: #{svm_forward.1} parent=1 // loop_pre_header
      _
    $region3: #{svm_forward.1} parent=1 // loop_header
      %s11 = sphi 0, %s15
      %p12 = scmp.ge.s32.totalorder %s11, 6
      %s18 = sphi 0, %s30
      %s19 = sphi 0, %s26
      %s20 = sphi 0, %s18
      %s21 = sphi 0, %s19
      %s22 = sphi 0, %s20
      %s23 = sphi 0, %s21
      %s37 = sphi 0, %s39
      %s40 = sphi 0, %s37
      %s41 = sphi 0, %s40
      %s57 = sphi 0, %s41
      %s67 = sphi 0, %s69
      %s70 = sphi 0, %s67
      %s71 = sphi 0, %s70
      %s87 = sphi 0, %s71
      %s93 = sphi 0, %s95
      %s96 = sphi 0, %s93
      %s97 = sphi 0, %s96
      %s113 = sphi 0, %s97
    $region4: #{svm_forward.1} parent=1 // loop_header_branch
      %14 = sbr.rel (%p12) target = $region8
    $region5: #{svm_forward.1} parent=1 // loop_body
      %s16 = ssub.s32 %s11, 1
      %s17 = ssub.s32 %s11, 2
      %s24 = sadd.s32 1, %s19
      %p25 = scmp.ge.s32.totalorder %s24, 2
      %s26 = scalar_select %p25, 0, %s24
      %s27 = sadd.s32 1, %s18
      %s28 = scalar_select %p25, %s27, %s18
      %p29 = scmp.ge.s32.totalorder %s28, 2
      %s30 = scalar_select %p29, 0, %s28
      %s31 = smul.u32 %s18, 2
      %s32 = sadd.s32 %s31, %s19
      %s33 = smul.u32 %s30, 2
      %s34 = sadd.s32 %s33, %s26
      %s35 = ssub.s32 %s32, %s34
      %p36 = scmp.eq.s32.totalorder %s35, 0
      %s38 = sadd.s32 %s37, 1
      %s39 = scalar_select %p36, %s37, %s38
      %p42 = pneg %p36
      %p43 = scmp.eq.s32.totalorder %s11, 3
      %p44 = por %p42, %p43
      %p45 = scmp.ne.s32.totalorder %s37, %s40
      %p46 = scmp.eq.s32.totalorder %s11, 0
      %p47 = por %p45, %p46
      %p48 = scmp.ne.s32.totalorder %s37, %s40
      %p49 = scmp.eq.s32.totalorder %s16, 3
      %p50 = por %p48, %p49
      %p51 = scmp.ne.s32.totalorder %s40, %s41
      %p52 = scmp.eq.s32.totalorder %s16, 0
      %p53 = por %p51, %p52
      %p54 = scmp.ne.s32.totalorder %s40, %s41
      %p55 = scmp.eq.s32.totalorder %s17, 3
      %p56 = por %p54, %p55
      %p58 = scmp.ne.s32.totalorder %s41, %s57
      %p59 = scmp.eq.s32.totalorder %s17, 0
      %p60 = por %p58, %p59
      %s61 = smul.u32 %s18, 2
      %s62 = sadd.s32 %s61, %s19
      %s63 = smul.u32 %s30, 2
      %s64 = sadd.s32 %s63, %s26
      %s65 = ssub.s32 %s62, %s64
      %p66 = scmp.eq.s32.totalorder %s65, 0
      %s68 = sadd.s32 %s67, 1
      %s69 = scalar_select %p66, %s67, %s68
      %p72 = pneg %p66
      %p73 = scmp.eq.s32.totalorder %s11, 3
      %p74 = por %p72, %p73
      %p75 = scmp.ne.s32.totalorder %s67, %s70
      %p76 = scmp.eq.s32.totalorder %s11, 0
      %p77 = por %p75, %p76
      %p78 = scmp.ne.s32.totalorder %s67, %s70
      %p79 = scmp.eq.s32.totalorder %s16, 3
      %p80 = por %p78, %p79
      %p81 = scmp.ne.s32.totalorder %s70, %s71
      %p82 = scmp.eq.s32.totalorder %s16, 0
      %p83 = por %p81, %p82
      %p84 = scmp.ne.s32.totalorder %s70, %s71
      %p85 = scmp.eq.s32.totalorder %s17, 3
      %p86 = por %p84, %p85
      %p88 = scmp.ne.s32.totalorder %s71, %s87
      %p89 = scmp.eq.s32.totalorder %s17, 0
      %p90 = por %p88, %p89
      %s91 = ssub.s32 %s18, %s30
      %p92 = scmp.eq.s32.totalorder %s91, 0
      %s94 = sadd.s32 %s93, 1
      %s95 = scalar_select %p92, %s93, %s94
      %p98 = pneg %p92
      %p99 = scmp.eq.s32.totalorder %s11, 3
      %p100 = por %p98, %p99
      %p101 = scmp.ne.s32.totalorder %s93, %s96
      %p102 = scmp.eq.s32.totalorder %s11, 0
      %p103 = por %p101, %p102
      %p104 = scmp.ne.s32.totalorder %s93, %s96
      %p105 = scmp.eq.s32.totalorder %s16, 3
      %p106 = por %p104, %p105
      %p107 = scmp.ne.s32.totalorder %s96, %s97
      %p108 = scmp.eq.s32.totalorder %s16, 0
      %p109 = por %p107, %p108
      %p110 = scmp.ne.s32.totalorder %s96, %s97
      %p111 = scmp.eq.s32.totalorder %s17, 3
      %p112 = por %p110, %p111
      %p114 = scmp.ne.s32.totalorder %s97, %s113
      %p115 = scmp.eq.s32.totalorder %s17, 0
      %p116 = por %p114, %p115
      %p117 = scmp.le.s32.totalorder 1, %s11
      %p118 = scmp.lt.s32.totalorder %s11, 5
      %p119 = pnand %p117, %p118
      %p120 = pneg %p119
      // Predicated region
      $region9: #{svm_forward.1} parent=5 // pred_check
        _
      $region10: #{svm_forward.1} parent=5 // pred_check_branch
        %122 = sbr.rel (%p119) target = $region12
      $region11: #{svm_forward.1} parent=5 // pred_region
        %s123 = ssub.s32 %s11, 1
      $region12: #{svm_forward.1} parent=5 // pred_fallthru
        _
      %p124 = scmp.lt.s32.totalorder %s11, 4
      // Predicated region
      $region13: #{svm_forward.1} parent=5 // pred_check
        %p125 = pneg %p124
      $region14: #{svm_forward.1} parent=5 // pred_check_branch
        %127 = sbr.rel (%p125) target = $region16
      $region15: #{svm_forward.1} parent=5 // pred_region
        // Predicated region
        $region17: #{svm_forward.1} parent=15 // pred_check
          %p128 = pneg %p47
        $region18: #{svm_forward.1} parent=15 // pred_check_branch
          %130 = sbr.rel (%p128) target = $region20
        $region19: #{svm_forward.1} parent=15 // pred_region
          %s131 = smul.u32 %s18, 2
          %s132 = sadd.s32 %s131, %s19
          %s133 = smul.u32 132, %s132
          %p134 = scmp.lt.s32.totalorder %s133, 527
          %s135 = scalar_select %p134, %s133, 527
          %s136 = smul.addr %s135, 2
          %s137 = scalar_lea.vmem %s0, %s136
          %s138 = smul.u32 %s18, 2
          %s139 = sadd.s32 %s138, %s19
          %s140 = smul.u32 132, %s139
        $region20: #{svm_forward.1} parent=15 // pred_fallthru
          _
        // Predicated region
        $region21: #{svm_forward.1} parent=15 // pred_check
          %p141 = pneg %p77
        $region22: #{svm_forward.1} parent=15 // pred_check_branch
          %143 = sbr.rel (%p141) target = $region24
        $region23: #{svm_forward.1} parent=15 // pred_region
          %s144 = sand.u32 %s67, 1
          %s145 = scalar_lea.sflag [#allocation3], %s144
          %s146 = sand.u32 %s67, 1
          %s147 = smul.addr %s146, 2112
          %s148 = scalar_lea.vmem [#allocation2], %s147
          %s149 = smul.u32 %s18, 2
          %s150 = sadd.s32 %s149, %s19
          %s151 = smul.u32 132, %s150
          %153 = vsyncadd %s145, 0
          %s154 = smul.addr %s151, 8
          %s155 = scalar_lea.hbm %s1, %s154
          %s156 = sshll.u32 %s155, 4
          %s157 = int_to_ptr.hbm [resolvable:$true] %s156
          %s158 = sshll.u32 %s148, 4
          %s159 = int_to_ptr.vmem [resolvable:$true] %s158
          %164 = dma.hbm_to_vmem [thread:$0]  %s157, 33792, %s159, %s145, 67584, 16896, 1056
        $region24: #{svm_forward.1} parent=15 // pred_fallthru
          _
      $region16: #{svm_forward.1} parent=5 // pred_fallthru
        _
      %p165 = scmp.le.s32.totalorder 1, %s11
      %p166 = scmp.lt.s32.totalorder %s11, 5
      %p167 = pnand %p165, %p166
      %p168 = pneg %p167
      // Predicated region
      $region25: #{svm_forward.1} parent=5 // pred_check
        _
      $region26: #{svm_forward.1} parent=5 // pred_check_branch
        %170 = sbr.rel (%p167) target = $region28
      $region27: #{svm_forward.1} parent=5 // pred_region
        %s171 = ssub.s32 %s11, 1
        %s172 = sand.u32 %s70, 1
        %s173 = scalar_lea.sflag [#allocation3], %s172
        %s174 = sand.u32 %s70, 1
        %s175 = smul.addr %s174, 2112
        %s176 = scalar_lea.vmem [#allocation2], %s175
        // Predicated region
        $region29: #{svm_forward.1} parent=27 // pred_check
          %p177 = pneg %p83
        $region30: #{svm_forward.1} parent=27 // pred_check_branch
          %179 = sbr.rel (%p177) target = $region32
        $region31: #{svm_forward.1} parent=27 // pred_region
          %181 = dma.done %s173, 33792
        $region32: #{svm_forward.1} parent=27 // pred_fallthru
          _
        %s182 = smul.u32 %s20, 2
        %s183 = sadd.s32 %s182, %s21
        %s184 = smul.u32 132, %s183
        %p185 = scmp.lt.s32.totalorder %s184, 527
        %s186 = scalar_select %p185, %s184, 527
        %s187 = smul.addr %s186, 2
        %s188 = scalar_lea.vmem %s0, %s187
        %p189 = pneg %p53
        %p190 = pneg %p50
        %s191 = sand.u32 %s70, 1
        %s192 = scalar_lea.sflag [#allocation3], %s191
        %s193 = sand.u32 %s70, 1
        %s194 = smul.addr %s193, 2112
        %s195 = scalar_lea.vmem [#allocation2], %s194
        %p196 = pneg %p83
        %p197 = pneg %p80
        %p198 = pneg %p109
        %p199 = pneg %p106
        %p200 = scmp.lt.s32.totalorder %s20, 1
        %s201 = scalar_select %p200, %s20, 1
        %s202 = smul.addr %s201, 2
        %s203 = scalar_lea.vmem %s2, %s202
        %s204 = smul.u32 %s20, 2
        %s205 = sadd.s32 %s204, %s21
        %s206 = smul.u32 132, %s205
        %p207 = scmp.lt.s32.totalorder %s206, 527
        %s208 = scalar_select %p207, %s206, 527
        %s209 = smul.addr %s208, 2
        %s210 = scalar_lea.vmem %s0, %s209
        %s211 = smul.u32 %s20, 2
        %s212 = sadd.s32 %s211, %s21
        %s213 = smul.u32 132, %s212
        %s214 = smul.u32 %s20, 2
        %s215 = sadd.s32 %s214, %s21
        %s216 = smul.u32 132, %s215
        %p217 = scmp.lt.s32.totalorder %s20, 1
        %s218 = scalar_select %p217, %s20, 1
        %s219 = smul.addr %s218, 2
        %s220 = scalar_lea.vmem %s2, %s219
        %p221 = scmp.eq.s32.totalorder %s21, 0
        // Predicated region
        $region33: #{svm_forward.1} parent=27 // pred_check
          %p222 = pneg %p221
        $region34: #{svm_forward.1} parent=27 // pred_check_branch
          %224 = sbr.rel (%p222) target = $region36
        $region35: #{svm_forward.1} parent=27 // pred_region
          %vm225 = vcmask 115712
          %226 = vst.msk [vmem:[%s220] sm:$0x3] %vm225, 0.0
        $region36: #{svm_forward.1} parent=27 // pred_fallthru
          _
        %s227 = smul.u32 %s20, 2
        %s228 = sadd.s32 %s227, %s21
        %p229 = scmp.lt.s32.totalorder %s228, 3
        // Predicated region
        $region37: #{svm_forward.1} parent=27 // pred_check
          %p230 = pneg %p229
        $region38: #{svm_forward.1} parent=27 // pred_check_branch
          %232 = sbr.rel (%p230) target = $region40
        $region39: #{svm_forward.1} parent=27 // pred_region
          %v233 = vld [vmem:[%s210] sm:$0xff]
          %v234 = vld [vmem:[%s210 + $0x8] sm:$0xff]
          %v235 = vld [vmem:[%s210 + $0x10] sm:$0xff]
          %v236 = vld [vmem:[%s210 + $0x18] sm:$0xff]
          %v237 = vld [vmem:[%s210 + $0x20] sm:$0xff]
          %v238 = vld [vmem:[%s210 + $0x28] sm:$0xff]
          %v239 = vld [vmem:[%s210 + $0x30] sm:$0xff]
          %v240 = vld [vmem:[%s210 + $0x38] sm:$0xff]
          %v241 = vld [vmem:[%s210 + $0x40] sm:$0xff]
          %v242 = vld [vmem:[%s210 + $0x48] sm:$0xff]
          %v243 = vld [vmem:[%s210 + $0x50] sm:$0xff]
          %v244 = vld [vmem:[%s210 + $0x58] sm:$0xff]
          %v245 = vld [vmem:[%s210 + $0x60] sm:$0xff]
          %v246 = vld [vmem:[%s210 + $0x68] sm:$0xff]
          %v247 = vld [vmem:[%s210 + $0x70] sm:$0xff]
          %v248 = vld [vmem:[%s210 + $0x78] sm:$0xff]
          %v249 = vld [vmem:[%s210 + $0x80] sm:$0xff]
          %v250 = vld [vmem:[%s210 + $0x88] sm:$0xff]
          %v251 = vld [vmem:[%s210 + $0x90] sm:$0xff]
          %v252 = vld [vmem:[%s210 + $0x98] sm:$0xff]
          %v253 = vld [vmem:[%s210 + $0xa0] sm:$0xff]
          %v254 = vld [vmem:[%s210 + $0xa8] sm:$0xff]
          %v255 = vld [vmem:[%s210 + $0xb0] sm:$0xff]
          %v256 = vld [vmem:[%s210 + $0xb8] sm:$0xff]
          %v257 = vld [vmem:[%s210 + $0xc0] sm:$0xff]
          %v258 = vld [vmem:[%s210 + $0xc8] sm:$0xff]
          %v259 = vld [vmem:[%s210 + $0xd0] sm:$0xff]
          %v260 = vld [vmem:[%s210 + $0xd8] sm:$0xff]
          %v261 = vld [vmem:[%s210 + $0xe0] sm:$0xff]
          %v262 = vld [vmem:[%s210 + $0xe8] sm:$0xff]
          %v263 = vld [vmem:[%s210 + $0xf0] sm:$0xff]
          %v264 = vld [vmem:[%s210 + $0xf8] sm:$0xff]
          %v265 = vld [vmem:[%s210 + $0x100] sm:$0xff]
          %v266 = vld [vmem:[%s176] sm:$0xff]
          %v267 = vld [vmem:[%s176 + $0x8] sm:$0xff]
          %v268 = vld [vmem:[%s176 + $0x10] sm:$0xff]
          %v269 = vld [vmem:[%s176 + $0x18] sm:$0xff]
          %v270 = vld [vmem:[%s176 + $0x20] sm:$0xff]
          %v271 = vld [vmem:[%s176 + $0x28] sm:$0xff]
          %v272 = vld [vmem:[%s176 + $0x30] sm:$0xff]
          %v273 = vld [vmem:[%s176 + $0x38] sm:$0xff]
          %v274 = vld [vmem:[%s176 + $0x40] sm:$0xff]
          %v275 = vld [vmem:[%s176 + $0x48] sm:$0xff]
          %v276 = vld [vmem:[%s176 + $0x50] sm:$0xff]
          %v277 = vld [vmem:[%s176 + $0x58] sm:$0xff]
          %v278 = vld [vmem:[%s176 + $0x60] sm:$0xff]
          %v279 = vld [vmem:[%s176 + $0x68] sm:$0xff]
          %v280 = vld [vmem:[%s176 + $0x70] sm:$0xff]
          %v281 = vld [vmem:[%s176 + $0x78] sm:$0xff]
          %v282 = vld [vmem:[%s176 + $0x80] sm:$0xff]
          %v283 = vld [vmem:[%s176 + $0x88] sm:$0xff]
          %v284 = vld [vmem:[%s176 + $0x90] sm:$0xff]
          %v285 = vld [vmem:[%s176 + $0x98] sm:$0xff]
          %v286 = vld [vmem:[%s176 + $0xa0] sm:$0xff]
          %v287 = vld [vmem:[%s176 + $0xa8] sm:$0xff]
          %v288 = vld [vmem:[%s176 + $0xb0] sm:$0xff]
          %v289 = vld [vmem:[%s176 + $0xb8] sm:$0xff]
          %v290 = vld [vmem:[%s176 + $0xc0] sm:$0xff]
          %v291 = vld [vmem:[%s176 + $0xc8] sm:$0xff]
          %v292 = vld [vmem:[%s176 + $0xd0] sm:$0xff]
          %v293 = vld [vmem:[%s176 + $0xd8] sm:$0xff]
          %v294 = vld [vmem:[%s176 + $0xe0] sm:$0xff]
          %v295 = vld [vmem:[%s176 + $0xe8] sm:$0xff]
          %v296 = vld [vmem:[%s176 + $0xf0] sm:$0xff]
          %v297 = vld [vmem:[%s176 + $0xf8] sm:$0xff]
          %v298 = vld [vmem:[%s176 + $0x100] sm:$0xff]
          %v299 = vld [vmem:[%s176 + $0x108] sm:$0xff]
          %v300 = vld [vmem:[%s176 + $0x110] sm:$0xff]
          %v301 = vld [vmem:[%s176 + $0x118] sm:$0xff]
          %v302 = vld [vmem:[%s176 + $0x120] sm:$0xff]
          %v303 = vld [vmem:[%s176 + $0x128] sm:$0xff]
          %v304 = vld [vmem:[%s176 + $0x130] sm:$0xff]
          %v305 = vld [vmem:[%s176 + $0x138] sm:$0xff]
          %v306 = vld [vmem:[%s176 + $0x140] sm:$0xff]
          %v307 = vld [vmem:[%s176 + $0x148] sm:$0xff]
          %v308 = vld [vmem:[%s176 + $0x150] sm:$0xff]
          %v309 = vld [vmem:[%s176 + $0x158] sm:$0xff]
          %v310 = vld [vmem:[%s176 + $0x160] sm:$0xff]
          %v311 = vld [vmem:[%s176 + $0x168] sm:$0xff]
          %v312 = vld [vmem:[%s176 + $0x170] sm:$0xff]
          %v313 = vld [vmem:[%s176 + $0x178] sm:$0xff]
          %v314 = vld [vmem:[%s176 + $0x180] sm:$0xff]
          %v315 = vld [vmem:[%s176 + $0x188] sm:$0xff]
          %v316 = vld [vmem:[%s176 + $0x190] sm:$0xff]
          %v317 = vld [vmem:[%s176 + $0x198] sm:$0xff]
          %v318 = vld [vmem:[%s176 + $0x1a0] sm:$0xff]
          %v319 = vld [vmem:[%s176 + $0x1a8] sm:$0xff]
          %v320 = vld [vmem:[%s176 + $0x1b0] sm:$0xff]
          %v321 = vld [vmem:[%s176 + $0x1b8] sm:$0xff]
          %v322 = vld [vmem:[%s176 + $0x1c0] sm:$0xff]
          %v323 = vld [vmem:[%s176 + $0x1c8] sm:$0xff]
          %v324 = vld [vmem:[%s176 + $0x1d0] sm:$0xff]
          %v325 = vld [vmem:[%s176 + $0x1d8] sm:$0xff]
          %v326 = vld [vmem:[%s176 + $0x1e0] sm:$0xff]
          %v327 = vld [vmem:[%s176 + $0x1e8] sm:$0xff]
          %v328 = vld [vmem:[%s176 + $0x1f0] sm:$0xff]
          %v329 = vld [vmem:[%s176 + $0x1f8] sm:$0xff]
          %v330 = vld [vmem:[%s176 + $0x200] sm:$0xff]
          %v331 = vld [vmem:[%s176 + $0x208] sm:$0xff]
          %v332 = vld [vmem:[%s176 + $0x210] sm:$0xff]
          %v333 = vld [vmem:[%s176 + $0x218] sm:$0xff]
          %v334 = vld [vmem:[%s176 + $0x220] sm:$0xff]
          %v335 = vld [vmem:[%s176 + $0x228] sm:$0xff]
          %v336 = vld [vmem:[%s176 + $0x230] sm:$0xff]
          %v337 = vld [vmem:[%s176 + $0x238] sm:$0xff]
          %v338 = vld [vmem:[%s176 + $0x240] sm:$0xff]
          %v339 = vld [vmem:[%s176 + $0x248] sm:$0xff]
          %v340 = vld [vmem:[%s176 + $0x250] sm:$0xff]
          %v341 = vld [vmem:[%s176 + $0x258] sm:$0xff]
          %v342 = vld [vmem:[%s176 + $0x260] sm:$0xff]
          %v343 = vld [vmem:[%s176 + $0x268] sm:$0xff]
          %v344 = vld [vmem:[%s176 + $0x270] sm:$0xff]
          %v345 = vld [vmem:[%s176 + $0x278] sm:$0xff]
          %v346 = vld [vmem:[%s176 + $0x280] sm:$0xff]
          %v347 = vld [vmem:[%s176 + $0x288] sm:$0xff]
          %v348 = vld [vmem:[%s176 + $0x290] sm:$0xff]
          %v349 = vld [vmem:[%s176 + $0x298] sm:$0xff]
          %v350 = vld [vmem:[%s176 + $0x2a0] sm:$0xff]
          %v351 = vld [vmem:[%s176 + $0x2a8] sm:$0xff]
          %v352 = vld [vmem:[%s176 + $0x2b0] sm:$0xff]
          %v353 = vld [vmem:[%s176 + $0x2b8] sm:$0xff]
          %v354 = vld [vmem:[%s176 + $0x2c0] sm:$0xff]
          %v355 = vld [vmem:[%s176 + $0x2c8] sm:$0xff]
          %v356 = vld [vmem:[%s176 + $0x2d0] sm:$0xff]
          %v357 = vld [vmem:[%s176 + $0x2d8] sm:$0xff]
          %v358 = vld [vmem:[%s176 + $0x2e0] sm:$0xff]
          %v359 = vld [vmem:[%s176 + $0x2e8] sm:$0xff]
          %v360 = vld [vmem:[%s176 + $0x2f0] sm:$0xff]
          %v361 = vld [vmem:[%s176 + $0x2f8] sm:$0xff]
          %v362 = vld [vmem:[%s176 + $0x300] sm:$0xff]
          %v363 = vld [vmem:[%s176 + $0x308] sm:$0xff]
          %v364 = vld [vmem:[%s176 + $0x310] sm:$0xff]
          %v365 = vld [vmem:[%s176 + $0x318] sm:$0xff]
          %v366 = vld [vmem:[%s176 + $0x320] sm:$0xff]
          %v367 = vld [vmem:[%s176 + $0x328] sm:$0xff]
          %v368 = vld [vmem:[%s176 + $0x330] sm:$0xff]
          %v369 = vld [vmem:[%s176 + $0x338] sm:$0xff]
          %v370 = vld [vmem:[%s176 + $0x340] sm:$0xff]
          %v371 = vld [vmem:[%s176 + $0x348] sm:$0xff]
          %v372 = vld [vmem:[%s176 + $0x350] sm:$0xff]
          %v373 = vld [vmem:[%s176 + $0x358] sm:$0xff]
          %v374 = vld [vmem:[%s176 + $0x360] sm:$0xff]
          %v375 = vld [vmem:[%s176 + $0x368] sm:$0xff]
          %v376 = vld [vmem:[%s176 + $0x370] sm:$0xff]
          %v377 = vld [vmem:[%s176 + $0x378] sm:$0xff]
          %v378 = vld [vmem:[%s176 + $0x380] sm:$0xff]
          %v379 = vld [vmem:[%s176 + $0x388] sm:$0xff]
          %v380 = vld [vmem:[%s176 + $0x390] sm:$0xff]
          %v381 = vld [vmem:[%s176 + $0x398] sm:$0xff]
          %v382 = vld [vmem:[%s176 + $0x3a0] sm:$0xff]
          %v383 = vld [vmem:[%s176 + $0x3a8] sm:$0xff]
          %v384 = vld [vmem:[%s176 + $0x3b0] sm:$0xff]
          %v385 = vld [vmem:[%s176 + $0x3b8] sm:$0xff]
          %v386 = vld [vmem:[%s176 + $0x3c0] sm:$0xff]
          %v387 = vld [vmem:[%s176 + $0x3c8] sm:$0xff]
          %v388 = vld [vmem:[%s176 + $0x3d0] sm:$0xff]
          %v389 = vld [vmem:[%s176 + $0x3d8] sm:$0xff]
          %v390 = vld [vmem:[%s176 + $0x3e0] sm:$0xff]
          %v391 = vld [vmem:[%s176 + $0x3e8] sm:$0xff]
          %v392 = vld [vmem:[%s176 + $0x3f0] sm:$0xff]
          %v393 = vld [vmem:[%s176 + $0x3f8] sm:$0xff]
          %v394 = vld [vmem:[%s176 + $0x400] sm:$0xff]
          %v395 = vld [vmem:[%s176 + $0x408] sm:$0xff]
          %v396 = vld [vmem:[%s176 + $0x410] sm:$0xff]
          %v397 = vld [vmem:[%s176 + $0x418] sm:$0xff]
          %v398 = vld [vmem:[%s176 + $0x420] sm:$0x7f]
          %v399 = vld [vmem:[%s176 + $0x428] sm:$0x7f]
          %v400 = vld [vmem:[%s176 + $0x430] sm:$0x7f]
          %v401 = vld [vmem:[%s176 + $0x438] sm:$0x7f]
          %v402 = vld [vmem:[%s176 + $0x440] sm:$0x7f]
          %v403 = vld [vmem:[%s176 + $0x448] sm:$0x7f]
          %v404 = vld [vmem:[%s176 + $0x450] sm:$0x7f]
          %v405 = vld [vmem:[%s176 + $0x458] sm:$0x7f]
          %v406 = vld [vmem:[%s176 + $0x460] sm:$0x7f]
          %v407 = vld [vmem:[%s176 + $0x468] sm:$0x7f]
          %v408 = vld [vmem:[%s176 + $0x470] sm:$0x7f]
          %v409 = vld [vmem:[%s176 + $0x478] sm:$0x7f]
          %v410 = vld [vmem:[%s176 + $0x480] sm:$0x7f]
          %v411 = vld [vmem:[%s176 + $0x488] sm:$0x7f]
          %v412 = vld [vmem:[%s176 + $0x490] sm:$0x7f]
          %v413 = vld [vmem:[%s176 + $0x498] sm:$0x7f]
          %v414 = vld [vmem:[%s176 + $0x4a0] sm:$0x7f]
          %v415 = vld [vmem:[%s176 + $0x4a8] sm:$0x7f]
          %v416 = vld [vmem:[%s176 + $0x4b0] sm:$0x7f]
          %v417 = vld [vmem:[%s176 + $0x4b8] sm:$0x7f]
          %v418 = vld [vmem:[%s176 + $0x4c0] sm:$0x7f]
          %v419 = vld [vmem:[%s176 + $0x4c8] sm:$0x7f]
          %v420 = vld [vmem:[%s176 + $0x4d0] sm:$0x7f]
          %v421 = vld [vmem:[%s176 + $0x4d8] sm:$0x7f]
          %v422 = vld [vmem:[%s176 + $0x4e0] sm:$0x7f]
          %v423 = vld [vmem:[%s176 + $0x4e8] sm:$0x7f]
          %v424 = vld [vmem:[%s176 + $0x4f0] sm:$0x7f]
          %v425 = vld [vmem:[%s176 + $0x4f8] sm:$0x7f]
          %v426 = vld [vmem:[%s176 + $0x500] sm:$0x7f]
          %v427 = vld [vmem:[%s176 + $0x508] sm:$0x7f]
          %v428 = vld [vmem:[%s176 + $0x510] sm:$0x7f]
          %v429 = vld [vmem:[%s176 + $0x518] sm:$0x7f]
          %v430 = vld [vmem:[%s176 + $0x520] sm:$0x7f]
          %v431 = vld [vmem:[%s176 + $0x528] sm:$0x7f]
          %v432 = vld [vmem:[%s176 + $0x530] sm:$0x7f]
          %v433 = vld [vmem:[%s176 + $0x538] sm:$0x7f]
          %v434 = vld [vmem:[%s176 + $0x540] sm:$0x7f]
          %v435 = vld [vmem:[%s176 + $0x548] sm:$0x7f]
          %v436 = vld [vmem:[%s176 + $0x550] sm:$0x7f]
          %v437 = vld [vmem:[%s176 + $0x558] sm:$0x7f]
          %v438 = vld [vmem:[%s176 + $0x560] sm:$0x7f]
          %v439 = vld [vmem:[%s176 + $0x568] sm:$0x7f]
          %v440 = vld [vmem:[%s176 + $0x570] sm:$0x7f]
          %v441 = vld [vmem:[%s176 + $0x578] sm:$0x7f]
          %v442 = vld [vmem:[%s176 + $0x580] sm:$0x7f]
          %v443 = vld [vmem:[%s176 + $0x588] sm:$0x7f]
          %v444 = vld [vmem:[%s176 + $0x590] sm:$0x7f]
          %v445 = vld [vmem:[%s176 + $0x598] sm:$0x7f]
          %v446 = vld [vmem:[%s176 + $0x5a0] sm:$0x7f]
          %v447 = vld [vmem:[%s176 + $0x5a8] sm:$0x7f]
          %v448 = vld [vmem:[%s176 + $0x5b0] sm:$0x7f]
          %v449 = vld [vmem:[%s176 + $0x5b8] sm:$0x7f]
          %v450 = vld [vmem:[%s176 + $0x5c0] sm:$0x7f]
          %v451 = vld [vmem:[%s176 + $0x5c8] sm:$0x7f]
          %v452 = vld [vmem:[%s176 + $0x5d0] sm:$0x7f]
          %v453 = vld [vmem:[%s176 + $0x5d8] sm:$0x7f]
          %v454 = vld [vmem:[%s176 + $0x5e0] sm:$0x7f]
          %v455 = vld [vmem:[%s176 + $0x5e8] sm:$0x7f]
          %v456 = vld [vmem:[%s176 + $0x5f0] sm:$0x7f]
          %v457 = vld [vmem:[%s176 + $0x5f8] sm:$0x7f]
          %v458 = vld [vmem:[%s176 + $0x600] sm:$0x7f]
          %v459 = vld [vmem:[%s176 + $0x608] sm:$0x7f]
          %v460 = vld [vmem:[%s176 + $0x610] sm:$0x7f]
          %v461 = vld [vmem:[%s176 + $0x618] sm:$0x7f]
          %v462 = vld [vmem:[%s176 + $0x620] sm:$0x7f]
          %v463 = vld [vmem:[%s176 + $0x628] sm:$0x7f]
          %v464 = vld [vmem:[%s176 + $0x630] sm:$0x7f]
          %v465 = vld [vmem:[%s176 + $0x638] sm:$0x7f]
          %v466 = vld [vmem:[%s176 + $0x640] sm:$0x7f]
          %v467 = vld [vmem:[%s176 + $0x648] sm:$0x7f]
          %v468 = vld [vmem:[%s176 + $0x650] sm:$0x7f]
          %v469 = vld [vmem:[%s176 + $0x658] sm:$0x7f]
          %v470 = vld [vmem:[%s176 + $0x660] sm:$0x7f]
          %v471 = vld [vmem:[%s176 + $0x668] sm:$0x7f]
          %v472 = vld [vmem:[%s176 + $0x670] sm:$0x7f]
          %v473 = vld [vmem:[%s176 + $0x678] sm:$0x7f]
          %v474 = vld [vmem:[%s176 + $0x680] sm:$0x7f]
          %v475 = vld [vmem:[%s176 + $0x688] sm:$0x7f]
          %v476 = vld [vmem:[%s176 + $0x690] sm:$0x7f]
          %v477 = vld [vmem:[%s176 + $0x698] sm:$0x7f]
          %v478 = vld [vmem:[%s176 + $0x6a0] sm:$0x7f]
          %v479 = vld [vmem:[%s176 + $0x6a8] sm:$0x7f]
          %v480 = vld [vmem:[%s176 + $0x6b0] sm:$0x7f]
          %v481 = vld [vmem:[%s176 + $0x6b8] sm:$0x7f]
          %v482 = vld [vmem:[%s176 + $0x6c0] sm:$0x7f]
          %v483 = vld [vmem:[%s176 + $0x6c8] sm:$0x7f]
          %v484 = vld [vmem:[%s176 + $0x6d0] sm:$0x7f]
          %v485 = vld [vmem:[%s176 + $0x6d8] sm:$0x7f]
          %v486 = vld [vmem:[%s176 + $0x6e0] sm:$0x7f]
          %v487 = vld [vmem:[%s176 + $0x6e8] sm:$0x7f]
          %v488 = vld [vmem:[%s176 + $0x6f0] sm:$0x7f]
          %v489 = vld [vmem:[%s176 + $0x6f8] sm:$0x7f]
          %v490 = vld [vmem:[%s176 + $0x700] sm:$0x7f]
          %v491 = vld [vmem:[%s176 + $0x708] sm:$0x7f]
          %v492 = vld [vmem:[%s176 + $0x710] sm:$0x7f]
          %v493 = vld [vmem:[%s176 + $0x718] sm:$0x7f]
          %v494 = vld [vmem:[%s176 + $0x720] sm:$0x7f]
          %v495 = vld [vmem:[%s176 + $0x728] sm:$0x7f]
          %v496 = vld [vmem:[%s176 + $0x730] sm:$0x7f]
          %v497 = vld [vmem:[%s176 + $0x738] sm:$0x7f]
          %v498 = vld [vmem:[%s176 + $0x740] sm:$0x7f]
          %v499 = vld [vmem:[%s176 + $0x748] sm:$0x7f]
          %v500 = vld [vmem:[%s176 + $0x750] sm:$0x7f]
          %v501 = vld [vmem:[%s176 + $0x758] sm:$0x7f]
          %v502 = vld [vmem:[%s176 + $0x760] sm:$0x7f]
          %v503 = vld [vmem:[%s176 + $0x768] sm:$0x7f]
          %v504 = vld [vmem:[%s176 + $0x770] sm:$0x7f]
          %v505 = vld [vmem:[%s176 + $0x778] sm:$0x7f]
          %v506 = vld [vmem:[%s176 + $0x780] sm:$0x7f]
          %v507 = vld [vmem:[%s176 + $0x788] sm:$0x7f]
          %v508 = vld [vmem:[%s176 + $0x790] sm:$0x7f]
          %v509 = vld [vmem:[%s176 + $0x798] sm:$0x7f]
          %v510 = vld [vmem:[%s176 + $0x7a0] sm:$0x7f]
          %v511 = vld [vmem:[%s176 + $0x7a8] sm:$0x7f]
          %v512 = vld [vmem:[%s176 + $0x7b0] sm:$0x7f]
          %v513 = vld [vmem:[%s176 + $0x7b8] sm:$0x7f]
          %v514 = vld [vmem:[%s176 + $0x7c0] sm:$0x7f]
          %v515 = vld [vmem:[%s176 + $0x7c8] sm:$0x7f]
          %v516 = vld [vmem:[%s176 + $0x7d0] sm:$0x7f]
          %v517 = vld [vmem:[%s176 + $0x7d8] sm:$0x7f]
          %v518 = vld [vmem:[%s176 + $0x7e0] sm:$0x7f]
          %v519 = vld [vmem:[%s176 + $0x7e8] sm:$0x7f]
          %v520 = vld [vmem:[%s176 + $0x7f0] sm:$0x7f]
          %v521 = vld [vmem:[%s176 + $0x7f8] sm:$0x7f]
          %v522 = vld [vmem:[%s176 + $0x800] sm:$0x7f]
          %v523 = vld [vmem:[%s176 + $0x808] sm:$0x7f]
          %v524 = vld [vmem:[%s176 + $0x810] sm:$0x7f]
          %v525 = vld [vmem:[%s176 + $0x818] sm:$0x7f]
          %v526 = vld [vmem:[%s176 + $0x820] sm:$0x7f]
          %v527 = vld [vmem:[%s176 + $0x828] sm:$0x7f]
          %v528 = vld [vmem:[%s176 + $0x830] sm:$0x7f]
          %v529 = vld [vmem:[%s176 + $0x838] sm:$0x7f]
          %v530 = vld [vmem:[%s220] sm:$0x3]
          %564 = vst [vmem:[#allocation1] ss:$4 sm:$0xff] %v233
          %s565 = scalar_lea.vmem [#allocation1], 32
          %566 = vst [vmem:[%s565] ss:$4 sm:$0xff] %v234
          %v567 = vld.sshfl [vmem:[#allocation1] sm:$0xff pattern:$0x73625140]
          %v568 = vld.sshfl [vmem:[#allocation1 + $0x8] sm:$0xff pattern:$0x73625140]
          %v569 = vld.sshfl [vmem:[#allocation1 + $0x10] sm:$0xff pattern:$0x73625140]
          %v570 = vld.sshfl [vmem:[#allocation1 + $0x18] sm:$0xff pattern:$0x73625140]
          %v571 = vld.sshfl [vmem:[#allocation1 + $0x20] sm:$0xff pattern:$0x73625140]
          %v572 = vld.sshfl [vmem:[#allocation1 + $0x28] sm:$0xff pattern:$0x73625140]
          %v573 = vld.sshfl [vmem:[#allocation1 + $0x30] sm:$0xff pattern:$0x73625140]
          %v574 = vld.sshfl [vmem:[#allocation1 + $0x38] sm:$0xff pattern:$0x73625140]
          %575 = vst [vmem:[#allocation1] ss:$4 sm:$0xff] %v235
          %576 = vst [vmem:[%s565] ss:$4 sm:$0xff] %v236
          %v577 = vld.sshfl [vmem:[#allocation1] sm:$0xff pattern:$0x73625140]
          %v578 = vld.sshfl [vmem:[#allocation1 + $0x8] sm:$0xff pattern:$0x73625140]
          %v579 = vld.sshfl [vmem:[#allocation1 + $0x10] sm:$0xff pattern:$0x73625140]
          %v580 = vld.sshfl [vmem:[#allocation1 + $0x18] sm:$0xff pattern:$0x73625140]
          %v581 = vld.sshfl [vmem:[#allocation1 + $0x20] sm:$0xff pattern:$0x73625140]
          %v582 = vld.sshfl [vmem:[#allocation1 + $0x28] sm:$0xff pattern:$0x73625140]
          %v583 = vld.sshfl [vmem:[#allocation1 + $0x30] sm:$0xff pattern:$0x73625140]
          %v584 = vld.sshfl [vmem:[#allocation1 + $0x38] sm:$0xff pattern:$0x73625140]
          %585 = vst [vmem:[#allocation1] ss:$4 sm:$0xff] %v237
          %586 = vst [vmem:[%s565] ss:$4 sm:$0xff] %v238
          %v587 = vld.sshfl [vmem:[#allocation1] sm:$0xff pattern:$0x73625140]
          %v588 = vld.sshfl [vmem:[#allocation1 + $0x8] sm:$0xff pattern:$0x73625140]
          %v589 = vld.sshfl [vmem:[#allocation1 + $0x10] sm:$0xff pattern:$0x73625140]
          %v590 = vld.sshfl [vmem:[#allocation1 + $0x18] sm:$0xff pattern:$0x73625140]
          %v591 = vld.sshfl [vmem:[#allocation1 + $0x20] sm:$0xff pattern:$0x73625140]
          %v592 = vld.sshfl [vmem:[#allocation1 + $0x28] sm:$0xff pattern:$0x73625140]
          %v593 = vld.sshfl [vmem:[#allocation1 + $0x30] sm:$0xff pattern:$0x73625140]
          %v594 = vld.sshfl [vmem:[#allocation1 + $0x38] sm:$0xff pattern:$0x73625140]
          %595 = vst [vmem:[#allocation1] ss:$4 sm:$0xff] %v239
          %596 = vst [vmem:[%s565] ss:$4 sm:$0xff] %v240
          %v597 = vld.sshfl [vmem:[#allocation1] sm:$0xff pattern:$0x73625140]
          %v598 = vld.sshfl [vmem:[#allocation1 + $0x8] sm:$0xff pattern:$0x73625140]
          %v599 = vld.sshfl [vmem:[#allocation1 + $0x10] sm:$0xff pattern:$0x73625140]
          %v600 = vld.sshfl [vmem:[#allocation1 + $0x18] sm:$0xff pattern:$0x73625140]
          %v601 = vld.sshfl [vmem:[#allocation1 + $0x20] sm:$0xff pattern:$0x73625140]
          %v602 = vld.sshfl [vmem:[#allocation1 + $0x28] sm:$0xff pattern:$0x73625140]
          %v603 = vld.sshfl [vmem:[#allocation1 + $0x30] sm:$0xff pattern:$0x73625140]
          %v604 = vld.sshfl [vmem:[#allocation1 + $0x38] sm:$0xff pattern:$0x73625140]
          %605 = vst [vmem:[#allocation1] ss:$4 sm:$0xff] %v241
          %606 = vst [vmem:[%s565] ss:$4 sm:$0xff] %v242
          %v607 = vld.sshfl [vmem:[#allocation1] sm:$0xff pattern:$0x73625140]
          %v608 = vld.sshfl [vmem:[#allocation1 + $0x8] sm:$0xff pattern:$0x73625140]
          %v609 = vld.sshfl [vmem:[#allocation1 + $0x10] sm:$0xff pattern:$0x73625140]
          %v610 = vld.sshfl [vmem:[#allocation1 + $0x18] sm:$0xff pattern:$0x73625140]
          %v611 = vld.sshfl [vmem:[#allocation1 + $0x20] sm:$0xff pattern:$0x73625140]
          %v612 = vld.sshfl [vmem:[#allocation1 + $0x28] sm:$0xff pattern:$0x73625140]
          %v613 = vld.sshfl [vmem:[#allocation1 + $0x30] sm:$0xff pattern:$0x73625140]
          %v614 = vld.sshfl [vmem:[#allocation1 + $0x38] sm:$0xff pattern:$0x73625140]
          %615 = vst [vmem:[#allocation1] ss:$4 sm:$0xff] %v243
          %616 = vst [vmem:[%s565] ss:$4 sm:$0xff] %v244
          %v617 = vld.sshfl [vmem:[#allocation1] sm:$0xff pattern:$0x73625140]
          %v618 = vld.sshfl [vmem:[#allocation1 + $0x8] sm:$0xff pattern:$0x73625140]
          %v619 = vld.sshfl [vmem:[#allocation1 + $0x10] sm:$0xff pattern:$0x73625140]
          %v620 = vld.sshfl [vmem:[#allocation1 + $0x18] sm:$0xff pattern:$0x73625140]
          %v621 = vld.sshfl [vmem:[#allocation1 + $0x20] sm:$0xff pattern:$0x73625140]
          %v622 = vld.sshfl [vmem:[#allocation1 + $0x28] sm:$0xff pattern:$0x73625140]
          %v623 = vld.sshfl [vmem:[#allocation1 + $0x30] sm:$0xff pattern:$0x73625140]
          %v624 = vld.sshfl [vmem:[#allocation1 + $0x38] sm:$0xff pattern:$0x73625140]
          %625 = vst [vmem:[#allocation1] ss:$4 sm:$0xff] %v245
          %626 = vst [vmem:[%s565] ss:$4 sm:$0xff] %v246
          %v627 = vld.sshfl [vmem:[#allocation1] sm:$0xff pattern:$0x73625140]
          %v628 = vld.sshfl [vmem:[#allocation1 + $0x8] sm:$0xff pattern:$0x73625140]
          %v629 = vld.sshfl [vmem:[#allocation1 + $0x10] sm:$0xff pattern:$0x73625140]
          %v630 = vld.sshfl [vmem:[#allocation1 + $0x18] sm:$0xff pattern:$0x73625140]
          %v631 = vld.sshfl [vmem:[#allocation1 + $0x20] sm:$0xff pattern:$0x73625140]
          %v632 = vld.sshfl [vmem:[#allocation1 + $0x28] sm:$0xff pattern:$0x73625140]
          %v633 = vld.sshfl [vmem:[#allocation1 + $0x30] sm:$0xff pattern:$0x73625140]
          %v634 = vld.sshfl [vmem:[#allocation1 + $0x38] sm:$0xff pattern:$0x73625140]
          %635 = vst [vmem:[#allocation1] ss:$4 sm:$0xff] %v247
          %636 = vst [vmem:[%s565] ss:$4 sm:$0xff] %v248
          %v637 = vld.sshfl [vmem:[#allocation1] sm:$0xff pattern:$0x73625140]
          %v638 = vld.sshfl [vmem:[#allocation1 + $0x8] sm:$0xff pattern:$0x73625140]
          %v639 = vld.sshfl [vmem:[#allocation1 + $0x10] sm:$0xff pattern:$0x73625140]
          %v640 = vld.sshfl [vmem:[#allocation1 + $0x18] sm:$0xff pattern:$0x73625140]
          %v641 = vld.sshfl [vmem:[#allocation1 + $0x20] sm:$0xff pattern:$0x73625140]
          %v642 = vld.sshfl [vmem:[#allocation1 + $0x28] sm:$0xff pattern:$0x73625140]
          %v643 = vld.sshfl [vmem:[#allocation1 + $0x30] sm:$0xff pattern:$0x73625140]
          %v644 = vld.sshfl [vmem:[#allocation1 + $0x38] sm:$0xff pattern:$0x73625140]
          %645 = vst [vmem:[#allocation1] ss:$4 sm:$0xff] %v249
          %646 = vst [vmem:[%s565] ss:$4 sm:$0xff] %v250
          %v647 = vld.sshfl [vmem:[#allocation1] sm:$0xff pattern:$0x73625140]
          %v648 = vld.sshfl [vmem:[#allocation1 + $0x8] sm:$0xff pattern:$0x73625140]
          %v649 = vld.sshfl [vmem:[#allocation1 + $0x10] sm:$0xff pattern:$0x73625140]
          %v650 = vld.sshfl [vmem:[#allocation1 + $0x18] sm:$0xff pattern:$0x73625140]
          %v651 = vld.sshfl [vmem:[#allocation1 + $0x20] sm:$0xff pattern:$0x73625140]
          %v652 = vld.sshfl [vmem:[#allocation1 + $0x28] sm:$0xff pattern:$0x73625140]
          %v653 = vld.sshfl [vmem:[#allocation1 + $0x30] sm:$0xff pattern:$0x73625140]
          %v654 = vld.sshfl [vmem:[#allocation1 + $0x38] sm:$0xff pattern:$0x73625140]
          %655 = vst [vmem:[#allocation1] ss:$4 sm:$0xff] %v251
          %656 = vst [vmem:[%s565] ss:$4 sm:$0xff] %v252
          %v657 = vld.sshfl [vmem:[#allocation1] sm:$0xff pattern:$0x73625140]
          %v658 = vld.sshfl [vmem:[#allocation1 + $0x8] sm:$0xff pattern:$0x73625140]
          %v659 = vld.sshfl [vmem:[#allocation1 + $0x10] sm:$0xff pattern:$0x73625140]
          %v660 = vld.sshfl [vmem:[#allocation1 + $0x18] sm:$0xff pattern:$0x73625140]
          %v661 = vld.sshfl [vmem:[#allocation1 + $0x20] sm:$0xff pattern:$0x73625140]
          %v662 = vld.sshfl [vmem:[#allocation1 + $0x28] sm:$0xff pattern:$0x73625140]
          %v663 = vld.sshfl [vmem:[#allocation1 + $0x30] sm:$0xff pattern:$0x73625140]
          %v664 = vld.sshfl [vmem:[#allocation1 + $0x38] sm:$0xff pattern:$0x73625140]
          %665 = vst [vmem:[#allocation1] ss:$4 sm:$0xff] %v253
          %666 = vst [vmem:[%s565] ss:$4 sm:$0xff] %v254
          %v667 = vld.sshfl [vmem:[#allocation1] sm:$0xff pattern:$0x73625140]
          %v668 = vld.sshfl [vmem:[#allocation1 + $0x8] sm:$0xff pattern:$0x73625140]
          %v669 = vld.sshfl [vmem:[#allocation1 + $0x10] sm:$0xff pattern:$0x73625140]
          %v670 = vld.sshfl [vmem:[#allocation1 + $0x18] sm:$0xff pattern:$0x73625140]
          %v671 = vld.sshfl [vmem:[#allocation1 + $0x20] sm:$0xff pattern:$0x73625140]
          %v672 = vld.sshfl [vmem:[#allocation1 + $0x28] sm:$0xff pattern:$0x73625140]
          %v673 = vld.sshfl [vmem:[#allocation1 + $0x30] sm:$0xff pattern:$0x73625140]
          %v674 = vld.sshfl [vmem:[#allocation1 + $0x38] sm:$0xff pattern:$0x73625140]
          %675 = vst [vmem:[#allocation1] ss:$4 sm:$0xff] %v255
          %676 = vst [vmem:[%s565] ss:$4 sm:$0xff] %v256
          %v677 = vld.sshfl [vmem:[#allocation1] sm:$0xff pattern:$0x73625140]
          %v678 = vld.sshfl [vmem:[#allocation1 + $0x8] sm:$0xff pattern:$0x73625140]
          %v679 = vld.sshfl [vmem:[#allocation1 + $0x10] sm:$0xff pattern:$0x73625140]
          %v680 = vld.sshfl [vmem:[#allocation1 + $0x18] sm:$0xff pattern:$0x73625140]
          %v681 = vld.sshfl [vmem:[#allocation1 + $0x20] sm:$0xff pattern:$0x73625140]
          %v682 = vld.sshfl [vmem:[#allocation1 + $0x28] sm:$0xff pattern:$0x73625140]
          %v683 = vld.sshfl [vmem:[#allocation1 + $0x30] sm:$0xff pattern:$0x73625140]
          %v684 = vld.sshfl [vmem:[#allocation1 + $0x38] sm:$0xff pattern:$0x73625140]
          %685 = vst [vmem:[#allocation1] ss:$4 sm:$0xff] %v257
          %686 = vst [vmem:[%s565] ss:$4 sm:$0xff] %v258
          %v687 = vld.sshfl [vmem:[#allocation1] sm:$0xff pattern:$0x73625140]
          %v688 = vld.sshfl [vmem:[#allocation1 + $0x8] sm:$0xff pattern:$0x73625140]
          %v689 = vld.sshfl [vmem:[#allocation1 + $0x10] sm:$0xff pattern:$0x73625140]
          %v690 = vld.sshfl [vmem:[#allocation1 + $0x18] sm:$0xff pattern:$0x73625140]
          %v691 = vld.sshfl [vmem:[#allocation1 + $0x20] sm:$0xff pattern:$0x73625140]
          %v692 = vld.sshfl [vmem:[#allocation1 + $0x28] sm:$0xff pattern:$0x73625140]
          %v693 = vld.sshfl [vmem:[#allocation1 + $0x30] sm:$0xff pattern:$0x73625140]
          %v694 = vld.sshfl [vmem:[#allocation1 + $0x38] sm:$0xff pattern:$0x73625140]
          %695 = vst [vmem:[#allocation1] ss:$4 sm:$0xff] %v259
          %696 = vst [vmem:[%s565] ss:$4 sm:$0xff] %v260
          %v697 = vld.sshfl [vmem:[#allocation1] sm:$0xff pattern:$0x73625140]
          %v698 = vld.sshfl [vmem:[#allocation1 + $0x8] sm:$0xff pattern:$0x73625140]
          %v699 = vld.sshfl [vmem:[#allocation1 + $0x10] sm:$0xff pattern:$0x73625140]
          %v700 = vld.sshfl [vmem:[#allocation1 + $0x18] sm:$0xff pattern:$0x73625140]
          %v701 = vld.sshfl [vmem:[#allocation1 + $0x20] sm:$0xff pattern:$0x73625140]
          %v702 = vld.sshfl [vmem:[#allocation1 + $0x28] sm:$0xff pattern:$0x73625140]
          %v703 = vld.sshfl [vmem:[#allocation1 + $0x30] sm:$0xff pattern:$0x73625140]
          %v704 = vld.sshfl [vmem:[#allocation1 + $0x38] sm:$0xff pattern:$0x73625140]
          %705 = vst [vmem:[#allocation1] ss:$4 sm:$0xff] %v261
          %706 = vst [vmem:[%s565] ss:$4 sm:$0xff] %v262
          %v707 = vld.sshfl [vmem:[#allocation1] sm:$0xff pattern:$0x73625140]
          %v708 = vld.sshfl [vmem:[#allocation1 + $0x8] sm:$0xff pattern:$0x73625140]
          %v709 = vld.sshfl [vmem:[#allocation1 + $0x10] sm:$0xff pattern:$0x73625140]
          %v710 = vld.sshfl [vmem:[#allocation1 + $0x18] sm:$0xff pattern:$0x73625140]
          %v711 = vld.sshfl [vmem:[#allocation1 + $0x20] sm:$0xff pattern:$0x73625140]
          %v712 = vld.sshfl [vmem:[#allocation1 + $0x28] sm:$0xff pattern:$0x73625140]
          %v713 = vld.sshfl [vmem:[#allocation1 + $0x30] sm:$0xff pattern:$0x73625140]
          %v714 = vld.sshfl [vmem:[#allocation1 + $0x38] sm:$0xff pattern:$0x73625140]
          %715 = vst [vmem:[#allocation1] ss:$4 sm:$0xff] %v263
          %716 = vst [vmem:[%s565] ss:$4 sm:$0xff] %v264
          %v717 = vld.sshfl [vmem:[#allocation1] sm:$0xff pattern:$0x73625140]
          %v718 = vld.sshfl [vmem:[#allocation1 + $0x8] sm:$0xff pattern:$0x73625140]
          %v719 = vld.sshfl [vmem:[#allocation1 + $0x10] sm:$0xff pattern:$0x73625140]
          %v720 = vld.sshfl [vmem:[#allocation1 + $0x18] sm:$0xff pattern:$0x73625140]
          %v721 = vld.sshfl [vmem:[#allocation1 + $0x20] sm:$0xff pattern:$0x73625140]
          %v722 = vld.sshfl [vmem:[#allocation1 + $0x28] sm:$0xff pattern:$0x73625140]
          %v723 = vld.sshfl [vmem:[#allocation1 + $0x30] sm:$0xff pattern:$0x73625140]
          %v724 = vld.sshfl [vmem:[#allocation1 + $0x38] sm:$0xff pattern:$0x73625140]
          %725 = vst [vmem:[#allocation1] ss:$4 sm:$0xff] %v265
          %v726 = vld.sshfl [vmem:[#allocation1] sm:$0xff pattern:$0x73625140]
          %v727 = vld.sshfl [vmem:[#allocation1 + $0x8] sm:$0xff pattern:$0x73625140]
          %v728 = vld.sshfl [vmem:[#allocation1 + $0x10] sm:$0xff pattern:$0x73625140]
          %v729 = vld.sshfl [vmem:[#allocation1 + $0x18] sm:$0xff pattern:$0x73625140]
          %862 = vmatpush.xpose.msra.mxu0 0.0
          %863 = vmatpush.xpose.msra.mxu0 0.0
          %864 = vmatpush.xpose.msra.mxu0 0.0
          %865 = vmatpush.xpose.msra.mxu0 0.0
          %866 = vmatpush.xpose.msra.mxu0 0.0
          %867 = vmatpush.xpose.msra.mxu0 0.0
          %868 = vmatpush.xpose.msra.mxu0 0.0
          %869 = vmatpush.xpose.msra.mxu0 0.0
          %870 = vmatpush.xpose.msra.mxu0 0.0
          %871 = vmatpush.xpose.msra.mxu0 0.0
          %872 = vmatpush.xpose.msra.mxu0 0.0
          %873 = vmatpush.xpose.msra.mxu0 0.0
          %874 = vmatpush.xpose.msra.mxu0 0.0
          %875 = vmatpush.xpose.msra.mxu0 0.0
          %876 = vmatpush.xpose.msra.mxu0 %v398
          %877 = vmatpush.xpose.msra.mxu0 %v266
          %878 = vmatmul.f32.gmra.mxu0 %v567
          %v879 = vpop.f32.mrf.mxu0
          %v880 = vadd.f32 0.0, %v879
          %881 = vdwg.mxu0
          %882 = vmatpush.xpose.msra.mxu0 0.0
          %883 = vmatpush.xpose.msra.mxu0 0.0
          %884 = vmatpush.xpose.msra.mxu0 0.0
          %885 = vmatpush.xpose.msra.mxu0 0.0
          %886 = vmatpush.xpose.msra.mxu0 0.0
          %887 = vmatpush.xpose.msra.mxu0 0.0
          %888 = vmatpush.xpose.msra.mxu0 0.0
          %889 = vmatpush.xpose.msra.mxu0 0.0
          %890 = vmatpush.xpose.msra.mxu0 0.0
          %891 = vmatpush.xpose.msra.mxu0 0.0
          %892 = vmatpush.xpose.msra.mxu0 0.0
          %893 = vmatpush.xpose.msra.mxu0 0.0
          %894 = vmatpush.xpose.msra.mxu0 0.0
          %895 = vmatpush.xpose.msra.mxu0 0.0
          %896 = vmatpush.xpose.msra.mxu0 %v399
          %897 = vmatpush.xpose.msra.mxu0 %v267
          %898 = vmatmul.f32.gmra.mxu0 %v568
          %v899 = vpop.f32.mrf.mxu0
          %v900 = vadd.f32 %v880, %v899
          %901 = vdwg.mxu0
          %902 = vmatpush.xpose.msra.mxu0 0.0
          %903 = vmatpush.xpose.msra.mxu0 0.0
          %904 = vmatpush.xpose.msra.mxu0 0.0
          %905 = vmatpush.xpose.msra.mxu0 0.0
          %906 = vmatpush.xpose.msra.mxu0 0.0
          %907 = vmatpush.xpose.msra.mxu0 0.0
          %908 = vmatpush.xpose.msra.mxu0 0.0
          %909 = vmatpush.xpose.msra.mxu0 0.0
          %910 = vmatpush.xpose.msra.mxu0 0.0
          %911 = vmatpush.xpose.msra.mxu0 0.0
          %912 = vmatpush.xpose.msra.mxu0 0.0
          %913 = vmatpush.xpose.msra.mxu0 0.0
          %914 = vmatpush.xpose.msra.mxu0 0.0
          %915 = vmatpush.xpose.msra.mxu0 0.0
          %916 = vmatpush.xpose.msra.mxu0 %v400
          %917 = vmatpush.xpose.msra.mxu0 %v268
          %918 = vmatmul.f32.gmra.mxu0 %v569
          %v919 = vpop.f32.mrf.mxu0
          %v920 = vadd.f32 %v900, %v919
          %921 = vdwg.mxu0
          %922 = vmatpush.xpose.msra.mxu0 0.0
          %923 = vmatpush.xpose.msra.mxu0 0.0
          %924 = vmatpush.xpose.msra.mxu0 0.0
          %925 = vmatpush.xpose.msra.mxu0 0.0
          %926 = vmatpush.xpose.msra.mxu0 0.0
          %927 = vmatpush.xpose.msra.mxu0 0.0
          %928 = vmatpush.xpose.msra.mxu0 0.0
          %929 = vmatpush.xpose.msra.mxu0 0.0
          %930 = vmatpush.xpose.msra.mxu0 0.0
          %931 = vmatpush.xpose.msra.mxu0 0.0
          %932 = vmatpush.xpose.msra.mxu0 0.0
          %933 = vmatpush.xpose.msra.mxu0 0.0
          %934 = vmatpush.xpose.msra.mxu0 0.0
          %935 = vmatpush.xpose.msra.mxu0 0.0
          %936 = vmatpush.xpose.msra.mxu0 %v401
          %937 = vmatpush.xpose.msra.mxu0 %v269
          %938 = vmatmul.f32.gmra.mxu0 %v570
          %v939 = vpop.f32.mrf.mxu0
          %v940 = vadd.f32 %v920, %v939
          %941 = vdwg.mxu0
          %942 = vmatpush.xpose.msra.mxu0 0.0
          %943 = vmatpush.xpose.msra.mxu0 0.0
          %944 = vmatpush.xpose.msra.mxu0 0.0
          %945 = vmatpush.xpose.msra.mxu0 0.0
          %946 = vmatpush.xpose.msra.mxu0 0.0
          %947 = vmatpush.xpose.msra.mxu0 0.0
          %948 = vmatpush.xpose.msra.mxu0 0.0
          %949 = vmatpush.xpose.msra.mxu0 0.0
          %950 = vmatpush.xpose.msra.mxu0 0.0
          %951 = vmatpush.xpose.msra.mxu0 0.0
          %952 = vmatpush.xpose.msra.mxu0 0.0
          %953 = vmatpush.xpose.msra.mxu0 0.0
          %954 = vmatpush.xpose.msra.mxu0 0.0
          %955 = vmatpush.xpose.msra.mxu0 0.0
          %956 = vmatpush.xpose.msra.mxu0 %v402
          %957 = vmatpush.xpose.msra.mxu0 %v270
          %958 = vmatmul.f32.gmra.mxu0 %v571
          %v959 = vpop.f32.mrf.mxu0
          %v960 = vadd.f32 %v940, %v959
          %961 = vdwg.mxu0
          %962 = vmatpush.xpose.msra.mxu0 0.0
          %963 = vmatpush.xpose.msra.mxu0 0.0
          %964 = vmatpush.xpose.msra.mxu0 0.0
          %965 = vmatpush.xpose.msra.mxu0 0.0
          %966 = vmatpush.xpose.msra.mxu0 0.0
          %967 = vmatpush.xpose.msra.mxu0 0.0
          %968 = vmatpush.xpose.msra.mxu0 0.0
          %969 = vmatpush.xpose.msra.mxu0 0.0
          %970 = vmatpush.xpose.msra.mxu0 0.0
          %971 = vmatpush.xpose.msra.mxu0 0.0
          %972 = vmatpush.xpose.msra.mxu0 0.0
          %973 = vmatpush.xpose.msra.mxu0 0.0
          %974 = vmatpush.xpose.msra.mxu0 0.0
          %975 = vmatpush.xpose.msra.mxu0 0.0
          %976 = vmatpush.xpose.msra.mxu0 %v403
          %977 = vmatpush.xpose.msra.mxu0 %v271
          %978 = vmatmul.f32.gmra.mxu0 %v572
          %v979 = vpop.f32.mrf.mxu0
          %v980 = vadd.f32 %v960, %v979
          %981 = vdwg.mxu0
          %982 = vmatpush.xpose.msra.mxu0 0.0
          %983 = vmatpush.xpose.msra.mxu0 0.0
          %984 = vmatpush.xpose.msra.mxu0 0.0
          %985 = vmatpush.xpose.msra.mxu0 0.0
          %986 = vmatpush.xpose.msra.mxu0 0.0
          %987 = vmatpush.xpose.msra.mxu0 0.0
          %988 = vmatpush.xpose.msra.mxu0 0.0
          %989 = vmatpush.xpose.msra.mxu0 0.0
          %990 = vmatpush.xpose.msra.mxu0 0.0
          %991 = vmatpush.xpose.msra.mxu0 0.0
          %992 = vmatpush.xpose.msra.mxu0 0.0
          %993 = vmatpush.xpose.msra.mxu0 0.0
          %994 = vmatpush.xpose.msra.mxu0 0.0
          %995 = vmatpush.xpose.msra.mxu0 0.0
          %996 = vmatpush.xpose.msra.mxu0 %v404
          %997 = vmatpush.xpose.msra.mxu0 %v272
          %998 = vmatmul.f32.gmra.mxu0 %v573
          %v999 = vpop.f32.mrf.mxu0
          %v1000 = vadd.f32 %v980, %v999
          %1001 = vdwg.mxu0
          %1002 = vmatpush.xpose.msra.mxu0 0.0
          %1003 = vmatpush.xpose.msra.mxu0 0.0
          %1004 = vmatpush.xpose.msra.mxu0 0.0
          %1005 = vmatpush.xpose.msra.mxu0 0.0
          %1006 = vmatpush.xpose.msra.mxu0 0.0
          %1007 = vmatpush.xpose.msra.mxu0 0.0
          %1008 = vmatpush.xpose.msra.mxu0 0.0
          %1009 = vmatpush.xpose.msra.mxu0 0.0
          %1010 = vmatpush.xpose.msra.mxu0 0.0
          %1011 = vmatpush.xpose.msra.mxu0 0.0
          %1012 = vmatpush.xpose.msra.mxu0 0.0
          %1013 = vmatpush.xpose.msra.mxu0 0.0
          %1014 = vmatpush.xpose.msra.mxu0 0.0
          %1015 = vmatpush.xpose.msra.mxu0 0.0
          %1016 = vmatpush.xpose.msra.mxu0 %v405
          %1017 = vmatpush.xpose.msra.mxu0 %v273
          %1018 = vmatmul.f32.gmra.mxu0 %v574
          %v1019 = vpop.f32.mrf.mxu0
          %v1020 = vadd.f32 %v1000, %v1019
          %1021 = vdwg.mxu0
          %1022 = vmatpush.xpose.msra.mxu0 0.0
          %1023 = vmatpush.xpose.msra.mxu0 0.0
          %1024 = vmatpush.xpose.msra.mxu0 0.0
          %1025 = vmatpush.xpose.msra.mxu0 0.0
          %1026 = vmatpush.xpose.msra.mxu0 0.0
          %1027 = vmatpush.xpose.msra.mxu0 0.0
          %1028 = vmatpush.xpose.msra.mxu0 0.0
          %1029 = vmatpush.xpose.msra.mxu0 0.0
          %1030 = vmatpush.xpose.msra.mxu0 0.0
          %1031 = vmatpush.xpose.msra.mxu0 0.0
          %1032 = vmatpush.xpose.msra.mxu0 0.0
          %1033 = vmatpush.xpose.msra.mxu0 0.0
          %1034 = vmatpush.xpose.msra.mxu0 0.0
          %1035 = vmatpush.xpose.msra.mxu0 0.0
          %1036 = vmatpush.xpose.msra.mxu0 %v406
          %1037 = vmatpush.xpose.msra.mxu0 %v274
          %1038 = vmatmul.f32.gmra.mxu0 %v577
          %v1039 = vpop.f32.mrf.mxu0
          %v1040 = vadd.f32 %v1020, %v1039
          %1041 = vdwg.mxu0
          %1042 = vmatpush.xpose.msra.mxu0 0.0
          %1043 = vmatpush.xpose.msra.mxu0 0.0
          %1044 = vmatpush.xpose.msra.mxu0 0.0
          %1045 = vmatpush.xpose.msra.mxu0 0.0
          %1046 = vmatpush.xpose.msra.mxu0 0.0
          %1047 = vmatpush.xpose.msra.mxu0 0.0
          %1048 = vmatpush.xpose.msra.mxu0 0.0
          %1049 = vmatpush.xpose.msra.mxu0 0.0
          %1050 = vmatpush.xpose.msra.mxu0 0.0
          %1051 = vmatpush.xpose.msra.mxu0 0.0
          %1052 = vmatpush.xpose.msra.mxu0 0.0
          %1053 = vmatpush.xpose.msra.mxu0 0.0
          %1054 = vmatpush.xpose.msra.mxu0 0.0
          %1055 = vmatpush.xpose.msra.mxu0 0.0
          %1056 = vmatpush.xpose.msra.mxu0 %v407
          %1057 = vmatpush.xpose.msra.mxu0 %v275
          %1058 = vmatmul.f32.gmra.mxu0 %v578
          %v1059 = vpop.f32.mrf.mxu0
          %v1060 = vadd.f32 %v1040, %v1059
          %1061 = vdwg.mxu0
          %1062 = vmatpush.xpose.msra.mxu0 0.0
          %1063 = vmatpush.xpose.msra.mxu0 0.0
          %1064 = vmatpush.xpose.msra.mxu0 0.0
          %1065 = vmatpush.xpose.msra.mxu0 0.0
          %1066 = vmatpush.xpose.msra.mxu0 0.0
          %1067 = vmatpush.xpose.msra.mxu0 0.0
          %1068 = vmatpush.xpose.msra.mxu0 0.0
          %1069 = vmatpush.xpose.msra.mxu0 0.0
          %1070 = vmatpush.xpose.msra.mxu0 0.0
          %1071 = vmatpush.xpose.msra.mxu0 0.0
          %1072 = vmatpush.xpose.msra.mxu0 0.0
          %1073 = vmatpush.xpose.msra.mxu0 0.0
          %1074 = vmatpush.xpose.msra.mxu0 0.0
          %1075 = vmatpush.xpose.msra.mxu0 0.0
          %1076 = vmatpush.xpose.msra.mxu0 %v408
          %1077 = vmatpush.xpose.msra.mxu0 %v276
          %1078 = vmatmul.f32.gmra.mxu0 %v579
          %v1079 = vpop.f32.mrf.mxu0
          %v1080 = vadd.f32 %v1060, %v1079
          %1081 = vdwg.mxu0
          %1082 = vmatpush.xpose.msra.mxu0 0.0
          %1083 = vmatpush.xpose.msra.mxu0 0.0
          %1084 = vmatpush.xpose.msra.mxu0 0.0
          %1085 = vmatpush.xpose.msra.mxu0 0.0
          %1086 = vmatpush.xpose.msra.mxu0 0.0
          %1087 = vmatpush.xpose.msra.mxu0 0.0
          %1088 = vmatpush.xpose.msra.mxu0 0.0
          %1089 = vmatpush.xpose.msra.mxu0 0.0
          %1090 = vmatpush.xpose.msra.mxu0 0.0
          %1091 = vmatpush.xpose.msra.mxu0 0.0
          %1092 = vmatpush.xpose.msra.mxu0 0.0
          %1093 = vmatpush.xpose.msra.mxu0 0.0
          %1094 = vmatpush.xpose.msra.mxu0 0.0
          %1095 = vmatpush.xpose.msra.mxu0 0.0
          %1096 = vmatpush.xpose.msra.mxu0 %v409
          %1097 = vmatpush.xpose.msra.mxu0 %v277
          %1098 = vmatmul.f32.gmra.mxu0 %v580
          %v1099 = vpop.f32.mrf.mxu0
          %v1100 = vadd.f32 %v1080, %v1099
          %1101 = vdwg.mxu0
          %1102 = vmatpush.xpose.msra.mxu0 0.0
          %1103 = vmatpush.xpose.msra.mxu0 0.0
          %1104 = vmatpush.xpose.msra.mxu0 0.0
          %1105 = vmatpush.xpose.msra.mxu0 0.0
          %1106 = vmatpush.xpose.msra.mxu0 0.0
          %1107 = vmatpush.xpose.msra.mxu0 0.0
          %1108 = vmatpush.xpose.msra.mxu0 0.0
          %1109 = vmatpush.xpose.msra.mxu0 0.0
          %1110 = vmatpush.xpose.msra.mxu0 0.0
          %1111 = vmatpush.xpose.msra.mxu0 0.0
          %1112 = vmatpush.xpose.msra.mxu0 0.0
          %1113 = vmatpush.xpose.msra.mxu0 0.0
          %1114 = vmatpush.xpose.msra.mxu0 0.0
          %1115 = vmatpush.xpose.msra.mxu0 0.0
          %1116 = vmatpush.xpose.msra.mxu0 %v410
          %1117 = vmatpush.xpose.msra.mxu0 %v278
          %1118 = vmatmul.f32.gmra.mxu0 %v581
          %v1119 = vpop.f32.mrf.mxu0
          %v1120 = vadd.f32 %v1100, %v1119
          %1121 = vdwg.mxu0
          %1122 = vmatpush.xpose.msra.mxu0 0.0
          %1123 = vmatpush.xpose.msra.mxu0 0.0
          %1124 = vmatpush.xpose.msra.mxu0 0.0
          %1125 = vmatpush.xpose.msra.mxu0 0.0
          %1126 = vmatpush.xpose.msra.mxu0 0.0
          %1127 = vmatpush.xpose.msra.mxu0 0.0
          %1128 = vmatpush.xpose.msra.mxu0 0.0
          %1129 = vmatpush.xpose.msra.mxu0 0.0
          %1130 = vmatpush.xpose.msra.mxu0 0.0
          %1131 = vmatpush.xpose.msra.mxu0 0.0
          %1132 = vmatpush.xpose.msra.mxu0 0.0
          %1133 = vmatpush.xpose.msra.mxu0 0.0
          %1134 = vmatpush.xpose.msra.mxu0 0.0
          %1135 = vmatpush.xpose.msra.mxu0 0.0
          %1136 = vmatpush.xpose.msra.mxu0 %v411
          %1137 = vmatpush.xpose.msra.mxu0 %v279
          %1138 = vmatmul.f32.gmra.mxu0 %v582
          %v1139 = vpop.f32.mrf.mxu0
          %v1140 = vadd.f32 %v1120, %v1139
          %1141 = vdwg.mxu0
          %1142 = vmatpush.xpose.msra.mxu0 0.0
          %1143 = vmatpush.xpose.msra.mxu0 0.0
          %1144 = vmatpush.xpose.msra.mxu0 0.0
          %1145 = vmatpush.xpose.msra.mxu0 0.0
          %1146 = vmatpush.xpose.msra.mxu0 0.0
          %1147 = vmatpush.xpose.msra.mxu0 0.0
          %1148 = vmatpush.xpose.msra.mxu0 0.0
          %1149 = vmatpush.xpose.msra.mxu0 0.0
          %1150 = vmatpush.xpose.msra.mxu0 0.0
          %1151 = vmatpush.xpose.msra.mxu0 0.0
          %1152 = vmatpush.xpose.msra.mxu0 0.0
          %1153 = vmatpush.xpose.msra.mxu0 0.0
          %1154 = vmatpush.xpose.msra.mxu0 0.0
          %1155 = vmatpush.xpose.msra.mxu0 0.0
          %1156 = vmatpush.xpose.msra.mxu0 %v412
          %1157 = vmatpush.xpose.msra.mxu0 %v280
          %1158 = vmatmul.f32.gmra.mxu0 %v583
          %v1159 = vpop.f32.mrf.mxu0
          %v1160 = vadd.f32 %v1140, %v1159
          %1161 = vdwg.mxu0
          %1162 = vmatpush.xpose.msra.mxu0 0.0
          %1163 = vmatpush.xpose.msra.mxu0 0.0
          %1164 = vmatpush.xpose.msra.mxu0 0.0
          %1165 = vmatpush.xpose.msra.mxu0 0.0
          %1166 = vmatpush.xpose.msra.mxu0 0.0
          %1167 = vmatpush.xpose.msra.mxu0 0.0
          %1168 = vmatpush.xpose.msra.mxu0 0.0
          %1169 = vmatpush.xpose.msra.mxu0 0.0
          %1170 = vmatpush.xpose.msra.mxu0 0.0
          %1171 = vmatpush.xpose.msra.mxu0 0.0
          %1172 = vmatpush.xpose.msra.mxu0 0.0
          %1173 = vmatpush.xpose.msra.mxu0 0.0
          %1174 = vmatpush.xpose.msra.mxu0 0.0
          %1175 = vmatpush.xpose.msra.mxu0 0.0
          %1176 = vmatpush.xpose.msra.mxu0 %v413
          %1177 = vmatpush.xpose.msra.mxu0 %v281
          %1178 = vmatmul.f32.gmra.mxu0 %v584
          %v1179 = vpop.f32.mrf.mxu0
          %v1180 = vadd.f32 %v1160, %v1179
          %1181 = vdwg.mxu0
          %1182 = vmatpush.xpose.msra.mxu0 0.0
          %1183 = vmatpush.xpose.msra.mxu0 0.0
          %1184 = vmatpush.xpose.msra.mxu0 0.0
          %1185 = vmatpush.xpose.msra.mxu0 0.0
          %1186 = vmatpush.xpose.msra.mxu0 0.0
          %1187 = vmatpush.xpose.msra.mxu0 0.0
          %1188 = vmatpush.xpose.msra.mxu0 0.0
          %1189 = vmatpush.xpose.msra.mxu0 0.0
          %1190 = vmatpush.xpose.msra.mxu0 0.0
          %1191 = vmatpush.xpose.msra.mxu0 0.0
          %1192 = vmatpush.xpose.msra.mxu0 0.0
          %1193 = vmatpush.xpose.msra.mxu0 0.0
          %1194 = vmatpush.xpose.msra.mxu0 0.0
          %1195 = vmatpush.xpose.msra.mxu0 0.0
          %1196 = vmatpush.xpose.msra.mxu0 %v414
          %1197 = vmatpush.xpose.msra.mxu0 %v282
          %1198 = vmatmul.f32.gmra.mxu0 %v587
          %v1199 = vpop.f32.mrf.mxu0
          %v1200 = vadd.f32 %v1180, %v1199
          %1201 = vdwg.mxu0
          %1202 = vmatpush.xpose.msra.mxu0 0.0
          %1203 = vmatpush.xpose.msra.mxu0 0.0
          %1204 = vmatpush.xpose.msra.mxu0 0.0
          %1205 = vmatpush.xpose.msra.mxu0 0.0
          %1206 = vmatpush.xpose.msra.mxu0 0.0
          %1207 = vmatpush.xpose.msra.mxu0 0.0
          %1208 = vmatpush.xpose.msra.mxu0 0.0
          %1209 = vmatpush.xpose.msra.mxu0 0.0
          %1210 = vmatpush.xpose.msra.mxu0 0.0
          %1211 = vmatpush.xpose.msra.mxu0 0.0
          %1212 = vmatpush.xpose.msra.mxu0 0.0
          %1213 = vmatpush.xpose.msra.mxu0 0.0
          %1214 = vmatpush.xpose.msra.mxu0 0.0
          %1215 = vmatpush.xpose.msra.mxu0 0.0
          %1216 = vmatpush.xpose.msra.mxu0 %v415
          %1217 = vmatpush.xpose.msra.mxu0 %v283
          %1218 = vmatmul.f32.gmra.mxu0 %v588
          %v1219 = vpop.f32.mrf.mxu0
          %v1220 = vadd.f32 %v1200, %v1219
          %1221 = vdwg.mxu0
          %1222 = vmatpush.xpose.msra.mxu0 0.0
          %1223 = vmatpush.xpose.msra.mxu0 0.0
          %1224 = vmatpush.xpose.msra.mxu0 0.0
          %1225 = vmatpush.xpose.msra.mxu0 0.0
          %1226 = vmatpush.xpose.msra.mxu0 0.0
          %1227 = vmatpush.xpose.msra.mxu0 0.0
          %1228 = vmatpush.xpose.msra.mxu0 0.0
          %1229 = vmatpush.xpose.msra.mxu0 0.0
          %1230 = vmatpush.xpose.msra.mxu0 0.0
          %1231 = vmatpush.xpose.msra.mxu0 0.0
          %1232 = vmatpush.xpose.msra.mxu0 0.0
          %1233 = vmatpush.xpose.msra.mxu0 0.0
          %1234 = vmatpush.xpose.msra.mxu0 0.0
          %1235 = vmatpush.xpose.msra.mxu0 0.0
          %1236 = vmatpush.xpose.msra.mxu0 %v416
          %1237 = vmatpush.xpose.msra.mxu0 %v284
          %1238 = vmatmul.f32.gmra.mxu0 %v589
          %v1239 = vpop.f32.mrf.mxu0
          %v1240 = vadd.f32 %v1220, %v1239
          %1241 = vdwg.mxu0
          %1242 = vmatpush.xpose.msra.mxu0 0.0
          %1243 = vmatpush.xpose.msra.mxu0 0.0
          %1244 = vmatpush.xpose.msra.mxu0 0.0
          %1245 = vmatpush.xpose.msra.mxu0 0.0
          %1246 = vmatpush.xpose.msra.mxu0 0.0
          %1247 = vmatpush.xpose.msra.mxu0 0.0
          %1248 = vmatpush.xpose.msra.mxu0 0.0
          %1249 = vmatpush.xpose.msra.mxu0 0.0
          %1250 = vmatpush.xpose.msra.mxu0 0.0
          %1251 = vmatpush.xpose.msra.mxu0 0.0
          %1252 = vmatpush.xpose.msra.mxu0 0.0
          %1253 = vmatpush.xpose.msra.mxu0 0.0
          %1254 = vmatpush.xpose.msra.mxu0 0.0
          %1255 = vmatpush.xpose.msra.mxu0 0.0
          %1256 = vmatpush.xpose.msra.mxu0 %v417
          %1257 = vmatpush.xpose.msra.mxu0 %v285
          %1258 = vmatmul.f32.gmra.mxu0 %v590
          %v1259 = vpop.f32.mrf.mxu0
          %v1260 = vadd.f32 %v1240, %v1259
          %1261 = vdwg.mxu0
          %1262 = vmatpush.xpose.msra.mxu0 0.0
          %1263 = vmatpush.xpose.msra.mxu0 0.0
          %1264 = vmatpush.xpose.msra.mxu0 0.0
          %1265 = vmatpush.xpose.msra.mxu0 0.0
          %1266 = vmatpush.xpose.msra.mxu0 0.0
          %1267 = vmatpush.xpose.msra.mxu0 0.0
          %1268 = vmatpush.xpose.msra.mxu0 0.0
          %1269 = vmatpush.xpose.msra.mxu0 0.0
          %1270 = vmatpush.xpose.msra.mxu0 0.0
          %1271 = vmatpush.xpose.msra.mxu0 0.0
          %1272 = vmatpush.xpose.msra.mxu0 0.0
          %1273 = vmatpush.xpose.msra.mxu0 0.0
          %1274 = vmatpush.xpose.msra.mxu0 0.0
          %1275 = vmatpush.xpose.msra.mxu0 0.0
          %1276 = vmatpush.xpose.msra.mxu0 %v418
          %1277 = vmatpush.xpose.msra.mxu0 %v286
          %1278 = vmatmul.f32.gmra.mxu0 %v591
          %v1279 = vpop.f32.mrf.mxu0
          %v1280 = vadd.f32 %v1260, %v1279
          %1281 = vdwg.mxu0
          %1282 = vmatpush.xpose.msra.mxu0 0.0
          %1283 = vmatpush.xpose.msra.mxu0 0.0
          %1284 = vmatpush.xpose.msra.mxu0 0.0
          %1285 = vmatpush.xpose.msra.mxu0 0.0
          %1286 = vmatpush.xpose.msra.mxu0 0.0
          %1287 = vmatpush.xpose.msra.mxu0 0.0
          %1288 = vmatpush.xpose.msra.mxu0 0.0
          %1289 = vmatpush.xpose.msra.mxu0 0.0
          %1290 = vmatpush.xpose.msra.mxu0 0.0
          %1291 = vmatpush.xpose.msra.mxu0 0.0
          %1292 = vmatpush.xpose.msra.mxu0 0.0
          %1293 = vmatpush.xpose.msra.mxu0 0.0
          %1294 = vmatpush.xpose.msra.mxu0 0.0
          %1295 = vmatpush.xpose.msra.mxu0 0.0
          %1296 = vmatpush.xpose.msra.mxu0 %v419
          %1297 = vmatpush.xpose.msra.mxu0 %v287
          %1298 = vmatmul.f32.gmra.mxu0 %v592
          %v1299 = vpop.f32.mrf.mxu0
          %v1300 = vadd.f32 %v1280, %v1299
          %1301 = vdwg.mxu0
          %1302 = vmatpush.xpose.msra.mxu0 0.0
          %1303 = vmatpush.xpose.msra.mxu0 0.0
          %1304 = vmatpush.xpose.msra.mxu0 0.0
          %1305 = vmatpush.xpose.msra.mxu0 0.0
          %1306 = vmatpush.xpose.msra.mxu0 0.0
          %1307 = vmatpush.xpose.msra.mxu0 0.0
          %1308 = vmatpush.xpose.msra.mxu0 0.0
          %1309 = vmatpush.xpose.msra.mxu0 0.0
          %1310 = vmatpush.xpose.msra.mxu0 0.0
          %1311 = vmatpush.xpose.msra.mxu0 0.0
          %1312 = vmatpush.xpose.msra.mxu0 0.0
          %1313 = vmatpush.xpose.msra.mxu0 0.0
          %1314 = vmatpush.xpose.msra.mxu0 0.0
          %1315 = vmatpush.xpose.msra.mxu0 0.0
          %1316 = vmatpush.xpose.msra.mxu0 %v420
          %1317 = vmatpush.xpose.msra.mxu0 %v288
          %1318 = vmatmul.f32.gmra.mxu0 %v593
          %v1319 = vpop.f32.mrf.mxu0
          %v1320 = vadd.f32 %v1300, %v1319
          %1321 = vdwg.mxu0
          %1322 = vmatpush.xpose.msra.mxu0 0.0
          %1323 = vmatpush.xpose.msra.mxu0 0.0
          %1324 = vmatpush.xpose.msra.mxu0 0.0
          %1325 = vmatpush.xpose.msra.mxu0 0.0
          %1326 = vmatpush.xpose.msra.mxu0 0.0
          %1327 = vmatpush.xpose.msra.mxu0 0.0
          %1328 = vmatpush.xpose.msra.mxu0 0.0
          %1329 = vmatpush.xpose.msra.mxu0 0.0
          %1330 = vmatpush.xpose.msra.mxu0 0.0
          %1331 = vmatpush.xpose.msra.mxu0 0.0
          %1332 = vmatpush.xpose.msra.mxu0 0.0
          %1333 = vmatpush.xpose.msra.mxu0 0.0
          %1334 = vmatpush.xpose.msra.mxu0 0.0
          %1335 = vmatpush.xpose.msra.mxu0 0.0
          %1336 = vmatpush.xpose.msra.mxu0 %v421
          %1337 = vmatpush.xpose.msra.mxu0 %v289
          %1338 = vmatmul.f32.gmra.mxu0 %v594
          %v1339 = vpop.f32.mrf.mxu0
          %v1340 = vadd.f32 %v1320, %v1339
          %1341 = vdwg.mxu0
          %1342 = vmatpush.xpose.msra.mxu0 0.0
          %1343 = vmatpush.xpose.msra.mxu0 0.0
          %1344 = vmatpush.xpose.msra.mxu0 0.0
          %1345 = vmatpush.xpose.msra.mxu0 0.0
          %1346 = vmatpush.xpose.msra.mxu0 0.0
          %1347 = vmatpush.xpose.msra.mxu0 0.0
          %1348 = vmatpush.xpose.msra.mxu0 0.0
          %1349 = vmatpush.xpose.msra.mxu0 0.0
          %1350 = vmatpush.xpose.msra.mxu0 0.0
          %1351 = vmatpush.xpose.msra.mxu0 0.0
          %1352 = vmatpush.xpose.msra.mxu0 0.0
          %1353 = vmatpush.xpose.msra.mxu0 0.0
          %1354 = vmatpush.xpose.msra.mxu0 0.0
          %1355 = vmatpush.xpose.msra.mxu0 0.0
          %1356 = vmatpush.xpose.msra.mxu0 %v422
          %1357 = vmatpush.xpose.msra.mxu0 %v290
          %1358 = vmatmul.f32.gmra.mxu0 %v597
          %v1359 = vpop.f32.mrf.mxu0
          %v1360 = vadd.f32 %v1340, %v1359
          %1361 = vdwg.mxu0
          %1362 = vmatpush.xpose.msra.mxu0 0.0
          %1363 = vmatpush.xpose.msra.mxu0 0.0
          %1364 = vmatpush.xpose.msra.mxu0 0.0
          %1365 = vmatpush.xpose.msra.mxu0 0.0
          %1366 = vmatpush.xpose.msra.mxu0 0.0
          %1367 = vmatpush.xpose.msra.mxu0 0.0
          %1368 = vmatpush.xpose.msra.mxu0 0.0
          %1369 = vmatpush.xpose.msra.mxu0 0.0
          %1370 = vmatpush.xpose.msra.mxu0 0.0
          %1371 = vmatpush.xpose.msra.mxu0 0.0
          %1372 = vmatpush.xpose.msra.mxu0 0.0
          %1373 = vmatpush.xpose.msra.mxu0 0.0
          %1374 = vmatpush.xpose.msra.mxu0 0.0
          %1375 = vmatpush.xpose.msra.mxu0 0.0
          %1376 = vmatpush.xpose.msra.mxu0 %v423
          %1377 = vmatpush.xpose.msra.mxu0 %v291
          %1378 = vmatmul.f32.gmra.mxu0 %v598
          %v1379 = vpop.f32.mrf.mxu0
          %v1380 = vadd.f32 %v1360, %v1379
          %1381 = vdwg.mxu0
          %1382 = vmatpush.xpose.msra.mxu0 0.0
          %1383 = vmatpush.xpose.msra.mxu0 0.0
          %1384 = vmatpush.xpose.msra.mxu0 0.0
          %1385 = vmatpush.xpose.msra.mxu0 0.0
          %1386 = vmatpush.xpose.msra.mxu0 0.0
          %1387 = vmatpush.xpose.msra.mxu0 0.0
          %1388 = vmatpush.xpose.msra.mxu0 0.0
          %1389 = vmatpush.xpose.msra.mxu0 0.0
          %1390 = vmatpush.xpose.msra.mxu0 0.0
          %1391 = vmatpush.xpose.msra.mxu0 0.0
          %1392 = vmatpush.xpose.msra.mxu0 0.0
          %1393 = vmatpush.xpose.msra.mxu0 0.0
          %1394 = vmatpush.xpose.msra.mxu0 0.0
          %1395 = vmatpush.xpose.msra.mxu0 0.0
          %1396 = vmatpush.xpose.msra.mxu0 %v424
          %1397 = vmatpush.xpose.msra.mxu0 %v292
          %1398 = vmatmul.f32.gmra.mxu0 %v599
          %v1399 = vpop.f32.mrf.mxu0
          %v1400 = vadd.f32 %v1380, %v1399
          %1401 = vdwg.mxu0
          %1402 = vmatpush.xpose.msra.mxu0 0.0
          %1403 = vmatpush.xpose.msra.mxu0 0.0
          %1404 = vmatpush.xpose.msra.mxu0 0.0
          %1405 = vmatpush.xpose.msra.mxu0 0.0
          %1406 = vmatpush.xpose.msra.mxu0 0.0
          %1407 = vmatpush.xpose.msra.mxu0 0.0
          %1408 = vmatpush.xpose.msra.mxu0 0.0
          %1409 = vmatpush.xpose.msra.mxu0 0.0
          %1410 = vmatpush.xpose.msra.mxu0 0.0
          %1411 = vmatpush.xpose.msra.mxu0 0.0
          %1412 = vmatpush.xpose.msra.mxu0 0.0
          %1413 = vmatpush.xpose.msra.mxu0 0.0
          %1414 = vmatpush.xpose.msra.mxu0 0.0
          %1415 = vmatpush.xpose.msra.mxu0 0.0
          %1416 = vmatpush.xpose.msra.mxu0 %v425
          %1417 = vmatpush.xpose.msra.mxu0 %v293
          %1418 = vmatmul.f32.gmra.mxu0 %v600
          %v1419 = vpop.f32.mrf.mxu0
          %v1420 = vadd.f32 %v1400, %v1419
          %1421 = vdwg.mxu0
          %1422 = vmatpush.xpose.msra.mxu0 0.0
          %1423 = vmatpush.xpose.msra.mxu0 0.0
          %1424 = vmatpush.xpose.msra.mxu0 0.0
          %1425 = vmatpush.xpose.msra.mxu0 0.0
          %1426 = vmatpush.xpose.msra.mxu0 0.0
          %1427 = vmatpush.xpose.msra.mxu0 0.0
          %1428 = vmatpush.xpose.msra.mxu0 0.0
          %1429 = vmatpush.xpose.msra.mxu0 0.0
          %1430 = vmatpush.xpose.msra.mxu0 0.0
          %1431 = vmatpush.xpose.msra.mxu0 0.0
          %1432 = vmatpush.xpose.msra.mxu0 0.0
          %1433 = vmatpush.xpose.msra.mxu0 0.0
          %1434 = vmatpush.xpose.msra.mxu0 0.0
          %1435 = vmatpush.xpose.msra.mxu0 0.0
          %1436 = vmatpush.xpose.msra.mxu0 %v426
          %1437 = vmatpush.xpose.msra.mxu0 %v294
          %1438 = vmatmul.f32.gmra.mxu0 %v601
          %v1439 = vpop.f32.mrf.mxu0
          %v1440 = vadd.f32 %v1420, %v1439
          %1441 = vdwg.mxu0
          %1442 = vmatpush.xpose.msra.mxu0 0.0
          %1443 = vmatpush.xpose.msra.mxu0 0.0
          %1444 = vmatpush.xpose.msra.mxu0 0.0
          %1445 = vmatpush.xpose.msra.mxu0 0.0
          %1446 = vmatpush.xpose.msra.mxu0 0.0
          %1447 = vmatpush.xpose.msra.mxu0 0.0
          %1448 = vmatpush.xpose.msra.mxu0 0.0
          %1449 = vmatpush.xpose.msra.mxu0 0.0
          %1450 = vmatpush.xpose.msra.mxu0 0.0
          %1451 = vmatpush.xpose.msra.mxu0 0.0
          %1452 = vmatpush.xpose.msra.mxu0 0.0
          %1453 = vmatpush.xpose.msra.mxu0 0.0
          %1454 = vmatpush.xpose.msra.mxu0 0.0
          %1455 = vmatpush.xpose.msra.mxu0 0.0
          %1456 = vmatpush.xpose.msra.mxu0 %v427
          %1457 = vmatpush.xpose.msra.mxu0 %v295
          %1458 = vmatmul.f32.gmra.mxu0 %v602
          %v1459 = vpop.f32.mrf.mxu0
          %v1460 = vadd.f32 %v1440, %v1459
          %1461 = vdwg.mxu0
          %1462 = vmatpush.xpose.msra.mxu0 0.0
          %1463 = vmatpush.xpose.msra.mxu0 0.0
          %1464 = vmatpush.xpose.msra.mxu0 0.0
          %1465 = vmatpush.xpose.msra.mxu0 0.0
          %1466 = vmatpush.xpose.msra.mxu0 0.0
          %1467 = vmatpush.xpose.msra.mxu0 0.0
          %1468 = vmatpush.xpose.msra.mxu0 0.0
          %1469 = vmatpush.xpose.msra.mxu0 0.0
          %1470 = vmatpush.xpose.msra.mxu0 0.0
          %1471 = vmatpush.xpose.msra.mxu0 0.0
          %1472 = vmatpush.xpose.msra.mxu0 0.0
          %1473 = vmatpush.xpose.msra.mxu0 0.0
          %1474 = vmatpush.xpose.msra.mxu0 0.0
          %1475 = vmatpush.xpose.msra.mxu0 0.0
          %1476 = vmatpush.xpose.msra.mxu0 %v428
          %1477 = vmatpush.xpose.msra.mxu0 %v296
          %1478 = vmatmul.f32.gmra.mxu0 %v603
          %v1479 = vpop.f32.mrf.mxu0
          %v1480 = vadd.f32 %v1460, %v1479
          %1481 = vdwg.mxu0
          %1482 = vmatpush.xpose.msra.mxu0 0.0
          %1483 = vmatpush.xpose.msra.mxu0 0.0
          %1484 = vmatpush.xpose.msra.mxu0 0.0
          %1485 = vmatpush.xpose.msra.mxu0 0.0
          %1486 = vmatpush.xpose.msra.mxu0 0.0
          %1487 = vmatpush.xpose.msra.mxu0 0.0
          %1488 = vmatpush.xpose.msra.mxu0 0.0
          %1489 = vmatpush.xpose.msra.mxu0 0.0
          %1490 = vmatpush.xpose.msra.mxu0 0.0
          %1491 = vmatpush.xpose.msra.mxu0 0.0
          %1492 = vmatpush.xpose.msra.mxu0 0.0
          %1493 = vmatpush.xpose.msra.mxu0 0.0
          %1494 = vmatpush.xpose.msra.mxu0 0.0
          %1495 = vmatpush.xpose.msra.mxu0 0.0
          %1496 = vmatpush.xpose.msra.mxu0 %v429
          %1497 = vmatpush.xpose.msra.mxu0 %v297
          %1498 = vmatmul.f32.gmra.mxu0 %v604
          %v1499 = vpop.f32.mrf.mxu0
          %v1500 = vadd.f32 %v1480, %v1499
          %1501 = vdwg.mxu0
          %1502 = vmatpush.xpose.msra.mxu0 0.0
          %1503 = vmatpush.xpose.msra.mxu0 0.0
          %1504 = vmatpush.xpose.msra.mxu0 0.0
          %1505 = vmatpush.xpose.msra.mxu0 0.0
          %1506 = vmatpush.xpose.msra.mxu0 0.0
          %1507 = vmatpush.xpose.msra.mxu0 0.0
          %1508 = vmatpush.xpose.msra.mxu0 0.0
          %1509 = vmatpush.xpose.msra.mxu0 0.0
          %1510 = vmatpush.xpose.msra.mxu0 0.0
          %1511 = vmatpush.xpose.msra.mxu0 0.0
          %1512 = vmatpush.xpose.msra.mxu0 0.0
          %1513 = vmatpush.xpose.msra.mxu0 0.0
          %1514 = vmatpush.xpose.msra.mxu0 0.0
          %1515 = vmatpush.xpose.msra.mxu0 0.0
          %1516 = vmatpush.xpose.msra.mxu0 %v430
          %1517 = vmatpush.xpose.msra.mxu0 %v298
          %1518 = vmatmul.f32.gmra.mxu0 %v607
          %v1519 = vpop.f32.mrf.mxu0
          %v1520 = vadd.f32 %v1500, %v1519
          %1521 = vdwg.mxu0
          %1522 = vmatpush.xpose.msra.mxu0 0.0
          %1523 = vmatpush.xpose.msra.mxu0 0.0
          %1524 = vmatpush.xpose.msra.mxu0 0.0
          %1525 = vmatpush.xpose.msra.mxu0 0.0
          %1526 = vmatpush.xpose.msra.mxu0 0.0
          %1527 = vmatpush.xpose.msra.mxu0 0.0
          %1528 = vmatpush.xpose.msra.mxu0 0.0
          %1529 = vmatpush.xpose.msra.mxu0 0.0
          %1530 = vmatpush.xpose.msra.mxu0 0.0
          %1531 = vmatpush.xpose.msra.mxu0 0.0
          %1532 = vmatpush.xpose.msra.mxu0 0.0
          %1533 = vmatpush.xpose.msra.mxu0 0.0
          %1534 = vmatpush.xpose.msra.mxu0 0.0
          %1535 = vmatpush.xpose.msra.mxu0 0.0
          %1536 = vmatpush.xpose.msra.mxu0 %v431
          %1537 = vmatpush.xpose.msra.mxu0 %v299
          %1538 = vmatmul.f32.gmra.mxu0 %v608
          %v1539 = vpop.f32.mrf.mxu0
          %v1540 = vadd.f32 %v1520, %v1539
          %1541 = vdwg.mxu0
          %1542 = vmatpush.xpose.msra.mxu0 0.0
          %1543 = vmatpush.xpose.msra.mxu0 0.0
          %1544 = vmatpush.xpose.msra.mxu0 0.0
          %1545 = vmatpush.xpose.msra.mxu0 0.0
          %1546 = vmatpush.xpose.msra.mxu0 0.0
          %1547 = vmatpush.xpose.msra.mxu0 0.0
          %1548 = vmatpush.xpose.msra.mxu0 0.0
          %1549 = vmatpush.xpose.msra.mxu0 0.0
          %1550 = vmatpush.xpose.msra.mxu0 0.0
          %1551 = vmatpush.xpose.msra.mxu0 0.0
          %1552 = vmatpush.xpose.msra.mxu0 0.0
          %1553 = vmatpush.xpose.msra.mxu0 0.0
          %1554 = vmatpush.xpose.msra.mxu0 0.0
          %1555 = vmatpush.xpose.msra.mxu0 0.0
          %1556 = vmatpush.xpose.msra.mxu0 %v432
          %1557 = vmatpush.xpose.msra.mxu0 %v300
          %1558 = vmatmul.f32.gmra.mxu0 %v609
          %v1559 = vpop.f32.mrf.mxu0
          %v1560 = vadd.f32 %v1540, %v1559
          %1561 = vdwg.mxu0
          %1562 = vmatpush.xpose.msra.mxu0 0.0
          %1563 = vmatpush.xpose.msra.mxu0 0.0
          %1564 = vmatpush.xpose.msra.mxu0 0.0
          %1565 = vmatpush.xpose.msra.mxu0 0.0
          %1566 = vmatpush.xpose.msra.mxu0 0.0
          %1567 = vmatpush.xpose.msra.mxu0 0.0
          %1568 = vmatpush.xpose.msra.mxu0 0.0
          %1569 = vmatpush.xpose.msra.mxu0 0.0
          %1570 = vmatpush.xpose.msra.mxu0 0.0
          %1571 = vmatpush.xpose.msra.mxu0 0.0
          %1572 = vmatpush.xpose.msra.mxu0 0.0
          %1573 = vmatpush.xpose.msra.mxu0 0.0
          %1574 = vmatpush.xpose.msra.mxu0 0.0
          %1575 = vmatpush.xpose.msra.mxu0 0.0
          %1576 = vmatpush.xpose.msra.mxu0 %v433
          %1577 = vmatpush.xpose.msra.mxu0 %v301
          %1578 = vmatmul.f32.gmra.mxu0 %v610
          %v1579 = vpop.f32.mrf.mxu0
          %v1580 = vadd.f32 %v1560, %v1579
          %1581 = vdwg.mxu0
          %1582 = vmatpush.xpose.msra.mxu0 0.0
          %1583 = vmatpush.xpose.msra.mxu0 0.0
          %1584 = vmatpush.xpose.msra.mxu0 0.0
          %1585 = vmatpush.xpose.msra.mxu0 0.0
          %1586 = vmatpush.xpose.msra.mxu0 0.0
          %1587 = vmatpush.xpose.msra.mxu0 0.0
          %1588 = vmatpush.xpose.msra.mxu0 0.0
          %1589 = vmatpush.xpose.msra.mxu0 0.0
          %1590 = vmatpush.xpose.msra.mxu0 0.0
          %1591 = vmatpush.xpose.msra.mxu0 0.0
          %1592 = vmatpush.xpose.msra.mxu0 0.0
          %1593 = vmatpush.xpose.msra.mxu0 0.0
          %1594 = vmatpush.xpose.msra.mxu0 0.0
          %1595 = vmatpush.xpose.msra.mxu0 0.0
          %1596 = vmatpush.xpose.msra.mxu0 %v434
          %1597 = vmatpush.xpose.msra.mxu0 %v302
          %1598 = vmatmul.f32.gmra.mxu0 %v611
          %v1599 = vpop.f32.mrf.mxu0
          %v1600 = vadd.f32 %v1580, %v1599
          %1601 = vdwg.mxu0
          %1602 = vmatpush.xpose.msra.mxu0 0.0
          %1603 = vmatpush.xpose.msra.mxu0 0.0
          %1604 = vmatpush.xpose.msra.mxu0 0.0
          %1605 = vmatpush.xpose.msra.mxu0 0.0
          %1606 = vmatpush.xpose.msra.mxu0 0.0
          %1607 = vmatpush.xpose.msra.mxu0 0.0
          %1608 = vmatpush.xpose.msra.mxu0 0.0
          %1609 = vmatpush.xpose.msra.mxu0 0.0
          %1610 = vmatpush.xpose.msra.mxu0 0.0
          %1611 = vmatpush.xpose.msra.mxu0 0.0
          %1612 = vmatpush.xpose.msra.mxu0 0.0
          %1613 = vmatpush.xpose.msra.mxu0 0.0
          %1614 = vmatpush.xpose.msra.mxu0 0.0
          %1615 = vmatpush.xpose.msra.mxu0 0.0
          %1616 = vmatpush.xpose.msra.mxu0 %v435
          %1617 = vmatpush.xpose.msra.mxu0 %v303
          %1618 = vmatmul.f32.gmra.mxu0 %v612
          %v1619 = vpop.f32.mrf.mxu0
          %v1620 = vadd.f32 %v1600, %v1619
          %1621 = vdwg.mxu0
          %1622 = vmatpush.xpose.msra.mxu0 0.0
          %1623 = vmatpush.xpose.msra.mxu0 0.0
          %1624 = vmatpush.xpose.msra.mxu0 0.0
          %1625 = vmatpush.xpose.msra.mxu0 0.0
          %1626 = vmatpush.xpose.msra.mxu0 0.0
          %1627 = vmatpush.xpose.msra.mxu0 0.0
          %1628 = vmatpush.xpose.msra.mxu0 0.0
          %1629 = vmatpush.xpose.msra.mxu0 0.0
          %1630 = vmatpush.xpose.msra.mxu0 0.0
          %1631 = vmatpush.xpose.msra.mxu0 0.0
          %1632 = vmatpush.xpose.msra.mxu0 0.0
          %1633 = vmatpush.xpose.msra.mxu0 0.0
          %1634 = vmatpush.xpose.msra.mxu0 0.0
          %1635 = vmatpush.xpose.msra.mxu0 0.0
          %1636 = vmatpush.xpose.msra.mxu0 %v436
          %1637 = vmatpush.xpose.msra.mxu0 %v304
          %1638 = vmatmul.f32.gmra.mxu0 %v613
          %v1639 = vpop.f32.mrf.mxu0
          %v1640 = vadd.f32 %v1620, %v1639
          %1641 = vdwg.mxu0
          %1642 = vmatpush.xpose.msra.mxu0 0.0
          %1643 = vmatpush.xpose.msra.mxu0 0.0
          %1644 = vmatpush.xpose.msra.mxu0 0.0
          %1645 = vmatpush.xpose.msra.mxu0 0.0
          %1646 = vmatpush.xpose.msra.mxu0 0.0
          %1647 = vmatpush.xpose.msra.mxu0 0.0
          %1648 = vmatpush.xpose.msra.mxu0 0.0
          %1649 = vmatpush.xpose.msra.mxu0 0.0
          %1650 = vmatpush.xpose.msra.mxu0 0.0
          %1651 = vmatpush.xpose.msra.mxu0 0.0
          %1652 = vmatpush.xpose.msra.mxu0 0.0
          %1653 = vmatpush.xpose.msra.mxu0 0.0
          %1654 = vmatpush.xpose.msra.mxu0 0.0
          %1655 = vmatpush.xpose.msra.mxu0 0.0
          %1656 = vmatpush.xpose.msra.mxu0 %v437
          %1657 = vmatpush.xpose.msra.mxu0 %v305
          %1658 = vmatmul.f32.gmra.mxu0 %v614
          %v1659 = vpop.f32.mrf.mxu0
          %v1660 = vadd.f32 %v1640, %v1659
          %1661 = vdwg.mxu0
          %1662 = vmatpush.xpose.msra.mxu0 0.0
          %1663 = vmatpush.xpose.msra.mxu0 0.0
          %1664 = vmatpush.xpose.msra.mxu0 0.0
          %1665 = vmatpush.xpose.msra.mxu0 0.0
          %1666 = vmatpush.xpose.msra.mxu0 0.0
          %1667 = vmatpush.xpose.msra.mxu0 0.0
          %1668 = vmatpush.xpose.msra.mxu0 0.0
          %1669 = vmatpush.xpose.msra.mxu0 0.0
          %1670 = vmatpush.xpose.msra.mxu0 0.0
          %1671 = vmatpush.xpose.msra.mxu0 0.0
          %1672 = vmatpush.xpose.msra.mxu0 0.0
          %1673 = vmatpush.xpose.msra.mxu0 0.0
          %1674 = vmatpush.xpose.msra.mxu0 0.0
          %1675 = vmatpush.xpose.msra.mxu0 0.0
          %1676 = vmatpush.xpose.msra.mxu0 %v438
          %1677 = vmatpush.xpose.msra.mxu0 %v306
          %1678 = vmatmul.f32.gmra.mxu0 %v617
          %v1679 = vpop.f32.mrf.mxu0
          %v1680 = vadd.f32 %v1660, %v1679
          %1681 = vdwg.mxu0
          %1682 = vmatpush.xpose.msra.mxu0 0.0
          %1683 = vmatpush.xpose.msra.mxu0 0.0
          %1684 = vmatpush.xpose.msra.mxu0 0.0
          %1685 = vmatpush.xpose.msra.mxu0 0.0
          %1686 = vmatpush.xpose.msra.mxu0 0.0
          %1687 = vmatpush.xpose.msra.mxu0 0.0
          %1688 = vmatpush.xpose.msra.mxu0 0.0
          %1689 = vmatpush.xpose.msra.mxu0 0.0
          %1690 = vmatpush.xpose.msra.mxu0 0.0
          %1691 = vmatpush.xpose.msra.mxu0 0.0
          %1692 = vmatpush.xpose.msra.mxu0 0.0
          %1693 = vmatpush.xpose.msra.mxu0 0.0
          %1694 = vmatpush.xpose.msra.mxu0 0.0
          %1695 = vmatpush.xpose.msra.mxu0 0.0
          %1696 = vmatpush.xpose.msra.mxu0 %v439
          %1697 = vmatpush.xpose.msra.mxu0 %v307
          %1698 = vmatmul.f32.gmra.mxu0 %v618
          %v1699 = vpop.f32.mrf.mxu0
          %v1700 = vadd.f32 %v1680, %v1699
          %1701 = vdwg.mxu0
          %1702 = vmatpush.xpose.msra.mxu0 0.0
          %1703 = vmatpush.xpose.msra.mxu0 0.0
          %1704 = vmatpush.xpose.msra.mxu0 0.0
          %1705 = vmatpush.xpose.msra.mxu0 0.0
          %1706 = vmatpush.xpose.msra.mxu0 0.0
          %1707 = vmatpush.xpose.msra.mxu0 0.0
          %1708 = vmatpush.xpose.msra.mxu0 0.0
          %1709 = vmatpush.xpose.msra.mxu0 0.0
          %1710 = vmatpush.xpose.msra.mxu0 0.0
          %1711 = vmatpush.xpose.msra.mxu0 0.0
          %1712 = vmatpush.xpose.msra.mxu0 0.0
          %1713 = vmatpush.xpose.msra.mxu0 0.0
          %1714 = vmatpush.xpose.msra.mxu0 0.0
          %1715 = vmatpush.xpose.msra.mxu0 0.0
          %1716 = vmatpush.xpose.msra.mxu0 %v440
          %1717 = vmatpush.xpose.msra.mxu0 %v308
          %1718 = vmatmul.f32.gmra.mxu0 %v619
          %v1719 = vpop.f32.mrf.mxu0
          %v1720 = vadd.f32 %v1700, %v1719
          %1721 = vdwg.mxu0
          %1722 = vmatpush.xpose.msra.mxu0 0.0
          %1723 = vmatpush.xpose.msra.mxu0 0.0
          %1724 = vmatpush.xpose.msra.mxu0 0.0
          %1725 = vmatpush.xpose.msra.mxu0 0.0
          %1726 = vmatpush.xpose.msra.mxu0 0.0
          %1727 = vmatpush.xpose.msra.mxu0 0.0
          %1728 = vmatpush.xpose.msra.mxu0 0.0
          %1729 = vmatpush.xpose.msra.mxu0 0.0
          %1730 = vmatpush.xpose.msra.mxu0 0.0
          %1731 = vmatpush.xpose.msra.mxu0 0.0
          %1732 = vmatpush.xpose.msra.mxu0 0.0
          %1733 = vmatpush.xpose.msra.mxu0 0.0
          %1734 = vmatpush.xpose.msra.mxu0 0.0
          %1735 = vmatpush.xpose.msra.mxu0 0.0
          %1736 = vmatpush.xpose.msra.mxu0 %v441
          %1737 = vmatpush.xpose.msra.mxu0 %v309
          %1738 = vmatmul.f32.gmra.mxu0 %v620
          %v1739 = vpop.f32.mrf.mxu0
          %v1740 = vadd.f32 %v1720, %v1739
          %1741 = vdwg.mxu0
          %1742 = vmatpush.xpose.msra.mxu0 0.0
          %1743 = vmatpush.xpose.msra.mxu0 0.0
          %1744 = vmatpush.xpose.msra.mxu0 0.0
          %1745 = vmatpush.xpose.msra.mxu0 0.0
          %1746 = vmatpush.xpose.msra.mxu0 0.0
          %1747 = vmatpush.xpose.msra.mxu0 0.0
          %1748 = vmatpush.xpose.msra.mxu0 0.0
          %1749 = vmatpush.xpose.msra.mxu0 0.0
          %1750 = vmatpush.xpose.msra.mxu0 0.0
          %1751 = vmatpush.xpose.msra.mxu0 0.0
          %1752 = vmatpush.xpose.msra.mxu0 0.0
          %1753 = vmatpush.xpose.msra.mxu0 0.0
          %1754 = vmatpush.xpose.msra.mxu0 0.0
          %1755 = vmatpush.xpose.msra.mxu0 0.0
          %1756 = vmatpush.xpose.msra.mxu0 %v442
          %1757 = vmatpush.xpose.msra.mxu0 %v310
          %1758 = vmatmul.f32.gmra.mxu0 %v621
          %v1759 = vpop.f32.mrf.mxu0
          %v1760 = vadd.f32 %v1740, %v1759
          %1761 = vdwg.mxu0
          %1762 = vmatpush.xpose.msra.mxu0 0.0
          %1763 = vmatpush.xpose.msra.mxu0 0.0
          %1764 = vmatpush.xpose.msra.mxu0 0.0
          %1765 = vmatpush.xpose.msra.mxu0 0.0
          %1766 = vmatpush.xpose.msra.mxu0 0.0
          %1767 = vmatpush.xpose.msra.mxu0 0.0
          %1768 = vmatpush.xpose.msra.mxu0 0.0
          %1769 = vmatpush.xpose.msra.mxu0 0.0
          %1770 = vmatpush.xpose.msra.mxu0 0.0
          %1771 = vmatpush.xpose.msra.mxu0 0.0
          %1772 = vmatpush.xpose.msra.mxu0 0.0
          %1773 = vmatpush.xpose.msra.mxu0 0.0
          %1774 = vmatpush.xpose.msra.mxu0 0.0
          %1775 = vmatpush.xpose.msra.mxu0 0.0
          %1776 = vmatpush.xpose.msra.mxu0 %v443
          %1777 = vmatpush.xpose.msra.mxu0 %v311
          %1778 = vmatmul.f32.gmra.mxu0 %v622
          %v1779 = vpop.f32.mrf.mxu0
          %v1780 = vadd.f32 %v1760, %v1779
          %1781 = vdwg.mxu0
          %1782 = vmatpush.xpose.msra.mxu0 0.0
          %1783 = vmatpush.xpose.msra.mxu0 0.0
          %1784 = vmatpush.xpose.msra.mxu0 0.0
          %1785 = vmatpush.xpose.msra.mxu0 0.0
          %1786 = vmatpush.xpose.msra.mxu0 0.0
          %1787 = vmatpush.xpose.msra.mxu0 0.0
          %1788 = vmatpush.xpose.msra.mxu0 0.0
          %1789 = vmatpush.xpose.msra.mxu0 0.0
          %1790 = vmatpush.xpose.msra.mxu0 0.0
          %1791 = vmatpush.xpose.msra.mxu0 0.0
          %1792 = vmatpush.xpose.msra.mxu0 0.0
          %1793 = vmatpush.xpose.msra.mxu0 0.0
          %1794 = vmatpush.xpose.msra.mxu0 0.0
          %1795 = vmatpush.xpose.msra.mxu0 0.0
          %1796 = vmatpush.xpose.msra.mxu0 %v444
          %1797 = vmatpush.xpose.msra.mxu0 %v312
          %1798 = vmatmul.f32.gmra.mxu0 %v623
          %v1799 = vpop.f32.mrf.mxu0
          %v1800 = vadd.f32 %v1780, %v1799
          %1801 = vdwg.mxu0
          %1802 = vmatpush.xpose.msra.mxu0 0.0
          %1803 = vmatpush.xpose.msra.mxu0 0.0
          %1804 = vmatpush.xpose.msra.mxu0 0.0
          %1805 = vmatpush.xpose.msra.mxu0 0.0
          %1806 = vmatpush.xpose.msra.mxu0 0.0
          %1807 = vmatpush.xpose.msra.mxu0 0.0
          %1808 = vmatpush.xpose.msra.mxu0 0.0
          %1809 = vmatpush.xpose.msra.mxu0 0.0
          %1810 = vmatpush.xpose.msra.mxu0 0.0
          %1811 = vmatpush.xpose.msra.mxu0 0.0
          %1812 = vmatpush.xpose.msra.mxu0 0.0
          %1813 = vmatpush.xpose.msra.mxu0 0.0
          %1814 = vmatpush.xpose.msra.mxu0 0.0
          %1815 = vmatpush.xpose.msra.mxu0 0.0
          %1816 = vmatpush.xpose.msra.mxu0 %v445
          %1817 = vmatpush.xpose.msra.mxu0 %v313
          %1818 = vmatmul.f32.gmra.mxu0 %v624
          %v1819 = vpop.f32.mrf.mxu0
          %v1820 = vadd.f32 %v1800, %v1819
          %1821 = vdwg.mxu0
          %1822 = vmatpush.xpose.msra.mxu0 0.0
          %1823 = vmatpush.xpose.msra.mxu0 0.0
          %1824 = vmatpush.xpose.msra.mxu0 0.0
          %1825 = vmatpush.xpose.msra.mxu0 0.0
          %1826 = vmatpush.xpose.msra.mxu0 0.0
          %1827 = vmatpush.xpose.msra.mxu0 0.0
          %1828 = vmatpush.xpose.msra.mxu0 0.0
          %1829 = vmatpush.xpose.msra.mxu0 0.0
          %1830 = vmatpush.xpose.msra.mxu0 0.0
          %1831 = vmatpush.xpose.msra.mxu0 0.0
          %1832 = vmatpush.xpose.msra.mxu0 0.0
          %1833 = vmatpush.xpose.msra.mxu0 0.0
          %1834 = vmatpush.xpose.msra.mxu0 0.0
          %1835 = vmatpush.xpose.msra.mxu0 0.0
          %1836 = vmatpush.xpose.msra.mxu0 %v446
          %1837 = vmatpush.xpose.msra.mxu0 %v314
          %1838 = vmatmul.f32.gmra.mxu0 %v627
          %v1839 = vpop.f32.mrf.mxu0
          %v1840 = vadd.f32 %v1820, %v1839
          %1841 = vdwg.mxu0
          %1842 = vmatpush.xpose.msra.mxu0 0.0
          %1843 = vmatpush.xpose.msra.mxu0 0.0
          %1844 = vmatpush.xpose.msra.mxu0 0.0
          %1845 = vmatpush.xpose.msra.mxu0 0.0
          %1846 = vmatpush.xpose.msra.mxu0 0.0
          %1847 = vmatpush.xpose.msra.mxu0 0.0
          %1848 = vmatpush.xpose.msra.mxu0 0.0
          %1849 = vmatpush.xpose.msra.mxu0 0.0
          %1850 = vmatpush.xpose.msra.mxu0 0.0
          %1851 = vmatpush.xpose.msra.mxu0 0.0
          %1852 = vmatpush.xpose.msra.mxu0 0.0
          %1853 = vmatpush.xpose.msra.mxu0 0.0
          %1854 = vmatpush.xpose.msra.mxu0 0.0
          %1855 = vmatpush.xpose.msra.mxu0 0.0
          %1856 = vmatpush.xpose.msra.mxu0 %v447
          %1857 = vmatpush.xpose.msra.mxu0 %v315
          %1858 = vmatmul.f32.gmra.mxu0 %v628
          %v1859 = vpop.f32.mrf.mxu0
          %v1860 = vadd.f32 %v1840, %v1859
          %1861 = vdwg.mxu0
          %1862 = vmatpush.xpose.msra.mxu0 0.0
          %1863 = vmatpush.xpose.msra.mxu0 0.0
          %1864 = vmatpush.xpose.msra.mxu0 0.0
          %1865 = vmatpush.xpose.msra.mxu0 0.0
          %1866 = vmatpush.xpose.msra.mxu0 0.0
          %1867 = vmatpush.xpose.msra.mxu0 0.0
          %1868 = vmatpush.xpose.msra.mxu0 0.0
          %1869 = vmatpush.xpose.msra.mxu0 0.0
          %1870 = vmatpush.xpose.msra.mxu0 0.0
          %1871 = vmatpush.xpose.msra.mxu0 0.0
          %1872 = vmatpush.xpose.msra.mxu0 0.0
          %1873 = vmatpush.xpose.msra.mxu0 0.0
          %1874 = vmatpush.xpose.msra.mxu0 0.0
          %1875 = vmatpush.xpose.msra.mxu0 0.0
          %1876 = vmatpush.xpose.msra.mxu0 %v448
          %1877 = vmatpush.xpose.msra.mxu0 %v316
          %1878 = vmatmul.f32.gmra.mxu0 %v629
          %v1879 = vpop.f32.mrf.mxu0
          %v1880 = vadd.f32 %v1860, %v1879
          %1881 = vdwg.mxu0
          %1882 = vmatpush.xpose.msra.mxu0 0.0
          %1883 = vmatpush.xpose.msra.mxu0 0.0
          %1884 = vmatpush.xpose.msra.mxu0 0.0
          %1885 = vmatpush.xpose.msra.mxu0 0.0
          %1886 = vmatpush.xpose.msra.mxu0 0.0
          %1887 = vmatpush.xpose.msra.mxu0 0.0
          %1888 = vmatpush.xpose.msra.mxu0 0.0
          %1889 = vmatpush.xpose.msra.mxu0 0.0
          %1890 = vmatpush.xpose.msra.mxu0 0.0
          %1891 = vmatpush.xpose.msra.mxu0 0.0
          %1892 = vmatpush.xpose.msra.mxu0 0.0
          %1893 = vmatpush.xpose.msra.mxu0 0.0
          %1894 = vmatpush.xpose.msra.mxu0 0.0
          %1895 = vmatpush.xpose.msra.mxu0 0.0
          %1896 = vmatpush.xpose.msra.mxu0 %v449
          %1897 = vmatpush.xpose.msra.mxu0 %v317
          %1898 = vmatmul.f32.gmra.mxu0 %v630
          %v1899 = vpop.f32.mrf.mxu0
          %v1900 = vadd.f32 %v1880, %v1899
          %1901 = vdwg.mxu0
          %1902 = vmatpush.xpose.msra.mxu0 0.0
          %1903 = vmatpush.xpose.msra.mxu0 0.0
          %1904 = vmatpush.xpose.msra.mxu0 0.0
          %1905 = vmatpush.xpose.msra.mxu0 0.0
          %1906 = vmatpush.xpose.msra.mxu0 0.0
          %1907 = vmatpush.xpose.msra.mxu0 0.0
          %1908 = vmatpush.xpose.msra.mxu0 0.0
          %1909 = vmatpush.xpose.msra.mxu0 0.0
          %1910 = vmatpush.xpose.msra.mxu0 0.0
          %1911 = vmatpush.xpose.msra.mxu0 0.0
          %1912 = vmatpush.xpose.msra.mxu0 0.0
          %1913 = vmatpush.xpose.msra.mxu0 0.0
          %1914 = vmatpush.xpose.msra.mxu0 0.0
          %1915 = vmatpush.xpose.msra.mxu0 0.0
          %1916 = vmatpush.xpose.msra.mxu0 %v450
          %1917 = vmatpush.xpose.msra.mxu0 %v318
          %1918 = vmatmul.f32.gmra.mxu0 %v631
          %v1919 = vpop.f32.mrf.mxu0
          %v1920 = vadd.f32 %v1900, %v1919
          %1921 = vdwg.mxu0
          %1922 = vmatpush.xpose.msra.mxu0 0.0
          %1923 = vmatpush.xpose.msra.mxu0 0.0
          %1924 = vmatpush.xpose.msra.mxu0 0.0
          %1925 = vmatpush.xpose.msra.mxu0 0.0
          %1926 = vmatpush.xpose.msra.mxu0 0.0
          %1927 = vmatpush.xpose.msra.mxu0 0.0
          %1928 = vmatpush.xpose.msra.mxu0 0.0
          %1929 = vmatpush.xpose.msra.mxu0 0.0
          %1930 = vmatpush.xpose.msra.mxu0 0.0
          %1931 = vmatpush.xpose.msra.mxu0 0.0
          %1932 = vmatpush.xpose.msra.mxu0 0.0
          %1933 = vmatpush.xpose.msra.mxu0 0.0
          %1934 = vmatpush.xpose.msra.mxu0 0.0
          %1935 = vmatpush.xpose.msra.mxu0 0.0
          %1936 = vmatpush.xpose.msra.mxu0 %v451
          %1937 = vmatpush.xpose.msra.mxu0 %v319
          %1938 = vmatmul.f32.gmra.mxu0 %v632
          %v1939 = vpop.f32.mrf.mxu0
          %v1940 = vadd.f32 %v1920, %v1939
          %1941 = vdwg.mxu0
          %1942 = vmatpush.xpose.msra.mxu0 0.0
          %1943 = vmatpush.xpose.msra.mxu0 0.0
          %1944 = vmatpush.xpose.msra.mxu0 0.0
          %1945 = vmatpush.xpose.msra.mxu0 0.0
          %1946 = vmatpush.xpose.msra.mxu0 0.0
          %1947 = vmatpush.xpose.msra.mxu0 0.0
          %1948 = vmatpush.xpose.msra.mxu0 0.0
          %1949 = vmatpush.xpose.msra.mxu0 0.0
          %1950 = vmatpush.xpose.msra.mxu0 0.0
          %1951 = vmatpush.xpose.msra.mxu0 0.0
          %1952 = vmatpush.xpose.msra.mxu0 0.0
          %1953 = vmatpush.xpose.msra.mxu0 0.0
          %1954 = vmatpush.xpose.msra.mxu0 0.0
          %1955 = vmatpush.xpose.msra.mxu0 0.0
          %1956 = vmatpush.xpose.msra.mxu0 %v452
          %1957 = vmatpush.xpose.msra.mxu0 %v320
          %1958 = vmatmul.f32.gmra.mxu0 %v633
          %v1959 = vpop.f32.mrf.mxu0
          %v1960 = vadd.f32 %v1940, %v1959
          %1961 = vdwg.mxu0
          %1962 = vmatpush.xpose.msra.mxu0 0.0
          %1963 = vmatpush.xpose.msra.mxu0 0.0
          %1964 = vmatpush.xpose.msra.mxu0 0.0
          %1965 = vmatpush.xpose.msra.mxu0 0.0
          %1966 = vmatpush.xpose.msra.mxu0 0.0
          %1967 = vmatpush.xpose.msra.mxu0 0.0
          %1968 = vmatpush.xpose.msra.mxu0 0.0
          %1969 = vmatpush.xpose.msra.mxu0 0.0
          %1970 = vmatpush.xpose.msra.mxu0 0.0
          %1971 = vmatpush.xpose.msra.mxu0 0.0
          %1972 = vmatpush.xpose.msra.mxu0 0.0
          %1973 = vmatpush.xpose.msra.mxu0 0.0
          %1974 = vmatpush.xpose.msra.mxu0 0.0
          %1975 = vmatpush.xpose.msra.mxu0 0.0
          %1976 = vmatpush.xpose.msra.mxu0 %v453
          %1977 = vmatpush.xpose.msra.mxu0 %v321
          %1978 = vmatmul.f32.gmra.mxu0 %v634
          %v1979 = vpop.f32.mrf.mxu0
          %v1980 = vadd.f32 %v1960, %v1979
          %1981 = vdwg.mxu0
          %1982 = vmatpush.xpose.msra.mxu0 0.0
          %1983 = vmatpush.xpose.msra.mxu0 0.0
          %1984 = vmatpush.xpose.msra.mxu0 0.0
          %1985 = vmatpush.xpose.msra.mxu0 0.0
          %1986 = vmatpush.xpose.msra.mxu0 0.0
          %1987 = vmatpush.xpose.msra.mxu0 0.0
          %1988 = vmatpush.xpose.msra.mxu0 0.0
          %1989 = vmatpush.xpose.msra.mxu0 0.0
          %1990 = vmatpush.xpose.msra.mxu0 0.0
          %1991 = vmatpush.xpose.msra.mxu0 0.0
          %1992 = vmatpush.xpose.msra.mxu0 0.0
          %1993 = vmatpush.xpose.msra.mxu0 0.0
          %1994 = vmatpush.xpose.msra.mxu0 0.0
          %1995 = vmatpush.xpose.msra.mxu0 0.0
          %1996 = vmatpush.xpose.msra.mxu0 %v454
          %1997 = vmatpush.xpose.msra.mxu0 %v322
          %1998 = vmatmul.f32.gmra.mxu0 %v637
          %v1999 = vpop.f32.mrf.mxu0
          %v2000 = vadd.f32 %v1980, %v1999
          %2001 = vdwg.mxu0
          %2002 = vmatpush.xpose.msra.mxu0 0.0
          %2003 = vmatpush.xpose.msra.mxu0 0.0
          %2004 = vmatpush.xpose.msra.mxu0 0.0
          %2005 = vmatpush.xpose.msra.mxu0 0.0
          %2006 = vmatpush.xpose.msra.mxu0 0.0
          %2007 = vmatpush.xpose.msra.mxu0 0.0
          %2008 = vmatpush.xpose.msra.mxu0 0.0
          %2009 = vmatpush.xpose.msra.mxu0 0.0
          %2010 = vmatpush.xpose.msra.mxu0 0.0
          %2011 = vmatpush.xpose.msra.mxu0 0.0
          %2012 = vmatpush.xpose.msra.mxu0 0.0
          %2013 = vmatpush.xpose.msra.mxu0 0.0
          %2014 = vmatpush.xpose.msra.mxu0 0.0
          %2015 = vmatpush.xpose.msra.mxu0 0.0
          %2016 = vmatpush.xpose.msra.mxu0 %v455
          %2017 = vmatpush.xpose.msra.mxu0 %v323
          %2018 = vmatmul.f32.gmra.mxu0 %v638
          %v2019 = vpop.f32.mrf.mxu0
          %v2020 = vadd.f32 %v2000, %v2019
          %2021 = vdwg.mxu0
          %2022 = vmatpush.xpose.msra.mxu0 0.0
          %2023 = vmatpush.xpose.msra.mxu0 0.0
          %2024 = vmatpush.xpose.msra.mxu0 0.0
          %2025 = vmatpush.xpose.msra.mxu0 0.0
          %2026 = vmatpush.xpose.msra.mxu0 0.0
          %2027 = vmatpush.xpose.msra.mxu0 0.0
          %2028 = vmatpush.xpose.msra.mxu0 0.0
          %2029 = vmatpush.xpose.msra.mxu0 0.0
          %2030 = vmatpush.xpose.msra.mxu0 0.0
          %2031 = vmatpush.xpose.msra.mxu0 0.0
          %2032 = vmatpush.xpose.msra.mxu0 0.0
          %2033 = vmatpush.xpose.msra.mxu0 0.0
          %2034 = vmatpush.xpose.msra.mxu0 0.0
          %2035 = vmatpush.xpose.msra.mxu0 0.0
          %2036 = vmatpush.xpose.msra.mxu0 %v456
          %2037 = vmatpush.xpose.msra.mxu0 %v324
          %2038 = vmatmul.f32.gmra.mxu0 %v639
          %v2039 = vpop.f32.mrf.mxu0
          %v2040 = vadd.f32 %v2020, %v2039
          %2041 = vdwg.mxu0
          %2042 = vmatpush.xpose.msra.mxu0 0.0
          %2043 = vmatpush.xpose.msra.mxu0 0.0
          %2044 = vmatpush.xpose.msra.mxu0 0.0
          %2045 = vmatpush.xpose.msra.mxu0 0.0
          %2046 = vmatpush.xpose.msra.mxu0 0.0
          %2047 = vmatpush.xpose.msra.mxu0 0.0
          %2048 = vmatpush.xpose.msra.mxu0 0.0
          %2049 = vmatpush.xpose.msra.mxu0 0.0
          %2050 = vmatpush.xpose.msra.mxu0 0.0
          %2051 = vmatpush.xpose.msra.mxu0 0.0
          %2052 = vmatpush.xpose.msra.mxu0 0.0
          %2053 = vmatpush.xpose.msra.mxu0 0.0
          %2054 = vmatpush.xpose.msra.mxu0 0.0
          %2055 = vmatpush.xpose.msra.mxu0 0.0
          %2056 = vmatpush.xpose.msra.mxu0 %v457
          %2057 = vmatpush.xpose.msra.mxu0 %v325
          %2058 = vmatmul.f32.gmra.mxu0 %v640
          %v2059 = vpop.f32.mrf.mxu0
          %v2060 = vadd.f32 %v2040, %v2059
          %2061 = vdwg.mxu0
          %2062 = vmatpush.xpose.msra.mxu0 0.0
          %2063 = vmatpush.xpose.msra.mxu0 0.0
          %2064 = vmatpush.xpose.msra.mxu0 0.0
          %2065 = vmatpush.xpose.msra.mxu0 0.0
          %2066 = vmatpush.xpose.msra.mxu0 0.0
          %2067 = vmatpush.xpose.msra.mxu0 0.0
          %2068 = vmatpush.xpose.msra.mxu0 0.0
          %2069 = vmatpush.xpose.msra.mxu0 0.0
          %2070 = vmatpush.xpose.msra.mxu0 0.0
          %2071 = vmatpush.xpose.msra.mxu0 0.0
          %2072 = vmatpush.xpose.msra.mxu0 0.0
          %2073 = vmatpush.xpose.msra.mxu0 0.0
          %2074 = vmatpush.xpose.msra.mxu0 0.0
          %2075 = vmatpush.xpose.msra.mxu0 0.0
          %2076 = vmatpush.xpose.msra.mxu0 %v458
          %2077 = vmatpush.xpose.msra.mxu0 %v326
          %2078 = vmatmul.f32.gmra.mxu0 %v641
          %v2079 = vpop.f32.mrf.mxu0
          %v2080 = vadd.f32 %v2060, %v2079
          %2081 = vdwg.mxu0
          %2082 = vmatpush.xpose.msra.mxu0 0.0
          %2083 = vmatpush.xpose.msra.mxu0 0.0
          %2084 = vmatpush.xpose.msra.mxu0 0.0
          %2085 = vmatpush.xpose.msra.mxu0 0.0
          %2086 = vmatpush.xpose.msra.mxu0 0.0
          %2087 = vmatpush.xpose.msra.mxu0 0.0
          %2088 = vmatpush.xpose.msra.mxu0 0.0
          %2089 = vmatpush.xpose.msra.mxu0 0.0
          %2090 = vmatpush.xpose.msra.mxu0 0.0
          %2091 = vmatpush.xpose.msra.mxu0 0.0
          %2092 = vmatpush.xpose.msra.mxu0 0.0
          %2093 = vmatpush.xpose.msra.mxu0 0.0
          %2094 = vmatpush.xpose.msra.mxu0 0.0
          %2095 = vmatpush.xpose.msra.mxu0 0.0
          %2096 = vmatpush.xpose.msra.mxu0 %v459
          %2097 = vmatpush.xpose.msra.mxu0 %v327
          %2098 = vmatmul.f32.gmra.mxu0 %v642
          %v2099 = vpop.f32.mrf.mxu0
          %v2100 = vadd.f32 %v2080, %v2099
          %2101 = vdwg.mxu0
          %2102 = vmatpush.xpose.msra.mxu0 0.0
          %2103 = vmatpush.xpose.msra.mxu0 0.0
          %2104 = vmatpush.xpose.msra.mxu0 0.0
          %2105 = vmatpush.xpose.msra.mxu0 0.0
          %2106 = vmatpush.xpose.msra.mxu0 0.0
          %2107 = vmatpush.xpose.msra.mxu0 0.0
          %2108 = vmatpush.xpose.msra.mxu0 0.0
          %2109 = vmatpush.xpose.msra.mxu0 0.0
          %2110 = vmatpush.xpose.msra.mxu0 0.0
          %2111 = vmatpush.xpose.msra.mxu0 0.0
          %2112 = vmatpush.xpose.msra.mxu0 0.0
          %2113 = vmatpush.xpose.msra.mxu0 0.0
          %2114 = vmatpush.xpose.msra.mxu0 0.0
          %2115 = vmatpush.xpose.msra.mxu0 0.0
          %2116 = vmatpush.xpose.msra.mxu0 %v460
          %2117 = vmatpush.xpose.msra.mxu0 %v328
          %2118 = vmatmul.f32.gmra.mxu0 %v643
          %v2119 = vpop.f32.mrf.mxu0
          %v2120 = vadd.f32 %v2100, %v2119
          %2121 = vdwg.mxu0
          %2122 = vmatpush.xpose.msra.mxu0 0.0
          %2123 = vmatpush.xpose.msra.mxu0 0.0
          %2124 = vmatpush.xpose.msra.mxu0 0.0
          %2125 = vmatpush.xpose.msra.mxu0 0.0
          %2126 = vmatpush.xpose.msra.mxu0 0.0
          %2127 = vmatpush.xpose.msra.mxu0 0.0
          %2128 = vmatpush.xpose.msra.mxu0 0.0
          %2129 = vmatpush.xpose.msra.mxu0 0.0
          %2130 = vmatpush.xpose.msra.mxu0 0.0
          %2131 = vmatpush.xpose.msra.mxu0 0.0
          %2132 = vmatpush.xpose.msra.mxu0 0.0
          %2133 = vmatpush.xpose.msra.mxu0 0.0
          %2134 = vmatpush.xpose.msra.mxu0 0.0
          %2135 = vmatpush.xpose.msra.mxu0 0.0
          %2136 = vmatpush.xpose.msra.mxu0 %v461
          %2137 = vmatpush.xpose.msra.mxu0 %v329
          %2138 = vmatmul.f32.gmra.mxu0 %v644
          %v2139 = vpop.f32.mrf.mxu0
          %v2140 = vadd.f32 %v2120, %v2139
          %2141 = vdwg.mxu0
          %2142 = vmatpush.xpose.msra.mxu0 0.0
          %2143 = vmatpush.xpose.msra.mxu0 0.0
          %2144 = vmatpush.xpose.msra.mxu0 0.0
          %2145 = vmatpush.xpose.msra.mxu0 0.0
          %2146 = vmatpush.xpose.msra.mxu0 0.0
          %2147 = vmatpush.xpose.msra.mxu0 0.0
          %2148 = vmatpush.xpose.msra.mxu0 0.0
          %2149 = vmatpush.xpose.msra.mxu0 0.0
          %2150 = vmatpush.xpose.msra.mxu0 0.0
          %2151 = vmatpush.xpose.msra.mxu0 0.0
          %2152 = vmatpush.xpose.msra.mxu0 0.0
          %2153 = vmatpush.xpose.msra.mxu0 0.0
          %2154 = vmatpush.xpose.msra.mxu0 0.0
          %2155 = vmatpush.xpose.msra.mxu0 0.0
          %2156 = vmatpush.xpose.msra.mxu0 %v462
          %2157 = vmatpush.xpose.msra.mxu0 %v330
          %2158 = vmatmul.f32.gmra.mxu0 %v647
          %v2159 = vpop.f32.mrf.mxu0
          %v2160 = vadd.f32 %v2140, %v2159
          %2161 = vdwg.mxu0
          %2162 = vmatpush.xpose.msra.mxu0 0.0
          %2163 = vmatpush.xpose.msra.mxu0 0.0
          %2164 = vmatpush.xpose.msra.mxu0 0.0
          %2165 = vmatpush.xpose.msra.mxu0 0.0
          %2166 = vmatpush.xpose.msra.mxu0 0.0
          %2167 = vmatpush.xpose.msra.mxu0 0.0
          %2168 = vmatpush.xpose.msra.mxu0 0.0
          %2169 = vmatpush.xpose.msra.mxu0 0.0
          %2170 = vmatpush.xpose.msra.mxu0 0.0
          %2171 = vmatpush.xpose.msra.mxu0 0.0
          %2172 = vmatpush.xpose.msra.mxu0 0.0
          %2173 = vmatpush.xpose.msra.mxu0 0.0
          %2174 = vmatpush.xpose.msra.mxu0 0.0
          %2175 = vmatpush.xpose.msra.mxu0 0.0
          %2176 = vmatpush.xpose.msra.mxu0 %v463
          %2177 = vmatpush.xpose.msra.mxu0 %v331
          %2178 = vmatmul.f32.gmra.mxu0 %v648
          %v2179 = vpop.f32.mrf.mxu0
          %v2180 = vadd.f32 %v2160, %v2179
          %2181 = vdwg.mxu0
          %2182 = vmatpush.xpose.msra.mxu0 0.0
          %2183 = vmatpush.xpose.msra.mxu0 0.0
          %2184 = vmatpush.xpose.msra.mxu0 0.0
          %2185 = vmatpush.xpose.msra.mxu0 0.0
          %2186 = vmatpush.xpose.msra.mxu0 0.0
          %2187 = vmatpush.xpose.msra.mxu0 0.0
          %2188 = vmatpush.xpose.msra.mxu0 0.0
          %2189 = vmatpush.xpose.msra.mxu0 0.0
          %2190 = vmatpush.xpose.msra.mxu0 0.0
          %2191 = vmatpush.xpose.msra.mxu0 0.0
          %2192 = vmatpush.xpose.msra.mxu0 0.0
          %2193 = vmatpush.xpose.msra.mxu0 0.0
          %2194 = vmatpush.xpose.msra.mxu0 0.0
          %2195 = vmatpush.xpose.msra.mxu0 0.0
          %2196 = vmatpush.xpose.msra.mxu0 %v464
          %2197 = vmatpush.xpose.msra.mxu0 %v332
          %2198 = vmatmul.f32.gmra.mxu0 %v649
          %v2199 = vpop.f32.mrf.mxu0
          %v2200 = vadd.f32 %v2180, %v2199
          %2201 = vdwg.mxu0
          %2202 = vmatpush.xpose.msra.mxu0 0.0
          %2203 = vmatpush.xpose.msra.mxu0 0.0
          %2204 = vmatpush.xpose.msra.mxu0 0.0
          %2205 = vmatpush.xpose.msra.mxu0 0.0
          %2206 = vmatpush.xpose.msra.mxu0 0.0
          %2207 = vmatpush.xpose.msra.mxu0 0.0
          %2208 = vmatpush.xpose.msra.mxu0 0.0
          %2209 = vmatpush.xpose.msra.mxu0 0.0
          %2210 = vmatpush.xpose.msra.mxu0 0.0
          %2211 = vmatpush.xpose.msra.mxu0 0.0
          %2212 = vmatpush.xpose.msra.mxu0 0.0
          %2213 = vmatpush.xpose.msra.mxu0 0.0
          %2214 = vmatpush.xpose.msra.mxu0 0.0
          %2215 = vmatpush.xpose.msra.mxu0 0.0
          %2216 = vmatpush.xpose.msra.mxu0 %v465
          %2217 = vmatpush.xpose.msra.mxu0 %v333
          %2218 = vmatmul.f32.gmra.mxu0 %v650
          %v2219 = vpop.f32.mrf.mxu0
          %v2220 = vadd.f32 %v2200, %v2219
          %2221 = vdwg.mxu0
          %2222 = vmatpush.xpose.msra.mxu0 0.0
          %2223 = vmatpush.xpose.msra.mxu0 0.0
          %2224 = vmatpush.xpose.msra.mxu0 0.0
          %2225 = vmatpush.xpose.msra.mxu0 0.0
          %2226 = vmatpush.xpose.msra.mxu0 0.0
          %2227 = vmatpush.xpose.msra.mxu0 0.0
          %2228 = vmatpush.xpose.msra.mxu0 0.0
          %2229 = vmatpush.xpose.msra.mxu0 0.0
          %2230 = vmatpush.xpose.msra.mxu0 0.0
          %2231 = vmatpush.xpose.msra.mxu0 0.0
          %2232 = vmatpush.xpose.msra.mxu0 0.0
          %2233 = vmatpush.xpose.msra.mxu0 0.0
          %2234 = vmatpush.xpose.msra.mxu0 0.0
          %2235 = vmatpush.xpose.msra.mxu0 0.0
          %2236 = vmatpush.xpose.msra.mxu0 %v466
          %2237 = vmatpush.xpose.msra.mxu0 %v334
          %2238 = vmatmul.f32.gmra.mxu0 %v651
          %v2239 = vpop.f32.mrf.mxu0
          %v2240 = vadd.f32 %v2220, %v2239
          %2241 = vdwg.mxu0
          %2242 = vmatpush.xpose.msra.mxu0 0.0
          %2243 = vmatpush.xpose.msra.mxu0 0.0
          %2244 = vmatpush.xpose.msra.mxu0 0.0
          %2245 = vmatpush.xpose.msra.mxu0 0.0
          %2246 = vmatpush.xpose.msra.mxu0 0.0
          %2247 = vmatpush.xpose.msra.mxu0 0.0
          %2248 = vmatpush.xpose.msra.mxu0 0.0
          %2249 = vmatpush.xpose.msra.mxu0 0.0
          %2250 = vmatpush.xpose.msra.mxu0 0.0
          %2251 = vmatpush.xpose.msra.mxu0 0.0
          %2252 = vmatpush.xpose.msra.mxu0 0.0
          %2253 = vmatpush.xpose.msra.mxu0 0.0
          %2254 = vmatpush.xpose.msra.mxu0 0.0
          %2255 = vmatpush.xpose.msra.mxu0 0.0
          %2256 = vmatpush.xpose.msra.mxu0 %v467
          %2257 = vmatpush.xpose.msra.mxu0 %v335
          %2258 = vmatmul.f32.gmra.mxu0 %v652
          %v2259 = vpop.f32.mrf.mxu0
          %v2260 = vadd.f32 %v2240, %v2259
          %2261 = vdwg.mxu0
          %2262 = vmatpush.xpose.msra.mxu0 0.0
          %2263 = vmatpush.xpose.msra.mxu0 0.0
          %2264 = vmatpush.xpose.msra.mxu0 0.0
          %2265 = vmatpush.xpose.msra.mxu0 0.0
          %2266 = vmatpush.xpose.msra.mxu0 0.0
          %2267 = vmatpush.xpose.msra.mxu0 0.0
          %2268 = vmatpush.xpose.msra.mxu0 0.0
          %2269 = vmatpush.xpose.msra.mxu0 0.0
          %2270 = vmatpush.xpose.msra.mxu0 0.0
          %2271 = vmatpush.xpose.msra.mxu0 0.0
          %2272 = vmatpush.xpose.msra.mxu0 0.0
          %2273 = vmatpush.xpose.msra.mxu0 0.0
          %2274 = vmatpush.xpose.msra.mxu0 0.0
          %2275 = vmatpush.xpose.msra.mxu0 0.0
          %2276 = vmatpush.xpose.msra.mxu0 %v468
          %2277 = vmatpush.xpose.msra.mxu0 %v336
          %2278 = vmatmul.f32.gmra.mxu0 %v653
          %v2279 = vpop.f32.mrf.mxu0
          %v2280 = vadd.f32 %v2260, %v2279
          %2281 = vdwg.mxu0
          %2282 = vmatpush.xpose.msra.mxu0 0.0
          %2283 = vmatpush.xpose.msra.mxu0 0.0
          %2284 = vmatpush.xpose.msra.mxu0 0.0
          %2285 = vmatpush.xpose.msra.mxu0 0.0
          %2286 = vmatpush.xpose.msra.mxu0 0.0
          %2287 = vmatpush.xpose.msra.mxu0 0.0
          %2288 = vmatpush.xpose.msra.mxu0 0.0
          %2289 = vmatpush.xpose.msra.mxu0 0.0
          %2290 = vmatpush.xpose.msra.mxu0 0.0
          %2291 = vmatpush.xpose.msra.mxu0 0.0
          %2292 = vmatpush.xpose.msra.mxu0 0.0
          %2293 = vmatpush.xpose.msra.mxu0 0.0
          %2294 = vmatpush.xpose.msra.mxu0 0.0
          %2295 = vmatpush.xpose.msra.mxu0 0.0
          %2296 = vmatpush.xpose.msra.mxu0 %v469
          %2297 = vmatpush.xpose.msra.mxu0 %v337
          %2298 = vmatmul.f32.gmra.mxu0 %v654
          %v2299 = vpop.f32.mrf.mxu0
          %v2300 = vadd.f32 %v2280, %v2299
          %2301 = vdwg.mxu0
          %2302 = vmatpush.xpose.msra.mxu0 0.0
          %2303 = vmatpush.xpose.msra.mxu0 0.0
          %2304 = vmatpush.xpose.msra.mxu0 0.0
          %2305 = vmatpush.xpose.msra.mxu0 0.0
          %2306 = vmatpush.xpose.msra.mxu0 0.0
          %2307 = vmatpush.xpose.msra.mxu0 0.0
          %2308 = vmatpush.xpose.msra.mxu0 0.0
          %2309 = vmatpush.xpose.msra.mxu0 0.0
          %2310 = vmatpush.xpose.msra.mxu0 0.0
          %2311 = vmatpush.xpose.msra.mxu0 0.0
          %2312 = vmatpush.xpose.msra.mxu0 0.0
          %2313 = vmatpush.xpose.msra.mxu0 0.0
          %2314 = vmatpush.xpose.msra.mxu0 0.0
          %2315 = vmatpush.xpose.msra.mxu0 0.0
          %2316 = vmatpush.xpose.msra.mxu0 %v470
          %2317 = vmatpush.xpose.msra.mxu0 %v338
          %2318 = vmatmul.f32.gmra.mxu0 %v657
          %v2319 = vpop.f32.mrf.mxu0
          %v2320 = vadd.f32 %v2300, %v2319
          %2321 = vdwg.mxu0
          %2322 = vmatpush.xpose.msra.mxu0 0.0
          %2323 = vmatpush.xpose.msra.mxu0 0.0
          %2324 = vmatpush.xpose.msra.mxu0 0.0
          %2325 = vmatpush.xpose.msra.mxu0 0.0
          %2326 = vmatpush.xpose.msra.mxu0 0.0
          %2327 = vmatpush.xpose.msra.mxu0 0.0
          %2328 = vmatpush.xpose.msra.mxu0 0.0
          %2329 = vmatpush.xpose.msra.mxu0 0.0
          %2330 = vmatpush.xpose.msra.mxu0 0.0
          %2331 = vmatpush.xpose.msra.mxu0 0.0
          %2332 = vmatpush.xpose.msra.mxu0 0.0
          %2333 = vmatpush.xpose.msra.mxu0 0.0
          %2334 = vmatpush.xpose.msra.mxu0 0.0
          %2335 = vmatpush.xpose.msra.mxu0 0.0
          %2336 = vmatpush.xpose.msra.mxu0 %v471
          %2337 = vmatpush.xpose.msra.mxu0 %v339
          %2338 = vmatmul.f32.gmra.mxu0 %v658
          %v2339 = vpop.f32.mrf.mxu0
          %v2340 = vadd.f32 %v2320, %v2339
          %2341 = vdwg.mxu0
          %2342 = vmatpush.xpose.msra.mxu0 0.0
          %2343 = vmatpush.xpose.msra.mxu0 0.0
          %2344 = vmatpush.xpose.msra.mxu0 0.0
          %2345 = vmatpush.xpose.msra.mxu0 0.0
          %2346 = vmatpush.xpose.msra.mxu0 0.0
          %2347 = vmatpush.xpose.msra.mxu0 0.0
          %2348 = vmatpush.xpose.msra.mxu0 0.0
          %2349 = vmatpush.xpose.msra.mxu0 0.0
          %2350 = vmatpush.xpose.msra.mxu0 0.0
          %2351 = vmatpush.xpose.msra.mxu0 0.0
          %2352 = vmatpush.xpose.msra.mxu0 0.0
          %2353 = vmatpush.xpose.msra.mxu0 0.0
          %2354 = vmatpush.xpose.msra.mxu0 0.0
          %2355 = vmatpush.xpose.msra.mxu0 0.0
          %2356 = vmatpush.xpose.msra.mxu0 %v472
          %2357 = vmatpush.xpose.msra.mxu0 %v340
          %2358 = vmatmul.f32.gmra.mxu0 %v659
          %v2359 = vpop.f32.mrf.mxu0
          %v2360 = vadd.f32 %v2340, %v2359
          %2361 = vdwg.mxu0
          %2362 = vmatpush.xpose.msra.mxu0 0.0
          %2363 = vmatpush.xpose.msra.mxu0 0.0
          %2364 = vmatpush.xpose.msra.mxu0 0.0
          %2365 = vmatpush.xpose.msra.mxu0 0.0
          %2366 = vmatpush.xpose.msra.mxu0 0.0
          %2367 = vmatpush.xpose.msra.mxu0 0.0
          %2368 = vmatpush.xpose.msra.mxu0 0.0
          %2369 = vmatpush.xpose.msra.mxu0 0.0
          %2370 = vmatpush.xpose.msra.mxu0 0.0
          %2371 = vmatpush.xpose.msra.mxu0 0.0
          %2372 = vmatpush.xpose.msra.mxu0 0.0
          %2373 = vmatpush.xpose.msra.mxu0 0.0
          %2374 = vmatpush.xpose.msra.mxu0 0.0
          %2375 = vmatpush.xpose.msra.mxu0 0.0
          %2376 = vmatpush.xpose.msra.mxu0 %v473
          %2377 = vmatpush.xpose.msra.mxu0 %v341
          %2378 = vmatmul.f32.gmra.mxu0 %v660
          %v2379 = vpop.f32.mrf.mxu0
          %v2380 = vadd.f32 %v2360, %v2379
          %2381 = vdwg.mxu0
          %2382 = vmatpush.xpose.msra.mxu0 0.0
          %2383 = vmatpush.xpose.msra.mxu0 0.0
          %2384 = vmatpush.xpose.msra.mxu0 0.0
          %2385 = vmatpush.xpose.msra.mxu0 0.0
          %2386 = vmatpush.xpose.msra.mxu0 0.0
          %2387 = vmatpush.xpose.msra.mxu0 0.0
          %2388 = vmatpush.xpose.msra.mxu0 0.0
          %2389 = vmatpush.xpose.msra.mxu0 0.0
          %2390 = vmatpush.xpose.msra.mxu0 0.0
          %2391 = vmatpush.xpose.msra.mxu0 0.0
          %2392 = vmatpush.xpose.msra.mxu0 0.0
          %2393 = vmatpush.xpose.msra.mxu0 0.0
          %2394 = vmatpush.xpose.msra.mxu0 0.0
          %2395 = vmatpush.xpose.msra.mxu0 0.0
          %2396 = vmatpush.xpose.msra.mxu0 %v474
          %2397 = vmatpush.xpose.msra.mxu0 %v342
          %2398 = vmatmul.f32.gmra.mxu0 %v661
          %v2399 = vpop.f32.mrf.mxu0
          %v2400 = vadd.f32 %v2380, %v2399
          %2401 = vdwg.mxu0
          %2402 = vmatpush.xpose.msra.mxu0 0.0
          %2403 = vmatpush.xpose.msra.mxu0 0.0
          %2404 = vmatpush.xpose.msra.mxu0 0.0
          %2405 = vmatpush.xpose.msra.mxu0 0.0
          %2406 = vmatpush.xpose.msra.mxu0 0.0
          %2407 = vmatpush.xpose.msra.mxu0 0.0
          %2408 = vmatpush.xpose.msra.mxu0 0.0
          %2409 = vmatpush.xpose.msra.mxu0 0.0
          %2410 = vmatpush.xpose.msra.mxu0 0.0
          %2411 = vmatpush.xpose.msra.mxu0 0.0
          %2412 = vmatpush.xpose.msra.mxu0 0.0
          %2413 = vmatpush.xpose.msra.mxu0 0.0
          %2414 = vmatpush.xpose.msra.mxu0 0.0
          %2415 = vmatpush.xpose.msra.mxu0 0.0
          %2416 = vmatpush.xpose.msra.mxu0 %v475
          %2417 = vmatpush.xpose.msra.mxu0 %v343
          %2418 = vmatmul.f32.gmra.mxu0 %v662
          %v2419 = vpop.f32.mrf.mxu0
          %v2420 = vadd.f32 %v2400, %v2419
          %2421 = vdwg.mxu0
          %2422 = vmatpush.xpose.msra.mxu0 0.0
          %2423 = vmatpush.xpose.msra.mxu0 0.0
          %2424 = vmatpush.xpose.msra.mxu0 0.0
          %2425 = vmatpush.xpose.msra.mxu0 0.0
          %2426 = vmatpush.xpose.msra.mxu0 0.0
          %2427 = vmatpush.xpose.msra.mxu0 0.0
          %2428 = vmatpush.xpose.msra.mxu0 0.0
          %2429 = vmatpush.xpose.msra.mxu0 0.0
          %2430 = vmatpush.xpose.msra.mxu0 0.0
          %2431 = vmatpush.xpose.msra.mxu0 0.0
          %2432 = vmatpush.xpose.msra.mxu0 0.0
          %2433 = vmatpush.xpose.msra.mxu0 0.0
          %2434 = vmatpush.xpose.msra.mxu0 0.0
          %2435 = vmatpush.xpose.msra.mxu0 0.0
          %2436 = vmatpush.xpose.msra.mxu0 %v476
          %2437 = vmatpush.xpose.msra.mxu0 %v344
          %2438 = vmatmul.f32.gmra.mxu0 %v663
          %v2439 = vpop.f32.mrf.mxu0
          %v2440 = vadd.f32 %v2420, %v2439
          %2441 = vdwg.mxu0
          %2442 = vmatpush.xpose.msra.mxu0 0.0
          %2443 = vmatpush.xpose.msra.mxu0 0.0
          %2444 = vmatpush.xpose.msra.mxu0 0.0
          %2445 = vmatpush.xpose.msra.mxu0 0.0
          %2446 = vmatpush.xpose.msra.mxu0 0.0
          %2447 = vmatpush.xpose.msra.mxu0 0.0
          %2448 = vmatpush.xpose.msra.mxu0 0.0
          %2449 = vmatpush.xpose.msra.mxu0 0.0
          %2450 = vmatpush.xpose.msra.mxu0 0.0
          %2451 = vmatpush.xpose.msra.mxu0 0.0
          %2452 = vmatpush.xpose.msra.mxu0 0.0
          %2453 = vmatpush.xpose.msra.mxu0 0.0
          %2454 = vmatpush.xpose.msra.mxu0 0.0
          %2455 = vmatpush.xpose.msra.mxu0 0.0
          %2456 = vmatpush.xpose.msra.mxu0 %v477
          %2457 = vmatpush.xpose.msra.mxu0 %v345
          %2458 = vmatmul.f32.gmra.mxu0 %v664
          %v2459 = vpop.f32.mrf.mxu0
          %v2460 = vadd.f32 %v2440, %v2459
          %2461 = vdwg.mxu0
          %2462 = vmatpush.xpose.msra.mxu0 0.0
          %2463 = vmatpush.xpose.msra.mxu0 0.0
          %2464 = vmatpush.xpose.msra.mxu0 0.0
          %2465 = vmatpush.xpose.msra.mxu0 0.0
          %2466 = vmatpush.xpose.msra.mxu0 0.0
          %2467 = vmatpush.xpose.msra.mxu0 0.0
          %2468 = vmatpush.xpose.msra.mxu0 0.0
          %2469 = vmatpush.xpose.msra.mxu0 0.0
          %2470 = vmatpush.xpose.msra.mxu0 0.0
          %2471 = vmatpush.xpose.msra.mxu0 0.0
          %2472 = vmatpush.xpose.msra.mxu0 0.0
          %2473 = vmatpush.xpose.msra.mxu0 0.0
          %2474 = vmatpush.xpose.msra.mxu0 0.0
          %2475 = vmatpush.xpose.msra.mxu0 0.0
          %2476 = vmatpush.xpose.msra.mxu0 %v478
          %2477 = vmatpush.xpose.msra.mxu0 %v346
          %2478 = vmatmul.f32.gmra.mxu0 %v667
          %v2479 = vpop.f32.mrf.mxu0
          %v2480 = vadd.f32 %v2460, %v2479
          %2481 = vdwg.mxu0
          %2482 = vmatpush.xpose.msra.mxu0 0.0
          %2483 = vmatpush.xpose.msra.mxu0 0.0
          %2484 = vmatpush.xpose.msra.mxu0 0.0
          %2485 = vmatpush.xpose.msra.mxu0 0.0
          %2486 = vmatpush.xpose.msra.mxu0 0.0
          %2487 = vmatpush.xpose.msra.mxu0 0.0
          %2488 = vmatpush.xpose.msra.mxu0 0.0
          %2489 = vmatpush.xpose.msra.mxu0 0.0
          %2490 = vmatpush.xpose.msra.mxu0 0.0
          %2491 = vmatpush.xpose.msra.mxu0 0.0
          %2492 = vmatpush.xpose.msra.mxu0 0.0
          %2493 = vmatpush.xpose.msra.mxu0 0.0
          %2494 = vmatpush.xpose.msra.mxu0 0.0
          %2495 = vmatpush.xpose.msra.mxu0 0.0
          %2496 = vmatpush.xpose.msra.mxu0 %v479
          %2497 = vmatpush.xpose.msra.mxu0 %v347
          %2498 = vmatmul.f32.gmra.mxu0 %v668
          %v2499 = vpop.f32.mrf.mxu0
          %v2500 = vadd.f32 %v2480, %v2499
          %2501 = vdwg.mxu0
          %2502 = vmatpush.xpose.msra.mxu0 0.0
          %2503 = vmatpush.xpose.msra.mxu0 0.0
          %2504 = vmatpush.xpose.msra.mxu0 0.0
          %2505 = vmatpush.xpose.msra.mxu0 0.0
          %2506 = vmatpush.xpose.msra.mxu0 0.0
          %2507 = vmatpush.xpose.msra.mxu0 0.0
          %2508 = vmatpush.xpose.msra.mxu0 0.0
          %2509 = vmatpush.xpose.msra.mxu0 0.0
          %2510 = vmatpush.xpose.msra.mxu0 0.0
          %2511 = vmatpush.xpose.msra.mxu0 0.0
          %2512 = vmatpush.xpose.msra.mxu0 0.0
          %2513 = vmatpush.xpose.msra.mxu0 0.0
          %2514 = vmatpush.xpose.msra.mxu0 0.0
          %2515 = vmatpush.xpose.msra.mxu0 0.0
          %2516 = vmatpush.xpose.msra.mxu0 %v480
          %2517 = vmatpush.xpose.msra.mxu0 %v348
          %2518 = vmatmul.f32.gmra.mxu0 %v669
          %v2519 = vpop.f32.mrf.mxu0
          %v2520 = vadd.f32 %v2500, %v2519
          %2521 = vdwg.mxu0
          %2522 = vmatpush.xpose.msra.mxu0 0.0
          %2523 = vmatpush.xpose.msra.mxu0 0.0
          %2524 = vmatpush.xpose.msra.mxu0 0.0
          %2525 = vmatpush.xpose.msra.mxu0 0.0
          %2526 = vmatpush.xpose.msra.mxu0 0.0
          %2527 = vmatpush.xpose.msra.mxu0 0.0
          %2528 = vmatpush.xpose.msra.mxu0 0.0
          %2529 = vmatpush.xpose.msra.mxu0 0.0
          %2530 = vmatpush.xpose.msra.mxu0 0.0
          %2531 = vmatpush.xpose.msra.mxu0 0.0
          %2532 = vmatpush.xpose.msra.mxu0 0.0
          %2533 = vmatpush.xpose.msra.mxu0 0.0
          %2534 = vmatpush.xpose.msra.mxu0 0.0
          %2535 = vmatpush.xpose.msra.mxu0 0.0
          %2536 = vmatpush.xpose.msra.mxu0 %v481
          %2537 = vmatpush.xpose.msra.mxu0 %v349
          %2538 = vmatmul.f32.gmra.mxu0 %v670
          %v2539 = vpop.f32.mrf.mxu0
          %v2540 = vadd.f32 %v2520, %v2539
          %2541 = vdwg.mxu0
          %2542 = vmatpush.xpose.msra.mxu0 0.0
          %2543 = vmatpush.xpose.msra.mxu0 0.0
          %2544 = vmatpush.xpose.msra.mxu0 0.0
          %2545 = vmatpush.xpose.msra.mxu0 0.0
          %2546 = vmatpush.xpose.msra.mxu0 0.0
          %2547 = vmatpush.xpose.msra.mxu0 0.0
          %2548 = vmatpush.xpose.msra.mxu0 0.0
          %2549 = vmatpush.xpose.msra.mxu0 0.0
          %2550 = vmatpush.xpose.msra.mxu0 0.0
          %2551 = vmatpush.xpose.msra.mxu0 0.0
          %2552 = vmatpush.xpose.msra.mxu0 0.0
          %2553 = vmatpush.xpose.msra.mxu0 0.0
          %2554 = vmatpush.xpose.msra.mxu0 0.0
          %2555 = vmatpush.xpose.msra.mxu0 0.0
          %2556 = vmatpush.xpose.msra.mxu0 %v482
          %2557 = vmatpush.xpose.msra.mxu0 %v350
          %2558 = vmatmul.f32.gmra.mxu0 %v671
          %v2559 = vpop.f32.mrf.mxu0
          %v2560 = vadd.f32 %v2540, %v2559
          %2561 = vdwg.mxu0
          %2562 = vmatpush.xpose.msra.mxu0 0.0
          %2563 = vmatpush.xpose.msra.mxu0 0.0
          %2564 = vmatpush.xpose.msra.mxu0 0.0
          %2565 = vmatpush.xpose.msra.mxu0 0.0
          %2566 = vmatpush.xpose.msra.mxu0 0.0
          %2567 = vmatpush.xpose.msra.mxu0 0.0
          %2568 = vmatpush.xpose.msra.mxu0 0.0
          %2569 = vmatpush.xpose.msra.mxu0 0.0
          %2570 = vmatpush.xpose.msra.mxu0 0.0
          %2571 = vmatpush.xpose.msra.mxu0 0.0
          %2572 = vmatpush.xpose.msra.mxu0 0.0
          %2573 = vmatpush.xpose.msra.mxu0 0.0
          %2574 = vmatpush.xpose.msra.mxu0 0.0
          %2575 = vmatpush.xpose.msra.mxu0 0.0
          %2576 = vmatpush.xpose.msra.mxu0 %v483
          %2577 = vmatpush.xpose.msra.mxu0 %v351
          %2578 = vmatmul.f32.gmra.mxu0 %v672
          %v2579 = vpop.f32.mrf.mxu0
          %v2580 = vadd.f32 %v2560, %v2579
          %2581 = vdwg.mxu0
          %2582 = vmatpush.xpose.msra.mxu0 0.0
          %2583 = vmatpush.xpose.msra.mxu0 0.0
          %2584 = vmatpush.xpose.msra.mxu0 0.0
          %2585 = vmatpush.xpose.msra.mxu0 0.0
          %2586 = vmatpush.xpose.msra.mxu0 0.0
          %2587 = vmatpush.xpose.msra.mxu0 0.0
          %2588 = vmatpush.xpose.msra.mxu0 0.0
          %2589 = vmatpush.xpose.msra.mxu0 0.0
          %2590 = vmatpush.xpose.msra.mxu0 0.0
          %2591 = vmatpush.xpose.msra.mxu0 0.0
          %2592 = vmatpush.xpose.msra.mxu0 0.0
          %2593 = vmatpush.xpose.msra.mxu0 0.0
          %2594 = vmatpush.xpose.msra.mxu0 0.0
          %2595 = vmatpush.xpose.msra.mxu0 0.0
          %2596 = vmatpush.xpose.msra.mxu0 %v484
          %2597 = vmatpush.xpose.msra.mxu0 %v352
          %2598 = vmatmul.f32.gmra.mxu0 %v673
          %v2599 = vpop.f32.mrf.mxu0
          %v2600 = vadd.f32 %v2580, %v2599
          %2601 = vdwg.mxu0
          %2602 = vmatpush.xpose.msra.mxu0 0.0
          %2603 = vmatpush.xpose.msra.mxu0 0.0
          %2604 = vmatpush.xpose.msra.mxu0 0.0
          %2605 = vmatpush.xpose.msra.mxu0 0.0
          %2606 = vmatpush.xpose.msra.mxu0 0.0
          %2607 = vmatpush.xpose.msra.mxu0 0.0
          %2608 = vmatpush.xpose.msra.mxu0 0.0
          %2609 = vmatpush.xpose.msra.mxu0 0.0
          %2610 = vmatpush.xpose.msra.mxu0 0.0
          %2611 = vmatpush.xpose.msra.mxu0 0.0
          %2612 = vmatpush.xpose.msra.mxu0 0.0
          %2613 = vmatpush.xpose.msra.mxu0 0.0
          %2614 = vmatpush.xpose.msra.mxu0 0.0
          %2615 = vmatpush.xpose.msra.mxu0 0.0
          %2616 = vmatpush.xpose.msra.mxu0 %v485
          %2617 = vmatpush.xpose.msra.mxu0 %v353
          %2618 = vmatmul.f32.gmra.mxu0 %v674
          %v2619 = vpop.f32.mrf.mxu0
          %v2620 = vadd.f32 %v2600, %v2619
          %2621 = vdwg.mxu0
          %2622 = vmatpush.xpose.msra.mxu0 0.0
          %2623 = vmatpush.xpose.msra.mxu0 0.0
          %2624 = vmatpush.xpose.msra.mxu0 0.0
          %2625 = vmatpush.xpose.msra.mxu0 0.0
          %2626 = vmatpush.xpose.msra.mxu0 0.0
          %2627 = vmatpush.xpose.msra.mxu0 0.0
          %2628 = vmatpush.xpose.msra.mxu0 0.0
          %2629 = vmatpush.xpose.msra.mxu0 0.0
          %2630 = vmatpush.xpose.msra.mxu0 0.0
          %2631 = vmatpush.xpose.msra.mxu0 0.0
          %2632 = vmatpush.xpose.msra.mxu0 0.0
          %2633 = vmatpush.xpose.msra.mxu0 0.0
          %2634 = vmatpush.xpose.msra.mxu0 0.0
          %2635 = vmatpush.xpose.msra.mxu0 0.0
          %2636 = vmatpush.xpose.msra.mxu0 %v486
          %2637 = vmatpush.xpose.msra.mxu0 %v354
          %2638 = vmatmul.f32.gmra.mxu0 %v677
          %v2639 = vpop.f32.mrf.mxu0
          %v2640 = vadd.f32 %v2620, %v2639
          %2641 = vdwg.mxu0
          %2642 = vmatpush.xpose.msra.mxu0 0.0
          %2643 = vmatpush.xpose.msra.mxu0 0.0
          %2644 = vmatpush.xpose.msra.mxu0 0.0
          %2645 = vmatpush.xpose.msra.mxu0 0.0
          %2646 = vmatpush.xpose.msra.mxu0 0.0
          %2647 = vmatpush.xpose.msra.mxu0 0.0
          %2648 = vmatpush.xpose.msra.mxu0 0.0
          %2649 = vmatpush.xpose.msra.mxu0 0.0
          %2650 = vmatpush.xpose.msra.mxu0 0.0
          %2651 = vmatpush.xpose.msra.mxu0 0.0
          %2652 = vmatpush.xpose.msra.mxu0 0.0
          %2653 = vmatpush.xpose.msra.mxu0 0.0
          %2654 = vmatpush.xpose.msra.mxu0 0.0
          %2655 = vmatpush.xpose.msra.mxu0 0.0
          %2656 = vmatpush.xpose.msra.mxu0 %v487
          %2657 = vmatpush.xpose.msra.mxu0 %v355
          %2658 = vmatmul.f32.gmra.mxu0 %v678
          %v2659 = vpop.f32.mrf.mxu0
          %v2660 = vadd.f32 %v2640, %v2659
          %2661 = vdwg.mxu0
          %2662 = vmatpush.xpose.msra.mxu0 0.0
          %2663 = vmatpush.xpose.msra.mxu0 0.0
          %2664 = vmatpush.xpose.msra.mxu0 0.0
          %2665 = vmatpush.xpose.msra.mxu0 0.0
          %2666 = vmatpush.xpose.msra.mxu0 0.0
          %2667 = vmatpush.xpose.msra.mxu0 0.0
          %2668 = vmatpush.xpose.msra.mxu0 0.0
          %2669 = vmatpush.xpose.msra.mxu0 0.0
          %2670 = vmatpush.xpose.msra.mxu0 0.0
          %2671 = vmatpush.xpose.msra.mxu0 0.0
          %2672 = vmatpush.xpose.msra.mxu0 0.0
          %2673 = vmatpush.xpose.msra.mxu0 0.0
          %2674 = vmatpush.xpose.msra.mxu0 0.0
          %2675 = vmatpush.xpose.msra.mxu0 0.0
          %2676 = vmatpush.xpose.msra.mxu0 %v488
          %2677 = vmatpush.xpose.msra.mxu0 %v356
          %2678 = vmatmul.f32.gmra.mxu0 %v679
          %v2679 = vpop.f32.mrf.mxu0
          %v2680 = vadd.f32 %v2660, %v2679
          %2681 = vdwg.mxu0
          %2682 = vmatpush.xpose.msra.mxu0 0.0
          %2683 = vmatpush.xpose.msra.mxu0 0.0
          %2684 = vmatpush.xpose.msra.mxu0 0.0
          %2685 = vmatpush.xpose.msra.mxu0 0.0
          %2686 = vmatpush.xpose.msra.mxu0 0.0
          %2687 = vmatpush.xpose.msra.mxu0 0.0
          %2688 = vmatpush.xpose.msra.mxu0 0.0
          %2689 = vmatpush.xpose.msra.mxu0 0.0
          %2690 = vmatpush.xpose.msra.mxu0 0.0
          %2691 = vmatpush.xpose.msra.mxu0 0.0
          %2692 = vmatpush.xpose.msra.mxu0 0.0
          %2693 = vmatpush.xpose.msra.mxu0 0.0
          %2694 = vmatpush.xpose.msra.mxu0 0.0
          %2695 = vmatpush.xpose.msra.mxu0 0.0
          %2696 = vmatpush.xpose.msra.mxu0 %v489
          %2697 = vmatpush.xpose.msra.mxu0 %v357
          %2698 = vmatmul.f32.gmra.mxu0 %v680
          %v2699 = vpop.f32.mrf.mxu0
          %v2700 = vadd.f32 %v2680, %v2699
          %2701 = vdwg.mxu0
          %2702 = vmatpush.xpose.msra.mxu0 0.0
          %2703 = vmatpush.xpose.msra.mxu0 0.0
          %2704 = vmatpush.xpose.msra.mxu0 0.0
          %2705 = vmatpush.xpose.msra.mxu0 0.0
          %2706 = vmatpush.xpose.msra.mxu0 0.0
          %2707 = vmatpush.xpose.msra.mxu0 0.0
          %2708 = vmatpush.xpose.msra.mxu0 0.0
          %2709 = vmatpush.xpose.msra.mxu0 0.0
          %2710 = vmatpush.xpose.msra.mxu0 0.0
          %2711 = vmatpush.xpose.msra.mxu0 0.0
          %2712 = vmatpush.xpose.msra.mxu0 0.0
          %2713 = vmatpush.xpose.msra.mxu0 0.0
          %2714 = vmatpush.xpose.msra.mxu0 0.0
          %2715 = vmatpush.xpose.msra.mxu0 0.0
          %2716 = vmatpush.xpose.msra.mxu0 %v490
          %2717 = vmatpush.xpose.msra.mxu0 %v358
          %2718 = vmatmul.f32.gmra.mxu0 %v681
          %v2719 = vpop.f32.mrf.mxu0
          %v2720 = vadd.f32 %v2700, %v2719
          %2721 = vdwg.mxu0
          %2722 = vmatpush.xpose.msra.mxu0 0.0
          %2723 = vmatpush.xpose.msra.mxu0 0.0
          %2724 = vmatpush.xpose.msra.mxu0 0.0
          %2725 = vmatpush.xpose.msra.mxu0 0.0
          %2726 = vmatpush.xpose.msra.mxu0 0.0
          %2727 = vmatpush.xpose.msra.mxu0 0.0
          %2728 = vmatpush.xpose.msra.mxu0 0.0
          %2729 = vmatpush.xpose.msra.mxu0 0.0
          %2730 = vmatpush.xpose.msra.mxu0 0.0
          %2731 = vmatpush.xpose.msra.mxu0 0.0
          %2732 = vmatpush.xpose.msra.mxu0 0.0
          %2733 = vmatpush.xpose.msra.mxu0 0.0
          %2734 = vmatpush.xpose.msra.mxu0 0.0
          %2735 = vmatpush.xpose.msra.mxu0 0.0
          %2736 = vmatpush.xpose.msra.mxu0 %v491
          %2737 = vmatpush.xpose.msra.mxu0 %v359
          %2738 = vmatmul.f32.gmra.mxu0 %v682
          %v2739 = vpop.f32.mrf.mxu0
          %v2740 = vadd.f32 %v2720, %v2739
          %2741 = vdwg.mxu0
          %2742 = vmatpush.xpose.msra.mxu0 0.0
          %2743 = vmatpush.xpose.msra.mxu0 0.0
          %2744 = vmatpush.xpose.msra.mxu0 0.0
          %2745 = vmatpush.xpose.msra.mxu0 0.0
          %2746 = vmatpush.xpose.msra.mxu0 0.0
          %2747 = vmatpush.xpose.msra.mxu0 0.0
          %2748 = vmatpush.xpose.msra.mxu0 0.0
          %2749 = vmatpush.xpose.msra.mxu0 0.0
          %2750 = vmatpush.xpose.msra.mxu0 0.0
          %2751 = vmatpush.xpose.msra.mxu0 0.0
          %2752 = vmatpush.xpose.msra.mxu0 0.0
          %2753 = vmatpush.xpose.msra.mxu0 0.0
          %2754 = vmatpush.xpose.msra.mxu0 0.0
          %2755 = vmatpush.xpose.msra.mxu0 0.0
          %2756 = vmatpush.xpose.msra.mxu0 %v492
          %2757 = vmatpush.xpose.msra.mxu0 %v360
          %2758 = vmatmul.f32.gmra.mxu0 %v683
          %v2759 = vpop.f32.mrf.mxu0
          %v2760 = vadd.f32 %v2740, %v2759
          %2761 = vdwg.mxu0
          %2762 = vmatpush.xpose.msra.mxu0 0.0
          %2763 = vmatpush.xpose.msra.mxu0 0.0
          %2764 = vmatpush.xpose.msra.mxu0 0.0
          %2765 = vmatpush.xpose.msra.mxu0 0.0
          %2766 = vmatpush.xpose.msra.mxu0 0.0
          %2767 = vmatpush.xpose.msra.mxu0 0.0
          %2768 = vmatpush.xpose.msra.mxu0 0.0
          %2769 = vmatpush.xpose.msra.mxu0 0.0
          %2770 = vmatpush.xpose.msra.mxu0 0.0
          %2771 = vmatpush.xpose.msra.mxu0 0.0
          %2772 = vmatpush.xpose.msra.mxu0 0.0
          %2773 = vmatpush.xpose.msra.mxu0 0.0
          %2774 = vmatpush.xpose.msra.mxu0 0.0
          %2775 = vmatpush.xpose.msra.mxu0 0.0
          %2776 = vmatpush.xpose.msra.mxu0 %v493
          %2777 = vmatpush.xpose.msra.mxu0 %v361
          %2778 = vmatmul.f32.gmra.mxu0 %v684
          %v2779 = vpop.f32.mrf.mxu0
          %v2780 = vadd.f32 %v2760, %v2779
          %2781 = vdwg.mxu0
          %2782 = vmatpush.xpose.msra.mxu0 0.0
          %2783 = vmatpush.xpose.msra.mxu0 0.0
          %2784 = vmatpush.xpose.msra.mxu0 0.0
          %2785 = vmatpush.xpose.msra.mxu0 0.0
          %2786 = vmatpush.xpose.msra.mxu0 0.0
          %2787 = vmatpush.xpose.msra.mxu0 0.0
          %2788 = vmatpush.xpose.msra.mxu0 0.0
          %2789 = vmatpush.xpose.msra.mxu0 0.0
          %2790 = vmatpush.xpose.msra.mxu0 0.0
          %2791 = vmatpush.xpose.msra.mxu0 0.0
          %2792 = vmatpush.xpose.msra.mxu0 0.0
          %2793 = vmatpush.xpose.msra.mxu0 0.0
          %2794 = vmatpush.xpose.msra.mxu0 0.0
          %2795 = vmatpush.xpose.msra.mxu0 0.0
          %2796 = vmatpush.xpose.msra.mxu0 %v494
          %2797 = vmatpush.xpose.msra.mxu0 %v362
          %2798 = vmatmul.f32.gmra.mxu0 %v687
          %v2799 = vpop.f32.mrf.mxu0
          %v2800 = vadd.f32 %v2780, %v2799
          %2801 = vdwg.mxu0
          %2802 = vmatpush.xpose.msra.mxu0 0.0
          %2803 = vmatpush.xpose.msra.mxu0 0.0
          %2804 = vmatpush.xpose.msra.mxu0 0.0
          %2805 = vmatpush.xpose.msra.mxu0 0.0
          %2806 = vmatpush.xpose.msra.mxu0 0.0
          %2807 = vmatpush.xpose.msra.mxu0 0.0
          %2808 = vmatpush.xpose.msra.mxu0 0.0
          %2809 = vmatpush.xpose.msra.mxu0 0.0
          %2810 = vmatpush.xpose.msra.mxu0 0.0
          %2811 = vmatpush.xpose.msra.mxu0 0.0
          %2812 = vmatpush.xpose.msra.mxu0 0.0
          %2813 = vmatpush.xpose.msra.mxu0 0.0
          %2814 = vmatpush.xpose.msra.mxu0 0.0
          %2815 = vmatpush.xpose.msra.mxu0 0.0
          %2816 = vmatpush.xpose.msra.mxu0 %v495
          %2817 = vmatpush.xpose.msra.mxu0 %v363
          %2818 = vmatmul.f32.gmra.mxu0 %v688
          %v2819 = vpop.f32.mrf.mxu0
          %v2820 = vadd.f32 %v2800, %v2819
          %2821 = vdwg.mxu0
          %2822 = vmatpush.xpose.msra.mxu0 0.0
          %2823 = vmatpush.xpose.msra.mxu0 0.0
          %2824 = vmatpush.xpose.msra.mxu0 0.0
          %2825 = vmatpush.xpose.msra.mxu0 0.0
          %2826 = vmatpush.xpose.msra.mxu0 0.0
          %2827 = vmatpush.xpose.msra.mxu0 0.0
          %2828 = vmatpush.xpose.msra.mxu0 0.0
          %2829 = vmatpush.xpose.msra.mxu0 0.0
          %2830 = vmatpush.xpose.msra.mxu0 0.0
          %2831 = vmatpush.xpose.msra.mxu0 0.0
          %2832 = vmatpush.xpose.msra.mxu0 0.0
          %2833 = vmatpush.xpose.msra.mxu0 0.0
          %2834 = vmatpush.xpose.msra.mxu0 0.0
          %2835 = vmatpush.xpose.msra.mxu0 0.0
          %2836 = vmatpush.xpose.msra.mxu0 %v496
          %2837 = vmatpush.xpose.msra.mxu0 %v364
          %2838 = vmatmul.f32.gmra.mxu0 %v689
          %v2839 = vpop.f32.mrf.mxu0
          %v2840 = vadd.f32 %v2820, %v2839
          %2841 = vdwg.mxu0
          %2842 = vmatpush.xpose.msra.mxu0 0.0
          %2843 = vmatpush.xpose.msra.mxu0 0.0
          %2844 = vmatpush.xpose.msra.mxu0 0.0
          %2845 = vmatpush.xpose.msra.mxu0 0.0
          %2846 = vmatpush.xpose.msra.mxu0 0.0
          %2847 = vmatpush.xpose.msra.mxu0 0.0
          %2848 = vmatpush.xpose.msra.mxu0 0.0
          %2849 = vmatpush.xpose.msra.mxu0 0.0
          %2850 = vmatpush.xpose.msra.mxu0 0.0
          %2851 = vmatpush.xpose.msra.mxu0 0.0
          %2852 = vmatpush.xpose.msra.mxu0 0.0
          %2853 = vmatpush.xpose.msra.mxu0 0.0
          %2854 = vmatpush.xpose.msra.mxu0 0.0
          %2855 = vmatpush.xpose.msra.mxu0 0.0
          %2856 = vmatpush.xpose.msra.mxu0 %v497
          %2857 = vmatpush.xpose.msra.mxu0 %v365
          %2858 = vmatmul.f32.gmra.mxu0 %v690
          %v2859 = vpop.f32.mrf.mxu0
          %v2860 = vadd.f32 %v2840, %v2859
          %2861 = vdwg.mxu0
          %2862 = vmatpush.xpose.msra.mxu0 0.0
          %2863 = vmatpush.xpose.msra.mxu0 0.0
          %2864 = vmatpush.xpose.msra.mxu0 0.0
          %2865 = vmatpush.xpose.msra.mxu0 0.0
          %2866 = vmatpush.xpose.msra.mxu0 0.0
          %2867 = vmatpush.xpose.msra.mxu0 0.0
          %2868 = vmatpush.xpose.msra.mxu0 0.0
          %2869 = vmatpush.xpose.msra.mxu0 0.0
          %2870 = vmatpush.xpose.msra.mxu0 0.0
          %2871 = vmatpush.xpose.msra.mxu0 0.0
          %2872 = vmatpush.xpose.msra.mxu0 0.0
          %2873 = vmatpush.xpose.msra.mxu0 0.0
          %2874 = vmatpush.xpose.msra.mxu0 0.0
          %2875 = vmatpush.xpose.msra.mxu0 0.0
          %2876 = vmatpush.xpose.msra.mxu0 %v498
          %2877 = vmatpush.xpose.msra.mxu0 %v366
          %2878 = vmatmul.f32.gmra.mxu0 %v691
          %v2879 = vpop.f32.mrf.mxu0
          %v2880 = vadd.f32 %v2860, %v2879
          %2881 = vdwg.mxu0
          %2882 = vmatpush.xpose.msra.mxu0 0.0
          %2883 = vmatpush.xpose.msra.mxu0 0.0
          %2884 = vmatpush.xpose.msra.mxu0 0.0
          %2885 = vmatpush.xpose.msra.mxu0 0.0
          %2886 = vmatpush.xpose.msra.mxu0 0.0
          %2887 = vmatpush.xpose.msra.mxu0 0.0
          %2888 = vmatpush.xpose.msra.mxu0 0.0
          %2889 = vmatpush.xpose.msra.mxu0 0.0
          %2890 = vmatpush.xpose.msra.mxu0 0.0
          %2891 = vmatpush.xpose.msra.mxu0 0.0
          %2892 = vmatpush.xpose.msra.mxu0 0.0
          %2893 = vmatpush.xpose.msra.mxu0 0.0
          %2894 = vmatpush.xpose.msra.mxu0 0.0
          %2895 = vmatpush.xpose.msra.mxu0 0.0
          %2896 = vmatpush.xpose.msra.mxu0 %v499
          %2897 = vmatpush.xpose.msra.mxu0 %v367
          %2898 = vmatmul.f32.gmra.mxu0 %v692
          %v2899 = vpop.f32.mrf.mxu0
          %v2900 = vadd.f32 %v2880, %v2899
          %2901 = vdwg.mxu0
          %2902 = vmatpush.xpose.msra.mxu0 0.0
          %2903 = vmatpush.xpose.msra.mxu0 0.0
          %2904 = vmatpush.xpose.msra.mxu0 0.0
          %2905 = vmatpush.xpose.msra.mxu0 0.0
          %2906 = vmatpush.xpose.msra.mxu0 0.0
          %2907 = vmatpush.xpose.msra.mxu0 0.0
          %2908 = vmatpush.xpose.msra.mxu0 0.0
          %2909 = vmatpush.xpose.msra.mxu0 0.0
          %2910 = vmatpush.xpose.msra.mxu0 0.0
          %2911 = vmatpush.xpose.msra.mxu0 0.0
          %2912 = vmatpush.xpose.msra.mxu0 0.0
          %2913 = vmatpush.xpose.msra.mxu0 0.0
          %2914 = vmatpush.xpose.msra.mxu0 0.0
          %2915 = vmatpush.xpose.msra.mxu0 0.0
          %2916 = vmatpush.xpose.msra.mxu0 %v500
          %2917 = vmatpush.xpose.msra.mxu0 %v368
          %2918 = vmatmul.f32.gmra.mxu0 %v693
          %v2919 = vpop.f32.mrf.mxu0
          %v2920 = vadd.f32 %v2900, %v2919
          %2921 = vdwg.mxu0
          %2922 = vmatpush.xpose.msra.mxu0 0.0
          %2923 = vmatpush.xpose.msra.mxu0 0.0
          %2924 = vmatpush.xpose.msra.mxu0 0.0
          %2925 = vmatpush.xpose.msra.mxu0 0.0
          %2926 = vmatpush.xpose.msra.mxu0 0.0
          %2927 = vmatpush.xpose.msra.mxu0 0.0
          %2928 = vmatpush.xpose.msra.mxu0 0.0
          %2929 = vmatpush.xpose.msra.mxu0 0.0
          %2930 = vmatpush.xpose.msra.mxu0 0.0
          %2931 = vmatpush.xpose.msra.mxu0 0.0
          %2932 = vmatpush.xpose.msra.mxu0 0.0
          %2933 = vmatpush.xpose.msra.mxu0 0.0
          %2934 = vmatpush.xpose.msra.mxu0 0.0
          %2935 = vmatpush.xpose.msra.mxu0 0.0
          %2936 = vmatpush.xpose.msra.mxu0 %v501
          %2937 = vmatpush.xpose.msra.mxu0 %v369
          %2938 = vmatmul.f32.gmra.mxu0 %v694
          %v2939 = vpop.f32.mrf.mxu0
          %v2940 = vadd.f32 %v2920, %v2939
          %2941 = vdwg.mxu0
          %2942 = vmatpush.xpose.msra.mxu0 0.0
          %2943 = vmatpush.xpose.msra.mxu0 0.0
          %2944 = vmatpush.xpose.msra.mxu0 0.0
          %2945 = vmatpush.xpose.msra.mxu0 0.0
          %2946 = vmatpush.xpose.msra.mxu0 0.0
          %2947 = vmatpush.xpose.msra.mxu0 0.0
          %2948 = vmatpush.xpose.msra.mxu0 0.0
          %2949 = vmatpush.xpose.msra.mxu0 0.0
          %2950 = vmatpush.xpose.msra.mxu0 0.0
          %2951 = vmatpush.xpose.msra.mxu0 0.0
          %2952 = vmatpush.xpose.msra.mxu0 0.0
          %2953 = vmatpush.xpose.msra.mxu0 0.0
          %2954 = vmatpush.xpose.msra.mxu0 0.0
          %2955 = vmatpush.xpose.msra.mxu0 0.0
          %2956 = vmatpush.xpose.msra.mxu0 %v502
          %2957 = vmatpush.xpose.msra.mxu0 %v370
          %2958 = vmatmul.f32.gmra.mxu0 %v697
          %v2959 = vpop.f32.mrf.mxu0
          %v2960 = vadd.f32 %v2940, %v2959
          %2961 = vdwg.mxu0
          %2962 = vmatpush.xpose.msra.mxu0 0.0
          %2963 = vmatpush.xpose.msra.mxu0 0.0
          %2964 = vmatpush.xpose.msra.mxu0 0.0
          %2965 = vmatpush.xpose.msra.mxu0 0.0
          %2966 = vmatpush.xpose.msra.mxu0 0.0
          %2967 = vmatpush.xpose.msra.mxu0 0.0
          %2968 = vmatpush.xpose.msra.mxu0 0.0
          %2969 = vmatpush.xpose.msra.mxu0 0.0
          %2970 = vmatpush.xpose.msra.mxu0 0.0
          %2971 = vmatpush.xpose.msra.mxu0 0.0
          %2972 = vmatpush.xpose.msra.mxu0 0.0
          %2973 = vmatpush.xpose.msra.mxu0 0.0
          %2974 = vmatpush.xpose.msra.mxu0 0.0
          %2975 = vmatpush.xpose.msra.mxu0 0.0
          %2976 = vmatpush.xpose.msra.mxu0 %v503
          %2977 = vmatpush.xpose.msra.mxu0 %v371
          %2978 = vmatmul.f32.gmra.mxu0 %v698
          %v2979 = vpop.f32.mrf.mxu0
          %v2980 = vadd.f32 %v2960, %v2979
          %2981 = vdwg.mxu0
          %2982 = vmatpush.xpose.msra.mxu0 0.0
          %2983 = vmatpush.xpose.msra.mxu0 0.0
          %2984 = vmatpush.xpose.msra.mxu0 0.0
          %2985 = vmatpush.xpose.msra.mxu0 0.0
          %2986 = vmatpush.xpose.msra.mxu0 0.0
          %2987 = vmatpush.xpose.msra.mxu0 0.0
          %2988 = vmatpush.xpose.msra.mxu0 0.0
          %2989 = vmatpush.xpose.msra.mxu0 0.0
          %2990 = vmatpush.xpose.msra.mxu0 0.0
          %2991 = vmatpush.xpose.msra.mxu0 0.0
          %2992 = vmatpush.xpose.msra.mxu0 0.0
          %2993 = vmatpush.xpose.msra.mxu0 0.0
          %2994 = vmatpush.xpose.msra.mxu0 0.0
          %2995 = vmatpush.xpose.msra.mxu0 0.0
          %2996 = vmatpush.xpose.msra.mxu0 %v504
          %2997 = vmatpush.xpose.msra.mxu0 %v372
          %2998 = vmatmul.f32.gmra.mxu0 %v699
          %v2999 = vpop.f32.mrf.mxu0
          %v3000 = vadd.f32 %v2980, %v2999
          %3001 = vdwg.mxu0
          %3002 = vmatpush.xpose.msra.mxu0 0.0
          %3003 = vmatpush.xpose.msra.mxu0 0.0
          %3004 = vmatpush.xpose.msra.mxu0 0.0
          %3005 = vmatpush.xpose.msra.mxu0 0.0
          %3006 = vmatpush.xpose.msra.mxu0 0.0
          %3007 = vmatpush.xpose.msra.mxu0 0.0
          %3008 = vmatpush.xpose.msra.mxu0 0.0
          %3009 = vmatpush.xpose.msra.mxu0 0.0
          %3010 = vmatpush.xpose.msra.mxu0 0.0
          %3011 = vmatpush.xpose.msra.mxu0 0.0
          %3012 = vmatpush.xpose.msra.mxu0 0.0
          %3013 = vmatpush.xpose.msra.mxu0 0.0
          %3014 = vmatpush.xpose.msra.mxu0 0.0
          %3015 = vmatpush.xpose.msra.mxu0 0.0
          %3016 = vmatpush.xpose.msra.mxu0 %v505
          %3017 = vmatpush.xpose.msra.mxu0 %v373
          %3018 = vmatmul.f32.gmra.mxu0 %v700
          %v3019 = vpop.f32.mrf.mxu0
          %v3020 = vadd.f32 %v3000, %v3019
          %3021 = vdwg.mxu0
          %3022 = vmatpush.xpose.msra.mxu0 0.0
          %3023 = vmatpush.xpose.msra.mxu0 0.0
          %3024 = vmatpush.xpose.msra.mxu0 0.0
          %3025 = vmatpush.xpose.msra.mxu0 0.0
          %3026 = vmatpush.xpose.msra.mxu0 0.0
          %3027 = vmatpush.xpose.msra.mxu0 0.0
          %3028 = vmatpush.xpose.msra.mxu0 0.0
          %3029 = vmatpush.xpose.msra.mxu0 0.0
          %3030 = vmatpush.xpose.msra.mxu0 0.0
          %3031 = vmatpush.xpose.msra.mxu0 0.0
          %3032 = vmatpush.xpose.msra.mxu0 0.0
          %3033 = vmatpush.xpose.msra.mxu0 0.0
          %3034 = vmatpush.xpose.msra.mxu0 0.0
          %3035 = vmatpush.xpose.msra.mxu0 0.0
          %3036 = vmatpush.xpose.msra.mxu0 %v506
          %3037 = vmatpush.xpose.msra.mxu0 %v374
          %3038 = vmatmul.f32.gmra.mxu0 %v701
          %v3039 = vpop.f32.mrf.mxu0
          %v3040 = vadd.f32 %v3020, %v3039
          %3041 = vdwg.mxu0
          %3042 = vmatpush.xpose.msra.mxu0 0.0
          %3043 = vmatpush.xpose.msra.mxu0 0.0
          %3044 = vmatpush.xpose.msra.mxu0 0.0
          %3045 = vmatpush.xpose.msra.mxu0 0.0
          %3046 = vmatpush.xpose.msra.mxu0 0.0
          %3047 = vmatpush.xpose.msra.mxu0 0.0
          %3048 = vmatpush.xpose.msra.mxu0 0.0
          %3049 = vmatpush.xpose.msra.mxu0 0.0
          %3050 = vmatpush.xpose.msra.mxu0 0.0
          %3051 = vmatpush.xpose.msra.mxu0 0.0
          %3052 = vmatpush.xpose.msra.mxu0 0.0
          %3053 = vmatpush.xpose.msra.mxu0 0.0
          %3054 = vmatpush.xpose.msra.mxu0 0.0
          %3055 = vmatpush.xpose.msra.mxu0 0.0
          %3056 = vmatpush.xpose.msra.mxu0 %v507
          %3057 = vmatpush.xpose.msra.mxu0 %v375
          %3058 = vmatmul.f32.gmra.mxu0 %v702
          %v3059 = vpop.f32.mrf.mxu0
          %v3060 = vadd.f32 %v3040, %v3059
          %3061 = vdwg.mxu0
          %3062 = vmatpush.xpose.msra.mxu0 0.0
          %3063 = vmatpush.xpose.msra.mxu0 0.0
          %3064 = vmatpush.xpose.msra.mxu0 0.0
          %3065 = vmatpush.xpose.msra.mxu0 0.0
          %3066 = vmatpush.xpose.msra.mxu0 0.0
          %3067 = vmatpush.xpose.msra.mxu0 0.0
          %3068 = vmatpush.xpose.msra.mxu0 0.0
          %3069 = vmatpush.xpose.msra.mxu0 0.0
          %3070 = vmatpush.xpose.msra.mxu0 0.0
          %3071 = vmatpush.xpose.msra.mxu0 0.0
          %3072 = vmatpush.xpose.msra.mxu0 0.0
          %3073 = vmatpush.xpose.msra.mxu0 0.0
          %3074 = vmatpush.xpose.msra.mxu0 0.0
          %3075 = vmatpush.xpose.msra.mxu0 0.0
          %3076 = vmatpush.xpose.msra.mxu0 %v508
          %3077 = vmatpush.xpose.msra.mxu0 %v376
          %3078 = vmatmul.f32.gmra.mxu0 %v703
          %v3079 = vpop.f32.mrf.mxu0
          %v3080 = vadd.f32 %v3060, %v3079
          %3081 = vdwg.mxu0
          %3082 = vmatpush.xpose.msra.mxu0 0.0
          %3083 = vmatpush.xpose.msra.mxu0 0.0
          %3084 = vmatpush.xpose.msra.mxu0 0.0
          %3085 = vmatpush.xpose.msra.mxu0 0.0
          %3086 = vmatpush.xpose.msra.mxu0 0.0
          %3087 = vmatpush.xpose.msra.mxu0 0.0
          %3088 = vmatpush.xpose.msra.mxu0 0.0
          %3089 = vmatpush.xpose.msra.mxu0 0.0
          %3090 = vmatpush.xpose.msra.mxu0 0.0
          %3091 = vmatpush.xpose.msra.mxu0 0.0
          %3092 = vmatpush.xpose.msra.mxu0 0.0
          %3093 = vmatpush.xpose.msra.mxu0 0.0
          %3094 = vmatpush.xpose.msra.mxu0 0.0
          %3095 = vmatpush.xpose.msra.mxu0 0.0
          %3096 = vmatpush.xpose.msra.mxu0 %v509
          %3097 = vmatpush.xpose.msra.mxu0 %v377
          %3098 = vmatmul.f32.gmra.mxu0 %v704
          %v3099 = vpop.f32.mrf.mxu0
          %v3100 = vadd.f32 %v3080, %v3099
          %3101 = vdwg.mxu0
          %3102 = vmatpush.xpose.msra.mxu0 0.0
          %3103 = vmatpush.xpose.msra.mxu0 0.0
          %3104 = vmatpush.xpose.msra.mxu0 0.0
          %3105 = vmatpush.xpose.msra.mxu0 0.0
          %3106 = vmatpush.xpose.msra.mxu0 0.0
          %3107 = vmatpush.xpose.msra.mxu0 0.0
          %3108 = vmatpush.xpose.msra.mxu0 0.0
          %3109 = vmatpush.xpose.msra.mxu0 0.0
          %3110 = vmatpush.xpose.msra.mxu0 0.0
          %3111 = vmatpush.xpose.msra.mxu0 0.0
          %3112 = vmatpush.xpose.msra.mxu0 0.0
          %3113 = vmatpush.xpose.msra.mxu0 0.0
          %3114 = vmatpush.xpose.msra.mxu0 0.0
          %3115 = vmatpush.xpose.msra.mxu0 0.0
          %3116 = vmatpush.xpose.msra.mxu0 %v510
          %3117 = vmatpush.xpose.msra.mxu0 %v378
          %3118 = vmatmul.f32.gmra.mxu0 %v707
          %v3119 = vpop.f32.mrf.mxu0
          %v3120 = vadd.f32 %v3100, %v3119
          %3121 = vdwg.mxu0
          %3122 = vmatpush.xpose.msra.mxu0 0.0
          %3123 = vmatpush.xpose.msra.mxu0 0.0
          %3124 = vmatpush.xpose.msra.mxu0 0.0
          %3125 = vmatpush.xpose.msra.mxu0 0.0
          %3126 = vmatpush.xpose.msra.mxu0 0.0
          %3127 = vmatpush.xpose.msra.mxu0 0.0
          %3128 = vmatpush.xpose.msra.mxu0 0.0
          %3129 = vmatpush.xpose.msra.mxu0 0.0
          %3130 = vmatpush.xpose.msra.mxu0 0.0
          %3131 = vmatpush.xpose.msra.mxu0 0.0
          %3132 = vmatpush.xpose.msra.mxu0 0.0
          %3133 = vmatpush.xpose.msra.mxu0 0.0
          %3134 = vmatpush.xpose.msra.mxu0 0.0
          %3135 = vmatpush.xpose.msra.mxu0 0.0
          %3136 = vmatpush.xpose.msra.mxu0 %v511
          %3137 = vmatpush.xpose.msra.mxu0 %v379
          %3138 = vmatmul.f32.gmra.mxu0 %v708
          %v3139 = vpop.f32.mrf.mxu0
          %v3140 = vadd.f32 %v3120, %v3139
          %3141 = vdwg.mxu0
          %3142 = vmatpush.xpose.msra.mxu0 0.0
          %3143 = vmatpush.xpose.msra.mxu0 0.0
          %3144 = vmatpush.xpose.msra.mxu0 0.0
          %3145 = vmatpush.xpose.msra.mxu0 0.0
          %3146 = vmatpush.xpose.msra.mxu0 0.0
          %3147 = vmatpush.xpose.msra.mxu0 0.0
          %3148 = vmatpush.xpose.msra.mxu0 0.0
          %3149 = vmatpush.xpose.msra.mxu0 0.0
          %3150 = vmatpush.xpose.msra.mxu0 0.0
          %3151 = vmatpush.xpose.msra.mxu0 0.0
          %3152 = vmatpush.xpose.msra.mxu0 0.0
          %3153 = vmatpush.xpose.msra.mxu0 0.0
          %3154 = vmatpush.xpose.msra.mxu0 0.0
          %3155 = vmatpush.xpose.msra.mxu0 0.0
          %3156 = vmatpush.xpose.msra.mxu0 %v512
          %3157 = vmatpush.xpose.msra.mxu0 %v380
          %3158 = vmatmul.f32.gmra.mxu0 %v709
          %v3159 = vpop.f32.mrf.mxu0
          %v3160 = vadd.f32 %v3140, %v3159
          %3161 = vdwg.mxu0
          %3162 = vmatpush.xpose.msra.mxu0 0.0
          %3163 = vmatpush.xpose.msra.mxu0 0.0
          %3164 = vmatpush.xpose.msra.mxu0 0.0
          %3165 = vmatpush.xpose.msra.mxu0 0.0
          %3166 = vmatpush.xpose.msra.mxu0 0.0
          %3167 = vmatpush.xpose.msra.mxu0 0.0
          %3168 = vmatpush.xpose.msra.mxu0 0.0
          %3169 = vmatpush.xpose.msra.mxu0 0.0
          %3170 = vmatpush.xpose.msra.mxu0 0.0
          %3171 = vmatpush.xpose.msra.mxu0 0.0
          %3172 = vmatpush.xpose.msra.mxu0 0.0
          %3173 = vmatpush.xpose.msra.mxu0 0.0
          %3174 = vmatpush.xpose.msra.mxu0 0.0
          %3175 = vmatpush.xpose.msra.mxu0 0.0
          %3176 = vmatpush.xpose.msra.mxu0 %v513
          %3177 = vmatpush.xpose.msra.mxu0 %v381
          %3178 = vmatmul.f32.gmra.mxu0 %v710
          %v3179 = vpop.f32.mrf.mxu0
          %v3180 = vadd.f32 %v3160, %v3179
          %3181 = vdwg.mxu0
          %3182 = vmatpush.xpose.msra.mxu0 0.0
          %3183 = vmatpush.xpose.msra.mxu0 0.0
          %3184 = vmatpush.xpose.msra.mxu0 0.0
          %3185 = vmatpush.xpose.msra.mxu0 0.0
          %3186 = vmatpush.xpose.msra.mxu0 0.0
          %3187 = vmatpush.xpose.msra.mxu0 0.0
          %3188 = vmatpush.xpose.msra.mxu0 0.0
          %3189 = vmatpush.xpose.msra.mxu0 0.0
          %3190 = vmatpush.xpose.msra.mxu0 0.0
          %3191 = vmatpush.xpose.msra.mxu0 0.0
          %3192 = vmatpush.xpose.msra.mxu0 0.0
          %3193 = vmatpush.xpose.msra.mxu0 0.0
          %3194 = vmatpush.xpose.msra.mxu0 0.0
          %3195 = vmatpush.xpose.msra.mxu0 0.0
          %3196 = vmatpush.xpose.msra.mxu0 %v514
          %3197 = vmatpush.xpose.msra.mxu0 %v382
          %3198 = vmatmul.f32.gmra.mxu0 %v711
          %v3199 = vpop.f32.mrf.mxu0
          %v3200 = vadd.f32 %v3180, %v3199
          %3201 = vdwg.mxu0
          %3202 = vmatpush.xpose.msra.mxu0 0.0
          %3203 = vmatpush.xpose.msra.mxu0 0.0
          %3204 = vmatpush.xpose.msra.mxu0 0.0
          %3205 = vmatpush.xpose.msra.mxu0 0.0
          %3206 = vmatpush.xpose.msra.mxu0 0.0
          %3207 = vmatpush.xpose.msra.mxu0 0.0
          %3208 = vmatpush.xpose.msra.mxu0 0.0
          %3209 = vmatpush.xpose.msra.mxu0 0.0
          %3210 = vmatpush.xpose.msra.mxu0 0.0
          %3211 = vmatpush.xpose.msra.mxu0 0.0
          %3212 = vmatpush.xpose.msra.mxu0 0.0
          %3213 = vmatpush.xpose.msra.mxu0 0.0
          %3214 = vmatpush.xpose.msra.mxu0 0.0
          %3215 = vmatpush.xpose.msra.mxu0 0.0
          %3216 = vmatpush.xpose.msra.mxu0 %v515
          %3217 = vmatpush.xpose.msra.mxu0 %v383
          %3218 = vmatmul.f32.gmra.mxu0 %v712
          %v3219 = vpop.f32.mrf.mxu0
          %v3220 = vadd.f32 %v3200, %v3219
          %3221 = vdwg.mxu0
          %3222 = vmatpush.xpose.msra.mxu0 0.0
          %3223 = vmatpush.xpose.msra.mxu0 0.0
          %3224 = vmatpush.xpose.msra.mxu0 0.0
          %3225 = vmatpush.xpose.msra.mxu0 0.0
          %3226 = vmatpush.xpose.msra.mxu0 0.0
          %3227 = vmatpush.xpose.msra.mxu0 0.0
          %3228 = vmatpush.xpose.msra.mxu0 0.0
          %3229 = vmatpush.xpose.msra.mxu0 0.0
          %3230 = vmatpush.xpose.msra.mxu0 0.0
          %3231 = vmatpush.xpose.msra.mxu0 0.0
          %3232 = vmatpush.xpose.msra.mxu0 0.0
          %3233 = vmatpush.xpose.msra.mxu0 0.0
          %3234 = vmatpush.xpose.msra.mxu0 0.0
          %3235 = vmatpush.xpose.msra.mxu0 0.0
          %3236 = vmatpush.xpose.msra.mxu0 %v516
          %3237 = vmatpush.xpose.msra.mxu0 %v384
          %3238 = vmatmul.f32.gmra.mxu0 %v713
          %v3239 = vpop.f32.mrf.mxu0
          %v3240 = vadd.f32 %v3220, %v3239
          %3241 = vdwg.mxu0
          %3242 = vmatpush.xpose.msra.mxu0 0.0
          %3243 = vmatpush.xpose.msra.mxu0 0.0
          %3244 = vmatpush.xpose.msra.mxu0 0.0
          %3245 = vmatpush.xpose.msra.mxu0 0.0
          %3246 = vmatpush.xpose.msra.mxu0 0.0
          %3247 = vmatpush.xpose.msra.mxu0 0.0
          %3248 = vmatpush.xpose.msra.mxu0 0.0
          %3249 = vmatpush.xpose.msra.mxu0 0.0
          %3250 = vmatpush.xpose.msra.mxu0 0.0
          %3251 = vmatpush.xpose.msra.mxu0 0.0
          %3252 = vmatpush.xpose.msra.mxu0 0.0
          %3253 = vmatpush.xpose.msra.mxu0 0.0
          %3254 = vmatpush.xpose.msra.mxu0 0.0
          %3255 = vmatpush.xpose.msra.mxu0 0.0
          %3256 = vmatpush.xpose.msra.mxu0 %v517
          %3257 = vmatpush.xpose.msra.mxu0 %v385
          %3258 = vmatmul.f32.gmra.mxu0 %v714
          %v3259 = vpop.f32.mrf.mxu0
          %v3260 = vadd.f32 %v3240, %v3259
          %3261 = vdwg.mxu0
          %3262 = vmatpush.xpose.msra.mxu0 0.0
          %3263 = vmatpush.xpose.msra.mxu0 0.0
          %3264 = vmatpush.xpose.msra.mxu0 0.0
          %3265 = vmatpush.xpose.msra.mxu0 0.0
          %3266 = vmatpush.xpose.msra.mxu0 0.0
          %3267 = vmatpush.xpose.msra.mxu0 0.0
          %3268 = vmatpush.xpose.msra.mxu0 0.0
          %3269 = vmatpush.xpose.msra.mxu0 0.0
          %3270 = vmatpush.xpose.msra.mxu0 0.0
          %3271 = vmatpush.xpose.msra.mxu0 0.0
          %3272 = vmatpush.xpose.msra.mxu0 0.0
          %3273 = vmatpush.xpose.msra.mxu0 0.0
          %3274 = vmatpush.xpose.msra.mxu0 0.0
          %3275 = vmatpush.xpose.msra.mxu0 0.0
          %3276 = vmatpush.xpose.msra.mxu0 %v518
          %3277 = vmatpush.xpose.msra.mxu0 %v386
          %3278 = vmatmul.f32.gmra.mxu0 %v717
          %v3279 = vpop.f32.mrf.mxu0
          %v3280 = vadd.f32 %v3260, %v3279
          %3281 = vdwg.mxu0
          %3282 = vmatpush.xpose.msra.mxu0 0.0
          %3283 = vmatpush.xpose.msra.mxu0 0.0
          %3284 = vmatpush.xpose.msra.mxu0 0.0
          %3285 = vmatpush.xpose.msra.mxu0 0.0
          %3286 = vmatpush.xpose.msra.mxu0 0.0
          %3287 = vmatpush.xpose.msra.mxu0 0.0
          %3288 = vmatpush.xpose.msra.mxu0 0.0
          %3289 = vmatpush.xpose.msra.mxu0 0.0
          %3290 = vmatpush.xpose.msra.mxu0 0.0
          %3291 = vmatpush.xpose.msra.mxu0 0.0
          %3292 = vmatpush.xpose.msra.mxu0 0.0
          %3293 = vmatpush.xpose.msra.mxu0 0.0
          %3294 = vmatpush.xpose.msra.mxu0 0.0
          %3295 = vmatpush.xpose.msra.mxu0 0.0
          %3296 = vmatpush.xpose.msra.mxu0 %v519
          %3297 = vmatpush.xpose.msra.mxu0 %v387
          %3298 = vmatmul.f32.gmra.mxu0 %v718
          %v3299 = vpop.f32.mrf.mxu0
          %v3300 = vadd.f32 %v3280, %v3299
          %3301 = vdwg.mxu0
          %3302 = vmatpush.xpose.msra.mxu0 0.0
          %3303 = vmatpush.xpose.msra.mxu0 0.0
          %3304 = vmatpush.xpose.msra.mxu0 0.0
          %3305 = vmatpush.xpose.msra.mxu0 0.0
          %3306 = vmatpush.xpose.msra.mxu0 0.0
          %3307 = vmatpush.xpose.msra.mxu0 0.0
          %3308 = vmatpush.xpose.msra.mxu0 0.0
          %3309 = vmatpush.xpose.msra.mxu0 0.0
          %3310 = vmatpush.xpose.msra.mxu0 0.0
          %3311 = vmatpush.xpose.msra.mxu0 0.0
          %3312 = vmatpush.xpose.msra.mxu0 0.0
          %3313 = vmatpush.xpose.msra.mxu0 0.0
          %3314 = vmatpush.xpose.msra.mxu0 0.0
          %3315 = vmatpush.xpose.msra.mxu0 0.0
          %3316 = vmatpush.xpose.msra.mxu0 %v520
          %3317 = vmatpush.xpose.msra.mxu0 %v388
          %3318 = vmatmul.f32.gmra.mxu0 %v719
          %v3319 = vpop.f32.mrf.mxu0
          %v3320 = vadd.f32 %v3300, %v3319
          %3321 = vdwg.mxu0
          %3322 = vmatpush.xpose.msra.mxu0 0.0
          %3323 = vmatpush.xpose.msra.mxu0 0.0
          %3324 = vmatpush.xpose.msra.mxu0 0.0
          %3325 = vmatpush.xpose.msra.mxu0 0.0
          %3326 = vmatpush.xpose.msra.mxu0 0.0
          %3327 = vmatpush.xpose.msra.mxu0 0.0
          %3328 = vmatpush.xpose.msra.mxu0 0.0
          %3329 = vmatpush.xpose.msra.mxu0 0.0
          %3330 = vmatpush.xpose.msra.mxu0 0.0
          %3331 = vmatpush.xpose.msra.mxu0 0.0
          %3332 = vmatpush.xpose.msra.mxu0 0.0
          %3333 = vmatpush.xpose.msra.mxu0 0.0
          %3334 = vmatpush.xpose.msra.mxu0 0.0
          %3335 = vmatpush.xpose.msra.mxu0 0.0
          %3336 = vmatpush.xpose.msra.mxu0 %v521
          %3337 = vmatpush.xpose.msra.mxu0 %v389
          %3338 = vmatmul.f32.gmra.mxu0 %v720
          %v3339 = vpop.f32.mrf.mxu0
          %v3340 = vadd.f32 %v3320, %v3339
          %3341 = vdwg.mxu0
          %3342 = vmatpush.xpose.msra.mxu0 0.0
          %3343 = vmatpush.xpose.msra.mxu0 0.0
          %3344 = vmatpush.xpose.msra.mxu0 0.0
          %3345 = vmatpush.xpose.msra.mxu0 0.0
          %3346 = vmatpush.xpose.msra.mxu0 0.0
          %3347 = vmatpush.xpose.msra.mxu0 0.0
          %3348 = vmatpush.xpose.msra.mxu0 0.0
          %3349 = vmatpush.xpose.msra.mxu0 0.0
          %3350 = vmatpush.xpose.msra.mxu0 0.0
          %3351 = vmatpush.xpose.msra.mxu0 0.0
          %3352 = vmatpush.xpose.msra.mxu0 0.0
          %3353 = vmatpush.xpose.msra.mxu0 0.0
          %3354 = vmatpush.xpose.msra.mxu0 0.0
          %3355 = vmatpush.xpose.msra.mxu0 0.0
          %3356 = vmatpush.xpose.msra.mxu0 %v522
          %3357 = vmatpush.xpose.msra.mxu0 %v390
          %3358 = vmatmul.f32.gmra.mxu0 %v721
          %v3359 = vpop.f32.mrf.mxu0
          %v3360 = vadd.f32 %v3340, %v3359
          %3361 = vdwg.mxu0
          %3362 = vmatpush.xpose.msra.mxu0 0.0
          %3363 = vmatpush.xpose.msra.mxu0 0.0
          %3364 = vmatpush.xpose.msra.mxu0 0.0
          %3365 = vmatpush.xpose.msra.mxu0 0.0
          %3366 = vmatpush.xpose.msra.mxu0 0.0
          %3367 = vmatpush.xpose.msra.mxu0 0.0
          %3368 = vmatpush.xpose.msra.mxu0 0.0
          %3369 = vmatpush.xpose.msra.mxu0 0.0
          %3370 = vmatpush.xpose.msra.mxu0 0.0
          %3371 = vmatpush.xpose.msra.mxu0 0.0
          %3372 = vmatpush.xpose.msra.mxu0 0.0
          %3373 = vmatpush.xpose.msra.mxu0 0.0
          %3374 = vmatpush.xpose.msra.mxu0 0.0
          %3375 = vmatpush.xpose.msra.mxu0 0.0
          %3376 = vmatpush.xpose.msra.mxu0 %v523
          %3377 = vmatpush.xpose.msra.mxu0 %v391
          %3378 = vmatmul.f32.gmra.mxu0 %v722
          %v3379 = vpop.f32.mrf.mxu0
          %v3380 = vadd.f32 %v3360, %v3379
          %3381 = vdwg.mxu0
          %3382 = vmatpush.xpose.msra.mxu0 0.0
          %3383 = vmatpush.xpose.msra.mxu0 0.0
          %3384 = vmatpush.xpose.msra.mxu0 0.0
          %3385 = vmatpush.xpose.msra.mxu0 0.0
          %3386 = vmatpush.xpose.msra.mxu0 0.0
          %3387 = vmatpush.xpose.msra.mxu0 0.0
          %3388 = vmatpush.xpose.msra.mxu0 0.0
          %3389 = vmatpush.xpose.msra.mxu0 0.0
          %3390 = vmatpush.xpose.msra.mxu0 0.0
          %3391 = vmatpush.xpose.msra.mxu0 0.0
          %3392 = vmatpush.xpose.msra.mxu0 0.0
          %3393 = vmatpush.xpose.msra.mxu0 0.0
          %3394 = vmatpush.xpose.msra.mxu0 0.0
          %3395 = vmatpush.xpose.msra.mxu0 0.0
          %3396 = vmatpush.xpose.msra.mxu0 %v524
          %3397 = vmatpush.xpose.msra.mxu0 %v392
          %3398 = vmatmul.f32.gmra.mxu0 %v723
          %v3399 = vpop.f32.mrf.mxu0
          %v3400 = vadd.f32 %v3380, %v3399
          %3401 = vdwg.mxu0
          %3402 = vmatpush.xpose.msra.mxu0 0.0
          %3403 = vmatpush.xpose.msra.mxu0 0.0
          %3404 = vmatpush.xpose.msra.mxu0 0.0
          %3405 = vmatpush.xpose.msra.mxu0 0.0
          %3406 = vmatpush.xpose.msra.mxu0 0.0
          %3407 = vmatpush.xpose.msra.mxu0 0.0
          %3408 = vmatpush.xpose.msra.mxu0 0.0
          %3409 = vmatpush.xpose.msra.mxu0 0.0
          %3410 = vmatpush.xpose.msra.mxu0 0.0
          %3411 = vmatpush.xpose.msra.mxu0 0.0
          %3412 = vmatpush.xpose.msra.mxu0 0.0
          %3413 = vmatpush.xpose.msra.mxu0 0.0
          %3414 = vmatpush.xpose.msra.mxu0 0.0
          %3415 = vmatpush.xpose.msra.mxu0 0.0
          %3416 = vmatpush.xpose.msra.mxu0 %v525
          %3417 = vmatpush.xpose.msra.mxu0 %v393
          %3418 = vmatmul.f32.gmra.mxu0 %v724
          %v3419 = vpop.f32.mrf.mxu0
          %v3420 = vadd.f32 %v3400, %v3419
          %3421 = vdwg.mxu0
          %3422 = vmatpush.xpose.msra.mxu0 0.0
          %3423 = vmatpush.xpose.msra.mxu0 0.0
          %3424 = vmatpush.xpose.msra.mxu0 0.0
          %3425 = vmatpush.xpose.msra.mxu0 0.0
          %3426 = vmatpush.xpose.msra.mxu0 0.0
          %3427 = vmatpush.xpose.msra.mxu0 0.0
          %3428 = vmatpush.xpose.msra.mxu0 0.0
          %3429 = vmatpush.xpose.msra.mxu0 0.0
          %3430 = vmatpush.xpose.msra.mxu0 0.0
          %3431 = vmatpush.xpose.msra.mxu0 0.0
          %3432 = vmatpush.xpose.msra.mxu0 0.0
          %3433 = vmatpush.xpose.msra.mxu0 0.0
          %3434 = vmatpush.xpose.msra.mxu0 0.0
          %3435 = vmatpush.xpose.msra.mxu0 0.0
          %3436 = vmatpush.xpose.msra.mxu0 %v526
          %3437 = vmatpush.xpose.msra.mxu0 %v394
          %3438 = vmatmul.f32.gmra.mxu0 %v726
          %v3439 = vpop.f32.mrf.mxu0
          %v3440 = vadd.f32 %v3420, %v3439
          %3441 = vdwg.mxu0
          %3442 = vmatpush.xpose.msra.mxu0 0.0
          %3443 = vmatpush.xpose.msra.mxu0 0.0
          %3444 = vmatpush.xpose.msra.mxu0 0.0
          %3445 = vmatpush.xpose.msra.mxu0 0.0
          %3446 = vmatpush.xpose.msra.mxu0 0.0
          %3447 = vmatpush.xpose.msra.mxu0 0.0
          %3448 = vmatpush.xpose.msra.mxu0 0.0
          %3449 = vmatpush.xpose.msra.mxu0 0.0
          %3450 = vmatpush.xpose.msra.mxu0 0.0
          %3451 = vmatpush.xpose.msra.mxu0 0.0
          %3452 = vmatpush.xpose.msra.mxu0 0.0
          %3453 = vmatpush.xpose.msra.mxu0 0.0
          %3454 = vmatpush.xpose.msra.mxu0 0.0
          %3455 = vmatpush.xpose.msra.mxu0 0.0
          %3456 = vmatpush.xpose.msra.mxu0 %v527
          %3457 = vmatpush.xpose.msra.mxu0 %v395
          %3458 = vmatmul.f32.gmra.mxu0 %v727
          %v3459 = vpop.f32.mrf.mxu0
          %v3460 = vadd.f32 %v3440, %v3459
          %3461 = vdwg.mxu0
          %3462 = vmatpush.xpose.msra.mxu0 0.0
          %3463 = vmatpush.xpose.msra.mxu0 0.0
          %3464 = vmatpush.xpose.msra.mxu0 0.0
          %3465 = vmatpush.xpose.msra.mxu0 0.0
          %3466 = vmatpush.xpose.msra.mxu0 0.0
          %3467 = vmatpush.xpose.msra.mxu0 0.0
          %3468 = vmatpush.xpose.msra.mxu0 0.0
          %3469 = vmatpush.xpose.msra.mxu0 0.0
          %3470 = vmatpush.xpose.msra.mxu0 0.0
          %3471 = vmatpush.xpose.msra.mxu0 0.0
          %3472 = vmatpush.xpose.msra.mxu0 0.0
          %3473 = vmatpush.xpose.msra.mxu0 0.0
          %3474 = vmatpush.xpose.msra.mxu0 0.0
          %3475 = vmatpush.xpose.msra.mxu0 0.0
          %3476 = vmatpush.xpose.msra.mxu0 %v528
          %3477 = vmatpush.xpose.msra.mxu0 %v396
          %3478 = vmatmul.f32.gmra.mxu0 %v728
          %v3479 = vpop.f32.mrf.mxu0
          %v3480 = vadd.f32 %v3460, %v3479
          %3481 = vdwg.mxu0
          %3482 = vmatpush.xpose.msra.mxu0 0.0
          %3483 = vmatpush.xpose.msra.mxu0 0.0
          %3484 = vmatpush.xpose.msra.mxu0 0.0
          %3485 = vmatpush.xpose.msra.mxu0 0.0
          %3486 = vmatpush.xpose.msra.mxu0 0.0
          %3487 = vmatpush.xpose.msra.mxu0 0.0
          %3488 = vmatpush.xpose.msra.mxu0 0.0
          %3489 = vmatpush.xpose.msra.mxu0 0.0
          %3490 = vmatpush.xpose.msra.mxu0 0.0
          %3491 = vmatpush.xpose.msra.mxu0 0.0
          %3492 = vmatpush.xpose.msra.mxu0 0.0
          %3493 = vmatpush.xpose.msra.mxu0 0.0
          %3494 = vmatpush.xpose.msra.mxu0 0.0
          %3495 = vmatpush.xpose.msra.mxu0 0.0
          %3496 = vmatpush.xpose.msra.mxu0 %v529
          %3497 = vmatpush.xpose.msra.mxu0 %v397
          %3498 = vmatmul.f32.gmra.mxu0 %v729
          %v3499 = vpop.f32.mrf.mxu0
          %v3500 = vadd.f32 %v3480, %v3499
          %3501 = vdwg.mxu0
          %v3502 = vadd.f32 %v530, %v3500
          %vm3503 = vcmask 115712
          %3504 = vst.msk [vmem:[%s220] sm:$0x3] %vm3503, %v3502
        $region40: #{svm_forward.1} parent=27 // pred_fallthru
          _
        %p3505 = scmp.eq.s32.totalorder %s228, 3
        // Predicated region
        $region41: #{svm_forward.1} parent=27 // pred_check
          %p3506 = pneg %p3505
        $region42: #{svm_forward.1} parent=27 // pred_check_branch
          %3508 = sbr.rel (%p3506) target = $region44
        $region43: #{svm_forward.1} parent=27 // pred_region
          %v3509 = vlaneseq
          %v3510 = vand.u32 %v3509, 127
          %v3511 = vadd.s32 %v3510, 128
          %v3512 = vadd.s32 %v3510, 256
          %v3513 = vadd.s32 %v3510, 384
          %v3514 = vadd.s32 %v3510, 512
          %v3515 = vadd.s32 %v3510, 640
          %v3516 = vadd.s32 %v3510, 768
          %v3517 = vadd.s32 %v3510, 896
          %v3518 = vadd.s32 %v3510, 1024
          %v3519 = vadd.s32 %v3510, 1152
          %v3520 = vadd.s32 %v3510, 1280
          %v3521 = vadd.s32 %v3510, 1408
          %v3522 = vadd.s32 %v3510, 1536
          %v3523 = vadd.s32 %v3510, 1664
          %v3524 = vadd.s32 %v3510, 1792
          %v3525 = vadd.s32 %v3510, 1920
          %v3526 = vadd.s32 %v3510, 2048
          %v3527 = vadd.s32 %v3510, 2176
          %v3528 = vadd.s32 %v3510, 2304
          %v3529 = vadd.s32 %v3510, 2432
          %v3530 = vadd.s32 %v3510, 2560
          %v3531 = vadd.s32 %v3510, 2688
          %v3532 = vadd.s32 %v3510, 2816
          %v3533 = vadd.s32 %v3510, 2944
          %v3534 = vadd.s32 %v3510, 3072
          %v3535 = vadd.s32 %v3510, 3200
          %v3536 = vadd.s32 %v3510, 3328
          %v3537 = vadd.s32 %v3510, 3456
          %v3538 = vadd.s32 %v3510, 3584
          %v3539 = vadd.s32 %v3510, 3712
          %v3540 = vadd.s32 %v3510, 3840
          %v3541 = vadd.s32 %v3510, 3968
          %v3542 = vadd.s32 %v3510, 4096
          %v3543 = vadd.s32 %v3510, 4224
          %v3544 = vadd.s32 %v3510, 4352
          %v3545 = vadd.s32 %v3510, 4480
          %v3546 = vadd.s32 %v3510, 4608
          %v3547 = vadd.s32 %v3510, 4736
          %v3548 = vadd.s32 %v3510, 4864
          %v3549 = vadd.s32 %v3510, 4992
          %v3550 = vadd.s32 %v3510, 5120
          %v3551 = vadd.s32 %v3510, 5248
          %v3552 = vadd.s32 %v3510, 5376
          %v3553 = vadd.s32 %v3510, 5504
          %v3554 = vadd.s32 %v3510, 5632
          %v3555 = vadd.s32 %v3510, 5760
          %v3556 = vadd.s32 %v3510, 5888
          %v3557 = vadd.s32 %v3510, 6016
          %v3558 = vadd.s32 %v3510, 6144
          %v3559 = vadd.s32 %v3510, 6272
          %v3560 = vadd.s32 %v3510, 6400
          %v3561 = vadd.s32 %v3510, 6528
          %v3562 = vadd.s32 %v3510, 6656
          %v3563 = vadd.s32 %v3510, 6784
          %v3564 = vadd.s32 %v3510, 6912
          %v3565 = vadd.s32 %v3510, 7040
          %v3566 = vadd.s32 %v3510, 7168
          %v3567 = vadd.s32 %v3510, 7296
          %v3568 = vadd.s32 %v3510, 7424
          %v3569 = vadd.s32 %v3510, 7552
          %v3570 = vadd.s32 %v3510, 7680
          %v3571 = vadd.s32 %v3510, 7808
          %v3572 = vadd.s32 %v3510, 7936
          %v3573 = vadd.s32 %v3510, 8064
          %v3574 = vadd.s32 %v3510, 8192
          %v3575 = vadd.s32 %v3510, 8320
          %v3576 = vadd.s32 %v3510, 8448
          %v3577 = vadd.s32 %v3510, 8576
          %v3578 = vadd.s32 %v3510, 8704
          %v3579 = vadd.s32 %v3510, 8832
          %v3580 = vadd.s32 %v3510, 8960
          %v3581 = vadd.s32 %v3510, 9088
          %v3582 = vadd.s32 %v3510, 9216
          %v3583 = vadd.s32 %v3510, 9344
          %v3584 = vadd.s32 %v3510, 9472
          %v3585 = vadd.s32 %v3510, 9600
          %v3586 = vadd.s32 %v3510, 9728
          %v3587 = vadd.s32 %v3510, 9856
          %v3588 = vadd.s32 %v3510, 9984
          %v3589 = vadd.s32 %v3510, 10112
          %v3590 = vadd.s32 %v3510, 10240
          %v3591 = vadd.s32 %v3510, 10368
          %v3592 = vadd.s32 %v3510, 10496
          %v3593 = vadd.s32 %v3510, 10624
          %v3594 = vadd.s32 %v3510, 10752
          %v3595 = vadd.s32 %v3510, 10880
          %v3596 = vadd.s32 %v3510, 11008
          %v3597 = vadd.s32 %v3510, 11136
          %v3598 = vadd.s32 %v3510, 11264
          %v3599 = vadd.s32 %v3510, 11392
          %v3600 = vadd.s32 %v3510, 11520
          %v3601 = vadd.s32 %v3510, 11648
          %v3602 = vadd.s32 %v3510, 11776
          %v3603 = vadd.s32 %v3510, 11904
          %v3604 = vadd.s32 %v3510, 12032
          %v3605 = vadd.s32 %v3510, 12160
          %v3606 = vadd.s32 %v3510, 12288
          %v3607 = vadd.s32 %v3510, 12416
          %v3608 = vadd.s32 %v3510, 12544
          %v3609 = vadd.s32 %v3510, 12672
          %v3610 = vadd.s32 %v3510, 12800
          %v3611 = vadd.s32 %v3510, 12928
          %v3612 = vadd.s32 %v3510, 13056
          %v3613 = vadd.s32 %v3510, 13184
          %v3614 = vadd.s32 %v3510, 13312
          %v3615 = vadd.s32 %v3510, 13440
          %v3616 = vadd.s32 %v3510, 13568
          %v3617 = vadd.s32 %v3510, 13696
          %v3618 = vadd.s32 %v3510, 13824
          %v3619 = vadd.s32 %v3510, 13952
          %v3620 = vadd.s32 %v3510, 14080
          %v3621 = vadd.s32 %v3510, 14208
          %v3622 = vadd.s32 %v3510, 14336
          %v3623 = vadd.s32 %v3510, 14464
          %v3624 = vadd.s32 %v3510, 14592
          %v3625 = vadd.s32 %v3510, 14720
          %v3626 = vadd.s32 %v3510, 14848
          %v3627 = vadd.s32 %v3510, 14976
          %v3628 = vadd.s32 %v3510, 15104
          %v3629 = vadd.s32 %v3510, 15232
          %v3630 = vadd.s32 %v3510, 15360
          %v3631 = vadd.s32 %v3510, 15488
          %v3632 = vadd.s32 %v3510, 15616
          %v3633 = vadd.s32 %v3510, 15744
          %v3634 = vadd.s32 %v3510, 15872
          %v3635 = vadd.s32 %v3510, 16000
          %v3636 = vadd.s32 %v3510, 16128
          %v3637 = vadd.s32 %v3510, 16256
          %v3638 = vadd.s32 %v3510, 16384
          %v3639 = vadd.s32 %v3510, 16512
          %v3640 = vadd.s32 %v3510, 16640
          %v3641 = vadd.s32 %v3510, 16768
          %vm3642 = vcmp.lt.s32.totalorder %v3510, 16812
          %vm3643 = vcmp.lt.s32.totalorder %v3511, 16812
          %vm3644 = vcmp.lt.s32.totalorder %v3512, 16812
          %vm3645 = vcmp.lt.s32.totalorder %v3513, 16812
          %vm3646 = vcmp.lt.s32.totalorder %v3514, 16812
          %vm3647 = vcmp.lt.s32.totalorder %v3515, 16812
          %vm3648 = vcmp.lt.s32.totalorder %v3516, 16812
          %vm3649 = vcmp.lt.s32.totalorder %v3517, 16812
          %vm3650 = vcmp.lt.s32.totalorder %v3518, 16812
          %vm3651 = vcmp.lt.s32.totalorder %v3519, 16812
          %vm3652 = vcmp.lt.s32.totalorder %v3520, 16812
          %vm3653 = vcmp.lt.s32.totalorder %v3521, 16812
          %vm3654 = vcmp.lt.s32.totalorder %v3522, 16812
          %vm3655 = vcmp.lt.s32.totalorder %v3523, 16812
          %vm3656 = vcmp.lt.s32.totalorder %v3524, 16812
          %vm3657 = vcmp.lt.s32.totalorder %v3525, 16812
          %vm3658 = vcmp.lt.s32.totalorder %v3526, 16812
          %vm3659 = vcmp.lt.s32.totalorder %v3527, 16812
          %vm3660 = vcmp.lt.s32.totalorder %v3528, 16812
          %vm3661 = vcmp.lt.s32.totalorder %v3529, 16812
          %vm3662 = vcmp.lt.s32.totalorder %v3530, 16812
          %vm3663 = vcmp.lt.s32.totalorder %v3531, 16812
          %vm3664 = vcmp.lt.s32.totalorder %v3532, 16812
          %vm3665 = vcmp.lt.s32.totalorder %v3533, 16812
          %vm3666 = vcmp.lt.s32.totalorder %v3534, 16812
          %vm3667 = vcmp.lt.s32.totalorder %v3535, 16812
          %vm3668 = vcmp.lt.s32.totalorder %v3536, 16812
          %vm3669 = vcmp.lt.s32.totalorder %v3537, 16812
          %vm3670 = vcmp.lt.s32.totalorder %v3538, 16812
          %vm3671 = vcmp.lt.s32.totalorder %v3539, 16812
          %vm3672 = vcmp.lt.s32.totalorder %v3540, 16812
          %vm3673 = vcmp.lt.s32.totalorder %v3541, 16812
          %vm3674 = vcmp.lt.s32.totalorder %v3542, 16812
          %vm3675 = vcmp.lt.s32.totalorder %v3543, 16812
          %vm3676 = vcmp.lt.s32.totalorder %v3544, 16812
          %vm3677 = vcmp.lt.s32.totalorder %v3545, 16812
          %vm3678 = vcmp.lt.s32.totalorder %v3546, 16812
          %vm3679 = vcmp.lt.s32.totalorder %v3547, 16812
          %vm3680 = vcmp.lt.s32.totalorder %v3548, 16812
          %vm3681 = vcmp.lt.s32.totalorder %v3549, 16812
          %vm3682 = vcmp.lt.s32.totalorder %v3550, 16812
          %vm3683 = vcmp.lt.s32.totalorder %v3551, 16812
          %vm3684 = vcmp.lt.s32.totalorder %v3552, 16812
          %vm3685 = vcmp.lt.s32.totalorder %v3553, 16812
          %vm3686 = vcmp.lt.s32.totalorder %v3554, 16812
          %vm3687 = vcmp.lt.s32.totalorder %v3555, 16812
          %vm3688 = vcmp.lt.s32.totalorder %v3556, 16812
          %vm3689 = vcmp.lt.s32.totalorder %v3557, 16812
          %vm3690 = vcmp.lt.s32.totalorder %v3558, 16812
          %vm3691 = vcmp.lt.s32.totalorder %v3559, 16812
          %vm3692 = vcmp.lt.s32.totalorder %v3560, 16812
          %vm3693 = vcmp.lt.s32.totalorder %v3561, 16812
          %vm3694 = vcmp.lt.s32.totalorder %v3562, 16812
          %vm3695 = vcmp.lt.s32.totalorder %v3563, 16812
          %vm3696 = vcmp.lt.s32.totalorder %v3564, 16812
          %vm3697 = vcmp.lt.s32.totalorder %v3565, 16812
          %vm3698 = vcmp.lt.s32.totalorder %v3566, 16812
          %vm3699 = vcmp.lt.s32.totalorder %v3567, 16812
          %vm3700 = vcmp.lt.s32.totalorder %v3568, 16812
          %vm3701 = vcmp.lt.s32.totalorder %v3569, 16812
          %vm3702 = vcmp.lt.s32.totalorder %v3570, 16812
          %vm3703 = vcmp.lt.s32.totalorder %v3571, 16812
          %vm3704 = vcmp.lt.s32.totalorder %v3572, 16812
          %vm3705 = vcmp.lt.s32.totalorder %v3573, 16812
          %vm3706 = vcmp.lt.s32.totalorder %v3574, 16812
          %vm3707 = vcmp.lt.s32.totalorder %v3575, 16812
          %vm3708 = vcmp.lt.s32.totalorder %v3576, 16812
          %vm3709 = vcmp.lt.s32.totalorder %v3577, 16812
          %vm3710 = vcmp.lt.s32.totalorder %v3578, 16812
          %vm3711 = vcmp.lt.s32.totalorder %v3579, 16812
          %vm3712 = vcmp.lt.s32.totalorder %v3580, 16812
          %vm3713 = vcmp.lt.s32.totalorder %v3581, 16812
          %vm3714 = vcmp.lt.s32.totalorder %v3582, 16812
          %vm3715 = vcmp.lt.s32.totalorder %v3583, 16812
          %vm3716 = vcmp.lt.s32.totalorder %v3584, 16812
          %vm3717 = vcmp.lt.s32.totalorder %v3585, 16812
          %vm3718 = vcmp.lt.s32.totalorder %v3586, 16812
          %vm3719 = vcmp.lt.s32.totalorder %v3587, 16812
          %vm3720 = vcmp.lt.s32.totalorder %v3588, 16812
          %vm3721 = vcmp.lt.s32.totalorder %v3589, 16812
          %vm3722 = vcmp.lt.s32.totalorder %v3590, 16812
          %vm3723 = vcmp.lt.s32.totalorder %v3591, 16812
          %vm3724 = vcmp.lt.s32.totalorder %v3592, 16812
          %vm3725 = vcmp.lt.s32.totalorder %v3593, 16812
          %vm3726 = vcmp.lt.s32.totalorder %v3594, 16812
          %vm3727 = vcmp.lt.s32.totalorder %v3595, 16812
          %vm3728 = vcmp.lt.s32.totalorder %v3596, 16812
          %vm3729 = vcmp.lt.s32.totalorder %v3597, 16812
          %vm3730 = vcmp.lt.s32.totalorder %v3598, 16812
          %vm3731 = vcmp.lt.s32.totalorder %v3599, 16812
          %vm3732 = vcmp.lt.s32.totalorder %v3600, 16812
          %vm3733 = vcmp.lt.s32.totalorder %v3601, 16812
          %vm3734 = vcmp.lt.s32.totalorder %v3602, 16812
          %vm3735 = vcmp.lt.s32.totalorder %v3603, 16812
          %vm3736 = vcmp.lt.s32.totalorder %v3604, 16812
          %vm3737 = vcmp.lt.s32.totalorder %v3605, 16812
          %vm3738 = vcmp.lt.s32.totalorder %v3606, 16812
          %vm3739 = vcmp.lt.s32.totalorder %v3607, 16812
          %vm3740 = vcmp.lt.s32.totalorder %v3608, 16812
          %vm3741 = vcmp.lt.s32.totalorder %v3609, 16812
          %vm3742 = vcmp.lt.s32.totalorder %v3610, 16812
          %vm3743 = vcmp.lt.s32.totalorder %v3611, 16812
          %vm3744 = vcmp.lt.s32.totalorder %v3612, 16812
          %vm3745 = vcmp.lt.s32.totalorder %v3613, 16812
          %vm3746 = vcmp.lt.s32.totalorder %v3614, 16812
          %vm3747 = vcmp.lt.s32.totalorder %v3615, 16812
          %vm3748 = vcmp.lt.s32.totalorder %v3616, 16812
          %vm3749 = vcmp.lt.s32.totalorder %v3617, 16812
          %vm3750 = vcmp.lt.s32.totalorder %v3618, 16812
          %vm3751 = vcmp.lt.s32.totalorder %v3619, 16812
          %vm3752 = vcmp.lt.s32.totalorder %v3620, 16812
          %vm3753 = vcmp.lt.s32.totalorder %v3621, 16812
          %vm3754 = vcmp.lt.s32.totalorder %v3622, 16812
          %vm3755 = vcmp.lt.s32.totalorder %v3623, 16812
          %vm3756 = vcmp.lt.s32.totalorder %v3624, 16812
          %vm3757 = vcmp.lt.s32.totalorder %v3625, 16812
          %vm3758 = vcmp.lt.s32.totalorder %v3626, 16812
          %vm3759 = vcmp.lt.s32.totalorder %v3627, 16812
          %vm3760 = vcmp.lt.s32.totalorder %v3628, 16812
          %vm3761 = vcmp.lt.s32.totalorder %v3629, 16812
          %vm3762 = vcmp.lt.s32.totalorder %v3630, 16812
          %vm3763 = vcmp.lt.s32.totalorder %v3631, 16812
          %vm3764 = vcmp.lt.s32.totalorder %v3632, 16812
          %vm3765 = vcmp.lt.s32.totalorder %v3633, 16812
          %vm3766 = vcmp.lt.s32.totalorder %v3634, 16812
          %vm3767 = vcmp.lt.s32.totalorder %v3635, 16812
          %vm3768 = vcmp.lt.s32.totalorder %v3636, 16812
          %vm3769 = vcmp.lt.s32.totalorder %v3637, 16812
          %vm3770 = vcmp.lt.s32.totalorder %v3638, 16812
          %vm3771 = vcmp.lt.s32.totalorder %v3639, 16812
          %vm3772 = vcmp.lt.s32.totalorder %v3640, 16812
          %vm3773 = vcmp.lt.s32.totalorder %v3641, 16812
          %v3774 = vld [vmem:[%s210] sm:$0xff]
          %v3775 = vld [vmem:[%s210 + $0x8] sm:$0xff]
          %v3776 = vld [vmem:[%s210 + $0x10] sm:$0xff]
          %v3777 = vld [vmem:[%s210 + $0x18] sm:$0xff]
          %v3778 = vld [vmem:[%s210 + $0x20] sm:$0xff]
          %v3779 = vld [vmem:[%s210 + $0x28] sm:$0xff]
          %v3780 = vld [vmem:[%s210 + $0x30] sm:$0xff]
          %v3781 = vld [vmem:[%s210 + $0x38] sm:$0xff]
          %v3782 = vld [vmem:[%s210 + $0x40] sm:$0xff]
          %v3783 = vld [vmem:[%s210 + $0x48] sm:$0xff]
          %v3784 = vld [vmem:[%s210 + $0x50] sm:$0xff]
          %v3785 = vld [vmem:[%s210 + $0x58] sm:$0xff]
          %v3786 = vld [vmem:[%s210 + $0x60] sm:$0xff]
          %v3787 = vld [vmem:[%s210 + $0x68] sm:$0xff]
          %v3788 = vld [vmem:[%s210 + $0x70] sm:$0xff]
          %v3789 = vld [vmem:[%s210 + $0x78] sm:$0xff]
          %v3790 = vld [vmem:[%s210 + $0x80] sm:$0xff]
          %v3791 = vld [vmem:[%s210 + $0x88] sm:$0xff]
          %v3792 = vld [vmem:[%s210 + $0x90] sm:$0xff]
          %v3793 = vld [vmem:[%s210 + $0x98] sm:$0xff]
          %v3794 = vld [vmem:[%s210 + $0xa0] sm:$0xff]
          %v3795 = vld [vmem:[%s210 + $0xa8] sm:$0xff]
          %v3796 = vld [vmem:[%s210 + $0xb0] sm:$0xff]
          %v3797 = vld [vmem:[%s210 + $0xb8] sm:$0xff]
          %v3798 = vld [vmem:[%s210 + $0xc0] sm:$0xff]
          %v3799 = vld [vmem:[%s210 + $0xc8] sm:$0xff]
          %v3800 = vld [vmem:[%s210 + $0xd0] sm:$0xff]
          %v3801 = vld [vmem:[%s210 + $0xd8] sm:$0xff]
          %v3802 = vld [vmem:[%s210 + $0xe0] sm:$0xff]
          %v3803 = vld [vmem:[%s210 + $0xe8] sm:$0xff]
          %v3804 = vld [vmem:[%s210 + $0xf0] sm:$0xff]
          %v3805 = vld [vmem:[%s210 + $0xf8] sm:$0xff]
          %v3806 = vld [vmem:[%s210 + $0x100] sm:$0xff]
          %v3807 = vsel %vm3642, 1, 0
          %v3808 = vsel %vm3643, 1, 0
          %v3809 = vsel %vm3644, 1, 0
          %v3810 = vsel %vm3645, 1, 0
          %v3811 = vsel %vm3646, 1, 0
          %v3812 = vsel %vm3647, 1, 0
          %v3813 = vsel %vm3648, 1, 0
          %v3814 = vsel %vm3649, 1, 0
          %v3815 = vsel %vm3650, 1, 0
          %v3816 = vsel %vm3651, 1, 0
          %v3817 = vsel %vm3652, 1, 0
          %v3818 = vsel %vm3653, 1, 0
          %v3819 = vsel %vm3654, 1, 0
          %v3820 = vsel %vm3655, 1, 0
          %v3821 = vsel %vm3656, 1, 0
          %v3822 = vsel %vm3657, 1, 0
          %v3823 = vsel %vm3658, 1, 0
          %v3824 = vsel %vm3659, 1, 0
          %v3825 = vsel %vm3660, 1, 0
          %v3826 = vsel %vm3661, 1, 0
          %v3827 = vsel %vm3662, 1, 0
          %v3828 = vsel %vm3663, 1, 0
          %v3829 = vsel %vm3664, 1, 0
          %v3830 = vsel %vm3665, 1, 0
          %v3831 = vsel %vm3666, 1, 0
          %v3832 = vsel %vm3667, 1, 0
          %v3833 = vsel %vm3668, 1, 0
          %v3834 = vsel %vm3669, 1, 0
          %v3835 = vsel %vm3670, 1, 0
          %v3836 = vsel %vm3671, 1, 0
          %v3837 = vsel %vm3672, 1, 0
          %v3838 = vsel %vm3673, 1, 0
          %v3839 = vsel %vm3674, 1, 0
          %v3840 = vsel %vm3675, 1, 0
          %v3841 = vsel %vm3676, 1, 0
          %v3842 = vsel %vm3677, 1, 0
          %v3843 = vsel %vm3678, 1, 0
          %v3844 = vsel %vm3679, 1, 0
          %v3845 = vsel %vm3680, 1, 0
          %v3846 = vsel %vm3681, 1, 0
          %v3847 = vsel %vm3682, 1, 0
          %v3848 = vsel %vm3683, 1, 0
          %v3849 = vsel %vm3684, 1, 0
          %v3850 = vsel %vm3685, 1, 0
          %v3851 = vsel %vm3686, 1, 0
          %v3852 = vsel %vm3687, 1, 0
          %v3853 = vsel %vm3688, 1, 0
          %v3854 = vsel %vm3689, 1, 0
          %v3855 = vsel %vm3690, 1, 0
          %v3856 = vsel %vm3691, 1, 0
          %v3857 = vsel %vm3692, 1, 0
          %v3858 = vsel %vm3693, 1, 0
          %v3859 = vsel %vm3694, 1, 0
          %v3860 = vsel %vm3695, 1, 0
          %v3861 = vsel %vm3696, 1, 0
          %v3862 = vsel %vm3697, 1, 0
          %v3863 = vsel %vm3698, 1, 0
          %v3864 = vsel %vm3699, 1, 0
          %v3865 = vsel %vm3700, 1, 0
          %v3866 = vsel %vm3701, 1, 0
          %v3867 = vsel %vm3702, 1, 0
          %v3868 = vsel %vm3703, 1, 0
          %v3869 = vsel %vm3704, 1, 0
          %v3870 = vsel %vm3705, 1, 0
          %v3871 = vsel %vm3706, 1, 0
          %v3872 = vsel %vm3707, 1, 0
          %v3873 = vsel %vm3708, 1, 0
          %v3874 = vsel %vm3709, 1, 0
          %v3875 = vsel %vm3710, 1, 0
          %v3876 = vsel %vm3711, 1, 0
          %v3877 = vsel %vm3712, 1, 0
          %v3878 = vsel %vm3713, 1, 0
          %v3879 = vsel %vm3714, 1, 0
          %v3880 = vsel %vm3715, 1, 0
          %v3881 = vsel %vm3716, 1, 0
          %v3882 = vsel %vm3717, 1, 0
          %v3883 = vsel %vm3718, 1, 0
          %v3884 = vsel %vm3719, 1, 0
          %v3885 = vsel %vm3720, 1, 0
          %v3886 = vsel %vm3721, 1, 0
          %v3887 = vsel %vm3722, 1, 0
          %v3888 = vsel %vm3723, 1, 0
          %v3889 = vsel %vm3724, 1, 0
          %v3890 = vsel %vm3725, 1, 0
          %v3891 = vsel %vm3726, 1, 0
          %v3892 = vsel %vm3727, 1, 0
          %v3893 = vsel %vm3728, 1, 0
          %v3894 = vsel %vm3729, 1, 0
          %v3895 = vsel %vm3730, 1, 0
          %v3896 = vsel %vm3731, 1, 0
          %v3897 = vsel %vm3732, 1, 0
          %v3898 = vsel %vm3733, 1, 0
          %v3899 = vsel %vm3734, 1, 0
          %v3900 = vsel %vm3735, 1, 0
          %v3901 = vsel %vm3736, 1, 0
          %v3902 = vsel %vm3737, 1, 0
          %v3903 = vsel %vm3738, 1, 0
          %v3904 = vsel %vm3739, 1, 0
          %v3905 = vsel %vm3740, 1, 0
          %v3906 = vsel %vm3741, 1, 0
          %v3907 = vsel %vm3742, 1, 0
          %v3908 = vsel %vm3743, 1, 0
          %v3909 = vsel %vm3744, 1, 0
          %v3910 = vsel %vm3745, 1, 0
          %v3911 = vsel %vm3746, 1, 0
          %v3912 = vsel %vm3747, 1, 0
          %v3913 = vsel %vm3748, 1, 0
          %v3914 = vsel %vm3749, 1, 0
          %v3915 = vsel %vm3750, 1, 0
          %v3916 = vsel %vm3751, 1, 0
          %v3917 = vsel %vm3752, 1, 0
          %v3918 = vsel %vm3753, 1, 0
          %v3919 = vsel %vm3754, 1, 0
          %v3920 = vsel %vm3755, 1, 0
          %v3921 = vsel %vm3756, 1, 0
          %v3922 = vsel %vm3757, 1, 0
          %v3923 = vsel %vm3758, 1, 0
          %v3924 = vsel %vm3759, 1, 0
          %v3925 = vsel %vm3760, 1, 0
          %v3926 = vsel %vm3761, 1, 0
          %v3927 = vsel %vm3762, 1, 0
          %v3928 = vsel %vm3763, 1, 0
          %v3929 = vsel %vm3764, 1, 0
          %v3930 = vsel %vm3765, 1, 0
          %v3931 = vsel %vm3766, 1, 0
          %v3932 = vsel %vm3767, 1, 0
          %v3933 = vsel %vm3768, 1, 0
          %v3934 = vsel %vm3769, 1, 0
          %v3935 = vsel %vm3770, 1, 0
          %v3936 = vsel %vm3771, 1, 0
          %v3937 = vsel %vm3772, 1, 0
          %v3938 = vsel %vm3773, 1, 0
          %vm3939 = vcmp.eq.s32.totalorder %v3807, 1
          %vm3940 = vcmp.eq.s32.totalorder %v3808, 1
          %vm3941 = vcmp.eq.s32.totalorder %v3809, 1
          %vm3942 = vcmp.eq.s32.totalorder %v3810, 1
          %vm3943 = vcmp.eq.s32.totalorder %v3811, 1
          %vm3944 = vcmp.eq.s32.totalorder %v3812, 1
          %vm3945 = vcmp.eq.s32.totalorder %v3813, 1
          %vm3946 = vcmp.eq.s32.totalorder %v3814, 1
          %vm3947 = vcmp.eq.s32.totalorder %v3815, 1
          %vm3948 = vcmp.eq.s32.totalorder %v3816, 1
          %vm3949 = vcmp.eq.s32.totalorder %v3817, 1
          %vm3950 = vcmp.eq.s32.totalorder %v3818, 1
          %vm3951 = vcmp.eq.s32.totalorder %v3819, 1
          %vm3952 = vcmp.eq.s32.totalorder %v3820, 1
          %vm3953 = vcmp.eq.s32.totalorder %v3821, 1
          %vm3954 = vcmp.eq.s32.totalorder %v3822, 1
          %vm3955 = vcmp.eq.s32.totalorder %v3823, 1
          %vm3956 = vcmp.eq.s32.totalorder %v3824, 1
          %vm3957 = vcmp.eq.s32.totalorder %v3825, 1
          %vm3958 = vcmp.eq.s32.totalorder %v3826, 1
          %vm3959 = vcmp.eq.s32.totalorder %v3827, 1
          %vm3960 = vcmp.eq.s32.totalorder %v3828, 1
          %vm3961 = vcmp.eq.s32.totalorder %v3829, 1
          %vm3962 = vcmp.eq.s32.totalorder %v3830, 1
          %vm3963 = vcmp.eq.s32.totalorder %v3831, 1
          %vm3964 = vcmp.eq.s32.totalorder %v3832, 1
          %vm3965 = vcmp.eq.s32.totalorder %v3833, 1
          %vm3966 = vcmp.eq.s32.totalorder %v3834, 1
          %vm3967 = vcmp.eq.s32.totalorder %v3835, 1
          %vm3968 = vcmp.eq.s32.totalorder %v3836, 1
          %vm3969 = vcmp.eq.s32.totalorder %v3837, 1
          %vm3970 = vcmp.eq.s32.totalorder %v3838, 1
          %vm3971 = vcmp.eq.s32.totalorder %v3839, 1
          %vm3972 = vcmp.eq.s32.totalorder %v3840, 1
          %vm3973 = vcmp.eq.s32.totalorder %v3841, 1
          %vm3974 = vcmp.eq.s32.totalorder %v3842, 1
          %vm3975 = vcmp.eq.s32.totalorder %v3843, 1
          %vm3976 = vcmp.eq.s32.totalorder %v3844, 1
          %vm3977 = vcmp.eq.s32.totalorder %v3845, 1
          %vm3978 = vcmp.eq.s32.totalorder %v3846, 1
          %vm3979 = vcmp.eq.s32.totalorder %v3847, 1
          %vm3980 = vcmp.eq.s32.totalorder %v3848, 1
          %vm3981 = vcmp.eq.s32.totalorder %v3849, 1
          %vm3982 = vcmp.eq.s32.totalorder %v3850, 1
          %vm3983 = vcmp.eq.s32.totalorder %v3851, 1
          %vm3984 = vcmp.eq.s32.totalorder %v3852, 1
          %vm3985 = vcmp.eq.s32.totalorder %v3853, 1
          %vm3986 = vcmp.eq.s32.totalorder %v3854, 1
          %vm3987 = vcmp.eq.s32.totalorder %v3855, 1
          %vm3988 = vcmp.eq.s32.totalorder %v3856, 1
          %vm3989 = vcmp.eq.s32.totalorder %v3857, 1
          %vm3990 = vcmp.eq.s32.totalorder %v3858, 1
          %vm3991 = vcmp.eq.s32.totalorder %v3859, 1
          %vm3992 = vcmp.eq.s32.totalorder %v3860, 1
          %vm3993 = vcmp.eq.s32.totalorder %v3861, 1
          %vm3994 = vcmp.eq.s32.totalorder %v3862, 1
          %vm3995 = vcmp.eq.s32.totalorder %v3863, 1
          %vm3996 = vcmp.eq.s32.totalorder %v3864, 1
          %vm3997 = vcmp.eq.s32.totalorder %v3865, 1
          %vm3998 = vcmp.eq.s32.totalorder %v3866, 1
          %vm3999 = vcmp.eq.s32.totalorder %v3867, 1
          %vm4000 = vcmp.eq.s32.totalorder %v3868, 1
          %vm4001 = vcmp.eq.s32.totalorder %v3869, 1
          %vm4002 = vcmp.eq.s32.totalorder %v3870, 1
          %vm4003 = vcmp.eq.s32.totalorder %v3871, 1
          %vm4004 = vcmp.eq.s32.totalorder %v3872, 1
          %vm4005 = vcmp.eq.s32.totalorder %v3873, 1
          %vm4006 = vcmp.eq.s32.totalorder %v3874, 1
          %vm4007 = vcmp.eq.s32.totalorder %v3875, 1
          %vm4008 = vcmp.eq.s32.totalorder %v3876, 1
          %vm4009 = vcmp.eq.s32.totalorder %v3877, 1
          %vm4010 = vcmp.eq.s32.totalorder %v3878, 1
          %vm4011 = vcmp.eq.s32.totalorder %v3879, 1
          %vm4012 = vcmp.eq.s32.totalorder %v3880, 1
          %vm4013 = vcmp.eq.s32.totalorder %v3881, 1
          %vm4014 = vcmp.eq.s32.totalorder %v3882, 1
          %vm4015 = vcmp.eq.s32.totalorder %v3883, 1
          %vm4016 = vcmp.eq.s32.totalorder %v3884, 1
          %vm4017 = vcmp.eq.s32.totalorder %v3885, 1
          %vm4018 = vcmp.eq.s32.totalorder %v3886, 1
          %vm4019 = vcmp.eq.s32.totalorder %v3887, 1
          %vm4020 = vcmp.eq.s32.totalorder %v3888, 1
          %vm4021 = vcmp.eq.s32.totalorder %v3889, 1
          %vm4022 = vcmp.eq.s32.totalorder %v3890, 1
          %vm4023 = vcmp.eq.s32.totalorder %v3891, 1
          %vm4024 = vcmp.eq.s32.totalorder %v3892, 1
          %vm4025 = vcmp.eq.s32.totalorder %v3893, 1
          %vm4026 = vcmp.eq.s32.totalorder %v3894, 1
          %vm4027 = vcmp.eq.s32.totalorder %v3895, 1
          %vm4028 = vcmp.eq.s32.totalorder %v3896, 1
          %vm4029 = vcmp.eq.s32.totalorder %v3897, 1
          %vm4030 = vcmp.eq.s32.totalorder %v3898, 1
          %vm4031 = vcmp.eq.s32.totalorder %v3899, 1
          %vm4032 = vcmp.eq.s32.totalorder %v3900, 1
          %vm4033 = vcmp.eq.s32.totalorder %v3901, 1
          %vm4034 = vcmp.eq.s32.totalorder %v3902, 1
          %vm4035 = vcmp.eq.s32.totalorder %v3903, 1
          %vm4036 = vcmp.eq.s32.totalorder %v3904, 1
          %vm4037 = vcmp.eq.s32.totalorder %v3905, 1
          %vm4038 = vcmp.eq.s32.totalorder %v3906, 1
          %vm4039 = vcmp.eq.s32.totalorder %v3907, 1
          %vm4040 = vcmp.eq.s32.totalorder %v3908, 1
          %vm4041 = vcmp.eq.s32.totalorder %v3909, 1
          %vm4042 = vcmp.eq.s32.totalorder %v3910, 1
          %vm4043 = vcmp.eq.s32.totalorder %v3911, 1
          %vm4044 = vcmp.eq.s32.totalorder %v3912, 1
          %vm4045 = vcmp.eq.s32.totalorder %v3913, 1
          %vm4046 = vcmp.eq.s32.totalorder %v3914, 1
          %vm4047 = vcmp.eq.s32.totalorder %v3915, 1
          %vm4048 = vcmp.eq.s32.totalorder %v3916, 1
          %vm4049 = vcmp.eq.s32.totalorder %v3917, 1
          %vm4050 = vcmp.eq.s32.totalorder %v3918, 1
          %vm4051 = vcmp.eq.s32.totalorder %v3919, 1
          %vm4052 = vcmp.eq.s32.totalorder %v3920, 1
          %vm4053 = vcmp.eq.s32.totalorder %v3921, 1
          %vm4054 = vcmp.eq.s32.totalorder %v3922, 1
          %vm4055 = vcmp.eq.s32.totalorder %v3923, 1
          %vm4056 = vcmp.eq.s32.totalorder %v3924, 1
          %vm4057 = vcmp.eq.s32.totalorder %v3925, 1
          %vm4058 = vcmp.eq.s32.totalorder %v3926, 1
          %vm4059 = vcmp.eq.s32.totalorder %v3927, 1
          %vm4060 = vcmp.eq.s32.totalorder %v3928, 1
          %vm4061 = vcmp.eq.s32.totalorder %v3929, 1
          %vm4062 = vcmp.eq.s32.totalorder %v3930, 1
          %vm4063 = vcmp.eq.s32.totalorder %v3931, 1
          %vm4064 = vcmp.eq.s32.totalorder %v3932, 1
          %vm4065 = vcmp.eq.s32.totalorder %v3933, 1
          %vm4066 = vcmp.eq.s32.totalorder %v3934, 1
          %vm4067 = vcmp.eq.s32.totalorder %v3935, 1
          %vm4068 = vcmp.eq.s32.totalorder %v3936, 1
          %vm4069 = vcmp.eq.s32.totalorder %v3937, 1
          %vm4070 = vcmp.eq.s32.totalorder %v3938, 1
          %4104 = vst [vmem:[#allocation1] ss:$4 sm:$0xff] %v3774
          %s4105 = scalar_lea.vmem [#allocation1], 32
          %4106 = vst [vmem:[%s4105] ss:$4 sm:$0xff] %v3775
          %v4107 = vld.sshfl [vmem:[#allocation1] sm:$0xff pattern:$0x73625140]
          %v4108 = vld.sshfl [vmem:[#allocation1 + $0x8] sm:$0xff pattern:$0x73625140]
          %v4109 = vld.sshfl [vmem:[#allocation1 + $0x10] sm:$0xff pattern:$0x73625140]
          %v4110 = vld.sshfl [vmem:[#allocation1 + $0x18] sm:$0xff pattern:$0x73625140]
          %v4111 = vld.sshfl [vmem:[#allocation1 + $0x20] sm:$0xff pattern:$0x73625140]
          %v4112 = vld.sshfl [vmem:[#allocation1 + $0x28] sm:$0xff pattern:$0x73625140]
          %v4113 = vld.sshfl [vmem:[#allocation1 + $0x30] sm:$0xff pattern:$0x73625140]
          %v4114 = vld.sshfl [vmem:[#allocation1 + $0x38] sm:$0xff pattern:$0x73625140]
          %4115 = vst [vmem:[#allocation1] ss:$4 sm:$0xff] %v3776
          %4116 = vst [vmem:[%s4105] ss:$4 sm:$0xff] %v3777
          %v4117 = vld.sshfl [vmem:[#allocation1] sm:$0xff pattern:$0x73625140]
          %v4118 = vld.sshfl [vmem:[#allocation1 + $0x8] sm:$0xff pattern:$0x73625140]
          %v4119 = vld.sshfl [vmem:[#allocation1 + $0x10] sm:$0xff pattern:$0x73625140]
          %v4120 = vld.sshfl [vmem:[#allocation1 + $0x18] sm:$0xff pattern:$0x73625140]
          %v4121 = vld.sshfl [vmem:[#allocation1 + $0x20] sm:$0xff pattern:$0x73625140]
          %v4122 = vld.sshfl [vmem:[#allocation1 + $0x28] sm:$0xff pattern:$0x73625140]
          %v4123 = vld.sshfl [vmem:[#allocation1 + $0x30] sm:$0xff pattern:$0x73625140]
          %v4124 = vld.sshfl [vmem:[#allocation1 + $0x38] sm:$0xff pattern:$0x73625140]
          %4125 = vst [vmem:[#allocation1] ss:$4 sm:$0xff] %v3778
          %4126 = vst [vmem:[%s4105] ss:$4 sm:$0xff] %v3779
          %v4127 = vld.sshfl [vmem:[#allocation1] sm:$0xff pattern:$0x73625140]
          %v4128 = vld.sshfl [vmem:[#allocation1 + $0x8] sm:$0xff pattern:$0x73625140]
          %v4129 = vld.sshfl [vmem:[#allocation1 + $0x10] sm:$0xff pattern:$0x73625140]
          %v4130 = vld.sshfl [vmem:[#allocation1 + $0x18] sm:$0xff pattern:$0x73625140]
          %v4131 = vld.sshfl [vmem:[#allocation1 + $0x20] sm:$0xff pattern:$0x73625140]
          %v4132 = vld.sshfl [vmem:[#allocation1 + $0x28] sm:$0xff pattern:$0x73625140]
          %v4133 = vld.sshfl [vmem:[#allocation1 + $0x30] sm:$0xff pattern:$0x73625140]
          %v4134 = vld.sshfl [vmem:[#allocation1 + $0x38] sm:$0xff pattern:$0x73625140]
          %4135 = vst [vmem:[#allocation1] ss:$4 sm:$0xff] %v3780
          %4136 = vst [vmem:[%s4105] ss:$4 sm:$0xff] %v3781
          %v4137 = vld.sshfl [vmem:[#allocation1] sm:$0xff pattern:$0x73625140]
          %v4138 = vld.sshfl [vmem:[#allocation1 + $0x8] sm:$0xff pattern:$0x73625140]
          %v4139 = vld.sshfl [vmem:[#allocation1 + $0x10] sm:$0xff pattern:$0x73625140]
          %v4140 = vld.sshfl [vmem:[#allocation1 + $0x18] sm:$0xff pattern:$0x73625140]
          %v4141 = vld.sshfl [vmem:[#allocation1 + $0x20] sm:$0xff pattern:$0x73625140]
          %v4142 = vld.sshfl [vmem:[#allocation1 + $0x28] sm:$0xff pattern:$0x73625140]
          %v4143 = vld.sshfl [vmem:[#allocation1 + $0x30] sm:$0xff pattern:$0x73625140]
          %v4144 = vld.sshfl [vmem:[#allocation1 + $0x38] sm:$0xff pattern:$0x73625140]
          %4145 = vst [vmem:[#allocation1] ss:$4 sm:$0xff] %v3782
          %4146 = vst [vmem:[%s4105] ss:$4 sm:$0xff] %v3783
          %v4147 = vld.sshfl [vmem:[#allocation1] sm:$0xff pattern:$0x73625140]
          %v4148 = vld.sshfl [vmem:[#allocation1 + $0x8] sm:$0xff pattern:$0x73625140]
          %v4149 = vld.sshfl [vmem:[#allocation1 + $0x10] sm:$0xff pattern:$0x73625140]
          %v4150 = vld.sshfl [vmem:[#allocation1 + $0x18] sm:$0xff pattern:$0x73625140]
          %v4151 = vld.sshfl [vmem:[#allocation1 + $0x20] sm:$0xff pattern:$0x73625140]
          %v4152 = vld.sshfl [vmem:[#allocation1 + $0x28] sm:$0xff pattern:$0x73625140]
          %v4153 = vld.sshfl [vmem:[#allocation1 + $0x30] sm:$0xff pattern:$0x73625140]
          %v4154 = vld.sshfl [vmem:[#allocation1 + $0x38] sm:$0xff pattern:$0x73625140]
          %4155 = vst [vmem:[#allocation1] ss:$4 sm:$0xff] %v3784
          %4156 = vst [vmem:[%s4105] ss:$4 sm:$0xff] %v3785
          %v4157 = vld.sshfl [vmem:[#allocation1] sm:$0xff pattern:$0x73625140]
          %v4158 = vld.sshfl [vmem:[#allocation1 + $0x8] sm:$0xff pattern:$0x73625140]
          %v4159 = vld.sshfl [vmem:[#allocation1 + $0x10] sm:$0xff pattern:$0x73625140]
          %v4160 = vld.sshfl [vmem:[#allocation1 + $0x18] sm:$0xff pattern:$0x73625140]
          %v4161 = vld.sshfl [vmem:[#allocation1 + $0x20] sm:$0xff pattern:$0x73625140]
          %v4162 = vld.sshfl [vmem:[#allocation1 + $0x28] sm:$0xff pattern:$0x73625140]
          %v4163 = vld.sshfl [vmem:[#allocation1 + $0x30] sm:$0xff pattern:$0x73625140]
          %v4164 = vld.sshfl [vmem:[#allocation1 + $0x38] sm:$0xff pattern:$0x73625140]
          %4165 = vst [vmem:[#allocation1] ss:$4 sm:$0xff] %v3786
          %4166 = vst [vmem:[%s4105] ss:$4 sm:$0xff] %v3787
          %v4167 = vld.sshfl [vmem:[#allocation1] sm:$0xff pattern:$0x73625140]
          %v4168 = vld.sshfl [vmem:[#allocation1 + $0x8] sm:$0xff pattern:$0x73625140]
          %v4169 = vld.sshfl [vmem:[#allocation1 + $0x10] sm:$0xff pattern:$0x73625140]
          %v4170 = vld.sshfl [vmem:[#allocation1 + $0x18] sm:$0xff pattern:$0x73625140]
          %v4171 = vld.sshfl [vmem:[#allocation1 + $0x20] sm:$0xff pattern:$0x73625140]
          %v4172 = vld.sshfl [vmem:[#allocation1 + $0x28] sm:$0xff pattern:$0x73625140]
          %v4173 = vld.sshfl [vmem:[#allocation1 + $0x30] sm:$0xff pattern:$0x73625140]
          %v4174 = vld.sshfl [vmem:[#allocation1 + $0x38] sm:$0xff pattern:$0x73625140]
          %4175 = vst [vmem:[#allocation1] ss:$4 sm:$0xff] %v3788
          %4176 = vst [vmem:[%s4105] ss:$4 sm:$0xff] %v3789
          %v4177 = vld.sshfl [vmem:[#allocation1] sm:$0xff pattern:$0x73625140]
          %v4178 = vld.sshfl [vmem:[#allocation1 + $0x8] sm:$0xff pattern:$0x73625140]
          %v4179 = vld.sshfl [vmem:[#allocation1 + $0x10] sm:$0xff pattern:$0x73625140]
          %v4180 = vld.sshfl [vmem:[#allocation1 + $0x18] sm:$0xff pattern:$0x73625140]
          %v4181 = vld.sshfl [vmem:[#allocation1 + $0x20] sm:$0xff pattern:$0x73625140]
          %v4182 = vld.sshfl [vmem:[#allocation1 + $0x28] sm:$0xff pattern:$0x73625140]
          %v4183 = vld.sshfl [vmem:[#allocation1 + $0x30] sm:$0xff pattern:$0x73625140]
          %v4184 = vld.sshfl [vmem:[#allocation1 + $0x38] sm:$0xff pattern:$0x73625140]
          %4185 = vst [vmem:[#allocation1] ss:$4 sm:$0xff] %v3790
          %4186 = vst [vmem:[%s4105] ss:$4 sm:$0xff] %v3791
          %v4187 = vld.sshfl [vmem:[#allocation1] sm:$0xff pattern:$0x73625140]
          %v4188 = vld.sshfl [vmem:[#allocation1 + $0x8] sm:$0xff pattern:$0x73625140]
          %v4189 = vld.sshfl [vmem:[#allocation1 + $0x10] sm:$0xff pattern:$0x73625140]
          %v4190 = vld.sshfl [vmem:[#allocation1 + $0x18] sm:$0xff pattern:$0x73625140]
          %v4191 = vld.sshfl [vmem:[#allocation1 + $0x20] sm:$0xff pattern:$0x73625140]
          %v4192 = vld.sshfl [vmem:[#allocation1 + $0x28] sm:$0xff pattern:$0x73625140]
          %v4193 = vld.sshfl [vmem:[#allocation1 + $0x30] sm:$0xff pattern:$0x73625140]
          %v4194 = vld.sshfl [vmem:[#allocation1 + $0x38] sm:$0xff pattern:$0x73625140]
          %4195 = vst [vmem:[#allocation1] ss:$4 sm:$0xff] %v3792
          %4196 = vst [vmem:[%s4105] ss:$4 sm:$0xff] %v3793
          %v4197 = vld.sshfl [vmem:[#allocation1] sm:$0xff pattern:$0x73625140]
          %v4198 = vld.sshfl [vmem:[#allocation1 + $0x8] sm:$0xff pattern:$0x73625140]
          %v4199 = vld.sshfl [vmem:[#allocation1 + $0x10] sm:$0xff pattern:$0x73625140]
          %v4200 = vld.sshfl [vmem:[#allocation1 + $0x18] sm:$0xff pattern:$0x73625140]
          %v4201 = vld.sshfl [vmem:[#allocation1 + $0x20] sm:$0xff pattern:$0x73625140]
          %v4202 = vld.sshfl [vmem:[#allocation1 + $0x28] sm:$0xff pattern:$0x73625140]
          %v4203 = vld.sshfl [vmem:[#allocation1 + $0x30] sm:$0xff pattern:$0x73625140]
          %v4204 = vld.sshfl [vmem:[#allocation1 + $0x38] sm:$0xff pattern:$0x73625140]
          %4205 = vst [vmem:[#allocation1] ss:$4 sm:$0xff] %v3794
          %4206 = vst [vmem:[%s4105] ss:$4 sm:$0xff] %v3795
          %v4207 = vld.sshfl [vmem:[#allocation1] sm:$0xff pattern:$0x73625140]
          %v4208 = vld.sshfl [vmem:[#allocation1 + $0x8] sm:$0xff pattern:$0x73625140]
          %v4209 = vld.sshfl [vmem:[#allocation1 + $0x10] sm:$0xff pattern:$0x73625140]
          %v4210 = vld.sshfl [vmem:[#allocation1 + $0x18] sm:$0xff pattern:$0x73625140]
          %v4211 = vld.sshfl [vmem:[#allocation1 + $0x20] sm:$0xff pattern:$0x73625140]
          %v4212 = vld.sshfl [vmem:[#allocation1 + $0x28] sm:$0xff pattern:$0x73625140]
          %v4213 = vld.sshfl [vmem:[#allocation1 + $0x30] sm:$0xff pattern:$0x73625140]
          %v4214 = vld.sshfl [vmem:[#allocation1 + $0x38] sm:$0xff pattern:$0x73625140]
          %4215 = vst [vmem:[#allocation1] ss:$4 sm:$0xff] %v3796
          %4216 = vst [vmem:[%s4105] ss:$4 sm:$0xff] %v3797
          %v4217 = vld.sshfl [vmem:[#allocation1] sm:$0xff pattern:$0x73625140]
          %v4218 = vld.sshfl [vmem:[#allocation1 + $0x8] sm:$0xff pattern:$0x73625140]
          %v4219 = vld.sshfl [vmem:[#allocation1 + $0x10] sm:$0xff pattern:$0x73625140]
          %v4220 = vld.sshfl [vmem:[#allocation1 + $0x18] sm:$0xff pattern:$0x73625140]
          %v4221 = vld.sshfl [vmem:[#allocation1 + $0x20] sm:$0xff pattern:$0x73625140]
          %v4222 = vld.sshfl [vmem:[#allocation1 + $0x28] sm:$0xff pattern:$0x73625140]
          %v4223 = vld.sshfl [vmem:[#allocation1 + $0x30] sm:$0xff pattern:$0x73625140]
          %v4224 = vld.sshfl [vmem:[#allocation1 + $0x38] sm:$0xff pattern:$0x73625140]
          %4225 = vst [vmem:[#allocation1] ss:$4 sm:$0xff] %v3798
          %4226 = vst [vmem:[%s4105] ss:$4 sm:$0xff] %v3799
          %v4227 = vld.sshfl [vmem:[#allocation1] sm:$0xff pattern:$0x73625140]
          %v4228 = vld.sshfl [vmem:[#allocation1 + $0x8] sm:$0xff pattern:$0x73625140]
          %v4229 = vld.sshfl [vmem:[#allocation1 + $0x10] sm:$0xff pattern:$0x73625140]
          %v4230 = vld.sshfl [vmem:[#allocation1 + $0x18] sm:$0xff pattern:$0x73625140]
          %v4231 = vld.sshfl [vmem:[#allocation1 + $0x20] sm:$0xff pattern:$0x73625140]
          %v4232 = vld.sshfl [vmem:[#allocation1 + $0x28] sm:$0xff pattern:$0x73625140]
          %v4233 = vld.sshfl [vmem:[#allocation1 + $0x30] sm:$0xff pattern:$0x73625140]
          %v4234 = vld.sshfl [vmem:[#allocation1 + $0x38] sm:$0xff pattern:$0x73625140]
          %4235 = vst [vmem:[#allocation1] ss:$4 sm:$0xff] %v3800
          %4236 = vst [vmem:[%s4105] ss:$4 sm:$0xff] %v3801
          %v4237 = vld.sshfl [vmem:[#allocation1] sm:$0xff pattern:$0x73625140]
          %v4238 = vld.sshfl [vmem:[#allocation1 + $0x8] sm:$0xff pattern:$0x73625140]
          %v4239 = vld.sshfl [vmem:[#allocation1 + $0x10] sm:$0xff pattern:$0x73625140]
          %v4240 = vld.sshfl [vmem:[#allocation1 + $0x18] sm:$0xff pattern:$0x73625140]
          %v4241 = vld.sshfl [vmem:[#allocation1 + $0x20] sm:$0xff pattern:$0x73625140]
          %v4242 = vld.sshfl [vmem:[#allocation1 + $0x28] sm:$0xff pattern:$0x73625140]
          %v4243 = vld.sshfl [vmem:[#allocation1 + $0x30] sm:$0xff pattern:$0x73625140]
          %v4244 = vld.sshfl [vmem:[#allocation1 + $0x38] sm:$0xff pattern:$0x73625140]
          %4245 = vst [vmem:[#allocation1] ss:$4 sm:$0xff] %v3802
          %4246 = vst [vmem:[%s4105] ss:$4 sm:$0xff] %v3803
          %v4247 = vld.sshfl [vmem:[#allocation1] sm:$0xff pattern:$0x73625140]
          %v4248 = vld.sshfl [vmem:[#allocation1 + $0x8] sm:$0xff pattern:$0x73625140]
          %v4249 = vld.sshfl [vmem:[#allocation1 + $0x10] sm:$0xff pattern:$0x73625140]
          %v4250 = vld.sshfl [vmem:[#allocation1 + $0x18] sm:$0xff pattern:$0x73625140]
          %v4251 = vld.sshfl [vmem:[#allocation1 + $0x20] sm:$0xff pattern:$0x73625140]
          %v4252 = vld.sshfl [vmem:[#allocation1 + $0x28] sm:$0xff pattern:$0x73625140]
          %v4253 = vld.sshfl [vmem:[#allocation1 + $0x30] sm:$0xff pattern:$0x73625140]
          %v4254 = vld.sshfl [vmem:[#allocation1 + $0x38] sm:$0xff pattern:$0x73625140]
          %4255 = vst [vmem:[#allocation1] ss:$4 sm:$0xff] %v3804
          %4256 = vst [vmem:[%s4105] ss:$4 sm:$0xff] %v3805
          %v4257 = vld.sshfl [vmem:[#allocation1] sm:$0xff pattern:$0x73625140]
          %v4258 = vld.sshfl [vmem:[#allocation1 + $0x8] sm:$0xff pattern:$0x73625140]
          %v4259 = vld.sshfl [vmem:[#allocation1 + $0x10] sm:$0xff pattern:$0x73625140]
          %v4260 = vld.sshfl [vmem:[#allocation1 + $0x18] sm:$0xff pattern:$0x73625140]
          %v4261 = vld.sshfl [vmem:[#allocation1 + $0x20] sm:$0xff pattern:$0x73625140]
          %v4262 = vld.sshfl [vmem:[#allocation1 + $0x28] sm:$0xff pattern:$0x73625140]
          %v4263 = vld.sshfl [vmem:[#allocation1 + $0x30] sm:$0xff pattern:$0x73625140]
          %v4264 = vld.sshfl [vmem:[#allocation1 + $0x38] sm:$0xff pattern:$0x73625140]
          %4265 = vst [vmem:[#allocation1] ss:$4 sm:$0xff] %v3806
          %v4266 = vld.sshfl [vmem:[#allocation1] sm:$0xff pattern:$0x73625140]
          %v4267 = vld.sshfl [vmem:[#allocation1 + $0x8] sm:$0xff pattern:$0x73625140]
          %v4268 = vld.sshfl [vmem:[#allocation1 + $0x10] sm:$0xff pattern:$0x73625140]
          %v4269 = vld.sshfl [vmem:[#allocation1 + $0x18] sm:$0xff pattern:$0x73625140]
          %v4402 = vsel %vm3939, %v4107, 0.0
          %v4403 = vsel %vm3940, %v4108, 0.0
          %v4404 = vsel %vm3941, %v4109, 0.0
          %v4405 = vsel %vm3942, %v4110, 0.0
          %v4406 = vsel %vm3943, %v4111, 0.0
          %v4407 = vsel %vm3944, %v4112, 0.0
          %v4408 = vsel %vm3945, %v4113, 0.0
          %v4409 = vsel %vm3946, %v4114, 0.0
          %v4410 = vsel %vm3947, %v4117, 0.0
          %v4411 = vsel %vm3948, %v4118, 0.0
          %v4412 = vsel %vm3949, %v4119, 0.0
          %v4413 = vsel %vm3950, %v4120, 0.0
          %v4414 = vsel %vm3951, %v4121, 0.0
          %v4415 = vsel %vm3952, %v4122, 0.0
          %v4416 = vsel %vm3953, %v4123, 0.0
          %v4417 = vsel %vm3954, %v4124, 0.0
          %v4418 = vsel %vm3955, %v4127, 0.0
          %v4419 = vsel %vm3956, %v4128, 0.0
          %v4420 = vsel %vm3957, %v4129, 0.0
          %v4421 = vsel %vm3958, %v4130, 0.0
          %v4422 = vsel %vm3959, %v4131, 0.0
          %v4423 = vsel %vm3960, %v4132, 0.0
          %v4424 = vsel %vm3961, %v4133, 0.0
          %v4425 = vsel %vm3962, %v4134, 0.0
          %v4426 = vsel %vm3963, %v4137, 0.0
          %v4427 = vsel %vm3964, %v4138, 0.0
          %v4428 = vsel %vm3965, %v4139, 0.0
          %v4429 = vsel %vm3966, %v4140, 0.0
          %v4430 = vsel %vm3967, %v4141, 0.0
          %v4431 = vsel %vm3968, %v4142, 0.0
          %v4432 = vsel %vm3969, %v4143, 0.0
          %v4433 = vsel %vm3970, %v4144, 0.0
          %v4434 = vsel %vm3971, %v4147, 0.0
          %v4435 = vsel %vm3972, %v4148, 0.0
          %v4436 = vsel %vm3973, %v4149, 0.0
          %v4437 = vsel %vm3974, %v4150, 0.0
          %v4438 = vsel %vm3975, %v4151, 0.0
          %v4439 = vsel %vm3976, %v4152, 0.0
          %v4440 = vsel %vm3977, %v4153, 0.0
          %v4441 = vsel %vm3978, %v4154, 0.0
          %v4442 = vsel %vm3979, %v4157, 0.0
          %v4443 = vsel %vm3980, %v4158, 0.0
          %v4444 = vsel %vm3981, %v4159, 0.0
          %v4445 = vsel %vm3982, %v4160, 0.0
          %v4446 = vsel %vm3983, %v4161, 0.0
          %v4447 = vsel %vm3984, %v4162, 0.0
          %v4448 = vsel %vm3985, %v4163, 0.0
          %v4449 = vsel %vm3986, %v4164, 0.0
          %v4450 = vsel %vm3987, %v4167, 0.0
          %v4451 = vsel %vm3988, %v4168, 0.0
          %v4452 = vsel %vm3989, %v4169, 0.0
          %v4453 = vsel %vm3990, %v4170, 0.0
          %v4454 = vsel %vm3991, %v4171, 0.0
          %v4455 = vsel %vm3992, %v4172, 0.0
          %v4456 = vsel %vm3993, %v4173, 0.0
          %v4457 = vsel %vm3994, %v4174, 0.0
          %v4458 = vsel %vm3995, %v4177, 0.0
          %v4459 = vsel %vm3996, %v4178, 0.0
          %v4460 = vsel %vm3997, %v4179, 0.0
          %v4461 = vsel %vm3998, %v4180, 0.0
          %v4462 = vsel %vm3999, %v4181, 0.0
          %v4463 = vsel %vm4000, %v4182, 0.0
          %v4464 = vsel %vm4001, %v4183, 0.0
          %v4465 = vsel %vm4002, %v4184, 0.0
          %v4466 = vsel %vm4003, %v4187, 0.0
          %v4467 = vsel %vm4004, %v4188, 0.0
          %v4468 = vsel %vm4005, %v4189, 0.0
          %v4469 = vsel %vm4006, %v4190, 0.0
          %v4470 = vsel %vm4007, %v4191, 0.0
          %v4471 = vsel %vm4008, %v4192, 0.0
          %v4472 = vsel %vm4009, %v4193, 0.0
          %v4473 = vsel %vm4010, %v4194, 0.0
          %v4474 = vsel %vm4011, %v4197, 0.0
          %v4475 = vsel %vm4012, %v4198, 0.0
          %v4476 = vsel %vm4013, %v4199, 0.0
          %v4477 = vsel %vm4014, %v4200, 0.0
          %v4478 = vsel %vm4015, %v4201, 0.0
          %v4479 = vsel %vm4016, %v4202, 0.0
          %v4480 = vsel %vm4017, %v4203, 0.0
          %v4481 = vsel %vm4018, %v4204, 0.0
          %v4482 = vsel %vm4019, %v4207, 0.0
          %v4483 = vsel %vm4020, %v4208, 0.0
          %v4484 = vsel %vm4021, %v4209, 0.0
          %v4485 = vsel %vm4022, %v4210, 0.0
          %v4486 = vsel %vm4023, %v4211, 0.0
          %v4487 = vsel %vm4024, %v4212, 0.0
          %v4488 = vsel %vm4025, %v4213, 0.0
          %v4489 = vsel %vm4026, %v4214, 0.0
          %v4490 = vsel %vm4027, %v4217, 0.0
          %v4491 = vsel %vm4028, %v4218, 0.0
          %v4492 = vsel %vm4029, %v4219, 0.0
          %v4493 = vsel %vm4030, %v4220, 0.0
          %v4494 = vsel %vm4031, %v4221, 0.0
          %v4495 = vsel %vm4032, %v4222, 0.0
          %v4496 = vsel %vm4033, %v4223, 0.0
          %v4497 = vsel %vm4034, %v4224, 0.0
          %v4498 = vsel %vm4035, %v4227, 0.0
          %v4499 = vsel %vm4036, %v4228, 0.0
          %v4500 = vsel %vm4037, %v4229, 0.0
          %v4501 = vsel %vm4038, %v4230, 0.0
          %v4502 = vsel %vm4039, %v4231, 0.0
          %v4503 = vsel %vm4040, %v4232, 0.0
          %v4504 = vsel %vm4041, %v4233, 0.0
          %v4505 = vsel %vm4042, %v4234, 0.0
          %v4506 = vsel %vm4043, %v4237, 0.0
          %v4507 = vsel %vm4044, %v4238, 0.0
          %v4508 = vsel %vm4045, %v4239, 0.0
          %v4509 = vsel %vm4046, %v4240, 0.0
          %v4510 = vsel %vm4047, %v4241, 0.0
          %v4511 = vsel %vm4048, %v4242, 0.0
          %v4512 = vsel %vm4049, %v4243, 0.0
          %v4513 = vsel %vm4050, %v4244, 0.0
          %v4514 = vsel %vm4051, %v4247, 0.0
          %v4515 = vsel %vm4052, %v4248, 0.0
          %v4516 = vsel %vm4053, %v4249, 0.0
          %v4517 = vsel %vm4054, %v4250, 0.0
          %v4518 = vsel %vm4055, %v4251, 0.0
          %v4519 = vsel %vm4056, %v4252, 0.0
          %v4520 = vsel %vm4057, %v4253, 0.0
          %v4521 = vsel %vm4058, %v4254, 0.0
          %v4522 = vsel %vm4059, %v4257, 0.0
          %v4523 = vsel %vm4060, %v4258, 0.0
          %v4524 = vsel %vm4061, %v4259, 0.0
          %v4525 = vsel %vm4062, %v4260, 0.0
          %v4526 = vsel %vm4063, %v4261, 0.0
          %v4527 = vsel %vm4064, %v4262, 0.0
          %v4528 = vsel %vm4065, %v4263, 0.0
          %v4529 = vsel %vm4066, %v4264, 0.0
          %v4530 = vsel %vm4067, %v4266, 0.0
          %v4531 = vsel %vm4068, %v4267, 0.0
          %v4532 = vsel %vm4069, %v4268, 0.0
          %v4533 = vsel %vm4070, %v4269, 0.0
          %v4534 = vld [vmem:[%s176] sm:$0xff]
          %v4535 = vld [vmem:[%s176 + $0x8] sm:$0xff]
          %v4536 = vld [vmem:[%s176 + $0x10] sm:$0xff]
          %v4537 = vld [vmem:[%s176 + $0x18] sm:$0xff]
          %v4538 = vld [vmem:[%s176 + $0x20] sm:$0xff]
          %v4539 = vld [vmem:[%s176 + $0x28] sm:$0xff]
          %v4540 = vld [vmem:[%s176 + $0x30] sm:$0xff]
          %v4541 = vld [vmem:[%s176 + $0x38] sm:$0xff]
          %v4542 = vld [vmem:[%s176 + $0x40] sm:$0xff]
          %v4543 = vld [vmem:[%s176 + $0x48] sm:$0xff]
          %v4544 = vld [vmem:[%s176 + $0x50] sm:$0xff]
          %v4545 = vld [vmem:[%s176 + $0x58] sm:$0xff]
          %v4546 = vld [vmem:[%s176 + $0x60] sm:$0xff]
          %v4547 = vld [vmem:[%s176 + $0x68] sm:$0xff]
          %v4548 = vld [vmem:[%s176 + $0x70] sm:$0xff]
          %v4549 = vld [vmem:[%s176 + $0x78] sm:$0xff]
          %v4550 = vld [vmem:[%s176 + $0x80] sm:$0xff]
          %v4551 = vld [vmem:[%s176 + $0x88] sm:$0xff]
          %v4552 = vld [vmem:[%s176 + $0x90] sm:$0xff]
          %v4553 = vld [vmem:[%s176 + $0x98] sm:$0xff]
          %v4554 = vld [vmem:[%s176 + $0xa0] sm:$0xff]
          %v4555 = vld [vmem:[%s176 + $0xa8] sm:$0xff]
          %v4556 = vld [vmem:[%s176 + $0xb0] sm:$0xff]
          %v4557 = vld [vmem:[%s176 + $0xb8] sm:$0xff]
          %v4558 = vld [vmem:[%s176 + $0xc0] sm:$0xff]
          %v4559 = vld [vmem:[%s176 + $0xc8] sm:$0xff]
          %v4560 = vld [vmem:[%s176 + $0xd0] sm:$0xff]
          %v4561 = vld [vmem:[%s176 + $0xd8] sm:$0xff]
          %v4562 = vld [vmem:[%s176 + $0xe0] sm:$0xff]
          %v4563 = vld [vmem:[%s176 + $0xe8] sm:$0xff]
          %v4564 = vld [vmem:[%s176 + $0xf0] sm:$0xff]
          %v4565 = vld [vmem:[%s176 + $0xf8] sm:$0xff]
          %v4566 = vld [vmem:[%s176 + $0x100] sm:$0xff]
          %v4567 = vld [vmem:[%s176 + $0x108] sm:$0xff]
          %v4568 = vld [vmem:[%s176 + $0x110] sm:$0xff]
          %v4569 = vld [vmem:[%s176 + $0x118] sm:$0xff]
          %v4570 = vld [vmem:[%s176 + $0x120] sm:$0xff]
          %v4571 = vld [vmem:[%s176 + $0x128] sm:$0xff]
          %v4572 = vld [vmem:[%s176 + $0x130] sm:$0xff]
          %v4573 = vld [vmem:[%s176 + $0x138] sm:$0xff]
          %v4574 = vld [vmem:[%s176 + $0x140] sm:$0xff]
          %v4575 = vld [vmem:[%s176 + $0x148] sm:$0xff]
          %v4576 = vld [vmem:[%s176 + $0x150] sm:$0xff]
          %v4577 = vld [vmem:[%s176 + $0x158] sm:$0xff]
          %v4578 = vld [vmem:[%s176 + $0x160] sm:$0xff]
          %v4579 = vld [vmem:[%s176 + $0x168] sm:$0xff]
          %v4580 = vld [vmem:[%s176 + $0x170] sm:$0xff]
          %v4581 = vld [vmem:[%s176 + $0x178] sm:$0xff]
          %v4582 = vld [vmem:[%s176 + $0x180] sm:$0xff]
          %v4583 = vld [vmem:[%s176 + $0x188] sm:$0xff]
          %v4584 = vld [vmem:[%s176 + $0x190] sm:$0xff]
          %v4585 = vld [vmem:[%s176 + $0x198] sm:$0xff]
          %v4586 = vld [vmem:[%s176 + $0x1a0] sm:$0xff]
          %v4587 = vld [vmem:[%s176 + $0x1a8] sm:$0xff]
          %v4588 = vld [vmem:[%s176 + $0x1b0] sm:$0xff]
          %v4589 = vld [vmem:[%s176 + $0x1b8] sm:$0xff]
          %v4590 = vld [vmem:[%s176 + $0x1c0] sm:$0xff]
          %v4591 = vld [vmem:[%s176 + $0x1c8] sm:$0xff]
          %v4592 = vld [vmem:[%s176 + $0x1d0] sm:$0xff]
          %v4593 = vld [vmem:[%s176 + $0x1d8] sm:$0xff]
          %v4594 = vld [vmem:[%s176 + $0x1e0] sm:$0xff]
          %v4595 = vld [vmem:[%s176 + $0x1e8] sm:$0xff]
          %v4596 = vld [vmem:[%s176 + $0x1f0] sm:$0xff]
          %v4597 = vld [vmem:[%s176 + $0x1f8] sm:$0xff]
          %v4598 = vld [vmem:[%s176 + $0x200] sm:$0xff]
          %v4599 = vld [vmem:[%s176 + $0x208] sm:$0xff]
          %v4600 = vld [vmem:[%s176 + $0x210] sm:$0xff]
          %v4601 = vld [vmem:[%s176 + $0x218] sm:$0xff]
          %v4602 = vld [vmem:[%s176 + $0x220] sm:$0xff]
          %v4603 = vld [vmem:[%s176 + $0x228] sm:$0xff]
          %v4604 = vld [vmem:[%s176 + $0x230] sm:$0xff]
          %v4605 = vld [vmem:[%s176 + $0x238] sm:$0xff]
          %v4606 = vld [vmem:[%s176 + $0x240] sm:$0xff]
          %v4607 = vld [vmem:[%s176 + $0x248] sm:$0xff]
          %v4608 = vld [vmem:[%s176 + $0x250] sm:$0xff]
          %v4609 = vld [vmem:[%s176 + $0x258] sm:$0xff]
          %v4610 = vld [vmem:[%s176 + $0x260] sm:$0xff]
          %v4611 = vld [vmem:[%s176 + $0x268] sm:$0xff]
          %v4612 = vld [vmem:[%s176 + $0x270] sm:$0xff]
          %v4613 = vld [vmem:[%s176 + $0x278] sm:$0xff]
          %v4614 = vld [vmem:[%s176 + $0x280] sm:$0xff]
          %v4615 = vld [vmem:[%s176 + $0x288] sm:$0xff]
          %v4616 = vld [vmem:[%s176 + $0x290] sm:$0xff]
          %v4617 = vld [vmem:[%s176 + $0x298] sm:$0xff]
          %v4618 = vld [vmem:[%s176 + $0x2a0] sm:$0xff]
          %v4619 = vld [vmem:[%s176 + $0x2a8] sm:$0xff]
          %v4620 = vld [vmem:[%s176 + $0x2b0] sm:$0xff]
          %v4621 = vld [vmem:[%s176 + $0x2b8] sm:$0xff]
          %v4622 = vld [vmem:[%s176 + $0x2c0] sm:$0xff]
          %v4623 = vld [vmem:[%s176 + $0x2c8] sm:$0xff]
          %v4624 = vld [vmem:[%s176 + $0x2d0] sm:$0xff]
          %v4625 = vld [vmem:[%s176 + $0x2d8] sm:$0xff]
          %v4626 = vld [vmem:[%s176 + $0x2e0] sm:$0xff]
          %v4627 = vld [vmem:[%s176 + $0x2e8] sm:$0xff]
          %v4628 = vld [vmem:[%s176 + $0x2f0] sm:$0xff]
          %v4629 = vld [vmem:[%s176 + $0x2f8] sm:$0xff]
          %v4630 = vld [vmem:[%s176 + $0x300] sm:$0xff]
          %v4631 = vld [vmem:[%s176 + $0x308] sm:$0xff]
          %v4632 = vld [vmem:[%s176 + $0x310] sm:$0xff]
          %v4633 = vld [vmem:[%s176 + $0x318] sm:$0xff]
          %v4634 = vld [vmem:[%s176 + $0x320] sm:$0xff]
          %v4635 = vld [vmem:[%s176 + $0x328] sm:$0xff]
          %v4636 = vld [vmem:[%s176 + $0x330] sm:$0xff]
          %v4637 = vld [vmem:[%s176 + $0x338] sm:$0xff]
          %v4638 = vld [vmem:[%s176 + $0x340] sm:$0xff]
          %v4639 = vld [vmem:[%s176 + $0x348] sm:$0xff]
          %v4640 = vld [vmem:[%s176 + $0x350] sm:$0xff]
          %v4641 = vld [vmem:[%s176 + $0x358] sm:$0xff]
          %v4642 = vld [vmem:[%s176 + $0x360] sm:$0xff]
          %v4643 = vld [vmem:[%s176 + $0x368] sm:$0xff]
          %v4644 = vld [vmem:[%s176 + $0x370] sm:$0xff]
          %v4645 = vld [vmem:[%s176 + $0x378] sm:$0xff]
          %v4646 = vld [vmem:[%s176 + $0x380] sm:$0xff]
          %v4647 = vld [vmem:[%s176 + $0x388] sm:$0xff]
          %v4648 = vld [vmem:[%s176 + $0x390] sm:$0xff]
          %v4649 = vld [vmem:[%s176 + $0x398] sm:$0xff]
          %v4650 = vld [vmem:[%s176 + $0x3a0] sm:$0xff]
          %v4651 = vld [vmem:[%s176 + $0x3a8] sm:$0xff]
          %v4652 = vld [vmem:[%s176 + $0x3b0] sm:$0xff]
          %v4653 = vld [vmem:[%s176 + $0x3b8] sm:$0xff]
          %v4654 = vld [vmem:[%s176 + $0x3c0] sm:$0xff]
          %v4655 = vld [vmem:[%s176 + $0x3c8] sm:$0xff]
          %v4656 = vld [vmem:[%s176 + $0x3d0] sm:$0xff]
          %v4657 = vld [vmem:[%s176 + $0x3d8] sm:$0xff]
          %v4658 = vld [vmem:[%s176 + $0x3e0] sm:$0xff]
          %v4659 = vld [vmem:[%s176 + $0x3e8] sm:$0xff]
          %v4660 = vld [vmem:[%s176 + $0x3f0] sm:$0xff]
          %v4661 = vld [vmem:[%s176 + $0x3f8] sm:$0xff]
          %v4662 = vld [vmem:[%s176 + $0x400] sm:$0xff]
          %v4663 = vld [vmem:[%s176 + $0x408] sm:$0xff]
          %v4664 = vld [vmem:[%s176 + $0x410] sm:$0xff]
          %v4665 = vld [vmem:[%s176 + $0x418] sm:$0xff]
          %v4666 = vld [vmem:[%s176 + $0x420] sm:$0x7f]
          %v4667 = vld [vmem:[%s176 + $0x428] sm:$0x7f]
          %v4668 = vld [vmem:[%s176 + $0x430] sm:$0x7f]
          %v4669 = vld [vmem:[%s176 + $0x438] sm:$0x7f]
          %v4670 = vld [vmem:[%s176 + $0x440] sm:$0x7f]
          %v4671 = vld [vmem:[%s176 + $0x448] sm:$0x7f]
          %v4672 = vld [vmem:[%s176 + $0x450] sm:$0x7f]
          %v4673 = vld [vmem:[%s176 + $0x458] sm:$0x7f]
          %v4674 = vld [vmem:[%s176 + $0x460] sm:$0x7f]
          %v4675 = vld [vmem:[%s176 + $0x468] sm:$0x7f]
          %v4676 = vld [vmem:[%s176 + $0x470] sm:$0x7f]
          %v4677 = vld [vmem:[%s176 + $0x478] sm:$0x7f]
          %v4678 = vld [vmem:[%s176 + $0x480] sm:$0x7f]
          %v4679 = vld [vmem:[%s176 + $0x488] sm:$0x7f]
          %v4680 = vld [vmem:[%s176 + $0x490] sm:$0x7f]
          %v4681 = vld [vmem:[%s176 + $0x498] sm:$0x7f]
          %v4682 = vld [vmem:[%s176 + $0x4a0] sm:$0x7f]
          %v4683 = vld [vmem:[%s176 + $0x4a8] sm:$0x7f]
          %v4684 = vld [vmem:[%s176 + $0x4b0] sm:$0x7f]
          %v4685 = vld [vmem:[%s176 + $0x4b8] sm:$0x7f]
          %v4686 = vld [vmem:[%s176 + $0x4c0] sm:$0x7f]
          %v4687 = vld [vmem:[%s176 + $0x4c8] sm:$0x7f]
          %v4688 = vld [vmem:[%s176 + $0x4d0] sm:$0x7f]
          %v4689 = vld [vmem:[%s176 + $0x4d8] sm:$0x7f]
          %v4690 = vld [vmem:[%s176 + $0x4e0] sm:$0x7f]
          %v4691 = vld [vmem:[%s176 + $0x4e8] sm:$0x7f]
          %v4692 = vld [vmem:[%s176 + $0x4f0] sm:$0x7f]
          %v4693 = vld [vmem:[%s176 + $0x4f8] sm:$0x7f]
          %v4694 = vld [vmem:[%s176 + $0x500] sm:$0x7f]
          %v4695 = vld [vmem:[%s176 + $0x508] sm:$0x7f]
          %v4696 = vld [vmem:[%s176 + $0x510] sm:$0x7f]
          %v4697 = vld [vmem:[%s176 + $0x518] sm:$0x7f]
          %v4698 = vld [vmem:[%s176 + $0x520] sm:$0x7f]
          %v4699 = vld [vmem:[%s176 + $0x528] sm:$0x7f]
          %v4700 = vld [vmem:[%s176 + $0x530] sm:$0x7f]
          %v4701 = vld [vmem:[%s176 + $0x538] sm:$0x7f]
          %v4702 = vld [vmem:[%s176 + $0x540] sm:$0x7f]
          %v4703 = vld [vmem:[%s176 + $0x548] sm:$0x7f]
          %v4704 = vld [vmem:[%s176 + $0x550] sm:$0x7f]
          %v4705 = vld [vmem:[%s176 + $0x558] sm:$0x7f]
          %v4706 = vld [vmem:[%s176 + $0x560] sm:$0x7f]
          %v4707 = vld [vmem:[%s176 + $0x568] sm:$0x7f]
          %v4708 = vld [vmem:[%s176 + $0x570] sm:$0x7f]
          %v4709 = vld [vmem:[%s176 + $0x578] sm:$0x7f]
          %v4710 = vld [vmem:[%s176 + $0x580] sm:$0x7f]
          %v4711 = vld [vmem:[%s176 + $0x588] sm:$0x7f]
          %v4712 = vld [vmem:[%s176 + $0x590] sm:$0x7f]
          %v4713 = vld [vmem:[%s176 + $0x598] sm:$0x7f]
          %v4714 = vld [vmem:[%s176 + $0x5a0] sm:$0x7f]
          %v4715 = vld [vmem:[%s176 + $0x5a8] sm:$0x7f]
          %v4716 = vld [vmem:[%s176 + $0x5b0] sm:$0x7f]
          %v4717 = vld [vmem:[%s176 + $0x5b8] sm:$0x7f]
          %v4718 = vld [vmem:[%s176 + $0x5c0] sm:$0x7f]
          %v4719 = vld [vmem:[%s176 + $0x5c8] sm:$0x7f]
          %v4720 = vld [vmem:[%s176 + $0x5d0] sm:$0x7f]
          %v4721 = vld [vmem:[%s176 + $0x5d8] sm:$0x7f]
          %v4722 = vld [vmem:[%s176 + $0x5e0] sm:$0x7f]
          %v4723 = vld [vmem:[%s176 + $0x5e8] sm:$0x7f]
          %v4724 = vld [vmem:[%s176 + $0x5f0] sm:$0x7f]
          %v4725 = vld [vmem:[%s176 + $0x5f8] sm:$0x7f]
          %v4726 = vld [vmem:[%s176 + $0x600] sm:$0x7f]
          %v4727 = vld [vmem:[%s176 + $0x608] sm:$0x7f]
          %v4728 = vld [vmem:[%s176 + $0x610] sm:$0x7f]
          %v4729 = vld [vmem:[%s176 + $0x618] sm:$0x7f]
          %v4730 = vld [vmem:[%s176 + $0x620] sm:$0x7f]
          %v4731 = vld [vmem:[%s176 + $0x628] sm:$0x7f]
          %v4732 = vld [vmem:[%s176 + $0x630] sm:$0x7f]
          %v4733 = vld [vmem:[%s176 + $0x638] sm:$0x7f]
          %v4734 = vld [vmem:[%s176 + $0x640] sm:$0x7f]
          %v4735 = vld [vmem:[%s176 + $0x648] sm:$0x7f]
          %v4736 = vld [vmem:[%s176 + $0x650] sm:$0x7f]
          %v4737 = vld [vmem:[%s176 + $0x658] sm:$0x7f]
          %v4738 = vld [vmem:[%s176 + $0x660] sm:$0x7f]
          %v4739 = vld [vmem:[%s176 + $0x668] sm:$0x7f]
          %v4740 = vld [vmem:[%s176 + $0x670] sm:$0x7f]
          %v4741 = vld [vmem:[%s176 + $0x678] sm:$0x7f]
          %v4742 = vld [vmem:[%s176 + $0x680] sm:$0x7f]
          %v4743 = vld [vmem:[%s176 + $0x688] sm:$0x7f]
          %v4744 = vld [vmem:[%s176 + $0x690] sm:$0x7f]
          %v4745 = vld [vmem:[%s176 + $0x698] sm:$0x7f]
          %v4746 = vld [vmem:[%s176 + $0x6a0] sm:$0x7f]
          %v4747 = vld [vmem:[%s176 + $0x6a8] sm:$0x7f]
          %v4748 = vld [vmem:[%s176 + $0x6b0] sm:$0x7f]
          %v4749 = vld [vmem:[%s176 + $0x6b8] sm:$0x7f]
          %v4750 = vld [vmem:[%s176 + $0x6c0] sm:$0x7f]
          %v4751 = vld [vmem:[%s176 + $0x6c8] sm:$0x7f]
          %v4752 = vld [vmem:[%s176 + $0x6d0] sm:$0x7f]
          %v4753 = vld [vmem:[%s176 + $0x6d8] sm:$0x7f]
          %v4754 = vld [vmem:[%s176 + $0x6e0] sm:$0x7f]
          %v4755 = vld [vmem:[%s176 + $0x6e8] sm:$0x7f]
          %v4756 = vld [vmem:[%s176 + $0x6f0] sm:$0x7f]
          %v4757 = vld [vmem:[%s176 + $0x6f8] sm:$0x7f]
          %v4758 = vld [vmem:[%s176 + $0x700] sm:$0x7f]
          %v4759 = vld [vmem:[%s176 + $0x708] sm:$0x7f]
          %v4760 = vld [vmem:[%s176 + $0x710] sm:$0x7f]
          %v4761 = vld [vmem:[%s176 + $0x718] sm:$0x7f]
          %v4762 = vld [vmem:[%s176 + $0x720] sm:$0x7f]
          %v4763 = vld [vmem:[%s176 + $0x728] sm:$0x7f]
          %v4764 = vld [vmem:[%s176 + $0x730] sm:$0x7f]
          %v4765 = vld [vmem:[%s176 + $0x738] sm:$0x7f]
          %v4766 = vld [vmem:[%s176 + $0x740] sm:$0x7f]
          %v4767 = vld [vmem:[%s176 + $0x748] sm:$0x7f]
          %v4768 = vld [vmem:[%s176 + $0x750] sm:$0x7f]
          %v4769 = vld [vmem:[%s176 + $0x758] sm:$0x7f]
          %v4770 = vld [vmem:[%s176 + $0x760] sm:$0x7f]
          %v4771 = vld [vmem:[%s176 + $0x768] sm:$0x7f]
          %v4772 = vld [vmem:[%s176 + $0x770] sm:$0x7f]
          %v4773 = vld [vmem:[%s176 + $0x778] sm:$0x7f]
          %v4774 = vld [vmem:[%s176 + $0x780] sm:$0x7f]
          %v4775 = vld [vmem:[%s176 + $0x788] sm:$0x7f]
          %v4776 = vld [vmem:[%s176 + $0x790] sm:$0x7f]
          %v4777 = vld [vmem:[%s176 + $0x798] sm:$0x7f]
          %v4778 = vld [vmem:[%s176 + $0x7a0] sm:$0x7f]
          %v4779 = vld [vmem:[%s176 + $0x7a8] sm:$0x7f]
          %v4780 = vld [vmem:[%s176 + $0x7b0] sm:$0x7f]
          %v4781 = vld [vmem:[%s176 + $0x7b8] sm:$0x7f]
          %v4782 = vld [vmem:[%s176 + $0x7c0] sm:$0x7f]
          %v4783 = vld [vmem:[%s176 + $0x7c8] sm:$0x7f]
          %v4784 = vld [vmem:[%s176 + $0x7d0] sm:$0x7f]
          %v4785 = vld [vmem:[%s176 + $0x7d8] sm:$0x7f]
          %v4786 = vld [vmem:[%s176 + $0x7e0] sm:$0x7f]
          %v4787 = vld [vmem:[%s176 + $0x7e8] sm:$0x7f]
          %v4788 = vld [vmem:[%s176 + $0x7f0] sm:$0x7f]
          %v4789 = vld [vmem:[%s176 + $0x7f8] sm:$0x7f]
          %v4790 = vld [vmem:[%s176 + $0x800] sm:$0x7f]
          %v4791 = vld [vmem:[%s176 + $0x808] sm:$0x7f]
          %v4792 = vld [vmem:[%s176 + $0x810] sm:$0x7f]
          %v4793 = vld [vmem:[%s176 + $0x818] sm:$0x7f]
          %v4794 = vld [vmem:[%s176 + $0x820] sm:$0x7f]
          %v4795 = vld [vmem:[%s176 + $0x828] sm:$0x7f]
          %v4796 = vld [vmem:[%s176 + $0x830] sm:$0x7f]
          %v4797 = vld [vmem:[%s176 + $0x838] sm:$0x7f]
          %v4798 = vsel %vm3939, %v4534, 0.0
          %v4799 = vsel %vm3940, %v4535, 0.0
          %v4800 = vsel %vm3941, %v4536, 0.0
          %v4801 = vsel %vm3942, %v4537, 0.0
          %v4802 = vsel %vm3943, %v4538, 0.0
          %v4803 = vsel %vm3944, %v4539, 0.0
          %v4804 = vsel %vm3945, %v4540, 0.0
          %v4805 = vsel %vm3946, %v4541, 0.0
          %v4806 = vsel %vm3947, %v4542, 0.0
          %v4807 = vsel %vm3948, %v4543, 0.0
          %v4808 = vsel %vm3949, %v4544, 0.0
          %v4809 = vsel %vm3950, %v4545, 0.0
          %v4810 = vsel %vm3951, %v4546, 0.0
          %v4811 = vsel %vm3952, %v4547, 0.0
          %v4812 = vsel %vm3953, %v4548, 0.0
          %v4813 = vsel %vm3954, %v4549, 0.0
          %v4814 = vsel %vm3955, %v4550, 0.0
          %v4815 = vsel %vm3956, %v4551, 0.0
          %v4816 = vsel %vm3957, %v4552, 0.0
          %v4817 = vsel %vm3958, %v4553, 0.0
          %v4818 = vsel %vm3959, %v4554, 0.0
          %v4819 = vsel %vm3960, %v4555, 0.0
          %v4820 = vsel %vm3961, %v4556, 0.0
          %v4821 = vsel %vm3962, %v4557, 0.0
          %v4822 = vsel %vm3963, %v4558, 0.0
          %v4823 = vsel %vm3964, %v4559, 0.0
          %v4824 = vsel %vm3965, %v4560, 0.0
          %v4825 = vsel %vm3966, %v4561, 0.0
          %v4826 = vsel %vm3967, %v4562, 0.0
          %v4827 = vsel %vm3968, %v4563, 0.0
          %v4828 = vsel %vm3969, %v4564, 0.0
          %v4829 = vsel %vm3970, %v4565, 0.0
          %v4830 = vsel %vm3971, %v4566, 0.0
          %v4831 = vsel %vm3972, %v4567, 0.0
          %v4832 = vsel %vm3973, %v4568, 0.0
          %v4833 = vsel %vm3974, %v4569, 0.0
          %v4834 = vsel %vm3975, %v4570, 0.0
          %v4835 = vsel %vm3976, %v4571, 0.0
          %v4836 = vsel %vm3977, %v4572, 0.0
          %v4837 = vsel %vm3978, %v4573, 0.0
          %v4838 = vsel %vm3979, %v4574, 0.0
          %v4839 = vsel %vm3980, %v4575, 0.0
          %v4840 = vsel %vm3981, %v4576, 0.0
          %v4841 = vsel %vm3982, %v4577, 0.0
          %v4842 = vsel %vm3983, %v4578, 0.0
          %v4843 = vsel %vm3984, %v4579, 0.0
          %v4844 = vsel %vm3985, %v4580, 0.0
          %v4845 = vsel %vm3986, %v4581, 0.0
          %v4846 = vsel %vm3987, %v4582, 0.0
          %v4847 = vsel %vm3988, %v4583, 0.0
          %v4848 = vsel %vm3989, %v4584, 0.0
          %v4849 = vsel %vm3990, %v4585, 0.0
          %v4850 = vsel %vm3991, %v4586, 0.0
          %v4851 = vsel %vm3992, %v4587, 0.0
          %v4852 = vsel %vm3993, %v4588, 0.0
          %v4853 = vsel %vm3994, %v4589, 0.0
          %v4854 = vsel %vm3995, %v4590, 0.0
          %v4855 = vsel %vm3996, %v4591, 0.0
          %v4856 = vsel %vm3997, %v4592, 0.0
          %v4857 = vsel %vm3998, %v4593, 0.0
          %v4858 = vsel %vm3999, %v4594, 0.0
          %v4859 = vsel %vm4000, %v4595, 0.0
          %v4860 = vsel %vm4001, %v4596, 0.0
          %v4861 = vsel %vm4002, %v4597, 0.0
          %v4862 = vsel %vm4003, %v4598, 0.0
          %v4863 = vsel %vm4004, %v4599, 0.0
          %v4864 = vsel %vm4005, %v4600, 0.0
          %v4865 = vsel %vm4006, %v4601, 0.0
          %v4866 = vsel %vm4007, %v4602, 0.0
          %v4867 = vsel %vm4008, %v4603, 0.0
          %v4868 = vsel %vm4009, %v4604, 0.0
          %v4869 = vsel %vm4010, %v4605, 0.0
          %v4870 = vsel %vm4011, %v4606, 0.0
          %v4871 = vsel %vm4012, %v4607, 0.0
          %v4872 = vsel %vm4013, %v4608, 0.0
          %v4873 = vsel %vm4014, %v4609, 0.0
          %v4874 = vsel %vm4015, %v4610, 0.0
          %v4875 = vsel %vm4016, %v4611, 0.0
          %v4876 = vsel %vm4017, %v4612, 0.0
          %v4877 = vsel %vm4018, %v4613, 0.0
          %v4878 = vsel %vm4019, %v4614, 0.0
          %v4879 = vsel %vm4020, %v4615, 0.0
          %v4880 = vsel %vm4021, %v4616, 0.0
          %v4881 = vsel %vm4022, %v4617, 0.0
          %v4882 = vsel %vm4023, %v4618, 0.0
          %v4883 = vsel %vm4024, %v4619, 0.0
          %v4884 = vsel %vm4025, %v4620, 0.0
          %v4885 = vsel %vm4026, %v4621, 0.0
          %v4886 = vsel %vm4027, %v4622, 0.0
          %v4887 = vsel %vm4028, %v4623, 0.0
          %v4888 = vsel %vm4029, %v4624, 0.0
          %v4889 = vsel %vm4030, %v4625, 0.0
          %v4890 = vsel %vm4031, %v4626, 0.0
          %v4891 = vsel %vm4032, %v4627, 0.0
          %v4892 = vsel %vm4033, %v4628, 0.0
          %v4893 = vsel %vm4034, %v4629, 0.0
          %v4894 = vsel %vm4035, %v4630, 0.0
          %v4895 = vsel %vm4036, %v4631, 0.0
          %v4896 = vsel %vm4037, %v4632, 0.0
          %v4897 = vsel %vm4038, %v4633, 0.0
          %v4898 = vsel %vm4039, %v4634, 0.0
          %v4899 = vsel %vm4040, %v4635, 0.0
          %v4900 = vsel %vm4041, %v4636, 0.0
          %v4901 = vsel %vm4042, %v4637, 0.0
          %v4902 = vsel %vm4043, %v4638, 0.0
          %v4903 = vsel %vm4044, %v4639, 0.0
          %v4904 = vsel %vm4045, %v4640, 0.0
          %v4905 = vsel %vm4046, %v4641, 0.0
          %v4906 = vsel %vm4047, %v4642, 0.0
          %v4907 = vsel %vm4048, %v4643, 0.0
          %v4908 = vsel %vm4049, %v4644, 0.0
          %v4909 = vsel %vm4050, %v4645, 0.0
          %v4910 = vsel %vm4051, %v4646, 0.0
          %v4911 = vsel %vm4052, %v4647, 0.0
          %v4912 = vsel %vm4053, %v4648, 0.0
          %v4913 = vsel %vm4054, %v4649, 0.0
          %v4914 = vsel %vm4055, %v4650, 0.0
          %v4915 = vsel %vm4056, %v4651, 0.0
          %v4916 = vsel %vm4057, %v4652, 0.0
          %v4917 = vsel %vm4058, %v4653, 0.0
          %v4918 = vsel %vm4059, %v4654, 0.0
          %v4919 = vsel %vm4060, %v4655, 0.0
          %v4920 = vsel %vm4061, %v4656, 0.0
          %v4921 = vsel %vm4062, %v4657, 0.0
          %v4922 = vsel %vm4063, %v4658, 0.0
          %v4923 = vsel %vm4064, %v4659, 0.0
          %v4924 = vsel %vm4065, %v4660, 0.0
          %v4925 = vsel %vm4066, %v4661, 0.0
          %v4926 = vsel %vm4067, %v4662, 0.0
          %v4927 = vsel %vm4068, %v4663, 0.0
          %v4928 = vsel %vm4069, %v4664, 0.0
          %v4929 = vsel %vm4070, %v4665, 0.0
          %v4930 = vsel %vm3939, %v4666, 0.0
          %v4931 = vsel %vm3940, %v4667, 0.0
          %v4932 = vsel %vm3941, %v4668, 0.0
          %v4933 = vsel %vm3942, %v4669, 0.0
          %v4934 = vsel %vm3943, %v4670, 0.0
          %v4935 = vsel %vm3944, %v4671, 0.0
          %v4936 = vsel %vm3945, %v4672, 0.0
          %v4937 = vsel %vm3946, %v4673, 0.0
          %v4938 = vsel %vm3947, %v4674, 0.0
          %v4939 = vsel %vm3948, %v4675, 0.0
          %v4940 = vsel %vm3949, %v4676, 0.0
          %v4941 = vsel %vm3950, %v4677, 0.0
          %v4942 = vsel %vm3951, %v4678, 0.0
          %v4943 = vsel %vm3952, %v4679, 0.0
          %v4944 = vsel %vm3953, %v4680, 0.0
          %v4945 = vsel %vm3954, %v4681, 0.0
          %v4946 = vsel %vm3955, %v4682, 0.0
          %v4947 = vsel %vm3956, %v4683, 0.0
          %v4948 = vsel %vm3957, %v4684, 0.0
          %v4949 = vsel %vm3958, %v4685, 0.0
          %v4950 = vsel %vm3959, %v4686, 0.0
          %v4951 = vsel %vm3960, %v4687, 0.0
          %v4952 = vsel %vm3961, %v4688, 0.0
          %v4953 = vsel %vm3962, %v4689, 0.0
          %v4954 = vsel %vm3963, %v4690, 0.0
          %v4955 = vsel %vm3964, %v4691, 0.0
          %v4956 = vsel %vm3965, %v4692, 0.0
          %v4957 = vsel %vm3966, %v4693, 0.0
          %v4958 = vsel %vm3967, %v4694, 0.0
          %v4959 = vsel %vm3968, %v4695, 0.0
          %v4960 = vsel %vm3969, %v4696, 0.0
          %v4961 = vsel %vm3970, %v4697, 0.0
          %v4962 = vsel %vm3971, %v4698, 0.0
          %v4963 = vsel %vm3972, %v4699, 0.0
          %v4964 = vsel %vm3973, %v4700, 0.0
          %v4965 = vsel %vm3974, %v4701, 0.0
          %v4966 = vsel %vm3975, %v4702, 0.0
          %v4967 = vsel %vm3976, %v4703, 0.0
          %v4968 = vsel %vm3977, %v4704, 0.0
          %v4969 = vsel %vm3978, %v4705, 0.0
          %v4970 = vsel %vm3979, %v4706, 0.0
          %v4971 = vsel %vm3980, %v4707, 0.0
          %v4972 = vsel %vm3981, %v4708, 0.0
          %v4973 = vsel %vm3982, %v4709, 0.0
          %v4974 = vsel %vm3983, %v4710, 0.0
          %v4975 = vsel %vm3984, %v4711, 0.0
          %v4976 = vsel %vm3985, %v4712, 0.0
          %v4977 = vsel %vm3986, %v4713, 0.0
          %v4978 = vsel %vm3987, %v4714, 0.0
          %v4979 = vsel %vm3988, %v4715, 0.0
          %v4980 = vsel %vm3989, %v4716, 0.0
          %v4981 = vsel %vm3990, %v4717, 0.0
          %v4982 = vsel %vm3991, %v4718, 0.0
          %v4983 = vsel %vm3992, %v4719, 0.0
          %v4984 = vsel %vm3993, %v4720, 0.0
          %v4985 = vsel %vm3994, %v4721, 0.0
          %v4986 = vsel %vm3995, %v4722, 0.0
          %v4987 = vsel %vm3996, %v4723, 0.0
          %v4988 = vsel %vm3997, %v4724, 0.0
          %v4989 = vsel %vm3998, %v4725, 0.0
          %v4990 = vsel %vm3999, %v4726, 0.0
          %v4991 = vsel %vm4000, %v4727, 0.0
          %v4992 = vsel %vm4001, %v4728, 0.0
          %v4993 = vsel %vm4002, %v4729, 0.0
          %v4994 = vsel %vm4003, %v4730, 0.0
          %v4995 = vsel %vm4004, %v4731, 0.0
          %v4996 = vsel %vm4005, %v4732, 0.0
          %v4997 = vsel %vm4006, %v4733, 0.0
          %v4998 = vsel %vm4007, %v4734, 0.0
          %v4999 = vsel %vm4008, %v4735, 0.0
          %v5000 = vsel %vm4009, %v4736, 0.0
          %v5001 = vsel %vm4010, %v4737, 0.0
          %v5002 = vsel %vm4011, %v4738, 0.0
          %v5003 = vsel %vm4012, %v4739, 0.0
          %v5004 = vsel %vm4013, %v4740, 0.0
          %v5005 = vsel %vm4014, %v4741, 0.0
          %v5006 = vsel %vm4015, %v4742, 0.0
          %v5007 = vsel %vm4016, %v4743, 0.0
          %v5008 = vsel %vm4017, %v4744, 0.0
          %v5009 = vsel %vm4018, %v4745, 0.0
          %v5010 = vsel %vm4019, %v4746, 0.0
          %v5011 = vsel %vm4020, %v4747, 0.0
          %v5012 = vsel %vm4021, %v4748, 0.0
          %v5013 = vsel %vm4022, %v4749, 0.0
          %v5014 = vsel %vm4023, %v4750, 0.0
          %v5015 = vsel %vm4024, %v4751, 0.0
          %v5016 = vsel %vm4025, %v4752, 0.0
          %v5017 = vsel %vm4026, %v4753, 0.0
          %v5018 = vsel %vm4027, %v4754, 0.0
          %v5019 = vsel %vm4028, %v4755, 0.0
          %v5020 = vsel %vm4029, %v4756, 0.0
          %v5021 = vsel %vm4030, %v4757, 0.0
          %v5022 = vsel %vm4031, %v4758, 0.0
          %v5023 = vsel %vm4032, %v4759, 0.0
          %v5024 = vsel %vm4033, %v4760, 0.0
          %v5025 = vsel %vm4034, %v4761, 0.0
          %v5026 = vsel %vm4035, %v4762, 0.0
          %v5027 = vsel %vm4036, %v4763, 0.0
          %v5028 = vsel %vm4037, %v4764, 0.0
          %v5029 = vsel %vm4038, %v4765, 0.0
          %v5030 = vsel %vm4039, %v4766, 0.0
          %v5031 = vsel %vm4040, %v4767, 0.0
          %v5032 = vsel %vm4041, %v4768, 0.0
          %v5033 = vsel %vm4042, %v4769, 0.0
          %v5034 = vsel %vm4043, %v4770, 0.0
          %v5035 = vsel %vm4044, %v4771, 0.0
          %v5036 = vsel %vm4045, %v4772, 0.0
          %v5037 = vsel %vm4046, %v4773, 0.0
          %v5038 = vsel %vm4047, %v4774, 0.0
          %v5039 = vsel %vm4048, %v4775, 0.0
          %v5040 = vsel %vm4049, %v4776, 0.0
          %v5041 = vsel %vm4050, %v4777, 0.0
          %v5042 = vsel %vm4051, %v4778, 0.0
          %v5043 = vsel %vm4052, %v4779, 0.0
          %v5044 = vsel %vm4053, %v4780, 0.0
          %v5045 = vsel %vm4054, %v4781, 0.0
          %v5046 = vsel %vm4055, %v4782, 0.0
          %v5047 = vsel %vm4056, %v4783, 0.0
          %v5048 = vsel %vm4057, %v4784, 0.0
          %v5049 = vsel %vm4058, %v4785, 0.0
          %v5050 = vsel %vm4059, %v4786, 0.0
          %v5051 = vsel %vm4060, %v4787, 0.0
          %v5052 = vsel %vm4061, %v4788, 0.0
          %v5053 = vsel %vm4062, %v4789, 0.0
          %v5054 = vsel %vm4063, %v4790, 0.0
          %v5055 = vsel %vm4064, %v4791, 0.0
          %v5056 = vsel %vm4065, %v4792, 0.0
          %v5057 = vsel %vm4066, %v4793, 0.0
          %v5058 = vsel %vm4067, %v4794, 0.0
          %v5059 = vsel %vm4068, %v4795, 0.0
          %v5060 = vsel %vm4069, %v4796, 0.0
          %v5061 = vsel %vm4070, %v4797, 0.0
          %v5062 = vld [vmem:[%s220] sm:$0x3]
          %5063 = vmatpush.xpose.msra.mxu0 0.0
          %5064 = vmatpush.xpose.msra.mxu0 0.0
          %5065 = vmatpush.xpose.msra.mxu0 0.0
          %5066 = vmatpush.xpose.msra.mxu0 0.0
          %5067 = vmatpush.xpose.msra.mxu0 0.0
          %5068 = vmatpush.xpose.msra.mxu0 0.0
          %5069 = vmatpush.xpose.msra.mxu0 0.0
          %5070 = vmatpush.xpose.msra.mxu0 0.0
          %5071 = vmatpush.xpose.msra.mxu0 0.0
          %5072 = vmatpush.xpose.msra.mxu0 0.0
          %5073 = vmatpush.xpose.msra.mxu0 0.0
          %5074 = vmatpush.xpose.msra.mxu0 0.0
          %5075 = vmatpush.xpose.msra.mxu0 0.0
          %5076 = vmatpush.xpose.msra.mxu0 0.0
          %5077 = vmatpush.xpose.msra.mxu0 %v4930
          %5078 = vmatpush.xpose.msra.mxu0 %v4798
          %5079 = vmatmul.f32.gmra.mxu0 %v4402
          %v5080 = vpop.f32.mrf.mxu0
          %v5081 = vadd.f32 0.0, %v5080
          %5082 = vdwg.mxu0
          %5083 = vmatpush.xpose.msra.mxu0 0.0
          %5084 = vmatpush.xpose.msra.mxu0 0.0
          %5085 = vmatpush.xpose.msra.mxu0 0.0
          %5086 = vmatpush.xpose.msra.mxu0 0.0
          %5087 = vmatpush.xpose.msra.mxu0 0.0
          %5088 = vmatpush.xpose.msra.mxu0 0.0
          %5089 = vmatpush.xpose.msra.mxu0 0.0
          %5090 = vmatpush.xpose.msra.mxu0 0.0
          %5091 = vmatpush.xpose.msra.mxu0 0.0
          %5092 = vmatpush.xpose.msra.mxu0 0.0
          %5093 = vmatpush.xpose.msra.mxu0 0.0
          %5094 = vmatpush.xpose.msra.mxu0 0.0
          %5095 = vmatpush.xpose.msra.mxu0 0.0
          %5096 = vmatpush.xpose.msra.mxu0 0.0
          %5097 = vmatpush.xpose.msra.mxu0 %v4931
          %5098 = vmatpush.xpose.msra.mxu0 %v4799
          %5099 = vmatmul.f32.gmra.mxu0 %v4403
          %v5100 = vpop.f32.mrf.mxu0
          %v5101 = vadd.f32 %v5081, %v5100
          %5102 = vdwg.mxu0
          %5103 = vmatpush.xpose.msra.mxu0 0.0
          %5104 = vmatpush.xpose.msra.mxu0 0.0
          %5105 = vmatpush.xpose.msra.mxu0 0.0
          %5106 = vmatpush.xpose.msra.mxu0 0.0
          %5107 = vmatpush.xpose.msra.mxu0 0.0
          %5108 = vmatpush.xpose.msra.mxu0 0.0
          %5109 = vmatpush.xpose.msra.mxu0 0.0
          %5110 = vmatpush.xpose.msra.mxu0 0.0
          %5111 = vmatpush.xpose.msra.mxu0 0.0
          %5112 = vmatpush.xpose.msra.mxu0 0.0
          %5113 = vmatpush.xpose.msra.mxu0 0.0
          %5114 = vmatpush.xpose.msra.mxu0 0.0
          %5115 = vmatpush.xpose.msra.mxu0 0.0
          %5116 = vmatpush.xpose.msra.mxu0 0.0
          %5117 = vmatpush.xpose.msra.mxu0 %v4932
          %5118 = vmatpush.xpose.msra.mxu0 %v4800
          %5119 = vmatmul.f32.gmra.mxu0 %v4404
          %v5120 = vpop.f32.mrf.mxu0
          %v5121 = vadd.f32 %v5101, %v5120
          %5122 = vdwg.mxu0
          %5123 = vmatpush.xpose.msra.mxu0 0.0
          %5124 = vmatpush.xpose.msra.mxu0 0.0
          %5125 = vmatpush.xpose.msra.mxu0 0.0
          %5126 = vmatpush.xpose.msra.mxu0 0.0
          %5127 = vmatpush.xpose.msra.mxu0 0.0
          %5128 = vmatpush.xpose.msra.mxu0 0.0
          %5129 = vmatpush.xpose.msra.mxu0 0.0
          %5130 = vmatpush.xpose.msra.mxu0 0.0
          %5131 = vmatpush.xpose.msra.mxu0 0.0
          %5132 = vmatpush.xpose.msra.mxu0 0.0
          %5133 = vmatpush.xpose.msra.mxu0 0.0
          %5134 = vmatpush.xpose.msra.mxu0 0.0
          %5135 = vmatpush.xpose.msra.mxu0 0.0
          %5136 = vmatpush.xpose.msra.mxu0 0.0
          %5137 = vmatpush.xpose.msra.mxu0 %v4933
          %5138 = vmatpush.xpose.msra.mxu0 %v4801
          %5139 = vmatmul.f32.gmra.mxu0 %v4405
          %v5140 = vpop.f32.mrf.mxu0
          %v5141 = vadd.f32 %v5121, %v5140
          %5142 = vdwg.mxu0
          %5143 = vmatpush.xpose.msra.mxu0 0.0
          %5144 = vmatpush.xpose.msra.mxu0 0.0
          %5145 = vmatpush.xpose.msra.mxu0 0.0
          %5146 = vmatpush.xpose.msra.mxu0 0.0
          %5147 = vmatpush.xpose.msra.mxu0 0.0
          %5148 = vmatpush.xpose.msra.mxu0 0.0
          %5149 = vmatpush.xpose.msra.mxu0 0.0
          %5150 = vmatpush.xpose.msra.mxu0 0.0
          %5151 = vmatpush.xpose.msra.mxu0 0.0
          %5152 = vmatpush.xpose.msra.mxu0 0.0
          %5153 = vmatpush.xpose.msra.mxu0 0.0
          %5154 = vmatpush.xpose.msra.mxu0 0.0
          %5155 = vmatpush.xpose.msra.mxu0 0.0
          %5156 = vmatpush.xpose.msra.mxu0 0.0
          %5157 = vmatpush.xpose.msra.mxu0 %v4934
          %5158 = vmatpush.xpose.msra.mxu0 %v4802
          %5159 = vmatmul.f32.gmra.mxu0 %v4406
          %v5160 = vpop.f32.mrf.mxu0
          %v5161 = vadd.f32 %v5141, %v5160
          %5162 = vdwg.mxu0
          %5163 = vmatpush.xpose.msra.mxu0 0.0
          %5164 = vmatpush.xpose.msra.mxu0 0.0
          %5165 = vmatpush.xpose.msra.mxu0 0.0
          %5166 = vmatpush.xpose.msra.mxu0 0.0
          %5167 = vmatpush.xpose.msra.mxu0 0.0
          %5168 = vmatpush.xpose.msra.mxu0 0.0
          %5169 = vmatpush.xpose.msra.mxu0 0.0
          %5170 = vmatpush.xpose.msra.mxu0 0.0
          %5171 = vmatpush.xpose.msra.mxu0 0.0
          %5172 = vmatpush.xpose.msra.mxu0 0.0
          %5173 = vmatpush.xpose.msra.mxu0 0.0
          %5174 = vmatpush.xpose.msra.mxu0 0.0
          %5175 = vmatpush.xpose.msra.mxu0 0.0
          %5176 = vmatpush.xpose.msra.mxu0 0.0
          %5177 = vmatpush.xpose.msra.mxu0 %v4935
          %5178 = vmatpush.xpose.msra.mxu0 %v4803
          %5179 = vmatmul.f32.gmra.mxu0 %v4407
          %v5180 = vpop.f32.mrf.mxu0
          %v5181 = vadd.f32 %v5161, %v5180
          %5182 = vdwg.mxu0
          %5183 = vmatpush.xpose.msra.mxu0 0.0
          %5184 = vmatpush.xpose.msra.mxu0 0.0
          %5185 = vmatpush.xpose.msra.mxu0 0.0
          %5186 = vmatpush.xpose.msra.mxu0 0.0
          %5187 = vmatpush.xpose.msra.mxu0 0.0
          %5188 = vmatpush.xpose.msra.mxu0 0.0
          %5189 = vmatpush.xpose.msra.mxu0 0.0
          %5190 = vmatpush.xpose.msra.mxu0 0.0
          %5191 = vmatpush.xpose.msra.mxu0 0.0
          %5192 = vmatpush.xpose.msra.mxu0 0.0
          %5193 = vmatpush.xpose.msra.mxu0 0.0
          %5194 = vmatpush.xpose.msra.mxu0 0.0
          %5195 = vmatpush.xpose.msra.mxu0 0.0
          %5196 = vmatpush.xpose.msra.mxu0 0.0
          %5197 = vmatpush.xpose.msra.mxu0 %v4936
          %5198 = vmatpush.xpose.msra.mxu0 %v4804
          %5199 = vmatmul.f32.gmra.mxu0 %v4408
          %v5200 = vpop.f32.mrf.mxu0
          %v5201 = vadd.f32 %v5181, %v5200
          %5202 = vdwg.mxu0
          %5203 = vmatpush.xpose.msra.mxu0 0.0
          %5204 = vmatpush.xpose.msra.mxu0 0.0
          %5205 = vmatpush.xpose.msra.mxu0 0.0
          %5206 = vmatpush.xpose.msra.mxu0 0.0
          %5207 = vmatpush.xpose.msra.mxu0 0.0
          %5208 = vmatpush.xpose.msra.mxu0 0.0
          %5209 = vmatpush.xpose.msra.mxu0 0.0
          %5210 = vmatpush.xpose.msra.mxu0 0.0
          %5211 = vmatpush.xpose.msra.mxu0 0.0
          %5212 = vmatpush.xpose.msra.mxu0 0.0
          %5213 = vmatpush.xpose.msra.mxu0 0.0
          %5214 = vmatpush.xpose.msra.mxu0 0.0
          %5215 = vmatpush.xpose.msra.mxu0 0.0
          %5216 = vmatpush.xpose.msra.mxu0 0.0
          %5217 = vmatpush.xpose.msra.mxu0 %v4937
          %5218 = vmatpush.xpose.msra.mxu0 %v4805
          %5219 = vmatmul.f32.gmra.mxu0 %v4409
          %v5220 = vpop.f32.mrf.mxu0
          %v5221 = vadd.f32 %v5201, %v5220
          %5222 = vdwg.mxu0
          %5223 = vmatpush.xpose.msra.mxu0 0.0
          %5224 = vmatpush.xpose.msra.mxu0 0.0
          %5225 = vmatpush.xpose.msra.mxu0 0.0
          %5226 = vmatpush.xpose.msra.mxu0 0.0
          %5227 = vmatpush.xpose.msra.mxu0 0.0
          %5228 = vmatpush.xpose.msra.mxu0 0.0
          %5229 = vmatpush.xpose.msra.mxu0 0.0
          %5230 = vmatpush.xpose.msra.mxu0 0.0
          %5231 = vmatpush.xpose.msra.mxu0 0.0
          %5232 = vmatpush.xpose.msra.mxu0 0.0
          %5233 = vmatpush.xpose.msra.mxu0 0.0
          %5234 = vmatpush.xpose.msra.mxu0 0.0
          %5235 = vmatpush.xpose.msra.mxu0 0.0
          %5236 = vmatpush.xpose.msra.mxu0 0.0
          %5237 = vmatpush.xpose.msra.mxu0 %v4938
          %5238 = vmatpush.xpose.msra.mxu0 %v4806
          %5239 = vmatmul.f32.gmra.mxu0 %v4410
          %v5240 = vpop.f32.mrf.mxu0
          %v5241 = vadd.f32 %v5221, %v5240
          %5242 = vdwg.mxu0
          %5243 = vmatpush.xpose.msra.mxu0 0.0
          %5244 = vmatpush.xpose.msra.mxu0 0.0
          %5245 = vmatpush.xpose.msra.mxu0 0.0
          %5246 = vmatpush.xpose.msra.mxu0 0.0
          %5247 = vmatpush.xpose.msra.mxu0 0.0
          %5248 = vmatpush.xpose.msra.mxu0 0.0
          %5249 = vmatpush.xpose.msra.mxu0 0.0
          %5250 = vmatpush.xpose.msra.mxu0 0.0
          %5251 = vmatpush.xpose.msra.mxu0 0.0
          %5252 = vmatpush.xpose.msra.mxu0 0.0
          %5253 = vmatpush.xpose.msra.mxu0 0.0
          %5254 = vmatpush.xpose.msra.mxu0 0.0
          %5255 = vmatpush.xpose.msra.mxu0 0.0
          %5256 = vmatpush.xpose.msra.mxu0 0.0
          %5257 = vmatpush.xpose.msra.mxu0 %v4939
          %5258 = vmatpush.xpose.msra.mxu0 %v4807
          %5259 = vmatmul.f32.gmra.mxu0 %v4411
          %v5260 = vpop.f32.mrf.mxu0
          %v5261 = vadd.f32 %v5241, %v5260
          %5262 = vdwg.mxu0
          %5263 = vmatpush.xpose.msra.mxu0 0.0
          %5264 = vmatpush.xpose.msra.mxu0 0.0
          %5265 = vmatpush.xpose.msra.mxu0 0.0
          %5266 = vmatpush.xpose.msra.mxu0 0.0
          %5267 = vmatpush.xpose.msra.mxu0 0.0
          %5268 = vmatpush.xpose.msra.mxu0 0.0
          %5269 = vmatpush.xpose.msra.mxu0 0.0
          %5270 = vmatpush.xpose.msra.mxu0 0.0
          %5271 = vmatpush.xpose.msra.mxu0 0.0
          %5272 = vmatpush.xpose.msra.mxu0 0.0
          %5273 = vmatpush.xpose.msra.mxu0 0.0
          %5274 = vmatpush.xpose.msra.mxu0 0.0
          %5275 = vmatpush.xpose.msra.mxu0 0.0
          %5276 = vmatpush.xpose.msra.mxu0 0.0
          %5277 = vmatpush.xpose.msra.mxu0 %v4940
          %5278 = vmatpush.xpose.msra.mxu0 %v4808
          %5279 = vmatmul.f32.gmra.mxu0 %v4412
          %v5280 = vpop.f32.mrf.mxu0
          %v5281 = vadd.f32 %v5261, %v5280
          %5282 = vdwg.mxu0
          %5283 = vmatpush.xpose.msra.mxu0 0.0
          %5284 = vmatpush.xpose.msra.mxu0 0.0
          %5285 = vmatpush.xpose.msra.mxu0 0.0
          %5286 = vmatpush.xpose.msra.mxu0 0.0
          %5287 = vmatpush.xpose.msra.mxu0 0.0
          %5288 = vmatpush.xpose.msra.mxu0 0.0
          %5289 = vmatpush.xpose.msra.mxu0 0.0
          %5290 = vmatpush.xpose.msra.mxu0 0.0
          %5291 = vmatpush.xpose.msra.mxu0 0.0
          %5292 = vmatpush.xpose.msra.mxu0 0.0
          %5293 = vmatpush.xpose.msra.mxu0 0.0
          %5294 = vmatpush.xpose.msra.mxu0 0.0
          %5295 = vmatpush.xpose.msra.mxu0 0.0
          %5296 = vmatpush.xpose.msra.mxu0 0.0
          %5297 = vmatpush.xpose.msra.mxu0 %v4941
          %5298 = vmatpush.xpose.msra.mxu0 %v4809
          %5299 = vmatmul.f32.gmra.mxu0 %v4413
          %v5300 = vpop.f32.mrf.mxu0
          %v5301 = vadd.f32 %v5281, %v5300
          %5302 = vdwg.mxu0
          %5303 = vmatpush.xpose.msra.mxu0 0.0
          %5304 = vmatpush.xpose.msra.mxu0 0.0
          %5305 = vmatpush.xpose.msra.mxu0 0.0
          %5306 = vmatpush.xpose.msra.mxu0 0.0
          %5307 = vmatpush.xpose.msra.mxu0 0.0
          %5308 = vmatpush.xpose.msra.mxu0 0.0
          %5309 = vmatpush.xpose.msra.mxu0 0.0
          %5310 = vmatpush.xpose.msra.mxu0 0.0
          %5311 = vmatpush.xpose.msra.mxu0 0.0
          %5312 = vmatpush.xpose.msra.mxu0 0.0
          %5313 = vmatpush.xpose.msra.mxu0 0.0
          %5314 = vmatpush.xpose.msra.mxu0 0.0
          %5315 = vmatpush.xpose.msra.mxu0 0.0
          %5316 = vmatpush.xpose.msra.mxu0 0.0
          %5317 = vmatpush.xpose.msra.mxu0 %v4942
          %5318 = vmatpush.xpose.msra.mxu0 %v4810
          %5319 = vmatmul.f32.gmra.mxu0 %v4414
          %v5320 = vpop.f32.mrf.mxu0
          %v5321 = vadd.f32 %v5301, %v5320
          %5322 = vdwg.mxu0
          %5323 = vmatpush.xpose.msra.mxu0 0.0
          %5324 = vmatpush.xpose.msra.mxu0 0.0
          %5325 = vmatpush.xpose.msra.mxu0 0.0
          %5326 = vmatpush.xpose.msra.mxu0 0.0
          %5327 = vmatpush.xpose.msra.mxu0 0.0
          %5328 = vmatpush.xpose.msra.mxu0 0.0
          %5329 = vmatpush.xpose.msra.mxu0 0.0
          %5330 = vmatpush.xpose.msra.mxu0 0.0
          %5331 = vmatpush.xpose.msra.mxu0 0.0
          %5332 = vmatpush.xpose.msra.mxu0 0.0
          %5333 = vmatpush.xpose.msra.mxu0 0.0
          %5334 = vmatpush.xpose.msra.mxu0 0.0
          %5335 = vmatpush.xpose.msra.mxu0 0.0
          %5336 = vmatpush.xpose.msra.mxu0 0.0
          %5337 = vmatpush.xpose.msra.mxu0 %v4943
          %5338 = vmatpush.xpose.msra.mxu0 %v4811
          %5339 = vmatmul.f32.gmra.mxu0 %v4415
          %v5340 = vpop.f32.mrf.mxu0
          %v5341 = vadd.f32 %v5321, %v5340
          %5342 = vdwg.mxu0
          %5343 = vmatpush.xpose.msra.mxu0 0.0
          %5344 = vmatpush.xpose.msra.mxu0 0.0
          %5345 = vmatpush.xpose.msra.mxu0 0.0
          %5346 = vmatpush.xpose.msra.mxu0 0.0
          %5347 = vmatpush.xpose.msra.mxu0 0.0
          %5348 = vmatpush.xpose.msra.mxu0 0.0
          %5349 = vmatpush.xpose.msra.mxu0 0.0
          %5350 = vmatpush.xpose.msra.mxu0 0.0
          %5351 = vmatpush.xpose.msra.mxu0 0.0
          %5352 = vmatpush.xpose.msra.mxu0 0.0
          %5353 = vmatpush.xpose.msra.mxu0 0.0
          %5354 = vmatpush.xpose.msra.mxu0 0.0
          %5355 = vmatpush.xpose.msra.mxu0 0.0
          %5356 = vmatpush.xpose.msra.mxu0 0.0
          %5357 = vmatpush.xpose.msra.mxu0 %v4944
          %5358 = vmatpush.xpose.msra.mxu0 %v4812
          %5359 = vmatmul.f32.gmra.mxu0 %v4416
          %v5360 = vpop.f32.mrf.mxu0
          %v5361 = vadd.f32 %v5341, %v5360
          %5362 = vdwg.mxu0
          %5363 = vmatpush.xpose.msra.mxu0 0.0
          %5364 = vmatpush.xpose.msra.mxu0 0.0
          %5365 = vmatpush.xpose.msra.mxu0 0.0
          %5366 = vmatpush.xpose.msra.mxu0 0.0
          %5367 = vmatpush.xpose.msra.mxu0 0.0
          %5368 = vmatpush.xpose.msra.mxu0 0.0
          %5369 = vmatpush.xpose.msra.mxu0 0.0
          %5370 = vmatpush.xpose.msra.mxu0 0.0
          %5371 = vmatpush.xpose.msra.mxu0 0.0
          %5372 = vmatpush.xpose.msra.mxu0 0.0
          %5373 = vmatpush.xpose.msra.mxu0 0.0
          %5374 = vmatpush.xpose.msra.mxu0 0.0
          %5375 = vmatpush.xpose.msra.mxu0 0.0
          %5376 = vmatpush.xpose.msra.mxu0 0.0
          %5377 = vmatpush.xpose.msra.mxu0 %v4945
          %5378 = vmatpush.xpose.msra.mxu0 %v4813
          %5379 = vmatmul.f32.gmra.mxu0 %v4417
          %v5380 = vpop.f32.mrf.mxu0
          %v5381 = vadd.f32 %v5361, %v5380
          %5382 = vdwg.mxu0
          %5383 = vmatpush.xpose.msra.mxu0 0.0
          %5384 = vmatpush.xpose.msra.mxu0 0.0
          %5385 = vmatpush.xpose.msra.mxu0 0.0
          %5386 = vmatpush.xpose.msra.mxu0 0.0
          %5387 = vmatpush.xpose.msra.mxu0 0.0
          %5388 = vmatpush.xpose.msra.mxu0 0.0
          %5389 = vmatpush.xpose.msra.mxu0 0.0
          %5390 = vmatpush.xpose.msra.mxu0 0.0
          %5391 = vmatpush.xpose.msra.mxu0 0.0
          %5392 = vmatpush.xpose.msra.mxu0 0.0
          %5393 = vmatpush.xpose.msra.mxu0 0.0
          %5394 = vmatpush.xpose.msra.mxu0 0.0
          %5395 = vmatpush.xpose.msra.mxu0 0.0
          %5396 = vmatpush.xpose.msra.mxu0 0.0
          %5397 = vmatpush.xpose.msra.mxu0 %v4946
          %5398 = vmatpush.xpose.msra.mxu0 %v4814
          %5399 = vmatmul.f32.gmra.mxu0 %v4418
          %v5400 = vpop.f32.mrf.mxu0
          %v5401 = vadd.f32 %v5381, %v5400
          %5402 = vdwg.mxu0
          %5403 = vmatpush.xpose.msra.mxu0 0.0
          %5404 = vmatpush.xpose.msra.mxu0 0.0
          %5405 = vmatpush.xpose.msra.mxu0 0.0
          %5406 = vmatpush.xpose.msra.mxu0 0.0
          %5407 = vmatpush.xpose.msra.mxu0 0.0
          %5408 = vmatpush.xpose.msra.mxu0 0.0
          %5409 = vmatpush.xpose.msra.mxu0 0.0
          %5410 = vmatpush.xpose.msra.mxu0 0.0
          %5411 = vmatpush.xpose.msra.mxu0 0.0
          %5412 = vmatpush.xpose.msra.mxu0 0.0
          %5413 = vmatpush.xpose.msra.mxu0 0.0
          %5414 = vmatpush.xpose.msra.mxu0 0.0
          %5415 = vmatpush.xpose.msra.mxu0 0.0
          %5416 = vmatpush.xpose.msra.mxu0 0.0
          %5417 = vmatpush.xpose.msra.mxu0 %v4947
          %5418 = vmatpush.xpose.msra.mxu0 %v4815
          %5419 = vmatmul.f32.gmra.mxu0 %v4419
          %v5420 = vpop.f32.mrf.mxu0
          %v5421 = vadd.f32 %v5401, %v5420
          %5422 = vdwg.mxu0
          %5423 = vmatpush.xpose.msra.mxu0 0.0
          %5424 = vmatpush.xpose.msra.mxu0 0.0
          %5425 = vmatpush.xpose.msra.mxu0 0.0
          %5426 = vmatpush.xpose.msra.mxu0 0.0
          %5427 = vmatpush.xpose.msra.mxu0 0.0
          %5428 = vmatpush.xpose.msra.mxu0 0.0
          %5429 = vmatpush.xpose.msra.mxu0 0.0
          %5430 = vmatpush.xpose.msra.mxu0 0.0
          %5431 = vmatpush.xpose.msra.mxu0 0.0
          %5432 = vmatpush.xpose.msra.mxu0 0.0
          %5433 = vmatpush.xpose.msra.mxu0 0.0
          %5434 = vmatpush.xpose.msra.mxu0 0.0
          %5435 = vmatpush.xpose.msra.mxu0 0.0
          %5436 = vmatpush.xpose.msra.mxu0 0.0
          %5437 = vmatpush.xpose.msra.mxu0 %v4948
          %5438 = vmatpush.xpose.msra.mxu0 %v4816
          %5439 = vmatmul.f32.gmra.mxu0 %v4420
          %v5440 = vpop.f32.mrf.mxu0
          %v5441 = vadd.f32 %v5421, %v5440
          %5442 = vdwg.mxu0
          %5443 = vmatpush.xpose.msra.mxu0 0.0
          %5444 = vmatpush.xpose.msra.mxu0 0.0
          %5445 = vmatpush.xpose.msra.mxu0 0.0
          %5446 = vmatpush.xpose.msra.mxu0 0.0
          %5447 = vmatpush.xpose.msra.mxu0 0.0
          %5448 = vmatpush.xpose.msra.mxu0 0.0
          %5449 = vmatpush.xpose.msra.mxu0 0.0
          %5450 = vmatpush.xpose.msra.mxu0 0.0
          %5451 = vmatpush.xpose.msra.mxu0 0.0
          %5452 = vmatpush.xpose.msra.mxu0 0.0
          %5453 = vmatpush.xpose.msra.mxu0 0.0
          %5454 = vmatpush.xpose.msra.mxu0 0.0
          %5455 = vmatpush.xpose.msra.mxu0 0.0
          %5456 = vmatpush.xpose.msra.mxu0 0.0
          %5457 = vmatpush.xpose.msra.mxu0 %v4949
          %5458 = vmatpush.xpose.msra.mxu0 %v4817
          %5459 = vmatmul.f32.gmra.mxu0 %v4421
          %v5460 = vpop.f32.mrf.mxu0
          %v5461 = vadd.f32 %v5441, %v5460
          %5462 = vdwg.mxu0
          %5463 = vmatpush.xpose.msra.mxu0 0.0
          %5464 = vmatpush.xpose.msra.mxu0 0.0
          %5465 = vmatpush.xpose.msra.mxu0 0.0
          %5466 = vmatpush.xpose.msra.mxu0 0.0
          %5467 = vmatpush.xpose.msra.mxu0 0.0
          %5468 = vmatpush.xpose.msra.mxu0 0.0
          %5469 = vmatpush.xpose.msra.mxu0 0.0
          %5470 = vmatpush.xpose.msra.mxu0 0.0
          %5471 = vmatpush.xpose.msra.mxu0 0.0
          %5472 = vmatpush.xpose.msra.mxu0 0.0
          %5473 = vmatpush.xpose.msra.mxu0 0.0
          %5474 = vmatpush.xpose.msra.mxu0 0.0
          %5475 = vmatpush.xpose.msra.mxu0 0.0
          %5476 = vmatpush.xpose.msra.mxu0 0.0
          %5477 = vmatpush.xpose.msra.mxu0 %v4950
          %5478 = vmatpush.xpose.msra.mxu0 %v4818
          %5479 = vmatmul.f32.gmra.mxu0 %v4422
          %v5480 = vpop.f32.mrf.mxu0
          %v5481 = vadd.f32 %v5461, %v5480
          %5482 = vdwg.mxu0
          %5483 = vmatpush.xpose.msra.mxu0 0.0
          %5484 = vmatpush.xpose.msra.mxu0 0.0
          %5485 = vmatpush.xpose.msra.mxu0 0.0
          %5486 = vmatpush.xpose.msra.mxu0 0.0
          %5487 = vmatpush.xpose.msra.mxu0 0.0
          %5488 = vmatpush.xpose.msra.mxu0 0.0
          %5489 = vmatpush.xpose.msra.mxu0 0.0
          %5490 = vmatpush.xpose.msra.mxu0 0.0
          %5491 = vmatpush.xpose.msra.mxu0 0.0
          %5492 = vmatpush.xpose.msra.mxu0 0.0
          %5493 = vmatpush.xpose.msra.mxu0 0.0
          %5494 = vmatpush.xpose.msra.mxu0 0.0
          %5495 = vmatpush.xpose.msra.mxu0 0.0
          %5496 = vmatpush.xpose.msra.mxu0 0.0
          %5497 = vmatpush.xpose.msra.mxu0 %v4951
          %5498 = vmatpush.xpose.msra.mxu0 %v4819
          %5499 = vmatmul.f32.gmra.mxu0 %v4423
          %v5500 = vpop.f32.mrf.mxu0
          %v5501 = vadd.f32 %v5481, %v5500
          %5502 = vdwg.mxu0
          %5503 = vmatpush.xpose.msra.mxu0 0.0
          %5504 = vmatpush.xpose.msra.mxu0 0.0
          %5505 = vmatpush.xpose.msra.mxu0 0.0
          %5506 = vmatpush.xpose.msra.mxu0 0.0
          %5507 = vmatpush.xpose.msra.mxu0 0.0
          %5508 = vmatpush.xpose.msra.mxu0 0.0
          %5509 = vmatpush.xpose.msra.mxu0 0.0
          %5510 = vmatpush.xpose.msra.mxu0 0.0
          %5511 = vmatpush.xpose.msra.mxu0 0.0
          %5512 = vmatpush.xpose.msra.mxu0 0.0
          %5513 = vmatpush.xpose.msra.mxu0 0.0
          %5514 = vmatpush.xpose.msra.mxu0 0.0
          %5515 = vmatpush.xpose.msra.mxu0 0.0
          %5516 = vmatpush.xpose.msra.mxu0 0.0
          %5517 = vmatpush.xpose.msra.mxu0 %v4952
          %5518 = vmatpush.xpose.msra.mxu0 %v4820
          %5519 = vmatmul.f32.gmra.mxu0 %v4424
          %v5520 = vpop.f32.mrf.mxu0
          %v5521 = vadd.f32 %v5501, %v5520
          %5522 = vdwg.mxu0
          %5523 = vmatpush.xpose.msra.mxu0 0.0
          %5524 = vmatpush.xpose.msra.mxu0 0.0
          %5525 = vmatpush.xpose.msra.mxu0 0.0
          %5526 = vmatpush.xpose.msra.mxu0 0.0
          %5527 = vmatpush.xpose.msra.mxu0 0.0
          %5528 = vmatpush.xpose.msra.mxu0 0.0
          %5529 = vmatpush.xpose.msra.mxu0 0.0
          %5530 = vmatpush.xpose.msra.mxu0 0.0
          %5531 = vmatpush.xpose.msra.mxu0 0.0
          %5532 = vmatpush.xpose.msra.mxu0 0.0
          %5533 = vmatpush.xpose.msra.mxu0 0.0
          %5534 = vmatpush.xpose.msra.mxu0 0.0
          %5535 = vmatpush.xpose.msra.mxu0 0.0
          %5536 = vmatpush.xpose.msra.mxu0 0.0
          %5537 = vmatpush.xpose.msra.mxu0 %v4953
          %5538 = vmatpush.xpose.msra.mxu0 %v4821
          %5539 = vmatmul.f32.gmra.mxu0 %v4425
          %v5540 = vpop.f32.mrf.mxu0
          %v5541 = vadd.f32 %v5521, %v5540
          %5542 = vdwg.mxu0
          %5543 = vmatpush.xpose.msra.mxu0 0.0
          %5544 = vmatpush.xpose.msra.mxu0 0.0
          %5545 = vmatpush.xpose.msra.mxu0 0.0
          %5546 = vmatpush.xpose.msra.mxu0 0.0
          %5547 = vmatpush.xpose.msra.mxu0 0.0
          %5548 = vmatpush.xpose.msra.mxu0 0.0
          %5549 = vmatpush.xpose.msra.mxu0 0.0
          %5550 = vmatpush.xpose.msra.mxu0 0.0
          %5551 = vmatpush.xpose.msra.mxu0 0.0
          %5552 = vmatpush.xpose.msra.mxu0 0.0
          %5553 = vmatpush.xpose.msra.mxu0 0.0
          %5554 = vmatpush.xpose.msra.mxu0 0.0
          %5555 = vmatpush.xpose.msra.mxu0 0.0
          %5556 = vmatpush.xpose.msra.mxu0 0.0
          %5557 = vmatpush.xpose.msra.mxu0 %v4954
          %5558 = vmatpush.xpose.msra.mxu0 %v4822
          %5559 = vmatmul.f32.gmra.mxu0 %v4426
          %v5560 = vpop.f32.mrf.mxu0
          %v5561 = vadd.f32 %v5541, %v5560
          %5562 = vdwg.mxu0
          %5563 = vmatpush.xpose.msra.mxu0 0.0
          %5564 = vmatpush.xpose.msra.mxu0 0.0
          %5565 = vmatpush.xpose.msra.mxu0 0.0
          %5566 = vmatpush.xpose.msra.mxu0 0.0
          %5567 = vmatpush.xpose.msra.mxu0 0.0
          %5568 = vmatpush.xpose.msra.mxu0 0.0
          %5569 = vmatpush.xpose.msra.mxu0 0.0
          %5570 = vmatpush.xpose.msra.mxu0 0.0
          %5571 = vmatpush.xpose.msra.mxu0 0.0
          %5572 = vmatpush.xpose.msra.mxu0 0.0
          %5573 = vmatpush.xpose.msra.mxu0 0.0
          %5574 = vmatpush.xpose.msra.mxu0 0.0
          %5575 = vmatpush.xpose.msra.mxu0 0.0
          %5576 = vmatpush.xpose.msra.mxu0 0.0
          %5577 = vmatpush.xpose.msra.mxu0 %v4955
          %5578 = vmatpush.xpose.msra.mxu0 %v4823
          %5579 = vmatmul.f32.gmra.mxu0 %v4427
          %v5580 = vpop.f32.mrf.mxu0
          %v5581 = vadd.f32 %v5561, %v5580
          %5582 = vdwg.mxu0
          %5583 = vmatpush.xpose.msra.mxu0 0.0
          %5584 = vmatpush.xpose.msra.mxu0 0.0
          %5585 = vmatpush.xpose.msra.mxu0 0.0
          %5586 = vmatpush.xpose.msra.mxu0 0.0
          %5587 = vmatpush.xpose.msra.mxu0 0.0
          %5588 = vmatpush.xpose.msra.mxu0 0.0
          %5589 = vmatpush.xpose.msra.mxu0 0.0
          %5590 = vmatpush.xpose.msra.mxu0 0.0
          %5591 = vmatpush.xpose.msra.mxu0 0.0
          %5592 = vmatpush.xpose.msra.mxu0 0.0
          %5593 = vmatpush.xpose.msra.mxu0 0.0
          %5594 = vmatpush.xpose.msra.mxu0 0.0
          %5595 = vmatpush.xpose.msra.mxu0 0.0
          %5596 = vmatpush.xpose.msra.mxu0 0.0
          %5597 = vmatpush.xpose.msra.mxu0 %v4956
          %5598 = vmatpush.xpose.msra.mxu0 %v4824
          %5599 = vmatmul.f32.gmra.mxu0 %v4428
          %v5600 = vpop.f32.mrf.mxu0
          %v5601 = vadd.f32 %v5581, %v5600
          %5602 = vdwg.mxu0
          %5603 = vmatpush.xpose.msra.mxu0 0.0
          %5604 = vmatpush.xpose.msra.mxu0 0.0
          %5605 = vmatpush.xpose.msra.mxu0 0.0
          %5606 = vmatpush.xpose.msra.mxu0 0.0
          %5607 = vmatpush.xpose.msra.mxu0 0.0
          %5608 = vmatpush.xpose.msra.mxu0 0.0
          %5609 = vmatpush.xpose.msra.mxu0 0.0
          %5610 = vmatpush.xpose.msra.mxu0 0.0
          %5611 = vmatpush.xpose.msra.mxu0 0.0
          %5612 = vmatpush.xpose.msra.mxu0 0.0
          %5613 = vmatpush.xpose.msra.mxu0 0.0
          %5614 = vmatpush.xpose.msra.mxu0 0.0
          %5615 = vmatpush.xpose.msra.mxu0 0.0
          %5616 = vmatpush.xpose.msra.mxu0 0.0
          %5617 = vmatpush.xpose.msra.mxu0 %v4957
          %5618 = vmatpush.xpose.msra.mxu0 %v4825
          %5619 = vmatmul.f32.gmra.mxu0 %v4429
          %v5620 = vpop.f32.mrf.mxu0
          %v5621 = vadd.f32 %v5601, %v5620
          %5622 = vdwg.mxu0
          %5623 = vmatpush.xpose.msra.mxu0 0.0
          %5624 = vmatpush.xpose.msra.mxu0 0.0
          %5625 = vmatpush.xpose.msra.mxu0 0.0
          %5626 = vmatpush.xpose.msra.mxu0 0.0
          %5627 = vmatpush.xpose.msra.mxu0 0.0
          %5628 = vmatpush.xpose.msra.mxu0 0.0
          %5629 = vmatpush.xpose.msra.mxu0 0.0
          %5630 = vmatpush.xpose.msra.mxu0 0.0
          %5631 = vmatpush.xpose.msra.mxu0 0.0
          %5632 = vmatpush.xpose.msra.mxu0 0.0
          %5633 = vmatpush.xpose.msra.mxu0 0.0
          %5634 = vmatpush.xpose.msra.mxu0 0.0
          %5635 = vmatpush.xpose.msra.mxu0 0.0
          %5636 = vmatpush.xpose.msra.mxu0 0.0
          %5637 = vmatpush.xpose.msra.mxu0 %v4958
          %5638 = vmatpush.xpose.msra.mxu0 %v4826
          %5639 = vmatmul.f32.gmra.mxu0 %v4430
          %v5640 = vpop.f32.mrf.mxu0
          %v5641 = vadd.f32 %v5621, %v5640
          %5642 = vdwg.mxu0
          %5643 = vmatpush.xpose.msra.mxu0 0.0
          %5644 = vmatpush.xpose.msra.mxu0 0.0
          %5645 = vmatpush.xpose.msra.mxu0 0.0
          %5646 = vmatpush.xpose.msra.mxu0 0.0
          %5647 = vmatpush.xpose.msra.mxu0 0.0
          %5648 = vmatpush.xpose.msra.mxu0 0.0
          %5649 = vmatpush.xpose.msra.mxu0 0.0
          %5650 = vmatpush.xpose.msra.mxu0 0.0
          %5651 = vmatpush.xpose.msra.mxu0 0.0
          %5652 = vmatpush.xpose.msra.mxu0 0.0
          %5653 = vmatpush.xpose.msra.mxu0 0.0
          %5654 = vmatpush.xpose.msra.mxu0 0.0
          %5655 = vmatpush.xpose.msra.mxu0 0.0
          %5656 = vmatpush.xpose.msra.mxu0 0.0
          %5657 = vmatpush.xpose.msra.mxu0 %v4959
          %5658 = vmatpush.xpose.msra.mxu0 %v4827
          %5659 = vmatmul.f32.gmra.mxu0 %v4431
          %v5660 = vpop.f32.mrf.mxu0
          %v5661 = vadd.f32 %v5641, %v5660
          %5662 = vdwg.mxu0
          %5663 = vmatpush.xpose.msra.mxu0 0.0
          %5664 = vmatpush.xpose.msra.mxu0 0.0
          %5665 = vmatpush.xpose.msra.mxu0 0.0
          %5666 = vmatpush.xpose.msra.mxu0 0.0
          %5667 = vmatpush.xpose.msra.mxu0 0.0
          %5668 = vmatpush.xpose.msra.mxu0 0.0
          %5669 = vmatpush.xpose.msra.mxu0 0.0
          %5670 = vmatpush.xpose.msra.mxu0 0.0
          %5671 = vmatpush.xpose.msra.mxu0 0.0
          %5672 = vmatpush.xpose.msra.mxu0 0.0
          %5673 = vmatpush.xpose.msra.mxu0 0.0
          %5674 = vmatpush.xpose.msra.mxu0 0.0
          %5675 = vmatpush.xpose.msra.mxu0 0.0
          %5676 = vmatpush.xpose.msra.mxu0 0.0
          %5677 = vmatpush.xpose.msra.mxu0 %v4960
          %5678 = vmatpush.xpose.msra.mxu0 %v4828
          %5679 = vmatmul.f32.gmra.mxu0 %v4432
          %v5680 = vpop.f32.mrf.mxu0
          %v5681 = vadd.f32 %v5661, %v5680
          %5682 = vdwg.mxu0
          %5683 = vmatpush.xpose.msra.mxu0 0.0
          %5684 = vmatpush.xpose.msra.mxu0 0.0
          %5685 = vmatpush.xpose.msra.mxu0 0.0
          %5686 = vmatpush.xpose.msra.mxu0 0.0
          %5687 = vmatpush.xpose.msra.mxu0 0.0
          %5688 = vmatpush.xpose.msra.mxu0 0.0
          %5689 = vmatpush.xpose.msra.mxu0 0.0
          %5690 = vmatpush.xpose.msra.mxu0 0.0
          %5691 = vmatpush.xpose.msra.mxu0 0.0
          %5692 = vmatpush.xpose.msra.mxu0 0.0
          %5693 = vmatpush.xpose.msra.mxu0 0.0
          %5694 = vmatpush.xpose.msra.mxu0 0.0
          %5695 = vmatpush.xpose.msra.mxu0 0.0
          %5696 = vmatpush.xpose.msra.mxu0 0.0
          %5697 = vmatpush.xpose.msra.mxu0 %v4961
          %5698 = vmatpush.xpose.msra.mxu0 %v4829
          %5699 = vmatmul.f32.gmra.mxu0 %v4433
          %v5700 = vpop.f32.mrf.mxu0
          %v5701 = vadd.f32 %v5681, %v5700
          %5702 = vdwg.mxu0
          %5703 = vmatpush.xpose.msra.mxu0 0.0
          %5704 = vmatpush.xpose.msra.mxu0 0.0
          %5705 = vmatpush.xpose.msra.mxu0 0.0
          %5706 = vmatpush.xpose.msra.mxu0 0.0
          %5707 = vmatpush.xpose.msra.mxu0 0.0
          %5708 = vmatpush.xpose.msra.mxu0 0.0
          %5709 = vmatpush.xpose.msra.mxu0 0.0
          %5710 = vmatpush.xpose.msra.mxu0 0.0
          %5711 = vmatpush.xpose.msra.mxu0 0.0
          %5712 = vmatpush.xpose.msra.mxu0 0.0
          %5713 = vmatpush.xpose.msra.mxu0 0.0
          %5714 = vmatpush.xpose.msra.mxu0 0.0
          %5715 = vmatpush.xpose.msra.mxu0 0.0
          %5716 = vmatpush.xpose.msra.mxu0 0.0
          %5717 = vmatpush.xpose.msra.mxu0 %v4962
          %5718 = vmatpush.xpose.msra.mxu0 %v4830
          %5719 = vmatmul.f32.gmra.mxu0 %v4434
          %v5720 = vpop.f32.mrf.mxu0
          %v5721 = vadd.f32 %v5701, %v5720
          %5722 = vdwg.mxu0
          %5723 = vmatpush.xpose.msra.mxu0 0.0
          %5724 = vmatpush.xpose.msra.mxu0 0.0
          %5725 = vmatpush.xpose.msra.mxu0 0.0
          %5726 = vmatpush.xpose.msra.mxu0 0.0
          %5727 = vmatpush.xpose.msra.mxu0 0.0
          %5728 = vmatpush.xpose.msra.mxu0 0.0
          %5729 = vmatpush.xpose.msra.mxu0 0.0
          %5730 = vmatpush.xpose.msra.mxu0 0.0
          %5731 = vmatpush.xpose.msra.mxu0 0.0
          %5732 = vmatpush.xpose.msra.mxu0 0.0
          %5733 = vmatpush.xpose.msra.mxu0 0.0
          %5734 = vmatpush.xpose.msra.mxu0 0.0
          %5735 = vmatpush.xpose.msra.mxu0 0.0
          %5736 = vmatpush.xpose.msra.mxu0 0.0
          %5737 = vmatpush.xpose.msra.mxu0 %v4963
          %5738 = vmatpush.xpose.msra.mxu0 %v4831
          %5739 = vmatmul.f32.gmra.mxu0 %v4435
          %v5740 = vpop.f32.mrf.mxu0
          %v5741 = vadd.f32 %v5721, %v5740
          %5742 = vdwg.mxu0
          %5743 = vmatpush.xpose.msra.mxu0 0.0
          %5744 = vmatpush.xpose.msra.mxu0 0.0
          %5745 = vmatpush.xpose.msra.mxu0 0.0
          %5746 = vmatpush.xpose.msra.mxu0 0.0
          %5747 = vmatpush.xpose.msra.mxu0 0.0
          %5748 = vmatpush.xpose.msra.mxu0 0.0
          %5749 = vmatpush.xpose.msra.mxu0 0.0
          %5750 = vmatpush.xpose.msra.mxu0 0.0
          %5751 = vmatpush.xpose.msra.mxu0 0.0
          %5752 = vmatpush.xpose.msra.mxu0 0.0
          %5753 = vmatpush.xpose.msra.mxu0 0.0
          %5754 = vmatpush.xpose.msra.mxu0 0.0
          %5755 = vmatpush.xpose.msra.mxu0 0.0
          %5756 = vmatpush.xpose.msra.mxu0 0.0
          %5757 = vmatpush.xpose.msra.mxu0 %v4964
          %5758 = vmatpush.xpose.msra.mxu0 %v4832
          %5759 = vmatmul.f32.gmra.mxu0 %v4436
          %v5760 = vpop.f32.mrf.mxu0
          %v5761 = vadd.f32 %v5741, %v5760
          %5762 = vdwg.mxu0
          %5763 = vmatpush.xpose.msra.mxu0 0.0
          %5764 = vmatpush.xpose.msra.mxu0 0.0
          %5765 = vmatpush.xpose.msra.mxu0 0.0
          %5766 = vmatpush.xpose.msra.mxu0 0.0
          %5767 = vmatpush.xpose.msra.mxu0 0.0
          %5768 = vmatpush.xpose.msra.mxu0 0.0
          %5769 = vmatpush.xpose.msra.mxu0 0.0
          %5770 = vmatpush.xpose.msra.mxu0 0.0
          %5771 = vmatpush.xpose.msra.mxu0 0.0
          %5772 = vmatpush.xpose.msra.mxu0 0.0
          %5773 = vmatpush.xpose.msra.mxu0 0.0
          %5774 = vmatpush.xpose.msra.mxu0 0.0
          %5775 = vmatpush.xpose.msra.mxu0 0.0
          %5776 = vmatpush.xpose.msra.mxu0 0.0
          %5777 = vmatpush.xpose.msra.mxu0 %v4965
          %5778 = vmatpush.xpose.msra.mxu0 %v4833
          %5779 = vmatmul.f32.gmra.mxu0 %v4437
          %v5780 = vpop.f32.mrf.mxu0
          %v5781 = vadd.f32 %v5761, %v5780
          %5782 = vdwg.mxu0
          %5783 = vmatpush.xpose.msra.mxu0 0.0
          %5784 = vmatpush.xpose.msra.mxu0 0.0
          %5785 = vmatpush.xpose.msra.mxu0 0.0
          %5786 = vmatpush.xpose.msra.mxu0 0.0
          %5787 = vmatpush.xpose.msra.mxu0 0.0
          %5788 = vmatpush.xpose.msra.mxu0 0.0
          %5789 = vmatpush.xpose.msra.mxu0 0.0
          %5790 = vmatpush.xpose.msra.mxu0 0.0
          %5791 = vmatpush.xpose.msra.mxu0 0.0
          %5792 = vmatpush.xpose.msra.mxu0 0.0
          %5793 = vmatpush.xpose.msra.mxu0 0.0
          %5794 = vmatpush.xpose.msra.mxu0 0.0
          %5795 = vmatpush.xpose.msra.mxu0 0.0
          %5796 = vmatpush.xpose.msra.mxu0 0.0
          %5797 = vmatpush.xpose.msra.mxu0 %v4966
          %5798 = vmatpush.xpose.msra.mxu0 %v4834
          %5799 = vmatmul.f32.gmra.mxu0 %v4438
          %v5800 = vpop.f32.mrf.mxu0
          %v5801 = vadd.f32 %v5781, %v5800
          %5802 = vdwg.mxu0
          %5803 = vmatpush.xpose.msra.mxu0 0.0
          %5804 = vmatpush.xpose.msra.mxu0 0.0
          %5805 = vmatpush.xpose.msra.mxu0 0.0
          %5806 = vmatpush.xpose.msra.mxu0 0.0
          %5807 = vmatpush.xpose.msra.mxu0 0.0
          %5808 = vmatpush.xpose.msra.mxu0 0.0
          %5809 = vmatpush.xpose.msra.mxu0 0.0
          %5810 = vmatpush.xpose.msra.mxu0 0.0
          %5811 = vmatpush.xpose.msra.mxu0 0.0
          %5812 = vmatpush.xpose.msra.mxu0 0.0
          %5813 = vmatpush.xpose.msra.mxu0 0.0
          %5814 = vmatpush.xpose.msra.mxu0 0.0
          %5815 = vmatpush.xpose.msra.mxu0 0.0
          %5816 = vmatpush.xpose.msra.mxu0 0.0
          %5817 = vmatpush.xpose.msra.mxu0 %v4967
          %5818 = vmatpush.xpose.msra.mxu0 %v4835
          %5819 = vmatmul.f32.gmra.mxu0 %v4439
          %v5820 = vpop.f32.mrf.mxu0
          %v5821 = vadd.f32 %v5801, %v5820
          %5822 = vdwg.mxu0
          %5823 = vmatpush.xpose.msra.mxu0 0.0
          %5824 = vmatpush.xpose.msra.mxu0 0.0
          %5825 = vmatpush.xpose.msra.mxu0 0.0
          %5826 = vmatpush.xpose.msra.mxu0 0.0
          %5827 = vmatpush.xpose.msra.mxu0 0.0
          %5828 = vmatpush.xpose.msra.mxu0 0.0
          %5829 = vmatpush.xpose.msra.mxu0 0.0
          %5830 = vmatpush.xpose.msra.mxu0 0.0
          %5831 = vmatpush.xpose.msra.mxu0 0.0
          %5832 = vmatpush.xpose.msra.mxu0 0.0
          %5833 = vmatpush.xpose.msra.mxu0 0.0
          %5834 = vmatpush.xpose.msra.mxu0 0.0
          %5835 = vmatpush.xpose.msra.mxu0 0.0
          %5836 = vmatpush.xpose.msra.mxu0 0.0
          %5837 = vmatpush.xpose.msra.mxu0 %v4968
          %5838 = vmatpush.xpose.msra.mxu0 %v4836
          %5839 = vmatmul.f32.gmra.mxu0 %v4440
          %v5840 = vpop.f32.mrf.mxu0
          %v5841 = vadd.f32 %v5821, %v5840
          %5842 = vdwg.mxu0
          %5843 = vmatpush.xpose.msra.mxu0 0.0
          %5844 = vmatpush.xpose.msra.mxu0 0.0
          %5845 = vmatpush.xpose.msra.mxu0 0.0
          %5846 = vmatpush.xpose.msra.mxu0 0.0
          %5847 = vmatpush.xpose.msra.mxu0 0.0
          %5848 = vmatpush.xpose.msra.mxu0 0.0
          %5849 = vmatpush.xpose.msra.mxu0 0.0
          %5850 = vmatpush.xpose.msra.mxu0 0.0
          %5851 = vmatpush.xpose.msra.mxu0 0.0
          %5852 = vmatpush.xpose.msra.mxu0 0.0
          %5853 = vmatpush.xpose.msra.mxu0 0.0
          %5854 = vmatpush.xpose.msra.mxu0 0.0
          %5855 = vmatpush.xpose.msra.mxu0 0.0
          %5856 = vmatpush.xpose.msra.mxu0 0.0
          %5857 = vmatpush.xpose.msra.mxu0 %v4969
          %5858 = vmatpush.xpose.msra.mxu0 %v4837
          %5859 = vmatmul.f32.gmra.mxu0 %v4441
          %v5860 = vpop.f32.mrf.mxu0
          %v5861 = vadd.f32 %v5841, %v5860
          %5862 = vdwg.mxu0
          %5863 = vmatpush.xpose.msra.mxu0 0.0
          %5864 = vmatpush.xpose.msra.mxu0 0.0
          %5865 = vmatpush.xpose.msra.mxu0 0.0
          %5866 = vmatpush.xpose.msra.mxu0 0.0
          %5867 = vmatpush.xpose.msra.mxu0 0.0
          %5868 = vmatpush.xpose.msra.mxu0 0.0
          %5869 = vmatpush.xpose.msra.mxu0 0.0
          %5870 = vmatpush.xpose.msra.mxu0 0.0
          %5871 = vmatpush.xpose.msra.mxu0 0.0
          %5872 = vmatpush.xpose.msra.mxu0 0.0
          %5873 = vmatpush.xpose.msra.mxu0 0.0
          %5874 = vmatpush.xpose.msra.mxu0 0.0
          %5875 = vmatpush.xpose.msra.mxu0 0.0
          %5876 = vmatpush.xpose.msra.mxu0 0.0
          %5877 = vmatpush.xpose.msra.mxu0 %v4970
          %5878 = vmatpush.xpose.msra.mxu0 %v4838
          %5879 = vmatmul.f32.gmra.mxu0 %v4442
          %v5880 = vpop.f32.mrf.mxu0
          %v5881 = vadd.f32 %v5861, %v5880
          %5882 = vdwg.mxu0
          %5883 = vmatpush.xpose.msra.mxu0 0.0
          %5884 = vmatpush.xpose.msra.mxu0 0.0
          %5885 = vmatpush.xpose.msra.mxu0 0.0
          %5886 = vmatpush.xpose.msra.mxu0 0.0
          %5887 = vmatpush.xpose.msra.mxu0 0.0
          %5888 = vmatpush.xpose.msra.mxu0 0.0
          %5889 = vmatpush.xpose.msra.mxu0 0.0
          %5890 = vmatpush.xpose.msra.mxu0 0.0
          %5891 = vmatpush.xpose.msra.mxu0 0.0
          %5892 = vmatpush.xpose.msra.mxu0 0.0
          %5893 = vmatpush.xpose.msra.mxu0 0.0
          %5894 = vmatpush.xpose.msra.mxu0 0.0
          %5895 = vmatpush.xpose.msra.mxu0 0.0
          %5896 = vmatpush.xpose.msra.mxu0 0.0
          %5897 = vmatpush.xpose.msra.mxu0 %v4971
          %5898 = vmatpush.xpose.msra.mxu0 %v4839
          %5899 = vmatmul.f32.gmra.mxu0 %v4443
          %v5900 = vpop.f32.mrf.mxu0
          %v5901 = vadd.f32 %v5881, %v5900
          %5902 = vdwg.mxu0
          %5903 = vmatpush.xpose.msra.mxu0 0.0
          %5904 = vmatpush.xpose.msra.mxu0 0.0
          %5905 = vmatpush.xpose.msra.mxu0 0.0
          %5906 = vmatpush.xpose.msra.mxu0 0.0
          %5907 = vmatpush.xpose.msra.mxu0 0.0
          %5908 = vmatpush.xpose.msra.mxu0 0.0
          %5909 = vmatpush.xpose.msra.mxu0 0.0
          %5910 = vmatpush.xpose.msra.mxu0 0.0
          %5911 = vmatpush.xpose.msra.mxu0 0.0
          %5912 = vmatpush.xpose.msra.mxu0 0.0
          %5913 = vmatpush.xpose.msra.mxu0 0.0
          %5914 = vmatpush.xpose.msra.mxu0 0.0
          %5915 = vmatpush.xpose.msra.mxu0 0.0
          %5916 = vmatpush.xpose.msra.mxu0 0.0
          %5917 = vmatpush.xpose.msra.mxu0 %v4972
          %5918 = vmatpush.xpose.msra.mxu0 %v4840
          %5919 = vmatmul.f32.gmra.mxu0 %v4444
          %v5920 = vpop.f32.mrf.mxu0
          %v5921 = vadd.f32 %v5901, %v5920
          %5922 = vdwg.mxu0
          %5923 = vmatpush.xpose.msra.mxu0 0.0
          %5924 = vmatpush.xpose.msra.mxu0 0.0
          %5925 = vmatpush.xpose.msra.mxu0 0.0
          %5926 = vmatpush.xpose.msra.mxu0 0.0
          %5927 = vmatpush.xpose.msra.mxu0 0.0
          %5928 = vmatpush.xpose.msra.mxu0 0.0
          %5929 = vmatpush.xpose.msra.mxu0 0.0
          %5930 = vmatpush.xpose.msra.mxu0 0.0
          %5931 = vmatpush.xpose.msra.mxu0 0.0
          %5932 = vmatpush.xpose.msra.mxu0 0.0
          %5933 = vmatpush.xpose.msra.mxu0 0.0
          %5934 = vmatpush.xpose.msra.mxu0 0.0
          %5935 = vmatpush.xpose.msra.mxu0 0.0
          %5936 = vmatpush.xpose.msra.mxu0 0.0
          %5937 = vmatpush.xpose.msra.mxu0 %v4973
          %5938 = vmatpush.xpose.msra.mxu0 %v4841
          %5939 = vmatmul.f32.gmra.mxu0 %v4445
          %v5940 = vpop.f32.mrf.mxu0
          %v5941 = vadd.f32 %v5921, %v5940
          %5942 = vdwg.mxu0
          %5943 = vmatpush.xpose.msra.mxu0 0.0
          %5944 = vmatpush.xpose.msra.mxu0 0.0
          %5945 = vmatpush.xpose.msra.mxu0 0.0
          %5946 = vmatpush.xpose.msra.mxu0 0.0
          %5947 = vmatpush.xpose.msra.mxu0 0.0
          %5948 = vmatpush.xpose.msra.mxu0 0.0
          %5949 = vmatpush.xpose.msra.mxu0 0.0
          %5950 = vmatpush.xpose.msra.mxu0 0.0
          %5951 = vmatpush.xpose.msra.mxu0 0.0
          %5952 = vmatpush.xpose.msra.mxu0 0.0
          %5953 = vmatpush.xpose.msra.mxu0 0.0
          %5954 = vmatpush.xpose.msra.mxu0 0.0
          %5955 = vmatpush.xpose.msra.mxu0 0.0
          %5956 = vmatpush.xpose.msra.mxu0 0.0
          %5957 = vmatpush.xpose.msra.mxu0 %v4974
          %5958 = vmatpush.xpose.msra.mxu0 %v4842
          %5959 = vmatmul.f32.gmra.mxu0 %v4446
          %v5960 = vpop.f32.mrf.mxu0
          %v5961 = vadd.f32 %v5941, %v5960
          %5962 = vdwg.mxu0
          %5963 = vmatpush.xpose.msra.mxu0 0.0
          %5964 = vmatpush.xpose.msra.mxu0 0.0
          %5965 = vmatpush.xpose.msra.mxu0 0.0
          %5966 = vmatpush.xpose.msra.mxu0 0.0
          %5967 = vmatpush.xpose.msra.mxu0 0.0
          %5968 = vmatpush.xpose.msra.mxu0 0.0
          %5969 = vmatpush.xpose.msra.mxu0 0.0
          %5970 = vmatpush.xpose.msra.mxu0 0.0
          %5971 = vmatpush.xpose.msra.mxu0 0.0
          %5972 = vmatpush.xpose.msra.mxu0 0.0
          %5973 = vmatpush.xpose.msra.mxu0 0.0
          %5974 = vmatpush.xpose.msra.mxu0 0.0
          %5975 = vmatpush.xpose.msra.mxu0 0.0
          %5976 = vmatpush.xpose.msra.mxu0 0.0
          %5977 = vmatpush.xpose.msra.mxu0 %v4975
          %5978 = vmatpush.xpose.msra.mxu0 %v4843
          %5979 = vmatmul.f32.gmra.mxu0 %v4447
          %v5980 = vpop.f32.mrf.mxu0
          %v5981 = vadd.f32 %v5961, %v5980
          %5982 = vdwg.mxu0
          %5983 = vmatpush.xpose.msra.mxu0 0.0
          %5984 = vmatpush.xpose.msra.mxu0 0.0
          %5985 = vmatpush.xpose.msra.mxu0 0.0
          %5986 = vmatpush.xpose.msra.mxu0 0.0
          %5987 = vmatpush.xpose.msra.mxu0 0.0
          %5988 = vmatpush.xpose.msra.mxu0 0.0
          %5989 = vmatpush.xpose.msra.mxu0 0.0
          %5990 = vmatpush.xpose.msra.mxu0 0.0
          %5991 = vmatpush.xpose.msra.mxu0 0.0
          %5992 = vmatpush.xpose.msra.mxu0 0.0
          %5993 = vmatpush.xpose.msra.mxu0 0.0
          %5994 = vmatpush.xpose.msra.mxu0 0.0
          %5995 = vmatpush.xpose.msra.mxu0 0.0
          %5996 = vmatpush.xpose.msra.mxu0 0.0
          %5997 = vmatpush.xpose.msra.mxu0 %v4976
          %5998 = vmatpush.xpose.msra.mxu0 %v4844
          %5999 = vmatmul.f32.gmra.mxu0 %v4448
          %v6000 = vpop.f32.mrf.mxu0
          %v6001 = vadd.f32 %v5981, %v6000
          %6002 = vdwg.mxu0
          %6003 = vmatpush.xpose.msra.mxu0 0.0
          %6004 = vmatpush.xpose.msra.mxu0 0.0
          %6005 = vmatpush.xpose.msra.mxu0 0.0
          %6006 = vmatpush.xpose.msra.mxu0 0.0
          %6007 = vmatpush.xpose.msra.mxu0 0.0
          %6008 = vmatpush.xpose.msra.mxu0 0.0
          %6009 = vmatpush.xpose.msra.mxu0 0.0
          %6010 = vmatpush.xpose.msra.mxu0 0.0
          %6011 = vmatpush.xpose.msra.mxu0 0.0
          %6012 = vmatpush.xpose.msra.mxu0 0.0
          %6013 = vmatpush.xpose.msra.mxu0 0.0
          %6014 = vmatpush.xpose.msra.mxu0 0.0
          %6015 = vmatpush.xpose.msra.mxu0 0.0
          %6016 = vmatpush.xpose.msra.mxu0 0.0
          %6017 = vmatpush.xpose.msra.mxu0 %v4977
          %6018 = vmatpush.xpose.msra.mxu0 %v4845
          %6019 = vmatmul.f32.gmra.mxu0 %v4449
          %v6020 = vpop.f32.mrf.mxu0
          %v6021 = vadd.f32 %v6001, %v6020
          %6022 = vdwg.mxu0
          %6023 = vmatpush.xpose.msra.mxu0 0.0
          %6024 = vmatpush.xpose.msra.mxu0 0.0
          %6025 = vmatpush.xpose.msra.mxu0 0.0
          %6026 = vmatpush.xpose.msra.mxu0 0.0
          %6027 = vmatpush.xpose.msra.mxu0 0.0
          %6028 = vmatpush.xpose.msra.mxu0 0.0
          %6029 = vmatpush.xpose.msra.mxu0 0.0
          %6030 = vmatpush.xpose.msra.mxu0 0.0
          %6031 = vmatpush.xpose.msra.mxu0 0.0
          %6032 = vmatpush.xpose.msra.mxu0 0.0
          %6033 = vmatpush.xpose.msra.mxu0 0.0
          %6034 = vmatpush.xpose.msra.mxu0 0.0
          %6035 = vmatpush.xpose.msra.mxu0 0.0
          %6036 = vmatpush.xpose.msra.mxu0 0.0
          %6037 = vmatpush.xpose.msra.mxu0 %v4978
          %6038 = vmatpush.xpose.msra.mxu0 %v4846
          %6039 = vmatmul.f32.gmra.mxu0 %v4450
          %v6040 = vpop.f32.mrf.mxu0
          %v6041 = vadd.f32 %v6021, %v6040
          %6042 = vdwg.mxu0
          %6043 = vmatpush.xpose.msra.mxu0 0.0
          %6044 = vmatpush.xpose.msra.mxu0 0.0
          %6045 = vmatpush.xpose.msra.mxu0 0.0
          %6046 = vmatpush.xpose.msra.mxu0 0.0
          %6047 = vmatpush.xpose.msra.mxu0 0.0
          %6048 = vmatpush.xpose.msra.mxu0 0.0
          %6049 = vmatpush.xpose.msra.mxu0 0.0
          %6050 = vmatpush.xpose.msra.mxu0 0.0
          %6051 = vmatpush.xpose.msra.mxu0 0.0
          %6052 = vmatpush.xpose.msra.mxu0 0.0
          %6053 = vmatpush.xpose.msra.mxu0 0.0
          %6054 = vmatpush.xpose.msra.mxu0 0.0
          %6055 = vmatpush.xpose.msra.mxu0 0.0
          %6056 = vmatpush.xpose.msra.mxu0 0.0
          %6057 = vmatpush.xpose.msra.mxu0 %v4979
          %6058 = vmatpush.xpose.msra.mxu0 %v4847
          %6059 = vmatmul.f32.gmra.mxu0 %v4451
          %v6060 = vpop.f32.mrf.mxu0
          %v6061 = vadd.f32 %v6041, %v6060
          %6062 = vdwg.mxu0
          %6063 = vmatpush.xpose.msra.mxu0 0.0
          %6064 = vmatpush.xpose.msra.mxu0 0.0
          %6065 = vmatpush.xpose.msra.mxu0 0.0
          %6066 = vmatpush.xpose.msra.mxu0 0.0
          %6067 = vmatpush.xpose.msra.mxu0 0.0
          %6068 = vmatpush.xpose.msra.mxu0 0.0
          %6069 = vmatpush.xpose.msra.mxu0 0.0
          %6070 = vmatpush.xpose.msra.mxu0 0.0
          %6071 = vmatpush.xpose.msra.mxu0 0.0
          %6072 = vmatpush.xpose.msra.mxu0 0.0
          %6073 = vmatpush.xpose.msra.mxu0 0.0
          %6074 = vmatpush.xpose.msra.mxu0 0.0
          %6075 = vmatpush.xpose.msra.mxu0 0.0
          %6076 = vmatpush.xpose.msra.mxu0 0.0
          %6077 = vmatpush.xpose.msra.mxu0 %v4980
          %6078 = vmatpush.xpose.msra.mxu0 %v4848
          %6079 = vmatmul.f32.gmra.mxu0 %v4452
          %v6080 = vpop.f32.mrf.mxu0
          %v6081 = vadd.f32 %v6061, %v6080
          %6082 = vdwg.mxu0
          %6083 = vmatpush.xpose.msra.mxu0 0.0
          %6084 = vmatpush.xpose.msra.mxu0 0.0
          %6085 = vmatpush.xpose.msra.mxu0 0.0
          %6086 = vmatpush.xpose.msra.mxu0 0.0
          %6087 = vmatpush.xpose.msra.mxu0 0.0
          %6088 = vmatpush.xpose.msra.mxu0 0.0
          %6089 = vmatpush.xpose.msra.mxu0 0.0
          %6090 = vmatpush.xpose.msra.mxu0 0.0
          %6091 = vmatpush.xpose.msra.mxu0 0.0
          %6092 = vmatpush.xpose.msra.mxu0 0.0
          %6093 = vmatpush.xpose.msra.mxu0 0.0
          %6094 = vmatpush.xpose.msra.mxu0 0.0
          %6095 = vmatpush.xpose.msra.mxu0 0.0
          %6096 = vmatpush.xpose.msra.mxu0 0.0
          %6097 = vmatpush.xpose.msra.mxu0 %v4981
          %6098 = vmatpush.xpose.msra.mxu0 %v4849
          %6099 = vmatmul.f32.gmra.mxu0 %v4453
          %v6100 = vpop.f32.mrf.mxu0
          %v6101 = vadd.f32 %v6081, %v6100
          %6102 = vdwg.mxu0
          %6103 = vmatpush.xpose.msra.mxu0 0.0
          %6104 = vmatpush.xpose.msra.mxu0 0.0
          %6105 = vmatpush.xpose.msra.mxu0 0.0
          %6106 = vmatpush.xpose.msra.mxu0 0.0
          %6107 = vmatpush.xpose.msra.mxu0 0.0
          %6108 = vmatpush.xpose.msra.mxu0 0.0
          %6109 = vmatpush.xpose.msra.mxu0 0.0
          %6110 = vmatpush.xpose.msra.mxu0 0.0
          %6111 = vmatpush.xpose.msra.mxu0 0.0
          %6112 = vmatpush.xpose.msra.mxu0 0.0
          %6113 = vmatpush.xpose.msra.mxu0 0.0
          %6114 = vmatpush.xpose.msra.mxu0 0.0
          %6115 = vmatpush.xpose.msra.mxu0 0.0
          %6116 = vmatpush.xpose.msra.mxu0 0.0
          %6117 = vmatpush.xpose.msra.mxu0 %v4982
          %6118 = vmatpush.xpose.msra.mxu0 %v4850
          %6119 = vmatmul.f32.gmra.mxu0 %v4454
          %v6120 = vpop.f32.mrf.mxu0
          %v6121 = vadd.f32 %v6101, %v6120
          %6122 = vdwg.mxu0
          %6123 = vmatpush.xpose.msra.mxu0 0.0
          %6124 = vmatpush.xpose.msra.mxu0 0.0
          %6125 = vmatpush.xpose.msra.mxu0 0.0
          %6126 = vmatpush.xpose.msra.mxu0 0.0
          %6127 = vmatpush.xpose.msra.mxu0 0.0
          %6128 = vmatpush.xpose.msra.mxu0 0.0
          %6129 = vmatpush.xpose.msra.mxu0 0.0
          %6130 = vmatpush.xpose.msra.mxu0 0.0
          %6131 = vmatpush.xpose.msra.mxu0 0.0
          %6132 = vmatpush.xpose.msra.mxu0 0.0
          %6133 = vmatpush.xpose.msra.mxu0 0.0
          %6134 = vmatpush.xpose.msra.mxu0 0.0
          %6135 = vmatpush.xpose.msra.mxu0 0.0
          %6136 = vmatpush.xpose.msra.mxu0 0.0
          %6137 = vmatpush.xpose.msra.mxu0 %v4983
          %6138 = vmatpush.xpose.msra.mxu0 %v4851
          %6139 = vmatmul.f32.gmra.mxu0 %v4455
          %v6140 = vpop.f32.mrf.mxu0
          %v6141 = vadd.f32 %v6121, %v6140
          %6142 = vdwg.mxu0
          %6143 = vmatpush.xpose.msra.mxu0 0.0
          %6144 = vmatpush.xpose.msra.mxu0 0.0
          %6145 = vmatpush.xpose.msra.mxu0 0.0
          %6146 = vmatpush.xpose.msra.mxu0 0.0
          %6147 = vmatpush.xpose.msra.mxu0 0.0
          %6148 = vmatpush.xpose.msra.mxu0 0.0
          %6149 = vmatpush.xpose.msra.mxu0 0.0
          %6150 = vmatpush.xpose.msra.mxu0 0.0
          %6151 = vmatpush.xpose.msra.mxu0 0.0
          %6152 = vmatpush.xpose.msra.mxu0 0.0
          %6153 = vmatpush.xpose.msra.mxu0 0.0
          %6154 = vmatpush.xpose.msra.mxu0 0.0
          %6155 = vmatpush.xpose.msra.mxu0 0.0
          %6156 = vmatpush.xpose.msra.mxu0 0.0
          %6157 = vmatpush.xpose.msra.mxu0 %v4984
          %6158 = vmatpush.xpose.msra.mxu0 %v4852
          %6159 = vmatmul.f32.gmra.mxu0 %v4456
          %v6160 = vpop.f32.mrf.mxu0
          %v6161 = vadd.f32 %v6141, %v6160
          %6162 = vdwg.mxu0
          %6163 = vmatpush.xpose.msra.mxu0 0.0
          %6164 = vmatpush.xpose.msra.mxu0 0.0
          %6165 = vmatpush.xpose.msra.mxu0 0.0
          %6166 = vmatpush.xpose.msra.mxu0 0.0
          %6167 = vmatpush.xpose.msra.mxu0 0.0
          %6168 = vmatpush.xpose.msra.mxu0 0.0
          %6169 = vmatpush.xpose.msra.mxu0 0.0
          %6170 = vmatpush.xpose.msra.mxu0 0.0
          %6171 = vmatpush.xpose.msra.mxu0 0.0
          %6172 = vmatpush.xpose.msra.mxu0 0.0
          %6173 = vmatpush.xpose.msra.mxu0 0.0
          %6174 = vmatpush.xpose.msra.mxu0 0.0
          %6175 = vmatpush.xpose.msra.mxu0 0.0
          %6176 = vmatpush.xpose.msra.mxu0 0.0
          %6177 = vmatpush.xpose.msra.mxu0 %v4985
          %6178 = vmatpush.xpose.msra.mxu0 %v4853
          %6179 = vmatmul.f32.gmra.mxu0 %v4457
          %v6180 = vpop.f32.mrf.mxu0
          %v6181 = vadd.f32 %v6161, %v6180
          %6182 = vdwg.mxu0
          %6183 = vmatpush.xpose.msra.mxu0 0.0
          %6184 = vmatpush.xpose.msra.mxu0 0.0
          %6185 = vmatpush.xpose.msra.mxu0 0.0
          %6186 = vmatpush.xpose.msra.mxu0 0.0
          %6187 = vmatpush.xpose.msra.mxu0 0.0
          %6188 = vmatpush.xpose.msra.mxu0 0.0
          %6189 = vmatpush.xpose.msra.mxu0 0.0
          %6190 = vmatpush.xpose.msra.mxu0 0.0
          %6191 = vmatpush.xpose.msra.mxu0 0.0
          %6192 = vmatpush.xpose.msra.mxu0 0.0
          %6193 = vmatpush.xpose.msra.mxu0 0.0
          %6194 = vmatpush.xpose.msra.mxu0 0.0
          %6195 = vmatpush.xpose.msra.mxu0 0.0
          %6196 = vmatpush.xpose.msra.mxu0 0.0
          %6197 = vmatpush.xpose.msra.mxu0 %v4986
          %6198 = vmatpush.xpose.msra.mxu0 %v4854
          %6199 = vmatmul.f32.gmra.mxu0 %v4458
          %v6200 = vpop.f32.mrf.mxu0
          %v6201 = vadd.f32 %v6181, %v6200
          %6202 = vdwg.mxu0
          %6203 = vmatpush.xpose.msra.mxu0 0.0
          %6204 = vmatpush.xpose.msra.mxu0 0.0
          %6205 = vmatpush.xpose.msra.mxu0 0.0
          %6206 = vmatpush.xpose.msra.mxu0 0.0
          %6207 = vmatpush.xpose.msra.mxu0 0.0
          %6208 = vmatpush.xpose.msra.mxu0 0.0
          %6209 = vmatpush.xpose.msra.mxu0 0.0
          %6210 = vmatpush.xpose.msra.mxu0 0.0
          %6211 = vmatpush.xpose.msra.mxu0 0.0
          %6212 = vmatpush.xpose.msra.mxu0 0.0
          %6213 = vmatpush.xpose.msra.mxu0 0.0
          %6214 = vmatpush.xpose.msra.mxu0 0.0
          %6215 = vmatpush.xpose.msra.mxu0 0.0
          %6216 = vmatpush.xpose.msra.mxu0 0.0
          %6217 = vmatpush.xpose.msra.mxu0 %v4987
          %6218 = vmatpush.xpose.msra.mxu0 %v4855
          %6219 = vmatmul.f32.gmra.mxu0 %v4459
          %v6220 = vpop.f32.mrf.mxu0
          %v6221 = vadd.f32 %v6201, %v6220
          %6222 = vdwg.mxu0
          %6223 = vmatpush.xpose.msra.mxu0 0.0
          %6224 = vmatpush.xpose.msra.mxu0 0.0
          %6225 = vmatpush.xpose.msra.mxu0 0.0
          %6226 = vmatpush.xpose.msra.mxu0 0.0
          %6227 = vmatpush.xpose.msra.mxu0 0.0
          %6228 = vmatpush.xpose.msra.mxu0 0.0
          %6229 = vmatpush.xpose.msra.mxu0 0.0
          %6230 = vmatpush.xpose.msra.mxu0 0.0
          %6231 = vmatpush.xpose.msra.mxu0 0.0
          %6232 = vmatpush.xpose.msra.mxu0 0.0
          %6233 = vmatpush.xpose.msra.mxu0 0.0
          %6234 = vmatpush.xpose.msra.mxu0 0.0
          %6235 = vmatpush.xpose.msra.mxu0 0.0
          %6236 = vmatpush.xpose.msra.mxu0 0.0
          %6237 = vmatpush.xpose.msra.mxu0 %v4988
          %6238 = vmatpush.xpose.msra.mxu0 %v4856
          %6239 = vmatmul.f32.gmra.mxu0 %v4460
          %v6240 = vpop.f32.mrf.mxu0
          %v6241 = vadd.f32 %v6221, %v6240
          %6242 = vdwg.mxu0
          %6243 = vmatpush.xpose.msra.mxu0 0.0
          %6244 = vmatpush.xpose.msra.mxu0 0.0
          %6245 = vmatpush.xpose.msra.mxu0 0.0
          %6246 = vmatpush.xpose.msra.mxu0 0.0
          %6247 = vmatpush.xpose.msra.mxu0 0.0
          %6248 = vmatpush.xpose.msra.mxu0 0.0
          %6249 = vmatpush.xpose.msra.mxu0 0.0
          %6250 = vmatpush.xpose.msra.mxu0 0.0
          %6251 = vmatpush.xpose.msra.mxu0 0.0
          %6252 = vmatpush.xpose.msra.mxu0 0.0
          %6253 = vmatpush.xpose.msra.mxu0 0.0
          %6254 = vmatpush.xpose.msra.mxu0 0.0
          %6255 = vmatpush.xpose.msra.mxu0 0.0
          %6256 = vmatpush.xpose.msra.mxu0 0.0
          %6257 = vmatpush.xpose.msra.mxu0 %v4989
          %6258 = vmatpush.xpose.msra.mxu0 %v4857
          %6259 = vmatmul.f32.gmra.mxu0 %v4461
          %v6260 = vpop.f32.mrf.mxu0
          %v6261 = vadd.f32 %v6241, %v6260
          %6262 = vdwg.mxu0
          %6263 = vmatpush.xpose.msra.mxu0 0.0
          %6264 = vmatpush.xpose.msra.mxu0 0.0
          %6265 = vmatpush.xpose.msra.mxu0 0.0
          %6266 = vmatpush.xpose.msra.mxu0 0.0
          %6267 = vmatpush.xpose.msra.mxu0 0.0
          %6268 = vmatpush.xpose.msra.mxu0 0.0
          %6269 = vmatpush.xpose.msra.mxu0 0.0
          %6270 = vmatpush.xpose.msra.mxu0 0.0
          %6271 = vmatpush.xpose.msra.mxu0 0.0
          %6272 = vmatpush.xpose.msra.mxu0 0.0
          %6273 = vmatpush.xpose.msra.mxu0 0.0
          %6274 = vmatpush.xpose.msra.mxu0 0.0
          %6275 = vmatpush.xpose.msra.mxu0 0.0
          %6276 = vmatpush.xpose.msra.mxu0 0.0
          %6277 = vmatpush.xpose.msra.mxu0 %v4990
          %6278 = vmatpush.xpose.msra.mxu0 %v4858
          %6279 = vmatmul.f32.gmra.mxu0 %v4462
          %v6280 = vpop.f32.mrf.mxu0
          %v6281 = vadd.f32 %v6261, %v6280
          %6282 = vdwg.mxu0
          %6283 = vmatpush.xpose.msra.mxu0 0.0
          %6284 = vmatpush.xpose.msra.mxu0 0.0
          %6285 = vmatpush.xpose.msra.mxu0 0.0
          %6286 = vmatpush.xpose.msra.mxu0 0.0
          %6287 = vmatpush.xpose.msra.mxu0 0.0
          %6288 = vmatpush.xpose.msra.mxu0 0.0
          %6289 = vmatpush.xpose.msra.mxu0 0.0
          %6290 = vmatpush.xpose.msra.mxu0 0.0
          %6291 = vmatpush.xpose.msra.mxu0 0.0
          %6292 = vmatpush.xpose.msra.mxu0 0.0
          %6293 = vmatpush.xpose.msra.mxu0 0.0
          %6294 = vmatpush.xpose.msra.mxu0 0.0
          %6295 = vmatpush.xpose.msra.mxu0 0.0
          %6296 = vmatpush.xpose.msra.mxu0 0.0
          %6297 = vmatpush.xpose.msra.mxu0 %v4991
          %6298 = vmatpush.xpose.msra.mxu0 %v4859
          %6299 = vmatmul.f32.gmra.mxu0 %v4463
          %v6300 = vpop.f32.mrf.mxu0
          %v6301 = vadd.f32 %v6281, %v6300
          %6302 = vdwg.mxu0
          %6303 = vmatpush.xpose.msra.mxu0 0.0
          %6304 = vmatpush.xpose.msra.mxu0 0.0
          %6305 = vmatpush.xpose.msra.mxu0 0.0
          %6306 = vmatpush.xpose.msra.mxu0 0.0
          %6307 = vmatpush.xpose.msra.mxu0 0.0
          %6308 = vmatpush.xpose.msra.mxu0 0.0
          %6309 = vmatpush.xpose.msra.mxu0 0.0
          %6310 = vmatpush.xpose.msra.mxu0 0.0
          %6311 = vmatpush.xpose.msra.mxu0 0.0
          %6312 = vmatpush.xpose.msra.mxu0 0.0
          %6313 = vmatpush.xpose.msra.mxu0 0.0
          %6314 = vmatpush.xpose.msra.mxu0 0.0
          %6315 = vmatpush.xpose.msra.mxu0 0.0
          %6316 = vmatpush.xpose.msra.mxu0 0.0
          %6317 = vmatpush.xpose.msra.mxu0 %v4992
          %6318 = vmatpush.xpose.msra.mxu0 %v4860
          %6319 = vmatmul.f32.gmra.mxu0 %v4464
          %v6320 = vpop.f32.mrf.mxu0
          %v6321 = vadd.f32 %v6301, %v6320
          %6322 = vdwg.mxu0
          %6323 = vmatpush.xpose.msra.mxu0 0.0
          %6324 = vmatpush.xpose.msra.mxu0 0.0
          %6325 = vmatpush.xpose.msra.mxu0 0.0
          %6326 = vmatpush.xpose.msra.mxu0 0.0
          %6327 = vmatpush.xpose.msra.mxu0 0.0
          %6328 = vmatpush.xpose.msra.mxu0 0.0
          %6329 = vmatpush.xpose.msra.mxu0 0.0
          %6330 = vmatpush.xpose.msra.mxu0 0.0
          %6331 = vmatpush.xpose.msra.mxu0 0.0
          %6332 = vmatpush.xpose.msra.mxu0 0.0
          %6333 = vmatpush.xpose.msra.mxu0 0.0
          %6334 = vmatpush.xpose.msra.mxu0 0.0
          %6335 = vmatpush.xpose.msra.mxu0 0.0
          %6336 = vmatpush.xpose.msra.mxu0 0.0
          %6337 = vmatpush.xpose.msra.mxu0 %v4993
          %6338 = vmatpush.xpose.msra.mxu0 %v4861
          %6339 = vmatmul.f32.gmra.mxu0 %v4465
          %v6340 = vpop.f32.mrf.mxu0
          %v6341 = vadd.f32 %v6321, %v6340
          %6342 = vdwg.mxu0
          %6343 = vmatpush.xpose.msra.mxu0 0.0
          %6344 = vmatpush.xpose.msra.mxu0 0.0
          %6345 = vmatpush.xpose.msra.mxu0 0.0
          %6346 = vmatpush.xpose.msra.mxu0 0.0
          %6347 = vmatpush.xpose.msra.mxu0 0.0
          %6348 = vmatpush.xpose.msra.mxu0 0.0
          %6349 = vmatpush.xpose.msra.mxu0 0.0
          %6350 = vmatpush.xpose.msra.mxu0 0.0
          %6351 = vmatpush.xpose.msra.mxu0 0.0
          %6352 = vmatpush.xpose.msra.mxu0 0.0
          %6353 = vmatpush.xpose.msra.mxu0 0.0
          %6354 = vmatpush.xpose.msra.mxu0 0.0
          %6355 = vmatpush.xpose.msra.mxu0 0.0
          %6356 = vmatpush.xpose.msra.mxu0 0.0
          %6357 = vmatpush.xpose.msra.mxu0 %v4994
          %6358 = vmatpush.xpose.msra.mxu0 %v4862
          %6359 = vmatmul.f32.gmra.mxu0 %v4466
          %v6360 = vpop.f32.mrf.mxu0
          %v6361 = vadd.f32 %v6341, %v6360
          %6362 = vdwg.mxu0
          %6363 = vmatpush.xpose.msra.mxu0 0.0
          %6364 = vmatpush.xpose.msra.mxu0 0.0
          %6365 = vmatpush.xpose.msra.mxu0 0.0
          %6366 = vmatpush.xpose.msra.mxu0 0.0
          %6367 = vmatpush.xpose.msra.mxu0 0.0
          %6368 = vmatpush.xpose.msra.mxu0 0.0
          %6369 = vmatpush.xpose.msra.mxu0 0.0
          %6370 = vmatpush.xpose.msra.mxu0 0.0
          %6371 = vmatpush.xpose.msra.mxu0 0.0
          %6372 = vmatpush.xpose.msra.mxu0 0.0
          %6373 = vmatpush.xpose.msra.mxu0 0.0
          %6374 = vmatpush.xpose.msra.mxu0 0.0
          %6375 = vmatpush.xpose.msra.mxu0 0.0
          %6376 = vmatpush.xpose.msra.mxu0 0.0
          %6377 = vmatpush.xpose.msra.mxu0 %v4995
          %6378 = vmatpush.xpose.msra.mxu0 %v4863
          %6379 = vmatmul.f32.gmra.mxu0 %v4467
          %v6380 = vpop.f32.mrf.mxu0
          %v6381 = vadd.f32 %v6361, %v6380
          %6382 = vdwg.mxu0
          %6383 = vmatpush.xpose.msra.mxu0 0.0
          %6384 = vmatpush.xpose.msra.mxu0 0.0
          %6385 = vmatpush.xpose.msra.mxu0 0.0
          %6386 = vmatpush.xpose.msra.mxu0 0.0
          %6387 = vmatpush.xpose.msra.mxu0 0.0
          %6388 = vmatpush.xpose.msra.mxu0 0.0
          %6389 = vmatpush.xpose.msra.mxu0 0.0
          %6390 = vmatpush.xpose.msra.mxu0 0.0
          %6391 = vmatpush.xpose.msra.mxu0 0.0
          %6392 = vmatpush.xpose.msra.mxu0 0.0
          %6393 = vmatpush.xpose.msra.mxu0 0.0
          %6394 = vmatpush.xpose.msra.mxu0 0.0
          %6395 = vmatpush.xpose.msra.mxu0 0.0
          %6396 = vmatpush.xpose.msra.mxu0 0.0
          %6397 = vmatpush.xpose.msra.mxu0 %v4996
          %6398 = vmatpush.xpose.msra.mxu0 %v4864
          %6399 = vmatmul.f32.gmra.mxu0 %v4468
          %v6400 = vpop.f32.mrf.mxu0
          %v6401 = vadd.f32 %v6381, %v6400
          %6402 = vdwg.mxu0
          %6403 = vmatpush.xpose.msra.mxu0 0.0
          %6404 = vmatpush.xpose.msra.mxu0 0.0
          %6405 = vmatpush.xpose.msra.mxu0 0.0
          %6406 = vmatpush.xpose.msra.mxu0 0.0
          %6407 = vmatpush.xpose.msra.mxu0 0.0
          %6408 = vmatpush.xpose.msra.mxu0 0.0
          %6409 = vmatpush.xpose.msra.mxu0 0.0
          %6410 = vmatpush.xpose.msra.mxu0 0.0
          %6411 = vmatpush.xpose.msra.mxu0 0.0
          %6412 = vmatpush.xpose.msra.mxu0 0.0
          %6413 = vmatpush.xpose.msra.mxu0 0.0
          %6414 = vmatpush.xpose.msra.mxu0 0.0
          %6415 = vmatpush.xpose.msra.mxu0 0.0
          %6416 = vmatpush.xpose.msra.mxu0 0.0
          %6417 = vmatpush.xpose.msra.mxu0 %v4997
          %6418 = vmatpush.xpose.msra.mxu0 %v4865
          %6419 = vmatmul.f32.gmra.mxu0 %v4469
          %v6420 = vpop.f32.mrf.mxu0
          %v6421 = vadd.f32 %v6401, %v6420
          %6422 = vdwg.mxu0
          %6423 = vmatpush.xpose.msra.mxu0 0.0
          %6424 = vmatpush.xpose.msra.mxu0 0.0
          %6425 = vmatpush.xpose.msra.mxu0 0.0
          %6426 = vmatpush.xpose.msra.mxu0 0.0
          %6427 = vmatpush.xpose.msra.mxu0 0.0
          %6428 = vmatpush.xpose.msra.mxu0 0.0
          %6429 = vmatpush.xpose.msra.mxu0 0.0
          %6430 = vmatpush.xpose.msra.mxu0 0.0
          %6431 = vmatpush.xpose.msra.mxu0 0.0
          %6432 = vmatpush.xpose.msra.mxu0 0.0
          %6433 = vmatpush.xpose.msra.mxu0 0.0
          %6434 = vmatpush.xpose.msra.mxu0 0.0
          %6435 = vmatpush.xpose.msra.mxu0 0.0
          %6436 = vmatpush.xpose.msra.mxu0 0.0
          %6437 = vmatpush.xpose.msra.mxu0 %v4998
          %6438 = vmatpush.xpose.msra.mxu0 %v4866
          %6439 = vmatmul.f32.gmra.mxu0 %v4470
          %v6440 = vpop.f32.mrf.mxu0
          %v6441 = vadd.f32 %v6421, %v6440
          %6442 = vdwg.mxu0
          %6443 = vmatpush.xpose.msra.mxu0 0.0
          %6444 = vmatpush.xpose.msra.mxu0 0.0
          %6445 = vmatpush.xpose.msra.mxu0 0.0
          %6446 = vmatpush.xpose.msra.mxu0 0.0
          %6447 = vmatpush.xpose.msra.mxu0 0.0
          %6448 = vmatpush.xpose.msra.mxu0 0.0
          %6449 = vmatpush.xpose.msra.mxu0 0.0
          %6450 = vmatpush.xpose.msra.mxu0 0.0
          %6451 = vmatpush.xpose.msra.mxu0 0.0
          %6452 = vmatpush.xpose.msra.mxu0 0.0
          %6453 = vmatpush.xpose.msra.mxu0 0.0
          %6454 = vmatpush.xpose.msra.mxu0 0.0
          %6455 = vmatpush.xpose.msra.mxu0 0.0
          %6456 = vmatpush.xpose.msra.mxu0 0.0
          %6457 = vmatpush.xpose.msra.mxu0 %v4999
          %6458 = vmatpush.xpose.msra.mxu0 %v4867
          %6459 = vmatmul.f32.gmra.mxu0 %v4471
          %v6460 = vpop.f32.mrf.mxu0
          %v6461 = vadd.f32 %v6441, %v6460
          %6462 = vdwg.mxu0
          %6463 = vmatpush.xpose.msra.mxu0 0.0
          %6464 = vmatpush.xpose.msra.mxu0 0.0
          %6465 = vmatpush.xpose.msra.mxu0 0.0
          %6466 = vmatpush.xpose.msra.mxu0 0.0
          %6467 = vmatpush.xpose.msra.mxu0 0.0
          %6468 = vmatpush.xpose.msra.mxu0 0.0
          %6469 = vmatpush.xpose.msra.mxu0 0.0
          %6470 = vmatpush.xpose.msra.mxu0 0.0
          %6471 = vmatpush.xpose.msra.mxu0 0.0
          %6472 = vmatpush.xpose.msra.mxu0 0.0
          %6473 = vmatpush.xpose.msra.mxu0 0.0
          %6474 = vmatpush.xpose.msra.mxu0 0.0
          %6475 = vmatpush.xpose.msra.mxu0 0.0
          %6476 = vmatpush.xpose.msra.mxu0 0.0
          %6477 = vmatpush.xpose.msra.mxu0 %v5000
          %6478 = vmatpush.xpose.msra.mxu0 %v4868
          %6479 = vmatmul.f32.gmra.mxu0 %v4472
          %v6480 = vpop.f32.mrf.mxu0
          %v6481 = vadd.f32 %v6461, %v6480
          %6482 = vdwg.mxu0
          %6483 = vmatpush.xpose.msra.mxu0 0.0
          %6484 = vmatpush.xpose.msra.mxu0 0.0
          %6485 = vmatpush.xpose.msra.mxu0 0.0
          %6486 = vmatpush.xpose.msra.mxu0 0.0
          %6487 = vmatpush.xpose.msra.mxu0 0.0
          %6488 = vmatpush.xpose.msra.mxu0 0.0
          %6489 = vmatpush.xpose.msra.mxu0 0.0
          %6490 = vmatpush.xpose.msra.mxu0 0.0
          %6491 = vmatpush.xpose.msra.mxu0 0.0
          %6492 = vmatpush.xpose.msra.mxu0 0.0
          %6493 = vmatpush.xpose.msra.mxu0 0.0
          %6494 = vmatpush.xpose.msra.mxu0 0.0
          %6495 = vmatpush.xpose.msra.mxu0 0.0
          %6496 = vmatpush.xpose.msra.mxu0 0.0
          %6497 = vmatpush.xpose.msra.mxu0 %v5001
          %6498 = vmatpush.xpose.msra.mxu0 %v4869
          %6499 = vmatmul.f32.gmra.mxu0 %v4473
          %v6500 = vpop.f32.mrf.mxu0
          %v6501 = vadd.f32 %v6481, %v6500
          %6502 = vdwg.mxu0
          %6503 = vmatpush.xpose.msra.mxu0 0.0
          %6504 = vmatpush.xpose.msra.mxu0 0.0
          %6505 = vmatpush.xpose.msra.mxu0 0.0
          %6506 = vmatpush.xpose.msra.mxu0 0.0
          %6507 = vmatpush.xpose.msra.mxu0 0.0
          %6508 = vmatpush.xpose.msra.mxu0 0.0
          %6509 = vmatpush.xpose.msra.mxu0 0.0
          %6510 = vmatpush.xpose.msra.mxu0 0.0
          %6511 = vmatpush.xpose.msra.mxu0 0.0
          %6512 = vmatpush.xpose.msra.mxu0 0.0
          %6513 = vmatpush.xpose.msra.mxu0 0.0
          %6514 = vmatpush.xpose.msra.mxu0 0.0
          %6515 = vmatpush.xpose.msra.mxu0 0.0
          %6516 = vmatpush.xpose.msra.mxu0 0.0
          %6517 = vmatpush.xpose.msra.mxu0 %v5002
          %6518 = vmatpush.xpose.msra.mxu0 %v4870
          %6519 = vmatmul.f32.gmra.mxu0 %v4474
          %v6520 = vpop.f32.mrf.mxu0
          %v6521 = vadd.f32 %v6501, %v6520
          %6522 = vdwg.mxu0
          %6523 = vmatpush.xpose.msra.mxu0 0.0
          %6524 = vmatpush.xpose.msra.mxu0 0.0
          %6525 = vmatpush.xpose.msra.mxu0 0.0
          %6526 = vmatpush.xpose.msra.mxu0 0.0
          %6527 = vmatpush.xpose.msra.mxu0 0.0
          %6528 = vmatpush.xpose.msra.mxu0 0.0
          %6529 = vmatpush.xpose.msra.mxu0 0.0
          %6530 = vmatpush.xpose.msra.mxu0 0.0
          %6531 = vmatpush.xpose.msra.mxu0 0.0
          %6532 = vmatpush.xpose.msra.mxu0 0.0
          %6533 = vmatpush.xpose.msra.mxu0 0.0
          %6534 = vmatpush.xpose.msra.mxu0 0.0
          %6535 = vmatpush.xpose.msra.mxu0 0.0
          %6536 = vmatpush.xpose.msra.mxu0 0.0
          %6537 = vmatpush.xpose.msra.mxu0 %v5003
          %6538 = vmatpush.xpose.msra.mxu0 %v4871
          %6539 = vmatmul.f32.gmra.mxu0 %v4475
          %v6540 = vpop.f32.mrf.mxu0
          %v6541 = vadd.f32 %v6521, %v6540
          %6542 = vdwg.mxu0
          %6543 = vmatpush.xpose.msra.mxu0 0.0
          %6544 = vmatpush.xpose.msra.mxu0 0.0
          %6545 = vmatpush.xpose.msra.mxu0 0.0
          %6546 = vmatpush.xpose.msra.mxu0 0.0
          %6547 = vmatpush.xpose.msra.mxu0 0.0
          %6548 = vmatpush.xpose.msra.mxu0 0.0
          %6549 = vmatpush.xpose.msra.mxu0 0.0
          %6550 = vmatpush.xpose.msra.mxu0 0.0
          %6551 = vmatpush.xpose.msra.mxu0 0.0
          %6552 = vmatpush.xpose.msra.mxu0 0.0
          %6553 = vmatpush.xpose.msra.mxu0 0.0
          %6554 = vmatpush.xpose.msra.mxu0 0.0
          %6555 = vmatpush.xpose.msra.mxu0 0.0
          %6556 = vmatpush.xpose.msra.mxu0 0.0
          %6557 = vmatpush.xpose.msra.mxu0 %v5004
          %6558 = vmatpush.xpose.msra.mxu0 %v4872
          %6559 = vmatmul.f32.gmra.mxu0 %v4476
          %v6560 = vpop.f32.mrf.mxu0
          %v6561 = vadd.f32 %v6541, %v6560
          %6562 = vdwg.mxu0
          %6563 = vmatpush.xpose.msra.mxu0 0.0
          %6564 = vmatpush.xpose.msra.mxu0 0.0
          %6565 = vmatpush.xpose.msra.mxu0 0.0
          %6566 = vmatpush.xpose.msra.mxu0 0.0
          %6567 = vmatpush.xpose.msra.mxu0 0.0
          %6568 = vmatpush.xpose.msra.mxu0 0.0
          %6569 = vmatpush.xpose.msra.mxu0 0.0
          %6570 = vmatpush.xpose.msra.mxu0 0.0
          %6571 = vmatpush.xpose.msra.mxu0 0.0
          %6572 = vmatpush.xpose.msra.mxu0 0.0
          %6573 = vmatpush.xpose.msra.mxu0 0.0
          %6574 = vmatpush.xpose.msra.mxu0 0.0
          %6575 = vmatpush.xpose.msra.mxu0 0.0
          %6576 = vmatpush.xpose.msra.mxu0 0.0
          %6577 = vmatpush.xpose.msra.mxu0 %v5005
          %6578 = vmatpush.xpose.msra.mxu0 %v4873
          %6579 = vmatmul.f32.gmra.mxu0 %v4477
          %v6580 = vpop.f32.mrf.mxu0
          %v6581 = vadd.f32 %v6561, %v6580
          %6582 = vdwg.mxu0
          %6583 = vmatpush.xpose.msra.mxu0 0.0
          %6584 = vmatpush.xpose.msra.mxu0 0.0
          %6585 = vmatpush.xpose.msra.mxu0 0.0
          %6586 = vmatpush.xpose.msra.mxu0 0.0
          %6587 = vmatpush.xpose.msra.mxu0 0.0
          %6588 = vmatpush.xpose.msra.mxu0 0.0
          %6589 = vmatpush.xpose.msra.mxu0 0.0
          %6590 = vmatpush.xpose.msra.mxu0 0.0
          %6591 = vmatpush.xpose.msra.mxu0 0.0
          %6592 = vmatpush.xpose.msra.mxu0 0.0
          %6593 = vmatpush.xpose.msra.mxu0 0.0
          %6594 = vmatpush.xpose.msra.mxu0 0.0
          %6595 = vmatpush.xpose.msra.mxu0 0.0
          %6596 = vmatpush.xpose.msra.mxu0 0.0
          %6597 = vmatpush.xpose.msra.mxu0 %v5006
          %6598 = vmatpush.xpose.msra.mxu0 %v4874
          %6599 = vmatmul.f32.gmra.mxu0 %v4478
          %v6600 = vpop.f32.mrf.mxu0
          %v6601 = vadd.f32 %v6581, %v6600
          %6602 = vdwg.mxu0
          %6603 = vmatpush.xpose.msra.mxu0 0.0
          %6604 = vmatpush.xpose.msra.mxu0 0.0
          %6605 = vmatpush.xpose.msra.mxu0 0.0
          %6606 = vmatpush.xpose.msra.mxu0 0.0
          %6607 = vmatpush.xpose.msra.mxu0 0.0
          %6608 = vmatpush.xpose.msra.mxu0 0.0
          %6609 = vmatpush.xpose.msra.mxu0 0.0
          %6610 = vmatpush.xpose.msra.mxu0 0.0
          %6611 = vmatpush.xpose.msra.mxu0 0.0
          %6612 = vmatpush.xpose.msra.mxu0 0.0
          %6613 = vmatpush.xpose.msra.mxu0 0.0
          %6614 = vmatpush.xpose.msra.mxu0 0.0
          %6615 = vmatpush.xpose.msra.mxu0 0.0
          %6616 = vmatpush.xpose.msra.mxu0 0.0
          %6617 = vmatpush.xpose.msra.mxu0 %v5007
          %6618 = vmatpush.xpose.msra.mxu0 %v4875
          %6619 = vmatmul.f32.gmra.mxu0 %v4479
          %v6620 = vpop.f32.mrf.mxu0
          %v6621 = vadd.f32 %v6601, %v6620
          %6622 = vdwg.mxu0
          %6623 = vmatpush.xpose.msra.mxu0 0.0
          %6624 = vmatpush.xpose.msra.mxu0 0.0
          %6625 = vmatpush.xpose.msra.mxu0 0.0
          %6626 = vmatpush.xpose.msra.mxu0 0.0
          %6627 = vmatpush.xpose.msra.mxu0 0.0
          %6628 = vmatpush.xpose.msra.mxu0 0.0
          %6629 = vmatpush.xpose.msra.mxu0 0.0
          %6630 = vmatpush.xpose.msra.mxu0 0.0
          %6631 = vmatpush.xpose.msra.mxu0 0.0
          %6632 = vmatpush.xpose.msra.mxu0 0.0
          %6633 = vmatpush.xpose.msra.mxu0 0.0
          %6634 = vmatpush.xpose.msra.mxu0 0.0
          %6635 = vmatpush.xpose.msra.mxu0 0.0
          %6636 = vmatpush.xpose.msra.mxu0 0.0
          %6637 = vmatpush.xpose.msra.mxu0 %v5008
          %6638 = vmatpush.xpose.msra.mxu0 %v4876
          %6639 = vmatmul.f32.gmra.mxu0 %v4480
          %v6640 = vpop.f32.mrf.mxu0
          %v6641 = vadd.f32 %v6621, %v6640
          %6642 = vdwg.mxu0
          %6643 = vmatpush.xpose.msra.mxu0 0.0
          %6644 = vmatpush.xpose.msra.mxu0 0.0
          %6645 = vmatpush.xpose.msra.mxu0 0.0
          %6646 = vmatpush.xpose.msra.mxu0 0.0
          %6647 = vmatpush.xpose.msra.mxu0 0.0
          %6648 = vmatpush.xpose.msra.mxu0 0.0
          %6649 = vmatpush.xpose.msra.mxu0 0.0
          %6650 = vmatpush.xpose.msra.mxu0 0.0
          %6651 = vmatpush.xpose.msra.mxu0 0.0
          %6652 = vmatpush.xpose.msra.mxu0 0.0
          %6653 = vmatpush.xpose.msra.mxu0 0.0
          %6654 = vmatpush.xpose.msra.mxu0 0.0
          %6655 = vmatpush.xpose.msra.mxu0 0.0
          %6656 = vmatpush.xpose.msra.mxu0 0.0
          %6657 = vmatpush.xpose.msra.mxu0 %v5009
          %6658 = vmatpush.xpose.msra.mxu0 %v4877
          %6659 = vmatmul.f32.gmra.mxu0 %v4481
          %v6660 = vpop.f32.mrf.mxu0
          %v6661 = vadd.f32 %v6641, %v6660
          %6662 = vdwg.mxu0
          %6663 = vmatpush.xpose.msra.mxu0 0.0
          %6664 = vmatpush.xpose.msra.mxu0 0.0
          %6665 = vmatpush.xpose.msra.mxu0 0.0
          %6666 = vmatpush.xpose.msra.mxu0 0.0
          %6667 = vmatpush.xpose.msra.mxu0 0.0
          %6668 = vmatpush.xpose.msra.mxu0 0.0
          %6669 = vmatpush.xpose.msra.mxu0 0.0
          %6670 = vmatpush.xpose.msra.mxu0 0.0
          %6671 = vmatpush.xpose.msra.mxu0 0.0
          %6672 = vmatpush.xpose.msra.mxu0 0.0
          %6673 = vmatpush.xpose.msra.mxu0 0.0
          %6674 = vmatpush.xpose.msra.mxu0 0.0
          %6675 = vmatpush.xpose.msra.mxu0 0.0
          %6676 = vmatpush.xpose.msra.mxu0 0.0
          %6677 = vmatpush.xpose.msra.mxu0 %v5010
          %6678 = vmatpush.xpose.msra.mxu0 %v4878
          %6679 = vmatmul.f32.gmra.mxu0 %v4482
          %v6680 = vpop.f32.mrf.mxu0
          %v6681 = vadd.f32 %v6661, %v6680
          %6682 = vdwg.mxu0
          %6683 = vmatpush.xpose.msra.mxu0 0.0
          %6684 = vmatpush.xpose.msra.mxu0 0.0
          %6685 = vmatpush.xpose.msra.mxu0 0.0
          %6686 = vmatpush.xpose.msra.mxu0 0.0
          %6687 = vmatpush.xpose.msra.mxu0 0.0
          %6688 = vmatpush.xpose.msra.mxu0 0.0
          %6689 = vmatpush.xpose.msra.mxu0 0.0
          %6690 = vmatpush.xpose.msra.mxu0 0.0
          %6691 = vmatpush.xpose.msra.mxu0 0.0
          %6692 = vmatpush.xpose.msra.mxu0 0.0
          %6693 = vmatpush.xpose.msra.mxu0 0.0
          %6694 = vmatpush.xpose.msra.mxu0 0.0
          %6695 = vmatpush.xpose.msra.mxu0 0.0
          %6696 = vmatpush.xpose.msra.mxu0 0.0
          %6697 = vmatpush.xpose.msra.mxu0 %v5011
          %6698 = vmatpush.xpose.msra.mxu0 %v4879
          %6699 = vmatmul.f32.gmra.mxu0 %v4483
          %v6700 = vpop.f32.mrf.mxu0
          %v6701 = vadd.f32 %v6681, %v6700
          %6702 = vdwg.mxu0
          %6703 = vmatpush.xpose.msra.mxu0 0.0
          %6704 = vmatpush.xpose.msra.mxu0 0.0
          %6705 = vmatpush.xpose.msra.mxu0 0.0
          %6706 = vmatpush.xpose.msra.mxu0 0.0
          %6707 = vmatpush.xpose.msra.mxu0 0.0
          %6708 = vmatpush.xpose.msra.mxu0 0.0
          %6709 = vmatpush.xpose.msra.mxu0 0.0
          %6710 = vmatpush.xpose.msra.mxu0 0.0
          %6711 = vmatpush.xpose.msra.mxu0 0.0
          %6712 = vmatpush.xpose.msra.mxu0 0.0
          %6713 = vmatpush.xpose.msra.mxu0 0.0
          %6714 = vmatpush.xpose.msra.mxu0 0.0
          %6715 = vmatpush.xpose.msra.mxu0 0.0
          %6716 = vmatpush.xpose.msra.mxu0 0.0
          %6717 = vmatpush.xpose.msra.mxu0 %v5012
          %6718 = vmatpush.xpose.msra.mxu0 %v4880
          %6719 = vmatmul.f32.gmra.mxu0 %v4484
          %v6720 = vpop.f32.mrf.mxu0
          %v6721 = vadd.f32 %v6701, %v6720
          %6722 = vdwg.mxu0
          %6723 = vmatpush.xpose.msra.mxu0 0.0
          %6724 = vmatpush.xpose.msra.mxu0 0.0
          %6725 = vmatpush.xpose.msra.mxu0 0.0
          %6726 = vmatpush.xpose.msra.mxu0 0.0
          %6727 = vmatpush.xpose.msra.mxu0 0.0
          %6728 = vmatpush.xpose.msra.mxu0 0.0
          %6729 = vmatpush.xpose.msra.mxu0 0.0
          %6730 = vmatpush.xpose.msra.mxu0 0.0
          %6731 = vmatpush.xpose.msra.mxu0 0.0
          %6732 = vmatpush.xpose.msra.mxu0 0.0
          %6733 = vmatpush.xpose.msra.mxu0 0.0
          %6734 = vmatpush.xpose.msra.mxu0 0.0
          %6735 = vmatpush.xpose.msra.mxu0 0.0
          %6736 = vmatpush.xpose.msra.mxu0 0.0
          %6737 = vmatpush.xpose.msra.mxu0 %v5013
          %6738 = vmatpush.xpose.msra.mxu0 %v4881
          %6739 = vmatmul.f32.gmra.mxu0 %v4485
          %v6740 = vpop.f32.mrf.mxu0
          %v6741 = vadd.f32 %v6721, %v6740
          %6742 = vdwg.mxu0
          %6743 = vmatpush.xpose.msra.mxu0 0.0
          %6744 = vmatpush.xpose.msra.mxu0 0.0
          %6745 = vmatpush.xpose.msra.mxu0 0.0
          %6746 = vmatpush.xpose.msra.mxu0 0.0
          %6747 = vmatpush.xpose.msra.mxu0 0.0
          %6748 = vmatpush.xpose.msra.mxu0 0.0
          %6749 = vmatpush.xpose.msra.mxu0 0.0
          %6750 = vmatpush.xpose.msra.mxu0 0.0
          %6751 = vmatpush.xpose.msra.mxu0 0.0
          %6752 = vmatpush.xpose.msra.mxu0 0.0
          %6753 = vmatpush.xpose.msra.mxu0 0.0
          %6754 = vmatpush.xpose.msra.mxu0 0.0
          %6755 = vmatpush.xpose.msra.mxu0 0.0
          %6756 = vmatpush.xpose.msra.mxu0 0.0
          %6757 = vmatpush.xpose.msra.mxu0 %v5014
          %6758 = vmatpush.xpose.msra.mxu0 %v4882
          %6759 = vmatmul.f32.gmra.mxu0 %v4486
          %v6760 = vpop.f32.mrf.mxu0
          %v6761 = vadd.f32 %v6741, %v6760
          %6762 = vdwg.mxu0
          %6763 = vmatpush.xpose.msra.mxu0 0.0
          %6764 = vmatpush.xpose.msra.mxu0 0.0
          %6765 = vmatpush.xpose.msra.mxu0 0.0
          %6766 = vmatpush.xpose.msra.mxu0 0.0
          %6767 = vmatpush.xpose.msra.mxu0 0.0
          %6768 = vmatpush.xpose.msra.mxu0 0.0
          %6769 = vmatpush.xpose.msra.mxu0 0.0
          %6770 = vmatpush.xpose.msra.mxu0 0.0
          %6771 = vmatpush.xpose.msra.mxu0 0.0
          %6772 = vmatpush.xpose.msra.mxu0 0.0
          %6773 = vmatpush.xpose.msra.mxu0 0.0
          %6774 = vmatpush.xpose.msra.mxu0 0.0
          %6775 = vmatpush.xpose.msra.mxu0 0.0
          %6776 = vmatpush.xpose.msra.mxu0 0.0
          %6777 = vmatpush.xpose.msra.mxu0 %v5015
          %6778 = vmatpush.xpose.msra.mxu0 %v4883
          %6779 = vmatmul.f32.gmra.mxu0 %v4487
          %v6780 = vpop.f32.mrf.mxu0
          %v6781 = vadd.f32 %v6761, %v6780
          %6782 = vdwg.mxu0
          %6783 = vmatpush.xpose.msra.mxu0 0.0
          %6784 = vmatpush.xpose.msra.mxu0 0.0
          %6785 = vmatpush.xpose.msra.mxu0 0.0
          %6786 = vmatpush.xpose.msra.mxu0 0.0
          %6787 = vmatpush.xpose.msra.mxu0 0.0
          %6788 = vmatpush.xpose.msra.mxu0 0.0
          %6789 = vmatpush.xpose.msra.mxu0 0.0
          %6790 = vmatpush.xpose.msra.mxu0 0.0
          %6791 = vmatpush.xpose.msra.mxu0 0.0
          %6792 = vmatpush.xpose.msra.mxu0 0.0
          %6793 = vmatpush.xpose.msra.mxu0 0.0
          %6794 = vmatpush.xpose.msra.mxu0 0.0
          %6795 = vmatpush.xpose.msra.mxu0 0.0
          %6796 = vmatpush.xpose.msra.mxu0 0.0
          %6797 = vmatpush.xpose.msra.mxu0 %v5016
          %6798 = vmatpush.xpose.msra.mxu0 %v4884
          %6799 = vmatmul.f32.gmra.mxu0 %v4488
          %v6800 = vpop.f32.mrf.mxu0
          %v6801 = vadd.f32 %v6781, %v6800
          %6802 = vdwg.mxu0
          %6803 = vmatpush.xpose.msra.mxu0 0.0
          %6804 = vmatpush.xpose.msra.mxu0 0.0
          %6805 = vmatpush.xpose.msra.mxu0 0.0
          %6806 = vmatpush.xpose.msra.mxu0 0.0
          %6807 = vmatpush.xpose.msra.mxu0 0.0
          %6808 = vmatpush.xpose.msra.mxu0 0.0
          %6809 = vmatpush.xpose.msra.mxu0 0.0
          %6810 = vmatpush.xpose.msra.mxu0 0.0
          %6811 = vmatpush.xpose.msra.mxu0 0.0
          %6812 = vmatpush.xpose.msra.mxu0 0.0
          %6813 = vmatpush.xpose.msra.mxu0 0.0
          %6814 = vmatpush.xpose.msra.mxu0 0.0
          %6815 = vmatpush.xpose.msra.mxu0 0.0
          %6816 = vmatpush.xpose.msra.mxu0 0.0
          %6817 = vmatpush.xpose.msra.mxu0 %v5017
          %6818 = vmatpush.xpose.msra.mxu0 %v4885
          %6819 = vmatmul.f32.gmra.mxu0 %v4489
          %v6820 = vpop.f32.mrf.mxu0
          %v6821 = vadd.f32 %v6801, %v6820
          %6822 = vdwg.mxu0
          %6823 = vmatpush.xpose.msra.mxu0 0.0
          %6824 = vmatpush.xpose.msra.mxu0 0.0
          %6825 = vmatpush.xpose.msra.mxu0 0.0
          %6826 = vmatpush.xpose.msra.mxu0 0.0
          %6827 = vmatpush.xpose.msra.mxu0 0.0
          %6828 = vmatpush.xpose.msra.mxu0 0.0
          %6829 = vmatpush.xpose.msra.mxu0 0.0
          %6830 = vmatpush.xpose.msra.mxu0 0.0
          %6831 = vmatpush.xpose.msra.mxu0 0.0
          %6832 = vmatpush.xpose.msra.mxu0 0.0
          %6833 = vmatpush.xpose.msra.mxu0 0.0
          %6834 = vmatpush.xpose.msra.mxu0 0.0
          %6835 = vmatpush.xpose.msra.mxu0 0.0
          %6836 = vmatpush.xpose.msra.mxu0 0.0
          %6837 = vmatpush.xpose.msra.mxu0 %v5018
          %6838 = vmatpush.xpose.msra.mxu0 %v4886
          %6839 = vmatmul.f32.gmra.mxu0 %v4490
          %v6840 = vpop.f32.mrf.mxu0
          %v6841 = vadd.f32 %v6821, %v6840
          %6842 = vdwg.mxu0
          %6843 = vmatpush.xpose.msra.mxu0 0.0
          %6844 = vmatpush.xpose.msra.mxu0 0.0
          %6845 = vmatpush.xpose.msra.mxu0 0.0
          %6846 = vmatpush.xpose.msra.mxu0 0.0
          %6847 = vmatpush.xpose.msra.mxu0 0.0
          %6848 = vmatpush.xpose.msra.mxu0 0.0
          %6849 = vmatpush.xpose.msra.mxu0 0.0
          %6850 = vmatpush.xpose.msra.mxu0 0.0
          %6851 = vmatpush.xpose.msra.mxu0 0.0
          %6852 = vmatpush.xpose.msra.mxu0 0.0
          %6853 = vmatpush.xpose.msra.mxu0 0.0
          %6854 = vmatpush.xpose.msra.mxu0 0.0
          %6855 = vmatpush.xpose.msra.mxu0 0.0
          %6856 = vmatpush.xpose.msra.mxu0 0.0
          %6857 = vmatpush.xpose.msra.mxu0 %v5019
          %6858 = vmatpush.xpose.msra.mxu0 %v4887
          %6859 = vmatmul.f32.gmra.mxu0 %v4491
          %v6860 = vpop.f32.mrf.mxu0
          %v6861 = vadd.f32 %v6841, %v6860
          %6862 = vdwg.mxu0
          %6863 = vmatpush.xpose.msra.mxu0 0.0
          %6864 = vmatpush.xpose.msra.mxu0 0.0
          %6865 = vmatpush.xpose.msra.mxu0 0.0
          %6866 = vmatpush.xpose.msra.mxu0 0.0
          %6867 = vmatpush.xpose.msra.mxu0 0.0
          %6868 = vmatpush.xpose.msra.mxu0 0.0
          %6869 = vmatpush.xpose.msra.mxu0 0.0
          %6870 = vmatpush.xpose.msra.mxu0 0.0
          %6871 = vmatpush.xpose.msra.mxu0 0.0
          %6872 = vmatpush.xpose.msra.mxu0 0.0
          %6873 = vmatpush.xpose.msra.mxu0 0.0
          %6874 = vmatpush.xpose.msra.mxu0 0.0
          %6875 = vmatpush.xpose.msra.mxu0 0.0
          %6876 = vmatpush.xpose.msra.mxu0 0.0
          %6877 = vmatpush.xpose.msra.mxu0 %v5020
          %6878 = vmatpush.xpose.msra.mxu0 %v4888
          %6879 = vmatmul.f32.gmra.mxu0 %v4492
          %v6880 = vpop.f32.mrf.mxu0
          %v6881 = vadd.f32 %v6861, %v6880
          %6882 = vdwg.mxu0
          %6883 = vmatpush.xpose.msra.mxu0 0.0
          %6884 = vmatpush.xpose.msra.mxu0 0.0
          %6885 = vmatpush.xpose.msra.mxu0 0.0
          %6886 = vmatpush.xpose.msra.mxu0 0.0
          %6887 = vmatpush.xpose.msra.mxu0 0.0
          %6888 = vmatpush.xpose.msra.mxu0 0.0
          %6889 = vmatpush.xpose.msra.mxu0 0.0
          %6890 = vmatpush.xpose.msra.mxu0 0.0
          %6891 = vmatpush.xpose.msra.mxu0 0.0
          %6892 = vmatpush.xpose.msra.mxu0 0.0
          %6893 = vmatpush.xpose.msra.mxu0 0.0
          %6894 = vmatpush.xpose.msra.mxu0 0.0
          %6895 = vmatpush.xpose.msra.mxu0 0.0
          %6896 = vmatpush.xpose.msra.mxu0 0.0
          %6897 = vmatpush.xpose.msra.mxu0 %v5021
          %6898 = vmatpush.xpose.msra.mxu0 %v4889
          %6899 = vmatmul.f32.gmra.mxu0 %v4493
          %v6900 = vpop.f32.mrf.mxu0
          %v6901 = vadd.f32 %v6881, %v6900
          %6902 = vdwg.mxu0
          %6903 = vmatpush.xpose.msra.mxu0 0.0
          %6904 = vmatpush.xpose.msra.mxu0 0.0
          %6905 = vmatpush.xpose.msra.mxu0 0.0
          %6906 = vmatpush.xpose.msra.mxu0 0.0
          %6907 = vmatpush.xpose.msra.mxu0 0.0
          %6908 = vmatpush.xpose.msra.mxu0 0.0
          %6909 = vmatpush.xpose.msra.mxu0 0.0
          %6910 = vmatpush.xpose.msra.mxu0 0.0
          %6911 = vmatpush.xpose.msra.mxu0 0.0
          %6912 = vmatpush.xpose.msra.mxu0 0.0
          %6913 = vmatpush.xpose.msra.mxu0 0.0
          %6914 = vmatpush.xpose.msra.mxu0 0.0
          %6915 = vmatpush.xpose.msra.mxu0 0.0
          %6916 = vmatpush.xpose.msra.mxu0 0.0
          %6917 = vmatpush.xpose.msra.mxu0 %v5022
          %6918 = vmatpush.xpose.msra.mxu0 %v4890
          %6919 = vmatmul.f32.gmra.mxu0 %v4494
          %v6920 = vpop.f32.mrf.mxu0
          %v6921 = vadd.f32 %v6901, %v6920
          %6922 = vdwg.mxu0
          %6923 = vmatpush.xpose.msra.mxu0 0.0
          %6924 = vmatpush.xpose.msra.mxu0 0.0
          %6925 = vmatpush.xpose.msra.mxu0 0.0
          %6926 = vmatpush.xpose.msra.mxu0 0.0
          %6927 = vmatpush.xpose.msra.mxu0 0.0
          %6928 = vmatpush.xpose.msra.mxu0 0.0
          %6929 = vmatpush.xpose.msra.mxu0 0.0
          %6930 = vmatpush.xpose.msra.mxu0 0.0
          %6931 = vmatpush.xpose.msra.mxu0 0.0
          %6932 = vmatpush.xpose.msra.mxu0 0.0
          %6933 = vmatpush.xpose.msra.mxu0 0.0
          %6934 = vmatpush.xpose.msra.mxu0 0.0
          %6935 = vmatpush.xpose.msra.mxu0 0.0
          %6936 = vmatpush.xpose.msra.mxu0 0.0
          %6937 = vmatpush.xpose.msra.mxu0 %v5023
          %6938 = vmatpush.xpose.msra.mxu0 %v4891
          %6939 = vmatmul.f32.gmra.mxu0 %v4495
          %v6940 = vpop.f32.mrf.mxu0
          %v6941 = vadd.f32 %v6921, %v6940
          %6942 = vdwg.mxu0
          %6943 = vmatpush.xpose.msra.mxu0 0.0
          %6944 = vmatpush.xpose.msra.mxu0 0.0
          %6945 = vmatpush.xpose.msra.mxu0 0.0
          %6946 = vmatpush.xpose.msra.mxu0 0.0
          %6947 = vmatpush.xpose.msra.mxu0 0.0
          %6948 = vmatpush.xpose.msra.mxu0 0.0
          %6949 = vmatpush.xpose.msra.mxu0 0.0
          %6950 = vmatpush.xpose.msra.mxu0 0.0
          %6951 = vmatpush.xpose.msra.mxu0 0.0
          %6952 = vmatpush.xpose.msra.mxu0 0.0
          %6953 = vmatpush.xpose.msra.mxu0 0.0
          %6954 = vmatpush.xpose.msra.mxu0 0.0
          %6955 = vmatpush.xpose.msra.mxu0 0.0
          %6956 = vmatpush.xpose.msra.mxu0 0.0
          %6957 = vmatpush.xpose.msra.mxu0 %v5024
          %6958 = vmatpush.xpose.msra.mxu0 %v4892
          %6959 = vmatmul.f32.gmra.mxu0 %v4496
          %v6960 = vpop.f32.mrf.mxu0
          %v6961 = vadd.f32 %v6941, %v6960
          %6962 = vdwg.mxu0
          %6963 = vmatpush.xpose.msra.mxu0 0.0
          %6964 = vmatpush.xpose.msra.mxu0 0.0
          %6965 = vmatpush.xpose.msra.mxu0 0.0
          %6966 = vmatpush.xpose.msra.mxu0 0.0
          %6967 = vmatpush.xpose.msra.mxu0 0.0
          %6968 = vmatpush.xpose.msra.mxu0 0.0
          %6969 = vmatpush.xpose.msra.mxu0 0.0
          %6970 = vmatpush.xpose.msra.mxu0 0.0
          %6971 = vmatpush.xpose.msra.mxu0 0.0
          %6972 = vmatpush.xpose.msra.mxu0 0.0
          %6973 = vmatpush.xpose.msra.mxu0 0.0
          %6974 = vmatpush.xpose.msra.mxu0 0.0
          %6975 = vmatpush.xpose.msra.mxu0 0.0
          %6976 = vmatpush.xpose.msra.mxu0 0.0
          %6977 = vmatpush.xpose.msra.mxu0 %v5025
          %6978 = vmatpush.xpose.msra.mxu0 %v4893
          %6979 = vmatmul.f32.gmra.mxu0 %v4497
          %v6980 = vpop.f32.mrf.mxu0
          %v6981 = vadd.f32 %v6961, %v6980
          %6982 = vdwg.mxu0
          %6983 = vmatpush.xpose.msra.mxu0 0.0
          %6984 = vmatpush.xpose.msra.mxu0 0.0
          %6985 = vmatpush.xpose.msra.mxu0 0.0
          %6986 = vmatpush.xpose.msra.mxu0 0.0
          %6987 = vmatpush.xpose.msra.mxu0 0.0
          %6988 = vmatpush.xpose.msra.mxu0 0.0
          %6989 = vmatpush.xpose.msra.mxu0 0.0
          %6990 = vmatpush.xpose.msra.mxu0 0.0
          %6991 = vmatpush.xpose.msra.mxu0 0.0
          %6992 = vmatpush.xpose.msra.mxu0 0.0
          %6993 = vmatpush.xpose.msra.mxu0 0.0
          %6994 = vmatpush.xpose.msra.mxu0 0.0
          %6995 = vmatpush.xpose.msra.mxu0 0.0
          %6996 = vmatpush.xpose.msra.mxu0 0.0
          %6997 = vmatpush.xpose.msra.mxu0 %v5026
          %6998 = vmatpush.xpose.msra.mxu0 %v4894
          %6999 = vmatmul.f32.gmra.mxu0 %v4498
          %v7000 = vpop.f32.mrf.mxu0
          %v7001 = vadd.f32 %v6981, %v7000
          %7002 = vdwg.mxu0
          %7003 = vmatpush.xpose.msra.mxu0 0.0
          %7004 = vmatpush.xpose.msra.mxu0 0.0
          %7005 = vmatpush.xpose.msra.mxu0 0.0
          %7006 = vmatpush.xpose.msra.mxu0 0.0
          %7007 = vmatpush.xpose.msra.mxu0 0.0
          %7008 = vmatpush.xpose.msra.mxu0 0.0
          %7009 = vmatpush.xpose.msra.mxu0 0.0
          %7010 = vmatpush.xpose.msra.mxu0 0.0
          %7011 = vmatpush.xpose.msra.mxu0 0.0
          %7012 = vmatpush.xpose.msra.mxu0 0.0
          %7013 = vmatpush.xpose.msra.mxu0 0.0
          %7014 = vmatpush.xpose.msra.mxu0 0.0
          %7015 = vmatpush.xpose.msra.mxu0 0.0
          %7016 = vmatpush.xpose.msra.mxu0 0.0
          %7017 = vmatpush.xpose.msra.mxu0 %v5027
          %7018 = vmatpush.xpose.msra.mxu0 %v4895
          %7019 = vmatmul.f32.gmra.mxu0 %v4499
          %v7020 = vpop.f32.mrf.mxu0
          %v7021 = vadd.f32 %v7001, %v7020
          %7022 = vdwg.mxu0
          %7023 = vmatpush.xpose.msra.mxu0 0.0
          %7024 = vmatpush.xpose.msra.mxu0 0.0
          %7025 = vmatpush.xpose.msra.mxu0 0.0
          %7026 = vmatpush.xpose.msra.mxu0 0.0
          %7027 = vmatpush.xpose.msra.mxu0 0.0
          %7028 = vmatpush.xpose.msra.mxu0 0.0
          %7029 = vmatpush.xpose.msra.mxu0 0.0
          %7030 = vmatpush.xpose.msra.mxu0 0.0
          %7031 = vmatpush.xpose.msra.mxu0 0.0
          %7032 = vmatpush.xpose.msra.mxu0 0.0
          %7033 = vmatpush.xpose.msra.mxu0 0.0
          %7034 = vmatpush.xpose.msra.mxu0 0.0
          %7035 = vmatpush.xpose.msra.mxu0 0.0
          %7036 = vmatpush.xpose.msra.mxu0 0.0
          %7037 = vmatpush.xpose.msra.mxu0 %v5028
          %7038 = vmatpush.xpose.msra.mxu0 %v4896
          %7039 = vmatmul.f32.gmra.mxu0 %v4500
          %v7040 = vpop.f32.mrf.mxu0
          %v7041 = vadd.f32 %v7021, %v7040
          %7042 = vdwg.mxu0
          %7043 = vmatpush.xpose.msra.mxu0 0.0
          %7044 = vmatpush.xpose.msra.mxu0 0.0
          %7045 = vmatpush.xpose.msra.mxu0 0.0
          %7046 = vmatpush.xpose.msra.mxu0 0.0
          %7047 = vmatpush.xpose.msra.mxu0 0.0
          %7048 = vmatpush.xpose.msra.mxu0 0.0
          %7049 = vmatpush.xpose.msra.mxu0 0.0
          %7050 = vmatpush.xpose.msra.mxu0 0.0
          %7051 = vmatpush.xpose.msra.mxu0 0.0
          %7052 = vmatpush.xpose.msra.mxu0 0.0
          %7053 = vmatpush.xpose.msra.mxu0 0.0
          %7054 = vmatpush.xpose.msra.mxu0 0.0
          %7055 = vmatpush.xpose.msra.mxu0 0.0
          %7056 = vmatpush.xpose.msra.mxu0 0.0
          %7057 = vmatpush.xpose.msra.mxu0 %v5029
          %7058 = vmatpush.xpose.msra.mxu0 %v4897
          %7059 = vmatmul.f32.gmra.mxu0 %v4501
          %v7060 = vpop.f32.mrf.mxu0
          %v7061 = vadd.f32 %v7041, %v7060
          %7062 = vdwg.mxu0
          %7063 = vmatpush.xpose.msra.mxu0 0.0
          %7064 = vmatpush.xpose.msra.mxu0 0.0
          %7065 = vmatpush.xpose.msra.mxu0 0.0
          %7066 = vmatpush.xpose.msra.mxu0 0.0
          %7067 = vmatpush.xpose.msra.mxu0 0.0
          %7068 = vmatpush.xpose.msra.mxu0 0.0
          %7069 = vmatpush.xpose.msra.mxu0 0.0
          %7070 = vmatpush.xpose.msra.mxu0 0.0
          %7071 = vmatpush.xpose.msra.mxu0 0.0
          %7072 = vmatpush.xpose.msra.mxu0 0.0
          %7073 = vmatpush.xpose.msra.mxu0 0.0
          %7074 = vmatpush.xpose.msra.mxu0 0.0
          %7075 = vmatpush.xpose.msra.mxu0 0.0
          %7076 = vmatpush.xpose.msra.mxu0 0.0
          %7077 = vmatpush.xpose.msra.mxu0 %v5030
          %7078 = vmatpush.xpose.msra.mxu0 %v4898
          %7079 = vmatmul.f32.gmra.mxu0 %v4502
          %v7080 = vpop.f32.mrf.mxu0
          %v7081 = vadd.f32 %v7061, %v7080
          %7082 = vdwg.mxu0
          %7083 = vmatpush.xpose.msra.mxu0 0.0
          %7084 = vmatpush.xpose.msra.mxu0 0.0
          %7085 = vmatpush.xpose.msra.mxu0 0.0
          %7086 = vmatpush.xpose.msra.mxu0 0.0
          %7087 = vmatpush.xpose.msra.mxu0 0.0
          %7088 = vmatpush.xpose.msra.mxu0 0.0
          %7089 = vmatpush.xpose.msra.mxu0 0.0
          %7090 = vmatpush.xpose.msra.mxu0 0.0
          %7091 = vmatpush.xpose.msra.mxu0 0.0
          %7092 = vmatpush.xpose.msra.mxu0 0.0
          %7093 = vmatpush.xpose.msra.mxu0 0.0
          %7094 = vmatpush.xpose.msra.mxu0 0.0
          %7095 = vmatpush.xpose.msra.mxu0 0.0
          %7096 = vmatpush.xpose.msra.mxu0 0.0
          %7097 = vmatpush.xpose.msra.mxu0 %v5031
          %7098 = vmatpush.xpose.msra.mxu0 %v4899
          %7099 = vmatmul.f32.gmra.mxu0 %v4503
          %v7100 = vpop.f32.mrf.mxu0
          %v7101 = vadd.f32 %v7081, %v7100
          %7102 = vdwg.mxu0
          %7103 = vmatpush.xpose.msra.mxu0 0.0
          %7104 = vmatpush.xpose.msra.mxu0 0.0
          %7105 = vmatpush.xpose.msra.mxu0 0.0
          %7106 = vmatpush.xpose.msra.mxu0 0.0
          %7107 = vmatpush.xpose.msra.mxu0 0.0
          %7108 = vmatpush.xpose.msra.mxu0 0.0
          %7109 = vmatpush.xpose.msra.mxu0 0.0
          %7110 = vmatpush.xpose.msra.mxu0 0.0
          %7111 = vmatpush.xpose.msra.mxu0 0.0
          %7112 = vmatpush.xpose.msra.mxu0 0.0
          %7113 = vmatpush.xpose.msra.mxu0 0.0
          %7114 = vmatpush.xpose.msra.mxu0 0.0
          %7115 = vmatpush.xpose.msra.mxu0 0.0
          %7116 = vmatpush.xpose.msra.mxu0 0.0
          %7117 = vmatpush.xpose.msra.mxu0 %v5032
          %7118 = vmatpush.xpose.msra.mxu0 %v4900
          %7119 = vmatmul.f32.gmra.mxu0 %v4504
          %v7120 = vpop.f32.mrf.mxu0
          %v7121 = vadd.f32 %v7101, %v7120
          %7122 = vdwg.mxu0
          %7123 = vmatpush.xpose.msra.mxu0 0.0
          %7124 = vmatpush.xpose.msra.mxu0 0.0
          %7125 = vmatpush.xpose.msra.mxu0 0.0
          %7126 = vmatpush.xpose.msra.mxu0 0.0
          %7127 = vmatpush.xpose.msra.mxu0 0.0
          %7128 = vmatpush.xpose.msra.mxu0 0.0
          %7129 = vmatpush.xpose.msra.mxu0 0.0
          %7130 = vmatpush.xpose.msra.mxu0 0.0
          %7131 = vmatpush.xpose.msra.mxu0 0.0
          %7132 = vmatpush.xpose.msra.mxu0 0.0
          %7133 = vmatpush.xpose.msra.mxu0 0.0
          %7134 = vmatpush.xpose.msra.mxu0 0.0
          %7135 = vmatpush.xpose.msra.mxu0 0.0
          %7136 = vmatpush.xpose.msra.mxu0 0.0
          %7137 = vmatpush.xpose.msra.mxu0 %v5033
          %7138 = vmatpush.xpose.msra.mxu0 %v4901
          %7139 = vmatmul.f32.gmra.mxu0 %v4505
          %v7140 = vpop.f32.mrf.mxu0
          %v7141 = vadd.f32 %v7121, %v7140
          %7142 = vdwg.mxu0
          %7143 = vmatpush.xpose.msra.mxu0 0.0
          %7144 = vmatpush.xpose.msra.mxu0 0.0
          %7145 = vmatpush.xpose.msra.mxu0 0.0
          %7146 = vmatpush.xpose.msra.mxu0 0.0
          %7147 = vmatpush.xpose.msra.mxu0 0.0
          %7148 = vmatpush.xpose.msra.mxu0 0.0
          %7149 = vmatpush.xpose.msra.mxu0 0.0
          %7150 = vmatpush.xpose.msra.mxu0 0.0
          %7151 = vmatpush.xpose.msra.mxu0 0.0
          %7152 = vmatpush.xpose.msra.mxu0 0.0
          %7153 = vmatpush.xpose.msra.mxu0 0.0
          %7154 = vmatpush.xpose.msra.mxu0 0.0
          %7155 = vmatpush.xpose.msra.mxu0 0.0
          %7156 = vmatpush.xpose.msra.mxu0 0.0
          %7157 = vmatpush.xpose.msra.mxu0 %v5034
          %7158 = vmatpush.xpose.msra.mxu0 %v4902
          %7159 = vmatmul.f32.gmra.mxu0 %v4506
          %v7160 = vpop.f32.mrf.mxu0
          %v7161 = vadd.f32 %v7141, %v7160
          %7162 = vdwg.mxu0
          %7163 = vmatpush.xpose.msra.mxu0 0.0
          %7164 = vmatpush.xpose.msra.mxu0 0.0
          %7165 = vmatpush.xpose.msra.mxu0 0.0
          %7166 = vmatpush.xpose.msra.mxu0 0.0
          %7167 = vmatpush.xpose.msra.mxu0 0.0
          %7168 = vmatpush.xpose.msra.mxu0 0.0
          %7169 = vmatpush.xpose.msra.mxu0 0.0
          %7170 = vmatpush.xpose.msra.mxu0 0.0
          %7171 = vmatpush.xpose.msra.mxu0 0.0
          %7172 = vmatpush.xpose.msra.mxu0 0.0
          %7173 = vmatpush.xpose.msra.mxu0 0.0
          %7174 = vmatpush.xpose.msra.mxu0 0.0
          %7175 = vmatpush.xpose.msra.mxu0 0.0
          %7176 = vmatpush.xpose.msra.mxu0 0.0
          %7177 = vmatpush.xpose.msra.mxu0 %v5035
          %7178 = vmatpush.xpose.msra.mxu0 %v4903
          %7179 = vmatmul.f32.gmra.mxu0 %v4507
          %v7180 = vpop.f32.mrf.mxu0
          %v7181 = vadd.f32 %v7161, %v7180
          %7182 = vdwg.mxu0
          %7183 = vmatpush.xpose.msra.mxu0 0.0
          %7184 = vmatpush.xpose.msra.mxu0 0.0
          %7185 = vmatpush.xpose.msra.mxu0 0.0
          %7186 = vmatpush.xpose.msra.mxu0 0.0
          %7187 = vmatpush.xpose.msra.mxu0 0.0
          %7188 = vmatpush.xpose.msra.mxu0 0.0
          %7189 = vmatpush.xpose.msra.mxu0 0.0
          %7190 = vmatpush.xpose.msra.mxu0 0.0
          %7191 = vmatpush.xpose.msra.mxu0 0.0
          %7192 = vmatpush.xpose.msra.mxu0 0.0
          %7193 = vmatpush.xpose.msra.mxu0 0.0
          %7194 = vmatpush.xpose.msra.mxu0 0.0
          %7195 = vmatpush.xpose.msra.mxu0 0.0
          %7196 = vmatpush.xpose.msra.mxu0 0.0
          %7197 = vmatpush.xpose.msra.mxu0 %v5036
          %7198 = vmatpush.xpose.msra.mxu0 %v4904
          %7199 = vmatmul.f32.gmra.mxu0 %v4508
          %v7200 = vpop.f32.mrf.mxu0
          %v7201 = vadd.f32 %v7181, %v7200
          %7202 = vdwg.mxu0
          %7203 = vmatpush.xpose.msra.mxu0 0.0
          %7204 = vmatpush.xpose.msra.mxu0 0.0
          %7205 = vmatpush.xpose.msra.mxu0 0.0
          %7206 = vmatpush.xpose.msra.mxu0 0.0
          %7207 = vmatpush.xpose.msra.mxu0 0.0
          %7208 = vmatpush.xpose.msra.mxu0 0.0
          %7209 = vmatpush.xpose.msra.mxu0 0.0
          %7210 = vmatpush.xpose.msra.mxu0 0.0
          %7211 = vmatpush.xpose.msra.mxu0 0.0
          %7212 = vmatpush.xpose.msra.mxu0 0.0
          %7213 = vmatpush.xpose.msra.mxu0 0.0
          %7214 = vmatpush.xpose.msra.mxu0 0.0
          %7215 = vmatpush.xpose.msra.mxu0 0.0
          %7216 = vmatpush.xpose.msra.mxu0 0.0
          %7217 = vmatpush.xpose.msra.mxu0 %v5037
          %7218 = vmatpush.xpose.msra.mxu0 %v4905
          %7219 = vmatmul.f32.gmra.mxu0 %v4509
          %v7220 = vpop.f32.mrf.mxu0
          %v7221 = vadd.f32 %v7201, %v7220
          %7222 = vdwg.mxu0
          %7223 = vmatpush.xpose.msra.mxu0 0.0
          %7224 = vmatpush.xpose.msra.mxu0 0.0
          %7225 = vmatpush.xpose.msra.mxu0 0.0
          %7226 = vmatpush.xpose.msra.mxu0 0.0
          %7227 = vmatpush.xpose.msra.mxu0 0.0
          %7228 = vmatpush.xpose.msra.mxu0 0.0
          %7229 = vmatpush.xpose.msra.mxu0 0.0
          %7230 = vmatpush.xpose.msra.mxu0 0.0
          %7231 = vmatpush.xpose.msra.mxu0 0.0
          %7232 = vmatpush.xpose.msra.mxu0 0.0
          %7233 = vmatpush.xpose.msra.mxu0 0.0
          %7234 = vmatpush.xpose.msra.mxu0 0.0
          %7235 = vmatpush.xpose.msra.mxu0 0.0
          %7236 = vmatpush.xpose.msra.mxu0 0.0
          %7237 = vmatpush.xpose.msra.mxu0 %v5038
          %7238 = vmatpush.xpose.msra.mxu0 %v4906
          %7239 = vmatmul.f32.gmra.mxu0 %v4510
          %v7240 = vpop.f32.mrf.mxu0
          %v7241 = vadd.f32 %v7221, %v7240
          %7242 = vdwg.mxu0
          %7243 = vmatpush.xpose.msra.mxu0 0.0
          %7244 = vmatpush.xpose.msra.mxu0 0.0
          %7245 = vmatpush.xpose.msra.mxu0 0.0
          %7246 = vmatpush.xpose.msra.mxu0 0.0
          %7247 = vmatpush.xpose.msra.mxu0 0.0
          %7248 = vmatpush.xpose.msra.mxu0 0.0
          %7249 = vmatpush.xpose.msra.mxu0 0.0
          %7250 = vmatpush.xpose.msra.mxu0 0.0
          %7251 = vmatpush.xpose.msra.mxu0 0.0
          %7252 = vmatpush.xpose.msra.mxu0 0.0
          %7253 = vmatpush.xpose.msra.mxu0 0.0
          %7254 = vmatpush.xpose.msra.mxu0 0.0
          %7255 = vmatpush.xpose.msra.mxu0 0.0
          %7256 = vmatpush.xpose.msra.mxu0 0.0
          %7257 = vmatpush.xpose.msra.mxu0 %v5039
          %7258 = vmatpush.xpose.msra.mxu0 %v4907
          %7259 = vmatmul.f32.gmra.mxu0 %v4511
          %v7260 = vpop.f32.mrf.mxu0
          %v7261 = vadd.f32 %v7241, %v7260
          %7262 = vdwg.mxu0
          %7263 = vmatpush.xpose.msra.mxu0 0.0
          %7264 = vmatpush.xpose.msra.mxu0 0.0
          %7265 = vmatpush.xpose.msra.mxu0 0.0
          %7266 = vmatpush.xpose.msra.mxu0 0.0
          %7267 = vmatpush.xpose.msra.mxu0 0.0
          %7268 = vmatpush.xpose.msra.mxu0 0.0
          %7269 = vmatpush.xpose.msra.mxu0 0.0
          %7270 = vmatpush.xpose.msra.mxu0 0.0
          %7271 = vmatpush.xpose.msra.mxu0 0.0
          %7272 = vmatpush.xpose.msra.mxu0 0.0
          %7273 = vmatpush.xpose.msra.mxu0 0.0
          %7274 = vmatpush.xpose.msra.mxu0 0.0
          %7275 = vmatpush.xpose.msra.mxu0 0.0
          %7276 = vmatpush.xpose.msra.mxu0 0.0
          %7277 = vmatpush.xpose.msra.mxu0 %v5040
          %7278 = vmatpush.xpose.msra.mxu0 %v4908
          %7279 = vmatmul.f32.gmra.mxu0 %v4512
          %v7280 = vpop.f32.mrf.mxu0
          %v7281 = vadd.f32 %v7261, %v7280
          %7282 = vdwg.mxu0
          %7283 = vmatpush.xpose.msra.mxu0 0.0
          %7284 = vmatpush.xpose.msra.mxu0 0.0
          %7285 = vmatpush.xpose.msra.mxu0 0.0
          %7286 = vmatpush.xpose.msra.mxu0 0.0
          %7287 = vmatpush.xpose.msra.mxu0 0.0
          %7288 = vmatpush.xpose.msra.mxu0 0.0
          %7289 = vmatpush.xpose.msra.mxu0 0.0
          %7290 = vmatpush.xpose.msra.mxu0 0.0
          %7291 = vmatpush.xpose.msra.mxu0 0.0
          %7292 = vmatpush.xpose.msra.mxu0 0.0
          %7293 = vmatpush.xpose.msra.mxu0 0.0
          %7294 = vmatpush.xpose.msra.mxu0 0.0
          %7295 = vmatpush.xpose.msra.mxu0 0.0
          %7296 = vmatpush.xpose.msra.mxu0 0.0
          %7297 = vmatpush.xpose.msra.mxu0 %v5041
          %7298 = vmatpush.xpose.msra.mxu0 %v4909
          %7299 = vmatmul.f32.gmra.mxu0 %v4513
          %v7300 = vpop.f32.mrf.mxu0
          %v7301 = vadd.f32 %v7281, %v7300
          %7302 = vdwg.mxu0
          %7303 = vmatpush.xpose.msra.mxu0 0.0
          %7304 = vmatpush.xpose.msra.mxu0 0.0
          %7305 = vmatpush.xpose.msra.mxu0 0.0
          %7306 = vmatpush.xpose.msra.mxu0 0.0
          %7307 = vmatpush.xpose.msra.mxu0 0.0
          %7308 = vmatpush.xpose.msra.mxu0 0.0
          %7309 = vmatpush.xpose.msra.mxu0 0.0
          %7310 = vmatpush.xpose.msra.mxu0 0.0
          %7311 = vmatpush.xpose.msra.mxu0 0.0
          %7312 = vmatpush.xpose.msra.mxu0 0.0
          %7313 = vmatpush.xpose.msra.mxu0 0.0
          %7314 = vmatpush.xpose.msra.mxu0 0.0
          %7315 = vmatpush.xpose.msra.mxu0 0.0
          %7316 = vmatpush.xpose.msra.mxu0 0.0
          %7317 = vmatpush.xpose.msra.mxu0 %v5042
          %7318 = vmatpush.xpose.msra.mxu0 %v4910
          %7319 = vmatmul.f32.gmra.mxu0 %v4514
          %v7320 = vpop.f32.mrf.mxu0
          %v7321 = vadd.f32 %v7301, %v7320
          %7322 = vdwg.mxu0
          %7323 = vmatpush.xpose.msra.mxu0 0.0
          %7324 = vmatpush.xpose.msra.mxu0 0.0
          %7325 = vmatpush.xpose.msra.mxu0 0.0
          %7326 = vmatpush.xpose.msra.mxu0 0.0
          %7327 = vmatpush.xpose.msra.mxu0 0.0
          %7328 = vmatpush.xpose.msra.mxu0 0.0
          %7329 = vmatpush.xpose.msra.mxu0 0.0
          %7330 = vmatpush.xpose.msra.mxu0 0.0
          %7331 = vmatpush.xpose.msra.mxu0 0.0
          %7332 = vmatpush.xpose.msra.mxu0 0.0
          %7333 = vmatpush.xpose.msra.mxu0 0.0
          %7334 = vmatpush.xpose.msra.mxu0 0.0
          %7335 = vmatpush.xpose.msra.mxu0 0.0
          %7336 = vmatpush.xpose.msra.mxu0 0.0
          %7337 = vmatpush.xpose.msra.mxu0 %v5043
          %7338 = vmatpush.xpose.msra.mxu0 %v4911
          %7339 = vmatmul.f32.gmra.mxu0 %v4515
          %v7340 = vpop.f32.mrf.mxu0
          %v7341 = vadd.f32 %v7321, %v7340
          %7342 = vdwg.mxu0
          %7343 = vmatpush.xpose.msra.mxu0 0.0
          %7344 = vmatpush.xpose.msra.mxu0 0.0
          %7345 = vmatpush.xpose.msra.mxu0 0.0
          %7346 = vmatpush.xpose.msra.mxu0 0.0
          %7347 = vmatpush.xpose.msra.mxu0 0.0
          %7348 = vmatpush.xpose.msra.mxu0 0.0
          %7349 = vmatpush.xpose.msra.mxu0 0.0
          %7350 = vmatpush.xpose.msra.mxu0 0.0
          %7351 = vmatpush.xpose.msra.mxu0 0.0
          %7352 = vmatpush.xpose.msra.mxu0 0.0
          %7353 = vmatpush.xpose.msra.mxu0 0.0
          %7354 = vmatpush.xpose.msra.mxu0 0.0
          %7355 = vmatpush.xpose.msra.mxu0 0.0
          %7356 = vmatpush.xpose.msra.mxu0 0.0
          %7357 = vmatpush.xpose.msra.mxu0 %v5044
          %7358 = vmatpush.xpose.msra.mxu0 %v4912
          %7359 = vmatmul.f32.gmra.mxu0 %v4516
          %v7360 = vpop.f32.mrf.mxu0
          %v7361 = vadd.f32 %v7341, %v7360
          %7362 = vdwg.mxu0
          %7363 = vmatpush.xpose.msra.mxu0 0.0
          %7364 = vmatpush.xpose.msra.mxu0 0.0
          %7365 = vmatpush.xpose.msra.mxu0 0.0
          %7366 = vmatpush.xpose.msra.mxu0 0.0
          %7367 = vmatpush.xpose.msra.mxu0 0.0
          %7368 = vmatpush.xpose.msra.mxu0 0.0
          %7369 = vmatpush.xpose.msra.mxu0 0.0
          %7370 = vmatpush.xpose.msra.mxu0 0.0
          %7371 = vmatpush.xpose.msra.mxu0 0.0
          %7372 = vmatpush.xpose.msra.mxu0 0.0
          %7373 = vmatpush.xpose.msra.mxu0 0.0
          %7374 = vmatpush.xpose.msra.mxu0 0.0
          %7375 = vmatpush.xpose.msra.mxu0 0.0
          %7376 = vmatpush.xpose.msra.mxu0 0.0
          %7377 = vmatpush.xpose.msra.mxu0 %v5045
          %7378 = vmatpush.xpose.msra.mxu0 %v4913
          %7379 = vmatmul.f32.gmra.mxu0 %v4517
          %v7380 = vpop.f32.mrf.mxu0
          %v7381 = vadd.f32 %v7361, %v7380
          %7382 = vdwg.mxu0
          %7383 = vmatpush.xpose.msra.mxu0 0.0
          %7384 = vmatpush.xpose.msra.mxu0 0.0
          %7385 = vmatpush.xpose.msra.mxu0 0.0
          %7386 = vmatpush.xpose.msra.mxu0 0.0
          %7387 = vmatpush.xpose.msra.mxu0 0.0
          %7388 = vmatpush.xpose.msra.mxu0 0.0
          %7389 = vmatpush.xpose.msra.mxu0 0.0
          %7390 = vmatpush.xpose.msra.mxu0 0.0
          %7391 = vmatpush.xpose.msra.mxu0 0.0
          %7392 = vmatpush.xpose.msra.mxu0 0.0
          %7393 = vmatpush.xpose.msra.mxu0 0.0
          %7394 = vmatpush.xpose.msra.mxu0 0.0
          %7395 = vmatpush.xpose.msra.mxu0 0.0
          %7396 = vmatpush.xpose.msra.mxu0 0.0
          %7397 = vmatpush.xpose.msra.mxu0 %v5046
          %7398 = vmatpush.xpose.msra.mxu0 %v4914
          %7399 = vmatmul.f32.gmra.mxu0 %v4518
          %v7400 = vpop.f32.mrf.mxu0
          %v7401 = vadd.f32 %v7381, %v7400
          %7402 = vdwg.mxu0
          %7403 = vmatpush.xpose.msra.mxu0 0.0
          %7404 = vmatpush.xpose.msra.mxu0 0.0
          %7405 = vmatpush.xpose.msra.mxu0 0.0
          %7406 = vmatpush.xpose.msra.mxu0 0.0
          %7407 = vmatpush.xpose.msra.mxu0 0.0
          %7408 = vmatpush.xpose.msra.mxu0 0.0
          %7409 = vmatpush.xpose.msra.mxu0 0.0
          %7410 = vmatpush.xpose.msra.mxu0 0.0
          %7411 = vmatpush.xpose.msra.mxu0 0.0
          %7412 = vmatpush.xpose.msra.mxu0 0.0
          %7413 = vmatpush.xpose.msra.mxu0 0.0
          %7414 = vmatpush.xpose.msra.mxu0 0.0
          %7415 = vmatpush.xpose.msra.mxu0 0.0
          %7416 = vmatpush.xpose.msra.mxu0 0.0
          %7417 = vmatpush.xpose.msra.mxu0 %v5047
          %7418 = vmatpush.xpose.msra.mxu0 %v4915
          %7419 = vmatmul.f32.gmra.mxu0 %v4519
          %v7420 = vpop.f32.mrf.mxu0
          %v7421 = vadd.f32 %v7401, %v7420
          %7422 = vdwg.mxu0
          %7423 = vmatpush.xpose.msra.mxu0 0.0
          %7424 = vmatpush.xpose.msra.mxu0 0.0
          %7425 = vmatpush.xpose.msra.mxu0 0.0
          %7426 = vmatpush.xpose.msra.mxu0 0.0
          %7427 = vmatpush.xpose.msra.mxu0 0.0
          %7428 = vmatpush.xpose.msra.mxu0 0.0
          %7429 = vmatpush.xpose.msra.mxu0 0.0
          %7430 = vmatpush.xpose.msra.mxu0 0.0
          %7431 = vmatpush.xpose.msra.mxu0 0.0
          %7432 = vmatpush.xpose.msra.mxu0 0.0
          %7433 = vmatpush.xpose.msra.mxu0 0.0
          %7434 = vmatpush.xpose.msra.mxu0 0.0
          %7435 = vmatpush.xpose.msra.mxu0 0.0
          %7436 = vmatpush.xpose.msra.mxu0 0.0
          %7437 = vmatpush.xpose.msra.mxu0 %v5048
          %7438 = vmatpush.xpose.msra.mxu0 %v4916
          %7439 = vmatmul.f32.gmra.mxu0 %v4520
          %v7440 = vpop.f32.mrf.mxu0
          %v7441 = vadd.f32 %v7421, %v7440
          %7442 = vdwg.mxu0
          %7443 = vmatpush.xpose.msra.mxu0 0.0
          %7444 = vmatpush.xpose.msra.mxu0 0.0
          %7445 = vmatpush.xpose.msra.mxu0 0.0
          %7446 = vmatpush.xpose.msra.mxu0 0.0
          %7447 = vmatpush.xpose.msra.mxu0 0.0
          %7448 = vmatpush.xpose.msra.mxu0 0.0
          %7449 = vmatpush.xpose.msra.mxu0 0.0
          %7450 = vmatpush.xpose.msra.mxu0 0.0
          %7451 = vmatpush.xpose.msra.mxu0 0.0
          %7452 = vmatpush.xpose.msra.mxu0 0.0
          %7453 = vmatpush.xpose.msra.mxu0 0.0
          %7454 = vmatpush.xpose.msra.mxu0 0.0
          %7455 = vmatpush.xpose.msra.mxu0 0.0
          %7456 = vmatpush.xpose.msra.mxu0 0.0
          %7457 = vmatpush.xpose.msra.mxu0 %v5049
          %7458 = vmatpush.xpose.msra.mxu0 %v4917
          %7459 = vmatmul.f32.gmra.mxu0 %v4521
          %v7460 = vpop.f32.mrf.mxu0
          %v7461 = vadd.f32 %v7441, %v7460
          %7462 = vdwg.mxu0
          %7463 = vmatpush.xpose.msra.mxu0 0.0
          %7464 = vmatpush.xpose.msra.mxu0 0.0
          %7465 = vmatpush.xpose.msra.mxu0 0.0
          %7466 = vmatpush.xpose.msra.mxu0 0.0
          %7467 = vmatpush.xpose.msra.mxu0 0.0
          %7468 = vmatpush.xpose.msra.mxu0 0.0
          %7469 = vmatpush.xpose.msra.mxu0 0.0
          %7470 = vmatpush.xpose.msra.mxu0 0.0
          %7471 = vmatpush.xpose.msra.mxu0 0.0
          %7472 = vmatpush.xpose.msra.mxu0 0.0
          %7473 = vmatpush.xpose.msra.mxu0 0.0
          %7474 = vmatpush.xpose.msra.mxu0 0.0
          %7475 = vmatpush.xpose.msra.mxu0 0.0
          %7476 = vmatpush.xpose.msra.mxu0 0.0
          %7477 = vmatpush.xpose.msra.mxu0 %v5050
          %7478 = vmatpush.xpose.msra.mxu0 %v4918
          %7479 = vmatmul.f32.gmra.mxu0 %v4522
          %v7480 = vpop.f32.mrf.mxu0
          %v7481 = vadd.f32 %v7461, %v7480
          %7482 = vdwg.mxu0
          %7483 = vmatpush.xpose.msra.mxu0 0.0
          %7484 = vmatpush.xpose.msra.mxu0 0.0
          %7485 = vmatpush.xpose.msra.mxu0 0.0
          %7486 = vmatpush.xpose.msra.mxu0 0.0
          %7487 = vmatpush.xpose.msra.mxu0 0.0
          %7488 = vmatpush.xpose.msra.mxu0 0.0
          %7489 = vmatpush.xpose.msra.mxu0 0.0
          %7490 = vmatpush.xpose.msra.mxu0 0.0
          %7491 = vmatpush.xpose.msra.mxu0 0.0
          %7492 = vmatpush.xpose.msra.mxu0 0.0
          %7493 = vmatpush.xpose.msra.mxu0 0.0
          %7494 = vmatpush.xpose.msra.mxu0 0.0
          %7495 = vmatpush.xpose.msra.mxu0 0.0
          %7496 = vmatpush.xpose.msra.mxu0 0.0
          %7497 = vmatpush.xpose.msra.mxu0 %v5051
          %7498 = vmatpush.xpose.msra.mxu0 %v4919
          %7499 = vmatmul.f32.gmra.mxu0 %v4523
          %v7500 = vpop.f32.mrf.mxu0
          %v7501 = vadd.f32 %v7481, %v7500
          %7502 = vdwg.mxu0
          %7503 = vmatpush.xpose.msra.mxu0 0.0
          %7504 = vmatpush.xpose.msra.mxu0 0.0
          %7505 = vmatpush.xpose.msra.mxu0 0.0
          %7506 = vmatpush.xpose.msra.mxu0 0.0
          %7507 = vmatpush.xpose.msra.mxu0 0.0
          %7508 = vmatpush.xpose.msra.mxu0 0.0
          %7509 = vmatpush.xpose.msra.mxu0 0.0
          %7510 = vmatpush.xpose.msra.mxu0 0.0
          %7511 = vmatpush.xpose.msra.mxu0 0.0
          %7512 = vmatpush.xpose.msra.mxu0 0.0
          %7513 = vmatpush.xpose.msra.mxu0 0.0
          %7514 = vmatpush.xpose.msra.mxu0 0.0
          %7515 = vmatpush.xpose.msra.mxu0 0.0
          %7516 = vmatpush.xpose.msra.mxu0 0.0
          %7517 = vmatpush.xpose.msra.mxu0 %v5052
          %7518 = vmatpush.xpose.msra.mxu0 %v4920
          %7519 = vmatmul.f32.gmra.mxu0 %v4524
          %v7520 = vpop.f32.mrf.mxu0
          %v7521 = vadd.f32 %v7501, %v7520
          %7522 = vdwg.mxu0
          %7523 = vmatpush.xpose.msra.mxu0 0.0
          %7524 = vmatpush.xpose.msra.mxu0 0.0
          %7525 = vmatpush.xpose.msra.mxu0 0.0
          %7526 = vmatpush.xpose.msra.mxu0 0.0
          %7527 = vmatpush.xpose.msra.mxu0 0.0
          %7528 = vmatpush.xpose.msra.mxu0 0.0
          %7529 = vmatpush.xpose.msra.mxu0 0.0
          %7530 = vmatpush.xpose.msra.mxu0 0.0
          %7531 = vmatpush.xpose.msra.mxu0 0.0
          %7532 = vmatpush.xpose.msra.mxu0 0.0
          %7533 = vmatpush.xpose.msra.mxu0 0.0
          %7534 = vmatpush.xpose.msra.mxu0 0.0
          %7535 = vmatpush.xpose.msra.mxu0 0.0
          %7536 = vmatpush.xpose.msra.mxu0 0.0
          %7537 = vmatpush.xpose.msra.mxu0 %v5053
          %7538 = vmatpush.xpose.msra.mxu0 %v4921
          %7539 = vmatmul.f32.gmra.mxu0 %v4525
          %v7540 = vpop.f32.mrf.mxu0
          %v7541 = vadd.f32 %v7521, %v7540
          %7542 = vdwg.mxu0
          %7543 = vmatpush.xpose.msra.mxu0 0.0
          %7544 = vmatpush.xpose.msra.mxu0 0.0
          %7545 = vmatpush.xpose.msra.mxu0 0.0
          %7546 = vmatpush.xpose.msra.mxu0 0.0
          %7547 = vmatpush.xpose.msra.mxu0 0.0
          %7548 = vmatpush.xpose.msra.mxu0 0.0
          %7549 = vmatpush.xpose.msra.mxu0 0.0
          %7550 = vmatpush.xpose.msra.mxu0 0.0
          %7551 = vmatpush.xpose.msra.mxu0 0.0
          %7552 = vmatpush.xpose.msra.mxu0 0.0
          %7553 = vmatpush.xpose.msra.mxu0 0.0
          %7554 = vmatpush.xpose.msra.mxu0 0.0
          %7555 = vmatpush.xpose.msra.mxu0 0.0
          %7556 = vmatpush.xpose.msra.mxu0 0.0
          %7557 = vmatpush.xpose.msra.mxu0 %v5054
          %7558 = vmatpush.xpose.msra.mxu0 %v4922
          %7559 = vmatmul.f32.gmra.mxu0 %v4526
          %v7560 = vpop.f32.mrf.mxu0
          %v7561 = vadd.f32 %v7541, %v7560
          %7562 = vdwg.mxu0
          %7563 = vmatpush.xpose.msra.mxu0 0.0
          %7564 = vmatpush.xpose.msra.mxu0 0.0
          %7565 = vmatpush.xpose.msra.mxu0 0.0
          %7566 = vmatpush.xpose.msra.mxu0 0.0
          %7567 = vmatpush.xpose.msra.mxu0 0.0
          %7568 = vmatpush.xpose.msra.mxu0 0.0
          %7569 = vmatpush.xpose.msra.mxu0 0.0
          %7570 = vmatpush.xpose.msra.mxu0 0.0
          %7571 = vmatpush.xpose.msra.mxu0 0.0
          %7572 = vmatpush.xpose.msra.mxu0 0.0
          %7573 = vmatpush.xpose.msra.mxu0 0.0
          %7574 = vmatpush.xpose.msra.mxu0 0.0
          %7575 = vmatpush.xpose.msra.mxu0 0.0
          %7576 = vmatpush.xpose.msra.mxu0 0.0
          %7577 = vmatpush.xpose.msra.mxu0 %v5055
          %7578 = vmatpush.xpose.msra.mxu0 %v4923
          %7579 = vmatmul.f32.gmra.mxu0 %v4527
          %v7580 = vpop.f32.mrf.mxu0
          %v7581 = vadd.f32 %v7561, %v7580
          %7582 = vdwg.mxu0
          %7583 = vmatpush.xpose.msra.mxu0 0.0
          %7584 = vmatpush.xpose.msra.mxu0 0.0
          %7585 = vmatpush.xpose.msra.mxu0 0.0
          %7586 = vmatpush.xpose.msra.mxu0 0.0
          %7587 = vmatpush.xpose.msra.mxu0 0.0
          %7588 = vmatpush.xpose.msra.mxu0 0.0
          %7589 = vmatpush.xpose.msra.mxu0 0.0
          %7590 = vmatpush.xpose.msra.mxu0 0.0
          %7591 = vmatpush.xpose.msra.mxu0 0.0
          %7592 = vmatpush.xpose.msra.mxu0 0.0
          %7593 = vmatpush.xpose.msra.mxu0 0.0
          %7594 = vmatpush.xpose.msra.mxu0 0.0
          %7595 = vmatpush.xpose.msra.mxu0 0.0
          %7596 = vmatpush.xpose.msra.mxu0 0.0
          %7597 = vmatpush.xpose.msra.mxu0 %v5056
          %7598 = vmatpush.xpose.msra.mxu0 %v4924
          %7599 = vmatmul.f32.gmra.mxu0 %v4528
          %v7600 = vpop.f32.mrf.mxu0
          %v7601 = vadd.f32 %v7581, %v7600
          %7602 = vdwg.mxu0
          %7603 = vmatpush.xpose.msra.mxu0 0.0
          %7604 = vmatpush.xpose.msra.mxu0 0.0
          %7605 = vmatpush.xpose.msra.mxu0 0.0
          %7606 = vmatpush.xpose.msra.mxu0 0.0
          %7607 = vmatpush.xpose.msra.mxu0 0.0
          %7608 = vmatpush.xpose.msra.mxu0 0.0
          %7609 = vmatpush.xpose.msra.mxu0 0.0
          %7610 = vmatpush.xpose.msra.mxu0 0.0
          %7611 = vmatpush.xpose.msra.mxu0 0.0
          %7612 = vmatpush.xpose.msra.mxu0 0.0
          %7613 = vmatpush.xpose.msra.mxu0 0.0
          %7614 = vmatpush.xpose.msra.mxu0 0.0
          %7615 = vmatpush.xpose.msra.mxu0 0.0
          %7616 = vmatpush.xpose.msra.mxu0 0.0
          %7617 = vmatpush.xpose.msra.mxu0 %v5057
          %7618 = vmatpush.xpose.msra.mxu0 %v4925
          %7619 = vmatmul.f32.gmra.mxu0 %v4529
          %v7620 = vpop.f32.mrf.mxu0
          %v7621 = vadd.f32 %v7601, %v7620
          %7622 = vdwg.mxu0
          %7623 = vmatpush.xpose.msra.mxu0 0.0
          %7624 = vmatpush.xpose.msra.mxu0 0.0
          %7625 = vmatpush.xpose.msra.mxu0 0.0
          %7626 = vmatpush.xpose.msra.mxu0 0.0
          %7627 = vmatpush.xpose.msra.mxu0 0.0
          %7628 = vmatpush.xpose.msra.mxu0 0.0
          %7629 = vmatpush.xpose.msra.mxu0 0.0
          %7630 = vmatpush.xpose.msra.mxu0 0.0
          %7631 = vmatpush.xpose.msra.mxu0 0.0
          %7632 = vmatpush.xpose.msra.mxu0 0.0
          %7633 = vmatpush.xpose.msra.mxu0 0.0
          %7634 = vmatpush.xpose.msra.mxu0 0.0
          %7635 = vmatpush.xpose.msra.mxu0 0.0
          %7636 = vmatpush.xpose.msra.mxu0 0.0
          %7637 = vmatpush.xpose.msra.mxu0 %v5058
          %7638 = vmatpush.xpose.msra.mxu0 %v4926
          %7639 = vmatmul.f32.gmra.mxu0 %v4530
          %v7640 = vpop.f32.mrf.mxu0
          %v7641 = vadd.f32 %v7621, %v7640
          %7642 = vdwg.mxu0
          %7643 = vmatpush.xpose.msra.mxu0 0.0
          %7644 = vmatpush.xpose.msra.mxu0 0.0
          %7645 = vmatpush.xpose.msra.mxu0 0.0
          %7646 = vmatpush.xpose.msra.mxu0 0.0
          %7647 = vmatpush.xpose.msra.mxu0 0.0
          %7648 = vmatpush.xpose.msra.mxu0 0.0
          %7649 = vmatpush.xpose.msra.mxu0 0.0
          %7650 = vmatpush.xpose.msra.mxu0 0.0
          %7651 = vmatpush.xpose.msra.mxu0 0.0
          %7652 = vmatpush.xpose.msra.mxu0 0.0
          %7653 = vmatpush.xpose.msra.mxu0 0.0
          %7654 = vmatpush.xpose.msra.mxu0 0.0
          %7655 = vmatpush.xpose.msra.mxu0 0.0
          %7656 = vmatpush.xpose.msra.mxu0 0.0
          %7657 = vmatpush.xpose.msra.mxu0 %v5059
          %7658 = vmatpush.xpose.msra.mxu0 %v4927
          %7659 = vmatmul.f32.gmra.mxu0 %v4531
          %v7660 = vpop.f32.mrf.mxu0
          %v7661 = vadd.f32 %v7641, %v7660
          %7662 = vdwg.mxu0
          %7663 = vmatpush.xpose.msra.mxu0 0.0
          %7664 = vmatpush.xpose.msra.mxu0 0.0
          %7665 = vmatpush.xpose.msra.mxu0 0.0
          %7666 = vmatpush.xpose.msra.mxu0 0.0
          %7667 = vmatpush.xpose.msra.mxu0 0.0
          %7668 = vmatpush.xpose.msra.mxu0 0.0
          %7669 = vmatpush.xpose.msra.mxu0 0.0
          %7670 = vmatpush.xpose.msra.mxu0 0.0
          %7671 = vmatpush.xpose.msra.mxu0 0.0
          %7672 = vmatpush.xpose.msra.mxu0 0.0
          %7673 = vmatpush.xpose.msra.mxu0 0.0
          %7674 = vmatpush.xpose.msra.mxu0 0.0
          %7675 = vmatpush.xpose.msra.mxu0 0.0
          %7676 = vmatpush.xpose.msra.mxu0 0.0
          %7677 = vmatpush.xpose.msra.mxu0 %v5060
          %7678 = vmatpush.xpose.msra.mxu0 %v4928
          %7679 = vmatmul.f32.gmra.mxu0 %v4532
          %v7680 = vpop.f32.mrf.mxu0
          %v7681 = vadd.f32 %v7661, %v7680
          %7682 = vdwg.mxu0
          %7683 = vmatpush.xpose.msra.mxu0 0.0
          %7684 = vmatpush.xpose.msra.mxu0 0.0
          %7685 = vmatpush.xpose.msra.mxu0 0.0
          %7686 = vmatpush.xpose.msra.mxu0 0.0
          %7687 = vmatpush.xpose.msra.mxu0 0.0
          %7688 = vmatpush.xpose.msra.mxu0 0.0
          %7689 = vmatpush.xpose.msra.mxu0 0.0
          %7690 = vmatpush.xpose.msra.mxu0 0.0
          %7691 = vmatpush.xpose.msra.mxu0 0.0
          %7692 = vmatpush.xpose.msra.mxu0 0.0
          %7693 = vmatpush.xpose.msra.mxu0 0.0
          %7694 = vmatpush.xpose.msra.mxu0 0.0
          %7695 = vmatpush.xpose.msra.mxu0 0.0
          %7696 = vmatpush.xpose.msra.mxu0 0.0
          %7697 = vmatpush.xpose.msra.mxu0 %v5061
          %7698 = vmatpush.xpose.msra.mxu0 %v4929
          %7699 = vmatmul.f32.gmra.mxu0 %v4533
          %v7700 = vpop.f32.mrf.mxu0
          %v7701 = vadd.f32 %v7681, %v7700
          %7702 = vdwg.mxu0
          %v7703 = vadd.f32 %v5062, %v7701
          %vm7704 = vcmask 115712
          %7705 = vst.msk [vmem:[%s220] sm:$0x3] %vm7704, %v7703
        $region44: #{svm_forward.1} parent=27 // pred_fallthru
          _
        %p7706 = scmp.lt.s32.totalorder %s20, 1
        %s7707 = scalar_select %p7706, %s20, 1
        %s7708 = smul.addr %s7707, 2
        %s7709 = scalar_lea.vmem %s2, %s7708
        // Predicated region
        $region45: #{svm_forward.1} parent=27 // pred_check
          %p7710 = pneg %p106
        $region46: #{svm_forward.1} parent=27 // pred_check_branch
          %7712 = sbr.rel (%p7710) target = $region48
        $region47: #{svm_forward.1} parent=27 // pred_region
          _
        $region48: #{svm_forward.1} parent=27 // pred_fallthru
          _
      $region28: #{svm_forward.1} parent=5 // pred_fallthru
        _
      %p7713 = scmp.le.s32.totalorder 2, %s11
      // Predicated region
      $region49: #{svm_forward.1} parent=5 // pred_check
        %p7714 = pneg %p7713
      $region50: #{svm_forward.1} parent=5 // pred_check_branch
        %7716 = sbr.rel (%p7714) target = $region52
      $region51: #{svm_forward.1} parent=5 // pred_region
        %s7717 = ssub.s32 %s11, 2
        // Predicated region
        $region53: #{svm_forward.1} parent=51 // pred_check
          %p7718 = pneg %p112
        $region54: #{svm_forward.1} parent=51 // pred_check_branch
          %7720 = sbr.rel (%p7718) target = $region56
        $region55: #{svm_forward.1} parent=51 // pred_region
          %p7721 = scmp.lt.s32.totalorder %s22, 1
          %s7722 = scalar_select %p7721, %s22, 1
          %s7723 = smul.addr %s7722, 2
          %s7724 = scalar_lea.vmem %s2, %s7723
        $region56: #{svm_forward.1} parent=51 // pred_fallthru
          _
      $region52: #{svm_forward.1} parent=5 // pred_fallthru
        _
    $region6: #{svm_forward.1} parent=1 // loop_footer
      %s15 = sadd.s32 1, %s11
    $region7: #{svm_forward.1} parent=1 // loop_footer_branch
      %10 = sbr.rel target = $region3
    $region8: #{svm_forward.1} parent=1 // loop_exit
      _
    %7725 = vsyncpa [#allocation3], 1
    %s7726 = scalar_lea.sflag [#allocation3], 1
    %7727 = vsyncpa %s7726, 1

</llo_original>
